<compile_context>
chip_gen: v7x
topology: tpu7x:2x2x1
jax: 0.10.0
libtpu: 0.0.40
codegen_flags: <defaults>
</compile_context>

<pallas_src>
import jax
import jax.numpy as jnp
from jax import lax
from jax.experimental import pallas as pl
from jax.experimental.pallas import tpu as pltpu

# Problem sizes (from the PyTorch module)
C = 144
H = W = 14
KH = KW = 5
PAD = 2
HP = H + 2 * PAD                    # 18 padded rows
R_STRIP = 2                         # output rows per strip -> acc is (2, 14, 144) ~ 8 vregs
N_STRIPS = H // R_STRIP             # 7
ROWS_PER_STRIP = R_STRIP + KH - 1   # 6 shifted input rows feed one strip


def dwconv5x5_kernel(x_ref, w_ref, o_ref, xshift_ref, wb_ref):
    """Depthwise 5x5 conv, stride 1, pad 2, channels-last, single invocation.

    x_ref      : (H, W, C)        unpadded input (padding folded into the kernel)
    w_ref      : (KW*KH, C)       taps, kw-major: index = kw*KH + kh
    o_ref      : (H, W, C)        output
    xshift_ref : (KW, HP, W, C)   scratch: zero-padded, kw-shifted input copies
    wb_ref     : (KW*KH, W, C)    scratch: taps pre-broadcast across the W (sublane) axis
    """
    # ---- one-time setup --------------------------------------------------
    # Broadcast every tap across W once so hot-loop tap loads are aligned full slabs.
    wb_ref[...] = jnp.broadcast_to(w_ref[...][:, None, :], (KW * KH, W, C))

    # Build the zero-padded, kw-shifted input copies directly from the unpadded input:
    #   xshift[kw, r, wo, :] = x_pad[r, wo + kw, :]
    xshift_ref[...] = jnp.zeros((KW, HP, W, C), jnp.float32)
    for kw in range(KW):
        wo_lo = max(0, PAD - kw)
        wo_hi = min(W, W + PAD - kw)
        src_lo = wo_lo + kw - PAD
        src_hi = wo_hi + kw - PAD
        xshift_ref[kw, PAD:PAD + H, wo_lo:wo_hi, :] = x_ref[:, src_lo:src_hi, :]

    # ---- hot loop: strip-mined, register-resident f32 accumulator ---------
    def strip_body(s, carry):
        r0 = s * R_STRIP
        acc = jnp.zeros((R_STRIP, W, C), jnp.float32)
        for kw in range(KW):
            # Aligned loads only: 6 shifted rows + the 5 taps of this kw column.
            rows = xshift_ref[kw, pl.ds(r0, ROWS_PER_STRIP), :, :]    # (6, W, C)
            taps = wb_ref[kw * KH:(kw + 1) * KH]                      # (KH, W, C)
            for kh in range(KH):
                # rows[kh:kh+2] / taps[kh] are in-register value slices (free).
                acc = acc + rows[kh:kh + R_STRIP] * taps[kh]
        o_ref[pl.ds(r0, R_STRIP), :, :] = acc
        return carry

    lax.fori_loop(0, N_STRIPS, strip_body, 0, unroll=True)


@jax.jit
def depthwise_conv2d_pallas(x_nchw, w_oihw):
    """x_nchw: (1, C, H, W) f32; w_oihw: (C, 1, KH, KW) f32 -> (1, C, H, W) f32."""
    # NCHW -> HWC (batch = 1). No padding here: the kernel folds the zero-pad.
    x_hwc = jnp.transpose(x_nchw[0], (1, 2, 0))                       # (H, W, C)
    # (C, 1, KH, KW) -> (KW*KH, C) in kw-major order: index = kw*KH + kh
    w_kwmajor = jnp.transpose(w_oihw[:, 0], (2, 1, 0)).reshape(KW * KH, C)

    out_hwc = pl.pallas_call(
        dwconv5x5_kernel,
        out_shape=jax.ShapeDtypeStruct((H, W, C), jnp.float32),
        in_specs=[
            pl.BlockSpec((H, W, C), lambda: (0, 0, 0)),
            pl.BlockSpec((KW * KH, C), lambda: (0, 0)),
        ],
        out_specs=pl.BlockSpec((H, W, C), lambda: (0, 0, 0)),
        scratch_shapes=[
            pltpu.VMEM((KW, HP, W, C), jnp.float32),    # kw-shifted padded input
            pltpu.VMEM((KW * KH, W, C), jnp.float32),   # W-broadcast taps
        ],
    )(x_hwc, w_kwmajor)

    # HWC -> NCHW
    return jnp.transpose(out_hwc, (2, 0, 1))[None, ...]               # (1, C, H, W)


def reference_conv(x_nchw, w_oihw):
    """Pure-JAX reference: grouped (depthwise) conv, NCHW."""
    return lax.conv_general_dilated(
        x_nchw, w_oihw,
        window_strides=(1, 1),
        padding=((PAD, PAD), (PAD, PAD)),
        dimension_numbers=("NCHW", "OIHW", "NCHW"),
        feature_group_count=C,
        precision=lax.Precision.HIGHEST,
    )


if __name__ == "__main__":
    key = jax.random.PRNGKey(0)
    kx, kw_key = jax.random.split(key)

    # Deterministic synthetic input / weights (shapes from the module).
    x92 = jax.random.normal(kx, (1, C, H, W), dtype=jnp.float32)
    w = jax.random.normal(kw_key, (C, 1, KH, KW), dtype=jnp.float32) * 0.1

    out = jax.block_until_ready(depthwise_conv2d_pallas(x92, w))
    ref = jax.block_until_ready(reference_conv(x92, w))

    assert out.shape == (1, C, H, W)
    assert jnp.allclose(out, ref, atol=1e-4, rtol=1e-4), float(jnp.max(jnp.abs(out - ref)))

    print("KERNEL_OK")
</pallas_src>

<mosaic_0001>
module attributes {stable_mosaic.version = 11 : i64} {
  func.func @dwconv5x5_kernel(%arg0: memref<14x14x144xf32, #tpu.memory_space<vmem>>, %arg1: memref<25x144xf32, #tpu.memory_space<vmem>>, %arg2: memref<14x14x144xf32, #tpu.memory_space<vmem>>, %arg3: memref<5x18x14x144xf32, #tpu.memory_space<vmem>>, %arg4: memref<25x14x144xf32, #tpu.memory_space<vmem>>) attributes {dimension_semantics = [], scalar_prefetch = 0 : i64, scratch_operands = 2 : i64, tpu.core_type = #tpu.core_type<tc>} {
    %c0 = arith.constant 0 : index
    %c0_0 = arith.constant 0 : index
    %0 = vector.load %arg1[%c0, %c0_0] : memref<25x144xf32, #tpu.memory_space<vmem>>, vector<25x144xf32>
    %1 = vector.shape_cast %0 : vector<25x144xf32> to vector<25x1x144xf32>
    %2 = vector.shape_cast %1 : vector<25x1x144xf32> to vector<25x1x144xf32>
    %3 = vector.broadcast %2 : vector<25x1x144xf32> to vector<25x14x144xf32>
    %c0_1 = arith.constant 0 : index
    %c0_2 = arith.constant 0 : index
    %c0_3 = arith.constant 0 : index
    %4 = vector.load %arg4[%c0_1, %c0_2, %c0_3] : memref<25x14x144xf32, #tpu.memory_space<vmem>>, vector<25x14x144xf32>
    tpu.vector_store %arg4[%c0_1, %c0_2, %c0_3], %3 {strides = array<i32>} : memref<25x14x144xf32, #tpu.memory_space<vmem>>, vector<25x14x144xf32>,
    %cst = arith.constant 0.000000e+00 : f32
    %5 = vector.broadcast %cst : f32 to vector<5x18x14x144xf32>
    %c0_4 = arith.constant 0 : index
    %c0_5 = arith.constant 0 : index
    %c0_6 = arith.constant 0 : index
    %c0_7 = arith.constant 0 : index
    %6 = vector.load %arg3[%c0_4, %c0_5, %c0_6, %c0_7] : memref<5x18x14x144xf32, #tpu.memory_space<vmem>>, vector<5x18x14x144xf32>
    tpu.vector_store %arg3[%c0_4, %c0_5, %c0_6, %c0_7], %5 {strides = array<i32>} : memref<5x18x14x144xf32, #tpu.memory_space<vmem>>, vector<5x18x14x144xf32>,
    %c0_8 = arith.constant 0 : index
    %c0_9 = arith.constant 0 : index
    %c0_10 = arith.constant 0 : index
    %7 = vector.load %arg0[%c0_8, %c0_9, %c0_10] : memref<14x14x144xf32, #tpu.memory_space<vmem>>, vector<14x12x144xf32>
    %c0_11 = arith.constant 0 : index
    %c2 = arith.constant 2 : index
    %c2_12 = arith.constant 2 : index
    %c0_13 = arith.constant 0 : index
    %8 = vector.load %arg3[%c0_11, %c2, %c2_12, %c0_13] : memref<5x18x14x144xf32, #tpu.memory_space<vmem>>, vector<1x14x12x144xf32>
    %9 = vector.shape_cast %8 : vector<1x14x12x144xf32> to vector<14x12x144xf32>
    %10 = vector.shape_cast %7 : vector<14x12x144xf32> to vector<1x14x12x144xf32>
    tpu.vector_store %arg3[%c0_11, %c2, %c2_12, %c0_13], %10 {strides = array<i32>} : memref<5x18x14x144xf32, #tpu.memory_space<vmem>>, vector<1x14x12x144xf32>,
    %c0_14 = arith.constant 0 : index
    %c0_15 = arith.constant 0 : index
    %c0_16 = arith.constant 0 : index
    %11 = vector.load %arg0[%c0_14, %c0_15, %c0_16] : memref<14x14x144xf32, #tpu.memory_space<vmem>>, vector<14x13x144xf32>
    %c1 = arith.constant 1 : index
    %c2_17 = arith.constant 2 : index
    %c1_18 = arith.constant 1 : index
    %c0_19 = arith.constant 0 : index
    %12 = vector.load %arg3[%c1, %c2_17, %c1_18, %c0_19] : memref<5x18x14x144xf32, #tpu.memory_space<vmem>>, vector<1x14x13x144xf32>
    %13 = vector.shape_cast %12 : vector<1x14x13x144xf32> to vector<14x13x144xf32>
    %14 = vector.shape_cast %11 : vector<14x13x144xf32> to vector<1x14x13x144xf32>
    tpu.vector_store %arg3[%c1, %c2_17, %c1_18, %c0_19], %14 {strides = array<i32>} : memref<5x18x14x144xf32, #tpu.memory_space<vmem>>, vector<1x14x13x144xf32>,
    %c0_20 = arith.constant 0 : index
    %c0_21 = arith.constant 0 : index
    %c0_22 = arith.constant 0 : index
    %15 = vector.load %arg0[%c0_20, %c0_21, %c0_22] : memref<14x14x144xf32, #tpu.memory_space<vmem>>, vector<14x14x144xf32>
    %c2_23 = arith.constant 2 : index
    %c2_24 = arith.constant 2 : index
    %c0_25 = arith.constant 0 : index
    %c0_26 = arith.constant 0 : index
    %16 = vector.load %arg3[%c2_23, %c2_24, %c0_25, %c0_26] : memref<5x18x14x144xf32, #tpu.memory_space<vmem>>, vector<1x14x14x144xf32>
    %17 = vector.shape_cast %16 : vector<1x14x14x144xf32> to vector<14x14x144xf32>
    %18 = vector.shape_cast %15 : vector<14x14x144xf32> to vector<1x14x14x144xf32>
    tpu.vector_store %arg3[%c2_23, %c2_24, %c0_25, %c0_26], %18 {strides = array<i32>} : memref<5x18x14x144xf32, #tpu.memory_space<vmem>>, vector<1x14x14x144xf32>,
    %c0_27 = arith.constant 0 : index
    %c1_28 = arith.constant 1 : index
    %c0_29 = arith.constant 0 : index
    %19 = vector.load %arg0[%c0_27, %c1_28, %c0_29] : memref<14x14x144xf32, #tpu.memory_space<vmem>>, vector<14x13x144xf32>
    %c3 = arith.constant 3 : index
    %c2_30 = arith.constant 2 : index
    %c0_31 = arith.constant 0 : index
    %c0_32 = arith.constant 0 : index
    %20 = vector.load %arg3[%c3, %c2_30, %c0_31, %c0_32] : memref<5x18x14x144xf32, #tpu.memory_space<vmem>>, vector<1x14x13x144xf32>
    %21 = vector.shape_cast %20 : vector<1x14x13x144xf32> to vector<14x13x144xf32>
    %22 = vector.shape_cast %19 : vector<14x13x144xf32> to vector<1x14x13x144xf32>
    tpu.vector_store %arg3[%c3, %c2_30, %c0_31, %c0_32], %22 {strides = array<i32>} : memref<5x18x14x144xf32, #tpu.memory_space<vmem>>, vector<1x14x13x144xf32>,
    %c0_33 = arith.constant 0 : index
    %c2_34 = arith.constant 2 : index
    %c0_35 = arith.constant 0 : index
    %23 = vector.load %arg0[%c0_33, %c2_34, %c0_35] : memref<14x14x144xf32, #tpu.memory_space<vmem>>, vector<14x12x144xf32>
    %c4 = arith.constant 4 : index
    %c2_36 = arith.constant 2 : index
    %c0_37 = arith.constant 0 : index
    %c0_38 = arith.constant 0 : index
    %24 = vector.load %arg3[%c4, %c2_36, %c0_37, %c0_38] : memref<5x18x14x144xf32, #tpu.memory_space<vmem>>, vector<1x14x12x144xf32>
    %25 = vector.shape_cast %24 : vector<1x14x12x144xf32> to vector<14x12x144xf32>
    %26 = vector.shape_cast %23 : vector<14x12x144xf32> to vector<1x14x12x144xf32>
    tpu.vector_store %arg3[%c4, %c2_36, %c0_37, %c0_38], %26 {strides = array<i32>} : memref<5x18x14x144xf32, #tpu.memory_space<vmem>>, vector<1x14x12x144xf32>,
    %c0_i32 = arith.constant 0 : i32
    %c2_i32 = arith.constant 2 : i32
    %27 = arith.muli %c0_i32, %c2_i32 : i32
    %cst_39 = arith.constant 0.000000e+00 : f32
    %28 = vector.broadcast %cst_39 : f32 to vector<2x14x144xf32>
    %c0_40 = arith.constant 0 : index
    %29 = arith.index_cast %27 : i32 to index
    %c0_41 = arith.constant 0 : index
    %c0_42 = arith.constant 0 : index
    %30 = vector.load %arg3[%c0_40, %29, %c0_41, %c0_42] : memref<5x18x14x144xf32, #tpu.memory_space<vmem>>, vector<1x6x14x144xf32>
    %31 = vector.shape_cast %30 : vector<1x6x14x144xf32> to vector<6x14x144xf32>
    %c0_43 = arith.constant 0 : index
    %c0_44 = arith.constant 0 : index
    %c0_45 = arith.constant 0 : index
    %32 = vector.load %arg4[%c0_43, %c0_44, %c0_45] : memref<25x14x144xf32, #tpu.memory_space<vmem>>, vector<5x14x144xf32>
    %33 = vector.extract_strided_slice %31 {offsets = [0, 0, 0], sizes = [2, 14, 144], strides = [1, 1, 1]} : vector<6x14x144xf32> to vector<2x14x144xf32>
    %34 = vector.extract_strided_slice %32 {offsets = [0, 0, 0], sizes = [1, 14, 144], strides = [1, 1, 1]} : vector<5x14x144xf32> to vector<1x14x144xf32>
    %35 = vector.shape_cast %34 : vector<1x14x144xf32> to vector<14x144xf32>
    %36 = vector.shape_cast %35 : vector<14x144xf32> to vector<1x14x144xf32>
    %37 = vector.broadcast %36 : vector<1x14x144xf32> to vector<2x14x144xf32>
    %38 = arith.mulf %33, %37 : vector<2x14x144xf32>
    %39 = arith.addf %28, %38 : vector<2x14x144xf32>
    %40 = vector.extract_strided_slice %31 {offsets = [1, 0, 0], sizes = [2, 14, 144], strides = [1, 1, 1]} : vector<6x14x144xf32> to vector<2x14x144xf32>
    %41 = vector.extract_strided_slice %32 {offsets = [1, 0, 0], sizes = [1, 14, 144], strides = [1, 1, 1]} : vector<5x14x144xf32> to vector<1x14x144xf32>
    %42 = vector.shape_cast %41 : vector<1x14x144xf32> to vector<14x144xf32>
    %43 = vector.shape_cast %42 : vector<14x144xf32> to vector<1x14x144xf32>
    %44 = vector.broadcast %43 : vector<1x14x144xf32> to vector<2x14x144xf32>
    %45 = arith.mulf %40, %44 : vector<2x14x144xf32>
    %46 = arith.addf %39, %45 : vector<2x14x144xf32>
    %47 = vector.extract_strided_slice %31 {offsets = [2, 0, 0], sizes = [2, 14, 144], strides = [1, 1, 1]} : vector<6x14x144xf32> to vector<2x14x144xf32>
    %48 = vector.extract_strided_slice %32 {offsets = [2, 0, 0], sizes = [1, 14, 144], strides = [1, 1, 1]} : vector<5x14x144xf32> to vector<1x14x144xf32>
    %49 = vector.shape_cast %48 : vector<1x14x144xf32> to vector<14x144xf32>
    %50 = vector.shape_cast %49 : vector<14x144xf32> to vector<1x14x144xf32>
    %51 = vector.broadcast %50 : vector<1x14x144xf32> to vector<2x14x144xf32>
    %52 = arith.mulf %47, %51 : vector<2x14x144xf32>
    %53 = arith.addf %46, %52 : vector<2x14x144xf32>
    %54 = vector.extract_strided_slice %31 {offsets = [3, 0, 0], sizes = [2, 14, 144], strides = [1, 1, 1]} : vector<6x14x144xf32> to vector<2x14x144xf32>
    %55 = vector.extract_strided_slice %32 {offsets = [3, 0, 0], sizes = [1, 14, 144], strides = [1, 1, 1]} : vector<5x14x144xf32> to vector<1x14x144xf32>
    %56 = vector.shape_cast %55 : vector<1x14x144xf32> to vector<14x144xf32>
    %57 = vector.shape_cast %56 : vector<14x144xf32> to vector<1x14x144xf32>
    %58 = vector.broadcast %57 : vector<1x14x144xf32> to vector<2x14x144xf32>
    %59 = arith.mulf %54, %58 : vector<2x14x144xf32>
    %60 = arith.addf %53, %59 : vector<2x14x144xf32>
    %61 = vector.extract_strided_slice %31 {offsets = [4, 0, 0], sizes = [2, 14, 144], strides = [1, 1, 1]} : vector<6x14x144xf32> to vector<2x14x144xf32>
    %62 = vector.extract_strided_slice %32 {offsets = [4, 0, 0], sizes = [1, 14, 144], strides = [1, 1, 1]} : vector<5x14x144xf32> to vector<1x14x144xf32>
    %63 = vector.shape_cast %62 : vector<1x14x144xf32> to vector<14x144xf32>
    %64 = vector.shape_cast %63 : vector<14x144xf32> to vector<1x14x144xf32>
    %65 = vector.broadcast %64 : vector<1x14x144xf32> to vector<2x14x144xf32>
    %66 = arith.mulf %61, %65 : vector<2x14x144xf32>
    %67 = arith.addf %60, %66 : vector<2x14x144xf32>
    %c1_46 = arith.constant 1 : index
    %68 = arith.index_cast %27 : i32 to index
    %c0_47 = arith.constant 0 : index
    %c0_48 = arith.constant 0 : index
    %69 = vector.load %arg3[%c1_46, %68, %c0_47, %c0_48] : memref<5x18x14x144xf32, #tpu.memory_space<vmem>>, vector<1x6x14x144xf32>
    %70 = vector.shape_cast %69 : vector<1x6x14x144xf32> to vector<6x14x144xf32>
    %c5 = arith.constant 5 : index
    %c0_49 = arith.constant 0 : index
    %c0_50 = arith.constant 0 : index
    %71 = vector.load %arg4[%c5, %c0_49, %c0_50] : memref<25x14x144xf32, #tpu.memory_space<vmem>>, vector<5x14x144xf32>
    %72 = vector.extract_strided_slice %70 {offsets = [0, 0, 0], sizes = [2, 14, 144], strides = [1, 1, 1]} : vector<6x14x144xf32> to vector<2x14x144xf32>
    %73 = vector.extract_strided_slice %71 {offsets = [0, 0, 0], sizes = [1, 14, 144], strides = [1, 1, 1]} : vector<5x14x144xf32> to vector<1x14x144xf32>
    %74 = vector.shape_cast %73 : vector<1x14x144xf32> to vector<14x144xf32>
    %75 = vector.shape_cast %74 : vector<14x144xf32> to vector<1x14x144xf32>
    %76 = vector.broadcast %75 : vector<1x14x144xf32> to vector<2x14x144xf32>
    %77 = arith.mulf %72, %76 : vector<2x14x144xf32>
    %78 = arith.addf %67, %77 : vector<2x14x144xf32>
    %79 = vector.extract_strided_slice %70 {offsets = [1, 0, 0], sizes = [2, 14, 144], strides = [1, 1, 1]} : vector<6x14x144xf32> to vector<2x14x144xf32>
    %80 = vector.extract_strided_slice %71 {offsets = [1, 0, 0], sizes = [1, 14, 144], strides = [1, 1, 1]} : vector<5x14x144xf32> to vector<1x14x144xf32>
    %81 = vector.shape_cast %80 : vector<1x14x144xf32> to vector<14x144xf32>
    %82 = vector.shape_cast %81 : vector<14x144xf32> to vector<1x14x144xf32>
    %83 = vector.broadcast %82 : vector<1x14x144xf32> to vector<2x14x144xf32>
    %84 = arith.mulf %79, %83 : vector<2x14x144xf32>
    %85 = arith.addf %78, %84 : vector<2x14x144xf32>
    %86 = vector.extract_strided_slice %70 {offsets = [2, 0, 0], sizes = [2, 14, 144], strides = [1, 1, 1]} : vector<6x14x144xf32> to vector<2x14x144xf32>
    %87 = vector.extract_strided_slice %71 {offsets = [2, 0, 0], sizes = [1, 14, 144], strides = [1, 1, 1]} : vector<5x14x144xf32> to vector<1x14x144xf32>
    %88 = vector.shape_cast %87 : vector<1x14x144xf32> to vector<14x144xf32>
    %89 = vector.shape_cast %88 : vector<14x144xf32> to vector<1x14x144xf32>
    %90 = vector.broadcast %89 : vector<1x14x144xf32> to vector<2x14x144xf32>
    %91 = arith.mulf %86, %90 : vector<2x14x144xf32>
    %92 = arith.addf %85, %91 : vector<2x14x144xf32>
    %93 = vector.extract_strided_slice %70 {offsets = [3, 0, 0], sizes = [2, 14, 144], strides = [1, 1, 1]} : vector<6x14x144xf32> to vector<2x14x144xf32>
    %94 = vector.extract_strided_slice %71 {offsets = [3, 0, 0], sizes = [1, 14, 144], strides = [1, 1, 1]} : vector<5x14x144xf32> to vector<1x14x144xf32>
    %95 = vector.shape_cast %94 : vector<1x14x144xf32> to vector<14x144xf32>
    %96 = vector.shape_cast %95 : vector<14x144xf32> to vector<1x14x144xf32>
    %97 = vector.broadcast %96 : vector<1x14x144xf32> to vector<2x14x144xf32>
    %98 = arith.mulf %93, %97 : vector<2x14x144xf32>
    %99 = arith.addf %92, %98 : vector<2x14x144xf32>
    %100 = vector.extract_strided_slice %70 {offsets = [4, 0, 0], sizes = [2, 14, 144], strides = [1, 1, 1]} : vector<6x14x144xf32> to vector<2x14x144xf32>
    %101 = vector.extract_strided_slice %71 {offsets = [4, 0, 0], sizes = [1, 14, 144], strides = [1, 1, 1]} : vector<5x14x144xf32> to vector<1x14x144xf32>
    %102 = vector.shape_cast %101 : vector<1x14x144xf32> to vector<14x144xf32>
    %103 = vector.shape_cast %102 : vector<14x144xf32> to vector<1x14x144xf32>
    %104 = vector.broadcast %103 : vector<1x14x144xf32> to vector<2x14x144xf32>
    %105 = arith.mulf %100, %104 : vector<2x14x144xf32>
    %106 = arith.addf %99, %105 : vector<2x14x144xf32>
    %c2_51 = arith.constant 2 : index
    %107 = arith.index_cast %27 : i32 to index
    %c0_52 = arith.constant 0 : index
    %c0_53 = arith.constant 0 : index
    %108 = vector.load %arg3[%c2_51, %107, %c0_52, %c0_53] : memref<5x18x14x144xf32, #tpu.memory_space<vmem>>, vector<1x6x14x144xf32>
    %109 = vector.shape_cast %108 : vector<1x6x14x144xf32> to vector<6x14x144xf32>
    %c10 = arith.constant 10 : index
    %c0_54 = arith.constant 0 : index
    %c0_55 = arith.constant 0 : index
    %110 = vector.load %arg4[%c10, %c0_54, %c0_55] : memref<25x14x144xf32, #tpu.memory_space<vmem>>, vector<5x14x144xf32>
    %111 = vector.extract_strided_slice %109 {offsets = [0, 0, 0], sizes = [2, 14, 144], strides = [1, 1, 1]} : vector<6x14x144xf32> to vector<2x14x144xf32>
    %112 = vector.extract_strided_slice %110 {offsets = [0, 0, 0], sizes = [1, 14, 144], strides = [1, 1, 1]} : vector<5x14x144xf32> to vector<1x14x144xf32>
    %113 = vector.shape_cast %112 : vector<1x14x144xf32> to vector<14x144xf32>
    %114 = vector.shape_cast %113 : vector<14x144xf32> to vector<1x14x144xf32>
    %115 = vector.broadcast %114 : vector<1x14x144xf32> to vector<2x14x144xf32>
    %116 = arith.mulf %111, %115 : vector<2x14x144xf32>
    %117 = arith.addf %106, %116 : vector<2x14x144xf32>
    %118 = vector.extract_strided_slice %109 {offsets = [1, 0, 0], sizes = [2, 14, 144], strides = [1, 1, 1]} : vector<6x14x144xf32> to vector<2x14x144xf32>
    %119 = vector.extract_strided_slice %110 {offsets = [1, 0, 0], sizes = [1, 14, 144], strides = [1, 1, 1]} : vector<5x14x144xf32> to vector<1x14x144xf32>
    %120 = vector.shape_cast %119 : vector<1x14x144xf32> to vector<14x144xf32>
    %121 = vector.shape_cast %120 : vector<14x144xf32> to vector<1x14x144xf32>
    %122 = vector.broadcast %121 : vector<1x14x144xf32> to vector<2x14x144xf32>
    %123 = arith.mulf %118, %122 : vector<2x14x144xf32>
    %124 = arith.addf %117, %123 : vector<2x14x144xf32>
    %125 = vector.extract_strided_slice %109 {offsets = [2, 0, 0], sizes = [2, 14, 144], strides = [1, 1, 1]} : vector<6x14x144xf32> to vector<2x14x144xf32>
    %126 = vector.extract_strided_slice %110 {offsets = [2, 0, 0], sizes = [1, 14, 144], strides = [1, 1, 1]} : vector<5x14x144xf32> to vector<1x14x144xf32>
    %127 = vector.shape_cast %126 : vector<1x14x144xf32> to vector<14x144xf32>
    %128 = vector.shape_cast %127 : vector<14x144xf32> to vector<1x14x144xf32>
    %129 = vector.broadcast %128 : vector<1x14x144xf32> to vector<2x14x144xf32>
    %130 = arith.mulf %125, %129 : vector<2x14x144xf32>
    %131 = arith.addf %124, %130 : vector<2x14x144xf32>
    %132 = vector.extract_strided_slice %109 {offsets = [3, 0, 0], sizes = [2, 14, 144], strides = [1, 1, 1]} : vector<6x14x144xf32> to vector<2x14x144xf32>
    %133 = vector.extract_strided_slice %110 {offsets = [3, 0, 0], sizes = [1, 14, 144], strides = [1, 1, 1]} : vector<5x14x144xf32> to vector<1x14x144xf32>
    %134 = vector.shape_cast %133 : vector<1x14x144xf32> to vector<14x144xf32>
    %135 = vector.shape_cast %134 : vector<14x144xf32> to vector<1x14x144xf32>
    %136 = vector.broadcast %135 : vector<1x14x144xf32> to vector<2x14x144xf32>
    %137 = arith.mulf %132, %136 : vector<2x14x144xf32>
    %138 = arith.addf %131, %137 : vector<2x14x144xf32>
    %139 = vector.extract_strided_slice %109 {offsets = [4, 0, 0], sizes = [2, 14, 144], strides = [1, 1, 1]} : vector<6x14x144xf32> to vector<2x14x144xf32>
    %140 = vector.extract_strided_slice %110 {offsets = [4, 0, 0], sizes = [1, 14, 144], strides = [1, 1, 1]} : vector<5x14x144xf32> to vector<1x14x144xf32>
    %141 = vector.shape_cast %140 : vector<1x14x144xf32> to vector<14x144xf32>
    %142 = vector.shape_cast %141 : vector<14x144xf32> to vector<1x14x144xf32>
    %143 = vector.broadcast %142 : vector<1x14x144xf32> to vector<2x14x144xf32>
    %144 = arith.mulf %139, %143 : vector<2x14x144xf32>
    %145 = arith.addf %138, %144 : vector<2x14x144xf32>
    %c3_56 = arith.constant 3 : index
    %146 = arith.index_cast %27 : i32 to index
    %c0_57 = arith.constant 0 : index
    %c0_58 = arith.constant 0 : index
    %147 = vector.load %arg3[%c3_56, %146, %c0_57, %c0_58] : memref<5x18x14x144xf32, #tpu.memory_space<vmem>>, vector<1x6x14x144xf32>
    %148 = vector.shape_cast %147 : vector<1x6x14x144xf32> to vector<6x14x144xf32>
    %c15 = arith.constant 15 : index
    %c0_59 = arith.constant 0 : index
    %c0_60 = arith.constant 0 : index
    %149 = vector.load %arg4[%c15, %c0_59, %c0_60] : memref<25x14x144xf32, #tpu.memory_space<vmem>>, vector<5x14x144xf32>
    %150 = vector.extract_strided_slice %148 {offsets = [0, 0, 0], sizes = [2, 14, 144], strides = [1, 1, 1]} : vector<6x14x144xf32> to vector<2x14x144xf32>
    %151 = vector.extract_strided_slice %149 {offsets = [0, 0, 0], sizes = [1, 14, 144], strides = [1, 1, 1]} : vector<5x14x144xf32> to vector<1x14x144xf32>
    %152 = vector.shape_cast %151 : vector<1x14x144xf32> to vector<14x144xf32>
    %153 = vector.shape_cast %152 : vector<14x144xf32> to vector<1x14x144xf32>
    %154 = vector.broadcast %153 : vector<1x14x144xf32> to vector<2x14x144xf32>
    %155 = arith.mulf %150, %154 : vector<2x14x144xf32>
    %156 = arith.addf %145, %155 : vector<2x14x144xf32>
    %157 = vector.extract_strided_slice %148 {offsets = [1, 0, 0], sizes = [2, 14, 144], strides = [1, 1, 1]} : vector<6x14x144xf32> to vector<2x14x144xf32>
    %158 = vector.extract_strided_slice %149 {offsets = [1, 0, 0], sizes = [1, 14, 144], strides = [1, 1, 1]} : vector<5x14x144xf32> to vector<1x14x144xf32>
    %159 = vector.shape_cast %158 : vector<1x14x144xf32> to vector<14x144xf32>
    %160 = vector.shape_cast %159 : vector<14x144xf32> to vector<1x14x144xf32>
    %161 = vector.broadcast %160 : vector<1x14x144xf32> to vector<2x14x144xf32>
    %162 = arith.mulf %157, %161 : vector<2x14x144xf32>
    %163 = arith.addf %156, %162 : vector<2x14x144xf32>
    %164 = vector.extract_strided_slice %148 {offsets = [2, 0, 0], sizes = [2, 14, 144], strides = [1, 1, 1]} : vector<6x14x144xf32> to vector<2x14x144xf32>
    %165 = vector.extract_strided_slice %149 {offsets = [2, 0, 0], sizes = [1, 14, 144], strides = [1, 1, 1]} : vector<5x14x144xf32> to vector<1x14x144xf32>
    %166 = vector.shape_cast %165 : vector<1x14x144xf32> to vector<14x144xf32>
    %167 = vector.shape_cast %166 : vector<14x144xf32> to vector<1x14x144xf32>
    %168 = vector.broadcast %167 : vector<1x14x144xf32> to vector<2x14x144xf32>
    %169 = arith.mulf %164, %168 : vector<2x14x144xf32>
    %170 = arith.addf %163, %169 : vector<2x14x144xf32>
    %171 = vector.extract_strided_slice %148 {offsets = [3, 0, 0], sizes = [2, 14, 144], strides = [1, 1, 1]} : vector<6x14x144xf32> to vector<2x14x144xf32>
    %172 = vector.extract_strided_slice %149 {offsets = [3, 0, 0], sizes = [1, 14, 144], strides = [1, 1, 1]} : vector<5x14x144xf32> to vector<1x14x144xf32>
    %173 = vector.shape_cast %172 : vector<1x14x144xf32> to vector<14x144xf32>
    %174 = vector.shape_cast %173 : vector<14x144xf32> to vector<1x14x144xf32>
    %175 = vector.broadcast %174 : vector<1x14x144xf32> to vector<2x14x144xf32>
    %176 = arith.mulf %171, %175 : vector<2x14x144xf32>
    %177 = arith.addf %170, %176 : vector<2x14x144xf32>
    %178 = vector.extract_strided_slice %148 {offsets = [4, 0, 0], sizes = [2, 14, 144], strides = [1, 1, 1]} : vector<6x14x144xf32> to vector<2x14x144xf32>
    %179 = vector.extract_strided_slice %149 {offsets = [4, 0, 0], sizes = [1, 14, 144], strides = [1, 1, 1]} : vector<5x14x144xf32> to vector<1x14x144xf32>
    %180 = vector.shape_cast %179 : vector<1x14x144xf32> to vector<14x144xf32>
    %181 = vector.shape_cast %180 : vector<14x144xf32> to vector<1x14x144xf32>
    %182 = vector.broadcast %181 : vector<1x14x144xf32> to vector<2x14x144xf32>
    %183 = arith.mulf %178, %182 : vector<2x14x144xf32>
    %184 = arith.addf %177, %183 : vector<2x14x144xf32>
    %c4_61 = arith.constant 4 : index
    %185 = arith.index_cast %27 : i32 to index
    %c0_62 = arith.constant 0 : index
    %c0_63 = arith.constant 0 : index
    %186 = vector.load %arg3[%c4_61, %185, %c0_62, %c0_63] : memref<5x18x14x144xf32, #tpu.memory_space<vmem>>, vector<1x6x14x144xf32>
    %187 = vector.shape_cast %186 : vector<1x6x14x144xf32> to vector<6x14x144xf32>
    %c20 = arith.constant 20 : index
    %c0_64 = arith.constant 0 : index
    %c0_65 = arith.constant 0 : index
    %188 = vector.load %arg4[%c20, %c0_64, %c0_65] : memref<25x14x144xf32, #tpu.memory_space<vmem>>, vector<5x14x144xf32>
    %189 = vector.extract_strided_slice %187 {offsets = [0, 0, 0], sizes = [2, 14, 144], strides = [1, 1, 1]} : vector<6x14x144xf32> to vector<2x14x144xf32>
    %190 = vector.extract_strided_slice %188 {offsets = [0, 0, 0], sizes = [1, 14, 144], strides = [1, 1, 1]} : vector<5x14x144xf32> to vector<1x14x144xf32>
    %191 = vector.shape_cast %190 : vector<1x14x144xf32> to vector<14x144xf32>
    %192 = vector.shape_cast %191 : vector<14x144xf32> to vector<1x14x144xf32>
    %193 = vector.broadcast %192 : vector<1x14x144xf32> to vector<2x14x144xf32>
    %194 = arith.mulf %189, %193 : vector<2x14x144xf32>
    %195 = arith.addf %184, %194 : vector<2x14x144xf32>
    %196 = vector.extract_strided_slice %187 {offsets = [1, 0, 0], sizes = [2, 14, 144], strides = [1, 1, 1]} : vector<6x14x144xf32> to vector<2x14x144xf32>
    %197 = vector.extract_strided_slice %188 {offsets = [1, 0, 0], sizes = [1, 14, 144], strides = [1, 1, 1]} : vector<5x14x144xf32> to vector<1x14x144xf32>
    %198 = vector.shape_cast %197 : vector<1x14x144xf32> to vector<14x144xf32>
    %199 = vector.shape_cast %198 : vector<14x144xf32> to vector<1x14x144xf32>
    %200 = vector.broadcast %199 : vector<1x14x144xf32> to vector<2x14x144xf32>
    %201 = arith.mulf %196, %200 : vector<2x14x144xf32>
    %202 = arith.addf %195, %201 : vector<2x14x144xf32>
    %203 = vector.extract_strided_slice %187 {offsets = [2, 0, 0], sizes = [2, 14, 144], strides = [1, 1, 1]} : vector<6x14x144xf32> to vector<2x14x144xf32>
    %204 = vector.extract_strided_slice %188 {offsets = [2, 0, 0], sizes = [1, 14, 144], strides = [1, 1, 1]} : vector<5x14x144xf32> to vector<1x14x144xf32>
    %205 = vector.shape_cast %204 : vector<1x14x144xf32> to vector<14x144xf32>
    %206 = vector.shape_cast %205 : vector<14x144xf32> to vector<1x14x144xf32>
    %207 = vector.broadcast %206 : vector<1x14x144xf32> to vector<2x14x144xf32>
    %208 = arith.mulf %203, %207 : vector<2x14x144xf32>
    %209 = arith.addf %202, %208 : vector<2x14x144xf32>
    %210 = vector.extract_strided_slice %187 {offsets = [3, 0, 0], sizes = [2, 14, 144], strides = [1, 1, 1]} : vector<6x14x144xf32> to vector<2x14x144xf32>
    %211 = vector.extract_strided_slice %188 {offsets = [3, 0, 0], sizes = [1, 14, 144], strides = [1, 1, 1]} : vector<5x14x144xf32> to vector<1x14x144xf32>
    %212 = vector.shape_cast %211 : vector<1x14x144xf32> to vector<14x144xf32>
    %213 = vector.shape_cast %212 : vector<14x144xf32> to vector<1x14x144xf32>
    %214 = vector.broadcast %213 : vector<1x14x144xf32> to vector<2x14x144xf32>
    %215 = arith.mulf %210, %214 : vector<2x14x144xf32>
    %216 = arith.addf %209, %215 : vector<2x14x144xf32>
    %217 = vector.extract_strided_slice %187 {offsets = [4, 0, 0], sizes = [2, 14, 144], strides = [1, 1, 1]} : vector<6x14x144xf32> to vector<2x14x144xf32>
    %218 = vector.extract_strided_slice %188 {offsets = [4, 0, 0], sizes = [1, 14, 144], strides = [1, 1, 1]} : vector<5x14x144xf32> to vector<1x14x144xf32>
    %219 = vector.shape_cast %218 : vector<1x14x144xf32> to vector<14x144xf32>
    %220 = vector.shape_cast %219 : vector<14x144xf32> to vector<1x14x144xf32>
    %221 = vector.broadcast %220 : vector<1x14x144xf32> to vector<2x14x144xf32>
    %222 = arith.mulf %217, %221 : vector<2x14x144xf32>
    %223 = arith.addf %216, %222 : vector<2x14x144xf32>
    %224 = arith.index_cast %27 : i32 to index
    %c0_66 = arith.constant 0 : index
    %c0_67 = arith.constant 0 : index
    %225 = vector.load %arg2[%224, %c0_66, %c0_67] : memref<14x14x144xf32, #tpu.memory_space<vmem>>, vector<2x14x144xf32>
    tpu.vector_store %arg2[%224, %c0_66, %c0_67], %223 {strides = array<i32>} : memref<14x14x144xf32, #tpu.memory_space<vmem>>, vector<2x14x144xf32>,
    %c1_i32 = arith.constant 1 : i32
    %c2_i32_68 = arith.constant 2 : i32
    %226 = arith.muli %c1_i32, %c2_i32_68 : i32
    %cst_69 = arith.constant 0.000000e+00 : f32
    %227 = vector.broadcast %cst_69 : f32 to vector<2x14x144xf32>
    %c0_70 = arith.constant 0 : index
    %228 = arith.index_cast %226 : i32 to index
    %c0_71 = arith.constant 0 : index
    %c0_72 = arith.constant 0 : index
    %229 = vector.load %arg3[%c0_70, %228, %c0_71, %c0_72] : memref<5x18x14x144xf32, #tpu.memory_space<vmem>>, vector<1x6x14x144xf32>
    %230 = vector.shape_cast %229 : vector<1x6x14x144xf32> to vector<6x14x144xf32>
    %c0_73 = arith.constant 0 : index
    %c0_74 = arith.constant 0 : index
    %c0_75 = arith.constant 0 : index
    %231 = vector.load %arg4[%c0_73, %c0_74, %c0_75] : memref<25x14x144xf32, #tpu.memory_space<vmem>>, vector<5x14x144xf32>
    %232 = vector.extract_strided_slice %230 {offsets = [0, 0, 0], sizes = [2, 14, 144], strides = [1, 1, 1]} : vector<6x14x144xf32> to vector<2x14x144xf32>
    %233 = vector.extract_strided_slice %231 {offsets = [0, 0, 0], sizes = [1, 14, 144], strides = [1, 1, 1]} : vector<5x14x144xf32> to vector<1x14x144xf32>
    %234 = vector.shape_cast %233 : vector<1x14x144xf32> to vector<14x144xf32>
    %235 = vector.shape_cast %234 : vector<14x144xf32> to vector<1x14x144xf32>
    %236 = vector.broadcast %235 : vector<1x14x144xf32> to vector<2x14x144xf32>
    %237 = arith.mulf %232, %236 : vector<2x14x144xf32>
    %238 = arith.addf %227, %237 : vector<2x14x144xf32>
    %239 = vector.extract_strided_slice %230 {offsets = [1, 0, 0], sizes = [2, 14, 144], strides = [1, 1, 1]} : vector<6x14x144xf32> to vector<2x14x144xf32>
    %240 = vector.extract_strided_slice %231 {offsets = [1, 0, 0], sizes = [1, 14, 144], strides = [1, 1, 1]} : vector<5x14x144xf32> to vector<1x14x144xf32>
    %241 = vector.shape_cast %240 : vector<1x14x144xf32> to vector<14x144xf32>
    %242 = vector.shape_cast %241 : vector<14x144xf32> to vector<1x14x144xf32>
    %243 = vector.broadcast %242 : vector<1x14x144xf32> to vector<2x14x144xf32>
    %244 = arith.mulf %239, %243 : vector<2x14x144xf32>
    %245 = arith.addf %238, %244 : vector<2x14x144xf32>
    %246 = vector.extract_strided_slice %230 {offsets = [2, 0, 0], sizes = [2, 14, 144], strides = [1, 1, 1]} : vector<6x14x144xf32> to vector<2x14x144xf32>
    %247 = vector.extract_strided_slice %231 {offsets = [2, 0, 0], sizes = [1, 14, 144], strides = [1, 1, 1]} : vector<5x14x144xf32> to vector<1x14x144xf32>
    %248 = vector.shape_cast %247 : vector<1x14x144xf32> to vector<14x144xf32>
    %249 = vector.shape_cast %248 : vector<14x144xf32> to vector<1x14x144xf32>
    %250 = vector.broadcast %249 : vector<1x14x144xf32> to vector<2x14x144xf32>
    %251 = arith.mulf %246, %250 : vector<2x14x144xf32>
    %252 = arith.addf %245, %251 : vector<2x14x144xf32>
    %253 = vector.extract_strided_slice %230 {offsets = [3, 0, 0], sizes = [2, 14, 144], strides = [1, 1, 1]} : vector<6x14x144xf32> to vector<2x14x144xf32>
    %254 = vector.extract_strided_slice %231 {offsets = [3, 0, 0], sizes = [1, 14, 144], strides = [1, 1, 1]} : vector<5x14x144xf32> to vector<1x14x144xf32>
    %255 = vector.shape_cast %254 : vector<1x14x144xf32> to vector<14x144xf32>
    %256 = vector.shape_cast %255 : vector<14x144xf32> to vector<1x14x144xf32>
    %257 = vector.broadcast %256 : vector<1x14x144xf32> to vector<2x14x144xf32>
    %258 = arith.mulf %253, %257 : vector<2x14x144xf32>
    %259 = arith.addf %252, %258 : vector<2x14x144xf32>
    %260 = vector.extract_strided_slice %230 {offsets = [4, 0, 0], sizes = [2, 14, 144], strides = [1, 1, 1]} : vector<6x14x144xf32> to vector<2x14x144xf32>
    %261 = vector.extract_strided_slice %231 {offsets = [4, 0, 0], sizes = [1, 14, 144], strides = [1, 1, 1]} : vector<5x14x144xf32> to vector<1x14x144xf32>
    %262 = vector.shape_cast %261 : vector<1x14x144xf32> to vector<14x144xf32>
    %263 = vector.shape_cast %262 : vector<14x144xf32> to vector<1x14x144xf32>
    %264 = vector.broadcast %263 : vector<1x14x144xf32> to vector<2x14x144xf32>
    %265 = arith.mulf %260, %264 : vector<2x14x144xf32>
    %266 = arith.addf %259, %265 : vector<2x14x144xf32>
    %c1_76 = arith.constant 1 : index
    %267 = arith.index_cast %226 : i32 to index
    %c0_77 = arith.constant 0 : index
    %c0_78 = arith.constant 0 : index
    %268 = vector.load %arg3[%c1_76, %267, %c0_77, %c0_78] : memref<5x18x14x144xf32, #tpu.memory_space<vmem>>, vector<1x6x14x144xf32>
    %269 = vector.shape_cast %268 : vector<1x6x14x144xf32> to vector<6x14x144xf32>
    %c5_79 = arith.constant 5 : index
    %c0_80 = arith.constant 0 : index
    %c0_81 = arith.constant 0 : index
    %270 = vector.load %arg4[%c5_79, %c0_80, %c0_81] : memref<25x14x144xf32, #tpu.memory_space<vmem>>, vector<5x14x144xf32>
    %271 = vector.extract_strided_slice %269 {offsets = [0, 0, 0], sizes = [2, 14, 144], strides = [1, 1, 1]} : vector<6x14x144xf32> to vector<2x14x144xf32>
    %272 = vector.extract_strided_slice %270 {offsets = [0, 0, 0], sizes = [1, 14, 144], strides = [1, 1, 1]} : vector<5x14x144xf32> to vector<1x14x144xf32>
    %273 = vector.shape_cast %272 : vector<1x14x144xf32> to vector<14x144xf32>
    %274 = vector.shape_cast %273 : vector<14x144xf32> to vector<1x14x144xf32>
    %275 = vector.broadcast %274 : vector<1x14x144xf32> to vector<2x14x144xf32>
    %276 = arith.mulf %271, %275 : vector<2x14x144xf32>
    %277 = arith.addf %266, %276 : vector<2x14x144xf32>
    %278 = vector.extract_strided_slice %269 {offsets = [1, 0, 0], sizes = [2, 14, 144], strides = [1, 1, 1]} : vector<6x14x144xf32> to vector<2x14x144xf32>
    %279 = vector.extract_strided_slice %270 {offsets = [1, 0, 0], sizes = [1, 14, 144], strides = [1, 1, 1]} : vector<5x14x144xf32> to vector<1x14x144xf32>
    %280 = vector.shape_cast %279 : vector<1x14x144xf32> to vector<14x144xf32>
    %281 = vector.shape_cast %280 : vector<14x144xf32> to vector<1x14x144xf32>
    %282 = vector.broadcast %281 : vector<1x14x144xf32> to vector<2x14x144xf32>
    %283 = arith.mulf %278, %282 : vector<2x14x144xf32>
    %284 = arith.addf %277, %283 : vector<2x14x144xf32>
    %285 = vector.extract_strided_slice %269 {offsets = [2, 0, 0], sizes = [2, 14, 144], strides = [1, 1, 1]} : vector<6x14x144xf32> to vector<2x14x144xf32>
    %286 = vector.extract_strided_slice %270 {offsets = [2, 0, 0], sizes = [1, 14, 144], strides = [1, 1, 1]} : vector<5x14x144xf32> to vector<1x14x144xf32>
    %287 = vector.shape_cast %286 : vector<1x14x144xf32> to vector<14x144xf32>
    %288 = vector.shape_cast %287 : vector<14x144xf32> to vector<1x14x144xf32>
    %289 = vector.broadcast %288 : vector<1x14x144xf32> to vector<2x14x144xf32>
    %290 = arith.mulf %285, %289 : vector<2x14x144xf32>
    %291 = arith.addf %284, %290 : vector<2x14x144xf32>
    %292 = vector.extract_strided_slice %269 {offsets = [3, 0, 0], sizes = [2, 14, 144], strides = [1, 1, 1]} : vector<6x14x144xf32> to vector<2x14x144xf32>
    %293 = vector.extract_strided_slice %270 {offsets = [3, 0, 0], sizes = [1, 14, 144], strides = [1, 1, 1]} : vector<5x14x144xf32> to vector<1x14x144xf32>
    %294 = vector.shape_cast %293 : vector<1x14x144xf32> to vector<14x144xf32>
    %295 = vector.shape_cast %294 : vector<14x144xf32> to vector<1x14x144xf32>
    %296 = vector.broadcast %295 : vector<1x14x144xf32> to vector<2x14x144xf32>
    %297 = arith.mulf %292, %296 : vector<2x14x144xf32>
    %298 = arith.addf %291, %297 : vector<2x14x144xf32>
    %299 = vector.extract_strided_slice %269 {offsets = [4, 0, 0], sizes = [2, 14, 144], strides = [1, 1, 1]} : vector<6x14x144xf32> to vector<2x14x144xf32>
    %300 = vector.extract_strided_slice %270 {offsets = [4, 0, 0], sizes = [1, 14, 144], strides = [1, 1, 1]} : vector<5x14x144xf32> to vector<1x14x144xf32>
    %301 = vector.shape_cast %300 : vector<1x14x144xf32> to vector<14x144xf32>
    %302 = vector.shape_cast %301 : vector<14x144xf32> to vector<1x14x144xf32>
    %303 = vector.broadcast %302 : vector<1x14x144xf32> to vector<2x14x144xf32>
    %304 = arith.mulf %299, %303 : vector<2x14x144xf32>
    %305 = arith.addf %298, %304 : vector<2x14x144xf32>
    %c2_82 = arith.constant 2 : index
    %306 = arith.index_cast %226 : i32 to index
    %c0_83 = arith.constant 0 : index
    %c0_84 = arith.constant 0 : index
    %307 = vector.load %arg3[%c2_82, %306, %c0_83, %c0_84] : memref<5x18x14x144xf32, #tpu.memory_space<vmem>>, vector<1x6x14x144xf32>
    %308 = vector.shape_cast %307 : vector<1x6x14x144xf32> to vector<6x14x144xf32>
    %c10_85 = arith.constant 10 : index
    %c0_86 = arith.constant 0 : index
    %c0_87 = arith.constant 0 : index
    %309 = vector.load %arg4[%c10_85, %c0_86, %c0_87] : memref<25x14x144xf32, #tpu.memory_space<vmem>>, vector<5x14x144xf32>
    %310 = vector.extract_strided_slice %308 {offsets = [0, 0, 0], sizes = [2, 14, 144], strides = [1, 1, 1]} : vector<6x14x144xf32> to vector<2x14x144xf32>
    %311 = vector.extract_strided_slice %309 {offsets = [0, 0, 0], sizes = [1, 14, 144], strides = [1, 1, 1]} : vector<5x14x144xf32> to vector<1x14x144xf32>
    %312 = vector.shape_cast %311 : vector<1x14x144xf32> to vector<14x144xf32>
    %313 = vector.shape_cast %312 : vector<14x144xf32> to vector<1x14x144xf32>
    %314 = vector.broadcast %313 : vector<1x14x144xf32> to vector<2x14x144xf32>
    %315 = arith.mulf %310, %314 : vector<2x14x144xf32>
    %316 = arith.addf %305, %315 : vector<2x14x144xf32>
    %317 = vector.extract_strided_slice %308 {offsets = [1, 0, 0], sizes = [2, 14, 144], strides = [1, 1, 1]} : vector<6x14x144xf32> to vector<2x14x144xf32>
    %318 = vector.extract_strided_slice %309 {offsets = [1, 0, 0], sizes = [1, 14, 144], strides = [1, 1, 1]} : vector<5x14x144xf32> to vector<1x14x144xf32>
    %319 = vector.shape_cast %318 : vector<1x14x144xf32> to vector<14x144xf32>
    %320 = vector.shape_cast %319 : vector<14x144xf32> to vector<1x14x144xf32>
    %321 = vector.broadcast %320 : vector<1x14x144xf32> to vector<2x14x144xf32>
    %322 = arith.mulf %317, %321 : vector<2x14x144xf32>
    %323 = arith.addf %316, %322 : vector<2x14x144xf32>
    %324 = vector.extract_strided_slice %308 {offsets = [2, 0, 0], sizes = [2, 14, 144], strides = [1, 1, 1]} : vector<6x14x144xf32> to vector<2x14x144xf32>
    %325 = vector.extract_strided_slice %309 {offsets = [2, 0, 0], sizes = [1, 14, 144], strides = [1, 1, 1]} : vector<5x14x144xf32> to vector<1x14x144xf32>
    %326 = vector.shape_cast %325 : vector<1x14x144xf32> to vector<14x144xf32>
    %327 = vector.shape_cast %326 : vector<14x144xf32> to vector<1x14x144xf32>
    %328 = vector.broadcast %327 : vector<1x14x144xf32> to vector<2x14x144xf32>
    %329 = arith.mulf %324, %328 : vector<2x14x144xf32>
    %330 = arith.addf %323, %329 : vector<2x14x144xf32>
    %331 = vector.extract_strided_slice %308 {offsets = [3, 0, 0], sizes = [2, 14, 144], strides = [1, 1, 1]} : vector<6x14x144xf32> to vector<2x14x144xf32>
    %332 = vector.extract_strided_slice %309 {offsets = [3, 0, 0], sizes = [1, 14, 144], strides = [1, 1, 1]} : vector<5x14x144xf32> to vector<1x14x144xf32>
    %333 = vector.shape_cast %332 : vector<1x14x144xf32> to vector<14x144xf32>
    %334 = vector.shape_cast %333 : vector<14x144xf32> to vector<1x14x144xf32>
    %335 = vector.broadcast %334 : vector<1x14x144xf32> to vector<2x14x144xf32>
    %336 = arith.mulf %331, %335 : vector<2x14x144xf32>
    %337 = arith.addf %330, %336 : vector<2x14x144xf32>
    %338 = vector.extract_strided_slice %308 {offsets = [4, 0, 0], sizes = [2, 14, 144], strides = [1, 1, 1]} : vector<6x14x144xf32> to vector<2x14x144xf32>
    %339 = vector.extract_strided_slice %309 {offsets = [4, 0, 0], sizes = [1, 14, 144], strides = [1, 1, 1]} : vector<5x14x144xf32> to vector<1x14x144xf32>
    %340 = vector.shape_cast %339 : vector<1x14x144xf32> to vector<14x144xf32>
    %341 = vector.shape_cast %340 : vector<14x144xf32> to vector<1x14x144xf32>
    %342 = vector.broadcast %341 : vector<1x14x144xf32> to vector<2x14x144xf32>
    %343 = arith.mulf %338, %342 : vector<2x14x144xf32>
    %344 = arith.addf %337, %343 : vector<2x14x144xf32>
    %c3_88 = arith.constant 3 : index
    %345 = arith.index_cast %226 : i32 to index
    %c0_89 = arith.constant 0 : index
    %c0_90 = arith.constant 0 : index
    %346 = vector.load %arg3[%c3_88, %345, %c0_89, %c0_90] : memref<5x18x14x144xf32, #tpu.memory_space<vmem>>, vector<1x6x14x144xf32>
    %347 = vector.shape_cast %346 : vector<1x6x14x144xf32> to vector<6x14x144xf32>
    %c15_91 = arith.constant 15 : index
    %c0_92 = arith.constant 0 : index
    %c0_93 = arith.constant 0 : index
    %348 = vector.load %arg4[%c15_91, %c0_92, %c0_93] : memref<25x14x144xf32, #tpu.memory_space<vmem>>, vector<5x14x144xf32>
    %349 = vector.extract_strided_slice %347 {offsets = [0, 0, 0], sizes = [2, 14, 144], strides = [1, 1, 1]} : vector<6x14x144xf32> to vector<2x14x144xf32>
    %350 = vector.extract_strided_slice %348 {offsets = [0, 0, 0], sizes = [1, 14, 144], strides = [1, 1, 1]} : vector<5x14x144xf32> to vector<1x14x144xf32>
    %351 = vector.shape_cast %350 : vector<1x14x144xf32> to vector<14x144xf32>
    %352 = vector.shape_cast %351 : vector<14x144xf32> to vector<1x14x144xf32>
    %353 = vector.broadcast %352 : vector<1x14x144xf32> to vector<2x14x144xf32>
    %354 = arith.mulf %349, %353 : vector<2x14x144xf32>
    %355 = arith.addf %344, %354 : vector<2x14x144xf32>
    %356 = vector.extract_strided_slice %347 {offsets = [1, 0, 0], sizes = [2, 14, 144], strides = [1, 1, 1]} : vector<6x14x144xf32> to vector<2x14x144xf32>
    %357 = vector.extract_strided_slice %348 {offsets = [1, 0, 0], sizes = [1, 14, 144], strides = [1, 1, 1]} : vector<5x14x144xf32> to vector<1x14x144xf32>
    %358 = vector.shape_cast %357 : vector<1x14x144xf32> to vector<14x144xf32>
    %359 = vector.shape_cast %358 : vector<14x144xf32> to vector<1x14x144xf32>
    %360 = vector.broadcast %359 : vector<1x14x144xf32> to vector<2x14x144xf32>
    %361 = arith.mulf %356, %360 : vector<2x14x144xf32>
    %362 = arith.addf %355, %361 : vector<2x14x144xf32>
    %363 = vector.extract_strided_slice %347 {offsets = [2, 0, 0], sizes = [2, 14, 144], strides = [1, 1, 1]} : vector<6x14x144xf32> to vector<2x14x144xf32>
    %364 = vector.extract_strided_slice %348 {offsets = [2, 0, 0], sizes = [1, 14, 144], strides = [1, 1, 1]} : vector<5x14x144xf32> to vector<1x14x144xf32>
    %365 = vector.shape_cast %364 : vector<1x14x144xf32> to vector<14x144xf32>
    %366 = vector.shape_cast %365 : vector<14x144xf32> to vector<1x14x144xf32>
    %367 = vector.broadcast %366 : vector<1x14x144xf32> to vector<2x14x144xf32>
    %368 = arith.mulf %363, %367 : vector<2x14x144xf32>
    %369 = arith.addf %362, %368 : vector<2x14x144xf32>
    %370 = vector.extract_strided_slice %347 {offsets = [3, 0, 0], sizes = [2, 14, 144], strides = [1, 1, 1]} : vector<6x14x144xf32> to vector<2x14x144xf32>
    %371 = vector.extract_strided_slice %348 {offsets = [3, 0, 0], sizes = [1, 14, 144], strides = [1, 1, 1]} : vector<5x14x144xf32> to vector<1x14x144xf32>
    %372 = vector.shape_cast %371 : vector<1x14x144xf32> to vector<14x144xf32>
    %373 = vector.shape_cast %372 : vector<14x144xf32> to vector<1x14x144xf32>
    %374 = vector.broadcast %373 : vector<1x14x144xf32> to vector<2x14x144xf32>
    %375 = arith.mulf %370, %374 : vector<2x14x144xf32>
    %376 = arith.addf %369, %375 : vector<2x14x144xf32>
    %377 = vector.extract_strided_slice %347 {offsets = [4, 0, 0], sizes = [2, 14, 144], strides = [1, 1, 1]} : vector<6x14x144xf32> to vector<2x14x144xf32>
    %378 = vector.extract_strided_slice %348 {offsets = [4, 0, 0], sizes = [1, 14, 144], strides = [1, 1, 1]} : vector<5x14x144xf32> to vector<1x14x144xf32>
    %379 = vector.shape_cast %378 : vector<1x14x144xf32> to vector<14x144xf32>
    %380 = vector.shape_cast %379 : vector<14x144xf32> to vector<1x14x144xf32>
    %381 = vector.broadcast %380 : vector<1x14x144xf32> to vector<2x14x144xf32>
    %382 = arith.mulf %377, %381 : vector<2x14x144xf32>
    %383 = arith.addf %376, %382 : vector<2x14x144xf32>
    %c4_94 = arith.constant 4 : index
    %384 = arith.index_cast %226 : i32 to index
    %c0_95 = arith.constant 0 : index
    %c0_96 = arith.constant 0 : index
    %385 = vector.load %arg3[%c4_94, %384, %c0_95, %c0_96] : memref<5x18x14x144xf32, #tpu.memory_space<vmem>>, vector<1x6x14x144xf32>
    %386 = vector.shape_cast %385 : vector<1x6x14x144xf32> to vector<6x14x144xf32>
    %c20_97 = arith.constant 20 : index
    %c0_98 = arith.constant 0 : index
    %c0_99 = arith.constant 0 : index
    %387 = vector.load %arg4[%c20_97, %c0_98, %c0_99] : memref<25x14x144xf32, #tpu.memory_space<vmem>>, vector<5x14x144xf32>
    %388 = vector.extract_strided_slice %386 {offsets = [0, 0, 0], sizes = [2, 14, 144], strides = [1, 1, 1]} : vector<6x14x144xf32> to vector<2x14x144xf32>
    %389 = vector.extract_strided_slice %387 {offsets = [0, 0, 0], sizes = [1, 14, 144], strides = [1, 1, 1]} : vector<5x14x144xf32> to vector<1x14x144xf32>
    %390 = vector.shape_cast %389 : vector<1x14x144xf32> to vector<14x144xf32>
    %391 = vector.shape_cast %390 : vector<14x144xf32> to vector<1x14x144xf32>
    %392 = vector.broadcast %391 : vector<1x14x144xf32> to vector<2x14x144xf32>
    %393 = arith.mulf %388, %392 : vector<2x14x144xf32>
    %394 = arith.addf %383, %393 : vector<2x14x144xf32>
    %395 = vector.extract_strided_slice %386 {offsets = [1, 0, 0], sizes = [2, 14, 144], strides = [1, 1, 1]} : vector<6x14x144xf32> to vector<2x14x144xf32>
    %396 = vector.extract_strided_slice %387 {offsets = [1, 0, 0], sizes = [1, 14, 144], strides = [1, 1, 1]} : vector<5x14x144xf32> to vector<1x14x144xf32>
    %397 = vector.shape_cast %396 : vector<1x14x144xf32> to vector<14x144xf32>
    %398 = vector.shape_cast %397 : vector<14x144xf32> to vector<1x14x144xf32>
    %399 = vector.broadcast %398 : vector<1x14x144xf32> to vector<2x14x144xf32>
    %400 = arith.mulf %395, %399 : vector<2x14x144xf32>
    %401 = arith.addf %394, %400 : vector<2x14x144xf32>
    %402 = vector.extract_strided_slice %386 {offsets = [2, 0, 0], sizes = [2, 14, 144], strides = [1, 1, 1]} : vector<6x14x144xf32> to vector<2x14x144xf32>
    %403 = vector.extract_strided_slice %387 {offsets = [2, 0, 0], sizes = [1, 14, 144], strides = [1, 1, 1]} : vector<5x14x144xf32> to vector<1x14x144xf32>
    %404 = vector.shape_cast %403 : vector<1x14x144xf32> to vector<14x144xf32>
    %405 = vector.shape_cast %404 : vector<14x144xf32> to vector<1x14x144xf32>
    %406 = vector.broadcast %405 : vector<1x14x144xf32> to vector<2x14x144xf32>
    %407 = arith.mulf %402, %406 : vector<2x14x144xf32>
    %408 = arith.addf %401, %407 : vector<2x14x144xf32>
    %409 = vector.extract_strided_slice %386 {offsets = [3, 0, 0], sizes = [2, 14, 144], strides = [1, 1, 1]} : vector<6x14x144xf32> to vector<2x14x144xf32>
    %410 = vector.extract_strided_slice %387 {offsets = [3, 0, 0], sizes = [1, 14, 144], strides = [1, 1, 1]} : vector<5x14x144xf32> to vector<1x14x144xf32>
    %411 = vector.shape_cast %410 : vector<1x14x144xf32> to vector<14x144xf32>
    %412 = vector.shape_cast %411 : vector<14x144xf32> to vector<1x14x144xf32>
    %413 = vector.broadcast %412 : vector<1x14x144xf32> to vector<2x14x144xf32>
    %414 = arith.mulf %409, %413 : vector<2x14x144xf32>
    %415 = arith.addf %408, %414 : vector<2x14x144xf32>
    %416 = vector.extract_strided_slice %386 {offsets = [4, 0, 0], sizes = [2, 14, 144], strides = [1, 1, 1]} : vector<6x14x144xf32> to vector<2x14x144xf32>
    %417 = vector.extract_strided_slice %387 {offsets = [4, 0, 0], sizes = [1, 14, 144], strides = [1, 1, 1]} : vector<5x14x144xf32> to vector<1x14x144xf32>
    %418 = vector.shape_cast %417 : vector<1x14x144xf32> to vector<14x144xf32>
    %419 = vector.shape_cast %418 : vector<14x144xf32> to vector<1x14x144xf32>
    %420 = vector.broadcast %419 : vector<1x14x144xf32> to vector<2x14x144xf32>
    %421 = arith.mulf %416, %420 : vector<2x14x144xf32>
    %422 = arith.addf %415, %421 : vector<2x14x144xf32>
    %423 = arith.index_cast %226 : i32 to index
    %c0_100 = arith.constant 0 : index
    %c0_101 = arith.constant 0 : index
    %424 = vector.load %arg2[%423, %c0_100, %c0_101] : memref<14x14x144xf32, #tpu.memory_space<vmem>>, vector<2x14x144xf32>
    tpu.vector_store %arg2[%423, %c0_100, %c0_101], %422 {strides = array<i32>} : memref<14x14x144xf32, #tpu.memory_space<vmem>>, vector<2x14x144xf32>,
    %c2_i32_102 = arith.constant 2 : i32
    %c2_i32_103 = arith.constant 2 : i32
    %425 = arith.muli %c2_i32_102, %c2_i32_103 : i32
    %cst_104 = arith.constant 0.000000e+00 : f32
    %426 = vector.broadcast %cst_104 : f32 to vector<2x14x144xf32>
    %c0_105 = arith.constant 0 : index
    %427 = arith.index_cast %425 : i32 to index
    %c0_106 = arith.constant 0 : index
    %c0_107 = arith.constant 0 : index
    %428 = vector.load %arg3[%c0_105, %427, %c0_106, %c0_107] : memref<5x18x14x144xf32, #tpu.memory_space<vmem>>, vector<1x6x14x144xf32>
    %429 = vector.shape_cast %428 : vector<1x6x14x144xf32> to vector<6x14x144xf32>
    %c0_108 = arith.constant 0 : index
    %c0_109 = arith.constant 0 : index
    %c0_110 = arith.constant 0 : index
    %430 = vector.load %arg4[%c0_108, %c0_109, %c0_110] : memref<25x14x144xf32, #tpu.memory_space<vmem>>, vector<5x14x144xf32>
    %431 = vector.extract_strided_slice %429 {offsets = [0, 0, 0], sizes = [2, 14, 144], strides = [1, 1, 1]} : vector<6x14x144xf32> to vector<2x14x144xf32>
    %432 = vector.extract_strided_slice %430 {offsets = [0, 0, 0], sizes = [1, 14, 144], strides = [1, 1, 1]} : vector<5x14x144xf32> to vector<1x14x144xf32>
    %433 = vector.shape_cast %432 : vector<1x14x144xf32> to vector<14x144xf32>
    %434 = vector.shape_cast %433 : vector<14x144xf32> to vector<1x14x144xf32>
    %435 = vector.broadcast %434 : vector<1x14x144xf32> to vector<2x14x144xf32>
    %436 = arith.mulf %431, %435 : vector<2x14x144xf32>
    %437 = arith.addf %426, %436 : vector<2x14x144xf32>
    %438 = vector.extract_strided_slice %429 {offsets = [1, 0, 0], sizes = [2, 14, 144], strides = [1, 1, 1]} : vector<6x14x144xf32> to vector<2x14x144xf32>
    %439 = vector.extract_strided_slice %430 {offsets = [1, 0, 0], sizes = [1, 14, 144], strides = [1, 1, 1]} : vector<5x14x144xf32> to vector<1x14x144xf32>
    %440 = vector.shape_cast %439 : vector<1x14x144xf32> to vector<14x144xf32>
    %441 = vector.shape_cast %440 : vector<14x144xf32> to vector<1x14x144xf32>
    %442 = vector.broadcast %441 : vector<1x14x144xf32> to vector<2x14x144xf32>
    %443 = arith.mulf %438, %442 : vector<2x14x144xf32>
    %444 = arith.addf %437, %443 : vector<2x14x144xf32>
    %445 = vector.extract_strided_slice %429 {offsets = [2, 0, 0], sizes = [2, 14, 144], strides = [1, 1, 1]} : vector<6x14x144xf32> to vector<2x14x144xf32>
    %446 = vector.extract_strided_slice %430 {offsets = [2, 0, 0], sizes = [1, 14, 144], strides = [1, 1, 1]} : vector<5x14x144xf32> to vector<1x14x144xf32>
    %447 = vector.shape_cast %446 : vector<1x14x144xf32> to vector<14x144xf32>
    %448 = vector.shape_cast %447 : vector<14x144xf32> to vector<1x14x144xf32>
    %449 = vector.broadcast %448 : vector<1x14x144xf32> to vector<2x14x144xf32>
    %450 = arith.mulf %445, %449 : vector<2x14x144xf32>
    %451 = arith.addf %444, %450 : vector<2x14x144xf32>
    %452 = vector.extract_strided_slice %429 {offsets = [3, 0, 0], sizes = [2, 14, 144], strides = [1, 1, 1]} : vector<6x14x144xf32> to vector<2x14x144xf32>
    %453 = vector.extract_strided_slice %430 {offsets = [3, 0, 0], sizes = [1, 14, 144], strides = [1, 1, 1]} : vector<5x14x144xf32> to vector<1x14x144xf32>
    %454 = vector.shape_cast %453 : vector<1x14x144xf32> to vector<14x144xf32>
    %455 = vector.shape_cast %454 : vector<14x144xf32> to vector<1x14x144xf32>
    %456 = vector.broadcast %455 : vector<1x14x144xf32> to vector<2x14x144xf32>
    %457 = arith.mulf %452, %456 : vector<2x14x144xf32>
    %458 = arith.addf %451, %457 : vector<2x14x144xf32>
    %459 = vector.extract_strided_slice %429 {offsets = [4, 0, 0], sizes = [2, 14, 144], strides = [1, 1, 1]} : vector<6x14x144xf32> to vector<2x14x144xf32>
    %460 = vector.extract_strided_slice %430 {offsets = [4, 0, 0], sizes = [1, 14, 144], strides = [1, 1, 1]} : vector<5x14x144xf32> to vector<1x14x144xf32>
    %461 = vector.shape_cast %460 : vector<1x14x144xf32> to vector<14x144xf32>
    %462 = vector.shape_cast %461 : vector<14x144xf32> to vector<1x14x144xf32>
    %463 = vector.broadcast %462 : vector<1x14x144xf32> to vector<2x14x144xf32>
    %464 = arith.mulf %459, %463 : vector<2x14x144xf32>
    %465 = arith.addf %458, %464 : vector<2x14x144xf32>
    %c1_111 = arith.constant 1 : index
    %466 = arith.index_cast %425 : i32 to index
    %c0_112 = arith.constant 0 : index
    %c0_113 = arith.constant 0 : index
    %467 = vector.load %arg3[%c1_111, %466, %c0_112, %c0_113] : memref<5x18x14x144xf32, #tpu.memory_space<vmem>>, vector<1x6x14x144xf32>
    %468 = vector.shape_cast %467 : vector<1x6x14x144xf32> to vector<6x14x144xf32>
    %c5_114 = arith.constant 5 : index
    %c0_115 = arith.constant 0 : index
    %c0_116 = arith.constant 0 : index
    %469 = vector.load %arg4[%c5_114, %c0_115, %c0_116] : memref<25x14x144xf32, #tpu.memory_space<vmem>>, vector<5x14x144xf32>
    %470 = vector.extract_strided_slice %468 {offsets = [0, 0, 0], sizes = [2, 14, 144], strides = [1, 1, 1]} : vector<6x14x144xf32> to vector<2x14x144xf32>
    %471 = vector.extract_strided_slice %469 {offsets = [0, 0, 0], sizes = [1, 14, 144], strides = [1, 1, 1]} : vector<5x14x144xf32> to vector<1x14x144xf32>
    %472 = vector.shape_cast %471 : vector<1x14x144xf32> to vector<14x144xf32>
    %473 = vector.shape_cast %472 : vector<14x144xf32> to vector<1x14x144xf32>
    %474 = vector.broadcast %473 : vector<1x14x144xf32> to vector<2x14x144xf32>
    %475 = arith.mulf %470, %474 : vector<2x14x144xf32>
    %476 = arith.addf %465, %475 : vector<2x14x144xf32>
    %477 = vector.extract_strided_slice %468 {offsets = [1, 0, 0], sizes = [2, 14, 144], strides = [1, 1, 1]} : vector<6x14x144xf32> to vector<2x14x144xf32>
    %478 = vector.extract_strided_slice %469 {offsets = [1, 0, 0], sizes = [1, 14, 144], strides = [1, 1, 1]} : vector<5x14x144xf32> to vector<1x14x144xf32>
    %479 = vector.shape_cast %478 : vector<1x14x144xf32> to vector<14x144xf32>
    %480 = vector.shape_cast %479 : vector<14x144xf32> to vector<1x14x144xf32>
    %481 = vector.broadcast %480 : vector<1x14x144xf32> to vector<2x14x144xf32>
    %482 = arith.mulf %477, %481 : vector<2x14x144xf32>
    %483 = arith.addf %476, %482 : vector<2x14x144xf32>
    %484 = vector.extract_strided_slice %468 {offsets = [2, 0, 0], sizes = [2, 14, 144], strides = [1, 1, 1]} : vector<6x14x144xf32> to vector<2x14x144xf32>
    %485 = vector.extract_strided_slice %469 {offsets = [2, 0, 0], sizes = [1, 14, 144], strides = [1, 1, 1]} : vector<5x14x144xf32> to vector<1x14x144xf32>
    %486 = vector.shape_cast %485 : vector<1x14x144xf32> to vector<14x144xf32>
    %487 = vector.shape_cast %486 : vector<14x144xf32> to vector<1x14x144xf32>
    %488 = vector.broadcast %487 : vector<1x14x144xf32> to vector<2x14x144xf32>
    %489 = arith.mulf %484, %488 : vector<2x14x144xf32>
    %490 = arith.addf %483, %489 : vector<2x14x144xf32>
    %491 = vector.extract_strided_slice %468 {offsets = [3, 0, 0], sizes = [2, 14, 144], strides = [1, 1, 1]} : vector<6x14x144xf32> to vector<2x14x144xf32>
    %492 = vector.extract_strided_slice %469 {offsets = [3, 0, 0], sizes = [1, 14, 144], strides = [1, 1, 1]} : vector<5x14x144xf32> to vector<1x14x144xf32>
    %493 = vector.shape_cast %492 : vector<1x14x144xf32> to vector<14x144xf32>
    %494 = vector.shape_cast %493 : vector<14x144xf32> to vector<1x14x144xf32>
    %495 = vector.broadcast %494 : vector<1x14x144xf32> to vector<2x14x144xf32>
    %496 = arith.mulf %491, %495 : vector<2x14x144xf32>
    %497 = arith.addf %490, %496 : vector<2x14x144xf32>
    %498 = vector.extract_strided_slice %468 {offsets = [4, 0, 0], sizes = [2, 14, 144], strides = [1, 1, 1]} : vector<6x14x144xf32> to vector<2x14x144xf32>
    %499 = vector.extract_strided_slice %469 {offsets = [4, 0, 0], sizes = [1, 14, 144], strides = [1, 1, 1]} : vector<5x14x144xf32> to vector<1x14x144xf32>
    %500 = vector.shape_cast %499 : vector<1x14x144xf32> to vector<14x144xf32>
    %501 = vector.shape_cast %500 : vector<14x144xf32> to vector<1x14x144xf32>
    %502 = vector.broadcast %501 : vector<1x14x144xf32> to vector<2x14x144xf32>
    %503 = arith.mulf %498, %502 : vector<2x14x144xf32>
    %504 = arith.addf %497, %503 : vector<2x14x144xf32>
    %c2_117 = arith.constant 2 : index
    %505 = arith.index_cast %425 : i32 to index
    %c0_118 = arith.constant 0 : index
    %c0_119 = arith.constant 0 : index
    %506 = vector.load %arg3[%c2_117, %505, %c0_118, %c0_119] : memref<5x18x14x144xf32, #tpu.memory_space<vmem>>, vector<1x6x14x144xf32>
    %507 = vector.shape_cast %506 : vector<1x6x14x144xf32> to vector<6x14x144xf32>
    %c10_120 = arith.constant 10 : index
    %c0_121 = arith.constant 0 : index
    %c0_122 = arith.constant 0 : index
    %508 = vector.load %arg4[%c10_120, %c0_121, %c0_122] : memref<25x14x144xf32, #tpu.memory_space<vmem>>, vector<5x14x144xf32>
    %509 = vector.extract_strided_slice %507 {offsets = [0, 0, 0], sizes = [2, 14, 144], strides = [1, 1, 1]} : vector<6x14x144xf32> to vector<2x14x144xf32>
    %510 = vector.extract_strided_slice %508 {offsets = [0, 0, 0], sizes = [1, 14, 144], strides = [1, 1, 1]} : vector<5x14x144xf32> to vector<1x14x144xf32>
    %511 = vector.shape_cast %510 : vector<1x14x144xf32> to vector<14x144xf32>
    %512 = vector.shape_cast %511 : vector<14x144xf32> to vector<1x14x144xf32>
    %513 = vector.broadcast %512 : vector<1x14x144xf32> to vector<2x14x144xf32>
    %514 = arith.mulf %509, %513 : vector<2x14x144xf32>
    %515 = arith.addf %504, %514 : vector<2x14x144xf32>
    %516 = vector.extract_strided_slice %507 {offsets = [1, 0, 0], sizes = [2, 14, 144], strides = [1, 1, 1]} : vector<6x14x144xf32> to vector<2x14x144xf32>
    %517 = vector.extract_strided_slice %508 {offsets = [1, 0, 0], sizes = [1, 14, 144], strides = [1, 1, 1]} : vector<5x14x144xf32> to vector<1x14x144xf32>
    %518 = vector.shape_cast %517 : vector<1x14x144xf32> to vector<14x144xf32>
    %519 = vector.shape_cast %518 : vector<14x144xf32> to vector<1x14x144xf32>
    %520 = vector.broadcast %519 : vector<1x14x144xf32> to vector<2x14x144xf32>
    %521 = arith.mulf %516, %520 : vector<2x14x144xf32>
    %522 = arith.addf %515, %521 : vector<2x14x144xf32>
    %523 = vector.extract_strided_slice %507 {offsets = [2, 0, 0], sizes = [2, 14, 144], strides = [1, 1, 1]} : vector<6x14x144xf32> to vector<2x14x144xf32>
    %524 = vector.extract_strided_slice %508 {offsets = [2, 0, 0], sizes = [1, 14, 144], strides = [1, 1, 1]} : vector<5x14x144xf32> to vector<1x14x144xf32>
    %525 = vector.shape_cast %524 : vector<1x14x144xf32> to vector<14x144xf32>
    %526 = vector.shape_cast %525 : vector<14x144xf32> to vector<1x14x144xf32>
    %527 = vector.broadcast %526 : vector<1x14x144xf32> to vector<2x14x144xf32>
    %528 = arith.mulf %523, %527 : vector<2x14x144xf32>
    %529 = arith.addf %522, %528 : vector<2x14x144xf32>
    %530 = vector.extract_strided_slice %507 {offsets = [3, 0, 0], sizes = [2, 14, 144], strides = [1, 1, 1]} : vector<6x14x144xf32> to vector<2x14x144xf32>
    %531 = vector.extract_strided_slice %508 {offsets = [3, 0, 0], sizes = [1, 14, 144], strides = [1, 1, 1]} : vector<5x14x144xf32> to vector<1x14x144xf32>
    %532 = vector.shape_cast %531 : vector<1x14x144xf32> to vector<14x144xf32>
    %533 = vector.shape_cast %532 : vector<14x144xf32> to vector<1x14x144xf32>
    %534 = vector.broadcast %533 : vector<1x14x144xf32> to vector<2x14x144xf32>
    %535 = arith.mulf %530, %534 : vector<2x14x144xf32>
    %536 = arith.addf %529, %535 : vector<2x14x144xf32>
    %537 = vector.extract_strided_slice %507 {offsets = [4, 0, 0], sizes = [2, 14, 144], strides = [1, 1, 1]} : vector<6x14x144xf32> to vector<2x14x144xf32>
    %538 = vector.extract_strided_slice %508 {offsets = [4, 0, 0], sizes = [1, 14, 144], strides = [1, 1, 1]} : vector<5x14x144xf32> to vector<1x14x144xf32>
    %539 = vector.shape_cast %538 : vector<1x14x144xf32> to vector<14x144xf32>
    %540 = vector.shape_cast %539 : vector<14x144xf32> to vector<1x14x144xf32>
    %541 = vector.broadcast %540 : vector<1x14x144xf32> to vector<2x14x144xf32>
    %542 = arith.mulf %537, %541 : vector<2x14x144xf32>
    %543 = arith.addf %536, %542 : vector<2x14x144xf32>
    %c3_123 = arith.constant 3 : index
    %544 = arith.index_cast %425 : i32 to index
    %c0_124 = arith.constant 0 : index
    %c0_125 = arith.constant 0 : index
    %545 = vector.load %arg3[%c3_123, %544, %c0_124, %c0_125] : memref<5x18x14x144xf32, #tpu.memory_space<vmem>>, vector<1x6x14x144xf32>
    %546 = vector.shape_cast %545 : vector<1x6x14x144xf32> to vector<6x14x144xf32>
    %c15_126 = arith.constant 15 : index
    %c0_127 = arith.constant 0 : index
    %c0_128 = arith.constant 0 : index
    %547 = vector.load %arg4[%c15_126, %c0_127, %c0_128] : memref<25x14x144xf32, #tpu.memory_space<vmem>>, vector<5x14x144xf32>
    %548 = vector.extract_strided_slice %546 {offsets = [0, 0, 0], sizes = [2, 14, 144], strides = [1, 1, 1]} : vector<6x14x144xf32> to vector<2x14x144xf32>
    %549 = vector.extract_strided_slice %547 {offsets = [0, 0, 0], sizes = [1, 14, 144], strides = [1, 1, 1]} : vector<5x14x144xf32> to vector<1x14x144xf32>
    %550 = vector.shape_cast %549 : vector<1x14x144xf32> to vector<14x144xf32>
    %551 = vector.shape_cast %550 : vector<14x144xf32> to vector<1x14x144xf32>
    %552 = vector.broadcast %551 : vector<1x14x144xf32> to vector<2x14x144xf32>
    %553 = arith.mulf %548, %552 : vector<2x14x144xf32>
    %554 = arith.addf %543, %553 : vector<2x14x144xf32>
    %555 = vector.extract_strided_slice %546 {offsets = [1, 0, 0], sizes = [2, 14, 144], strides = [1, 1, 1]} : vector<6x14x144xf32> to vector<2x14x144xf32>
    %556 = vector.extract_strided_slice %547 {offsets = [1, 0, 0], sizes = [1, 14, 144], strides = [1, 1, 1]} : vector<5x14x144xf32> to vector<1x14x144xf32>
    %557 = vector.shape_cast %556 : vector<1x14x144xf32> to vector<14x144xf32>
    %558 = vector.shape_cast %557 : vector<14x144xf32> to vector<1x14x144xf32>
    %559 = vector.broadcast %558 : vector<1x14x144xf32> to vector<2x14x144xf32>
    %560 = arith.mulf %555, %559 : vector<2x14x144xf32>
    %561 = arith.addf %554, %560 : vector<2x14x144xf32>
    %562 = vector.extract_strided_slice %546 {offsets = [2, 0, 0], sizes = [2, 14, 144], strides = [1, 1, 1]} : vector<6x14x144xf32> to vector<2x14x144xf32>
    %563 = vector.extract_strided_slice %547 {offsets = [2, 0, 0], sizes = [1, 14, 144], strides = [1, 1, 1]} : vector<5x14x144xf32> to vector<1x14x144xf32>
    %564 = vector.shape_cast %563 : vector<1x14x144xf32> to vector<14x144xf32>
    %565 = vector.shape_cast %564 : vector<14x144xf32> to vector<1x14x144xf32>
    %566 = vector.broadcast %565 : vector<1x14x144xf32> to vector<2x14x144xf32>
    %567 = arith.mulf %562, %566 : vector<2x14x144xf32>
    %568 = arith.addf %561, %567 : vector<2x14x144xf32>
    %569 = vector.extract_strided_slice %546 {offsets = [3, 0, 0], sizes = [2, 14, 144], strides = [1, 1, 1]} : vector<6x14x144xf32> to vector<2x14x144xf32>
    %570 = vector.extract_strided_slice %547 {offsets = [3, 0, 0], sizes = [1, 14, 144], strides = [1, 1, 1]} : vector<5x14x144xf32> to vector<1x14x144xf32>
    %571 = vector.shape_cast %570 : vector<1x14x144xf32> to vector<14x144xf32>
    %572 = vector.shape_cast %571 : vector<14x144xf32> to vector<1x14x144xf32>
    %573 = vector.broadcast %572 : vector<1x14x144xf32> to vector<2x14x144xf32>
    %574 = arith.mulf %569, %573 : vector<2x14x144xf32>
    %575 = arith.addf %568, %574 : vector<2x14x144xf32>
    %576 = vector.extract_strided_slice %546 {offsets = [4, 0, 0], sizes = [2, 14, 144], strides = [1, 1, 1]} : vector<6x14x144xf32> to vector<2x14x144xf32>
    %577 = vector.extract_strided_slice %547 {offsets = [4, 0, 0], sizes = [1, 14, 144], strides = [1, 1, 1]} : vector<5x14x144xf32> to vector<1x14x144xf32>
    %578 = vector.shape_cast %577 : vector<1x14x144xf32> to vector<14x144xf32>
    %579 = vector.shape_cast %578 : vector<14x144xf32> to vector<1x14x144xf32>
    %580 = vector.broadcast %579 : vector<1x14x144xf32> to vector<2x14x144xf32>
    %581 = arith.mulf %576, %580 : vector<2x14x144xf32>
    %582 = arith.addf %575, %581 : vector<2x14x144xf32>
    %c4_129 = arith.constant 4 : index
    %583 = arith.index_cast %425 : i32 to index
    %c0_130 = arith.constant 0 : index
    %c0_131 = arith.constant 0 : index
    %584 = vector.load %arg3[%c4_129, %583, %c0_130, %c0_131] : memref<5x18x14x144xf32, #tpu.memory_space<vmem>>, vector<1x6x14x144xf32>
    %585 = vector.shape_cast %584 : vector<1x6x14x144xf32> to vector<6x14x144xf32>
    %c20_132 = arith.constant 20 : index
    %c0_133 = arith.constant 0 : index
    %c0_134 = arith.constant 0 : index
    %586 = vector.load %arg4[%c20_132, %c0_133, %c0_134] : memref<25x14x144xf32, #tpu.memory_space<vmem>>, vector<5x14x144xf32>
    %587 = vector.extract_strided_slice %585 {offsets = [0, 0, 0], sizes = [2, 14, 144], strides = [1, 1, 1]} : vector<6x14x144xf32> to vector<2x14x144xf32>
    %588 = vector.extract_strided_slice %586 {offsets = [0, 0, 0], sizes = [1, 14, 144], strides = [1, 1, 1]} : vector<5x14x144xf32> to vector<1x14x144xf32>
    %589 = vector.shape_cast %588 : vector<1x14x144xf32> to vector<14x144xf32>
    %590 = vector.shape_cast %589 : vector<14x144xf32> to vector<1x14x144xf32>
    %591 = vector.broadcast %590 : vector<1x14x144xf32> to vector<2x14x144xf32>
    %592 = arith.mulf %587, %591 : vector<2x14x144xf32>
    %593 = arith.addf %582, %592 : vector<2x14x144xf32>
    %594 = vector.extract_strided_slice %585 {offsets = [1, 0, 0], sizes = [2, 14, 144], strides = [1, 1, 1]} : vector<6x14x144xf32> to vector<2x14x144xf32>
    %595 = vector.extract_strided_slice %586 {offsets = [1, 0, 0], sizes = [1, 14, 144], strides = [1, 1, 1]} : vector<5x14x144xf32> to vector<1x14x144xf32>
    %596 = vector.shape_cast %595 : vector<1x14x144xf32> to vector<14x144xf32>
    %597 = vector.shape_cast %596 : vector<14x144xf32> to vector<1x14x144xf32>
    %598 = vector.broadcast %597 : vector<1x14x144xf32> to vector<2x14x144xf32>
    %599 = arith.mulf %594, %598 : vector<2x14x144xf32>
    %600 = arith.addf %593, %599 : vector<2x14x144xf32>
    %601 = vector.extract_strided_slice %585 {offsets = [2, 0, 0], sizes = [2, 14, 144], strides = [1, 1, 1]} : vector<6x14x144xf32> to vector<2x14x144xf32>
    %602 = vector.extract_strided_slice %586 {offsets = [2, 0, 0], sizes = [1, 14, 144], strides = [1, 1, 1]} : vector<5x14x144xf32> to vector<1x14x144xf32>
    %603 = vector.shape_cast %602 : vector<1x14x144xf32> to vector<14x144xf32>
    %604 = vector.shape_cast %603 : vector<14x144xf32> to vector<1x14x144xf32>
    %605 = vector.broadcast %604 : vector<1x14x144xf32> to vector<2x14x144xf32>
    %606 = arith.mulf %601, %605 : vector<2x14x144xf32>
    %607 = arith.addf %600, %606 : vector<2x14x144xf32>
    %608 = vector.extract_strided_slice %585 {offsets = [3, 0, 0], sizes = [2, 14, 144], strides = [1, 1, 1]} : vector<6x14x144xf32> to vector<2x14x144xf32>
    %609 = vector.extract_strided_slice %586 {offsets = [3, 0, 0], sizes = [1, 14, 144], strides = [1, 1, 1]} : vector<5x14x144xf32> to vector<1x14x144xf32>
    %610 = vector.shape_cast %609 : vector<1x14x144xf32> to vector<14x144xf32>
    %611 = vector.shape_cast %610 : vector<14x144xf32> to vector<1x14x144xf32>
    %612 = vector.broadcast %611 : vector<1x14x144xf32> to vector<2x14x144xf32>
    %613 = arith.mulf %608, %612 : vector<2x14x144xf32>
    %614 = arith.addf %607, %613 : vector<2x14x144xf32>
    %615 = vector.extract_strided_slice %585 {offsets = [4, 0, 0], sizes = [2, 14, 144], strides = [1, 1, 1]} : vector<6x14x144xf32> to vector<2x14x144xf32>
    %616 = vector.extract_strided_slice %586 {offsets = [4, 0, 0], sizes = [1, 14, 144], strides = [1, 1, 1]} : vector<5x14x144xf32> to vector<1x14x144xf32>
    %617 = vector.shape_cast %616 : vector<1x14x144xf32> to vector<14x144xf32>
    %618 = vector.shape_cast %617 : vector<14x144xf32> to vector<1x14x144xf32>
    %619 = vector.broadcast %618 : vector<1x14x144xf32> to vector<2x14x144xf32>
    %620 = arith.mulf %615, %619 : vector<2x14x144xf32>
    %621 = arith.addf %614, %620 : vector<2x14x144xf32>
    %622 = arith.index_cast %425 : i32 to index
    %c0_135 = arith.constant 0 : index
    %c0_136 = arith.constant 0 : index
    %623 = vector.load %arg2[%622, %c0_135, %c0_136] : memref<14x14x144xf32, #tpu.memory_space<vmem>>, vector<2x14x144xf32>
    tpu.vector_store %arg2[%622, %c0_135, %c0_136], %621 {strides = array<i32>} : memref<14x14x144xf32, #tpu.memory_space<vmem>>, vector<2x14x144xf32>,
    %c3_i32 = arith.constant 3 : i32
    %c2_i32_137 = arith.constant 2 : i32
    %624 = arith.muli %c3_i32, %c2_i32_137 : i32
    %cst_138 = arith.constant 0.000000e+00 : f32
    %625 = vector.broadcast %cst_138 : f32 to vector<2x14x144xf32>
    %c0_139 = arith.constant 0 : index
    %626 = arith.index_cast %624 : i32 to index
    %c0_140 = arith.constant 0 : index
    %c0_141 = arith.constant 0 : index
    %627 = vector.load %arg3[%c0_139, %626, %c0_140, %c0_141] : memref<5x18x14x144xf32, #tpu.memory_space<vmem>>, vector<1x6x14x144xf32>
    %628 = vector.shape_cast %627 : vector<1x6x14x144xf32> to vector<6x14x144xf32>
    %c0_142 = arith.constant 0 : index
    %c0_143 = arith.constant 0 : index
    %c0_144 = arith.constant 0 : index
    %629 = vector.load %arg4[%c0_142, %c0_143, %c0_144] : memref<25x14x144xf32, #tpu.memory_space<vmem>>, vector<5x14x144xf32>
    %630 = vector.extract_strided_slice %628 {offsets = [0, 0, 0], sizes = [2, 14, 144], strides = [1, 1, 1]} : vector<6x14x144xf32> to vector<2x14x144xf32>
    %631 = vector.extract_strided_slice %629 {offsets = [0, 0, 0], sizes = [1, 14, 144], strides = [1, 1, 1]} : vector<5x14x144xf32> to vector<1x14x144xf32>
    %632 = vector.shape_cast %631 : vector<1x14x144xf32> to vector<14x144xf32>
    %633 = vector.shape_cast %632 : vector<14x144xf32> to vector<1x14x144xf32>
    %634 = vector.broadcast %633 : vector<1x14x144xf32> to vector<2x14x144xf32>
    %635 = arith.mulf %630, %634 : vector<2x14x144xf32>
    %636 = arith.addf %625, %635 : vector<2x14x144xf32>
    %637 = vector.extract_strided_slice %628 {offsets = [1, 0, 0], sizes = [2, 14, 144], strides = [1, 1, 1]} : vector<6x14x144xf32> to vector<2x14x144xf32>
    %638 = vector.extract_strided_slice %629 {offsets = [1, 0, 0], sizes = [1, 14, 144], strides = [1, 1, 1]} : vector<5x14x144xf32> to vector<1x14x144xf32>
    %639 = vector.shape_cast %638 : vector<1x14x144xf32> to vector<14x144xf32>
    %640 = vector.shape_cast %639 : vector<14x144xf32> to vector<1x14x144xf32>
    %641 = vector.broadcast %640 : vector<1x14x144xf32> to vector<2x14x144xf32>
    %642 = arith.mulf %637, %641 : vector<2x14x144xf32>
    %643 = arith.addf %636, %642 : vector<2x14x144xf32>
    %644 = vector.extract_strided_slice %628 {offsets = [2, 0, 0], sizes = [2, 14, 144], strides = [1, 1, 1]} : vector<6x14x144xf32> to vector<2x14x144xf32>
    %645 = vector.extract_strided_slice %629 {offsets = [2, 0, 0], sizes = [1, 14, 144], strides = [1, 1, 1]} : vector<5x14x144xf32> to vector<1x14x144xf32>
    %646 = vector.shape_cast %645 : vector<1x14x144xf32> to vector<14x144xf32>
    %647 = vector.shape_cast %646 : vector<14x144xf32> to vector<1x14x144xf32>
    %648 = vector.broadcast %647 : vector<1x14x144xf32> to vector<2x14x144xf32>
    %649 = arith.mulf %644, %648 : vector<2x14x144xf32>
    %650 = arith.addf %643, %649 : vector<2x14x144xf32>
    %651 = vector.extract_strided_slice %628 {offsets = [3, 0, 0], sizes = [2, 14, 144], strides = [1, 1, 1]} : vector<6x14x144xf32> to vector<2x14x144xf32>
    %652 = vector.extract_strided_slice %629 {offsets = [3, 0, 0], sizes = [1, 14, 144], strides = [1, 1, 1]} : vector<5x14x144xf32> to vector<1x14x144xf32>
    %653 = vector.shape_cast %652 : vector<1x14x144xf32> to vector<14x144xf32>
    %654 = vector.shape_cast %653 : vector<14x144xf32> to vector<1x14x144xf32>
    %655 = vector.broadcast %654 : vector<1x14x144xf32> to vector<2x14x144xf32>
    %656 = arith.mulf %651, %655 : vector<2x14x144xf32>
    %657 = arith.addf %650, %656 : vector<2x14x144xf32>
    %658 = vector.extract_strided_slice %628 {offsets = [4, 0, 0], sizes = [2, 14, 144], strides = [1, 1, 1]} : vector<6x14x144xf32> to vector<2x14x144xf32>
    %659 = vector.extract_strided_slice %629 {offsets = [4, 0, 0], sizes = [1, 14, 144], strides = [1, 1, 1]} : vector<5x14x144xf32> to vector<1x14x144xf32>
    %660 = vector.shape_cast %659 : vector<1x14x144xf32> to vector<14x144xf32>
    %661 = vector.shape_cast %660 : vector<14x144xf32> to vector<1x14x144xf32>
    %662 = vector.broadcast %661 : vector<1x14x144xf32> to vector<2x14x144xf32>
    %663 = arith.mulf %658, %662 : vector<2x14x144xf32>
    %664 = arith.addf %657, %663 : vector<2x14x144xf32>
    %c1_145 = arith.constant 1 : index
    %665 = arith.index_cast %624 : i32 to index
    %c0_146 = arith.constant 0 : index
    %c0_147 = arith.constant 0 : index
    %666 = vector.load %arg3[%c1_145, %665, %c0_146, %c0_147] : memref<5x18x14x144xf32, #tpu.memory_space<vmem>>, vector<1x6x14x144xf32>
    %667 = vector.shape_cast %666 : vector<1x6x14x144xf32> to vector<6x14x144xf32>
    %c5_148 = arith.constant 5 : index
    %c0_149 = arith.constant 0 : index
    %c0_150 = arith.constant 0 : index
    %668 = vector.load %arg4[%c5_148, %c0_149, %c0_150] : memref<25x14x144xf32, #tpu.memory_space<vmem>>, vector<5x14x144xf32>
    %669 = vector.extract_strided_slice %667 {offsets = [0, 0, 0], sizes = [2, 14, 144], strides = [1, 1, 1]} : vector<6x14x144xf32> to vector<2x14x144xf32>
    %670 = vector.extract_strided_slice %668 {offsets = [0, 0, 0], sizes = [1, 14, 144], strides = [1, 1, 1]} : vector<5x14x144xf32> to vector<1x14x144xf32>
    %671 = vector.shape_cast %670 : vector<1x14x144xf32> to vector<14x144xf32>
    %672 = vector.shape_cast %671 : vector<14x144xf32> to vector<1x14x144xf32>
    %673 = vector.broadcast %672 : vector<1x14x144xf32> to vector<2x14x144xf32>
    %674 = arith.mulf %669, %673 : vector<2x14x144xf32>
    %675 = arith.addf %664, %674 : vector<2x14x144xf32>
    %676 = vector.extract_strided_slice %667 {offsets = [1, 0, 0], sizes = [2, 14, 144], strides = [1, 1, 1]} : vector<6x14x144xf32> to vector<2x14x144xf32>
    %677 = vector.extract_strided_slice %668 {offsets = [1, 0, 0], sizes = [1, 14, 144], strides = [1, 1, 1]} : vector<5x14x144xf32> to vector<1x14x144xf32>
    %678 = vector.shape_cast %677 : vector<1x14x144xf32> to vector<14x144xf32>
    %679 = vector.shape_cast %678 : vector<14x144xf32> to vector<1x14x144xf32>
    %680 = vector.broadcast %679 : vector<1x14x144xf32> to vector<2x14x144xf32>
    %681 = arith.mulf %676, %680 : vector<2x14x144xf32>
    %682 = arith.addf %675, %681 : vector<2x14x144xf32>
    %683 = vector.extract_strided_slice %667 {offsets = [2, 0, 0], sizes = [2, 14, 144], strides = [1, 1, 1]} : vector<6x14x144xf32> to vector<2x14x144xf32>
    %684 = vector.extract_strided_slice %668 {offsets = [2, 0, 0], sizes = [1, 14, 144], strides = [1, 1, 1]} : vector<5x14x144xf32> to vector<1x14x144xf32>
    %685 = vector.shape_cast %684 : vector<1x14x144xf32> to vector<14x144xf32>
    %686 = vector.shape_cast %685 : vector<14x144xf32> to vector<1x14x144xf32>
    %687 = vector.broadcast %686 : vector<1x14x144xf32> to vector<2x14x144xf32>
    %688 = arith.mulf %683, %687 : vector<2x14x144xf32>
    %689 = arith.addf %682, %688 : vector<2x14x144xf32>
    %690 = vector.extract_strided_slice %667 {offsets = [3, 0, 0], sizes = [2, 14, 144], strides = [1, 1, 1]} : vector<6x14x144xf32> to vector<2x14x144xf32>
    %691 = vector.extract_strided_slice %668 {offsets = [3, 0, 0], sizes = [1, 14, 144], strides = [1, 1, 1]} : vector<5x14x144xf32> to vector<1x14x144xf32>
    %692 = vector.shape_cast %691 : vector<1x14x144xf32> to vector<14x144xf32>
    %693 = vector.shape_cast %692 : vector<14x144xf32> to vector<1x14x144xf32>
    %694 = vector.broadcast %693 : vector<1x14x144xf32> to vector<2x14x144xf32>
    %695 = arith.mulf %690, %694 : vector<2x14x144xf32>
    %696 = arith.addf %689, %695 : vector<2x14x144xf32>
    %697 = vector.extract_strided_slice %667 {offsets = [4, 0, 0], sizes = [2, 14, 144], strides = [1, 1, 1]} : vector<6x14x144xf32> to vector<2x14x144xf32>
    %698 = vector.extract_strided_slice %668 {offsets = [4, 0, 0], sizes = [1, 14, 144], strides = [1, 1, 1]} : vector<5x14x144xf32> to vector<1x14x144xf32>
    %699 = vector.shape_cast %698 : vector<1x14x144xf32> to vector<14x144xf32>
    %700 = vector.shape_cast %699 : vector<14x144xf32> to vector<1x14x144xf32>
    %701 = vector.broadcast %700 : vector<1x14x144xf32> to vector<2x14x144xf32>
    %702 = arith.mulf %697, %701 : vector<2x14x144xf32>
    %703 = arith.addf %696, %702 : vector<2x14x144xf32>
    %c2_151 = arith.constant 2 : index
    %704 = arith.index_cast %624 : i32 to index
    %c0_152 = arith.constant 0 : index
    %c0_153 = arith.constant 0 : index
    %705 = vector.load %arg3[%c2_151, %704, %c0_152, %c0_153] : memref<5x18x14x144xf32, #tpu.memory_space<vmem>>, vector<1x6x14x144xf32>
    %706 = vector.shape_cast %705 : vector<1x6x14x144xf32> to vector<6x14x144xf32>
    %c10_154 = arith.constant 10 : index
    %c0_155 = arith.constant 0 : index
    %c0_156 = arith.constant 0 : index
    %707 = vector.load %arg4[%c10_154, %c0_155, %c0_156] : memref<25x14x144xf32, #tpu.memory_space<vmem>>, vector<5x14x144xf32>
    %708 = vector.extract_strided_slice %706 {offsets = [0, 0, 0], sizes = [2, 14, 144], strides = [1, 1, 1]} : vector<6x14x144xf32> to vector<2x14x144xf32>
    %709 = vector.extract_strided_slice %707 {offsets = [0, 0, 0], sizes = [1, 14, 144], strides = [1, 1, 1]} : vector<5x14x144xf32> to vector<1x14x144xf32>
    %710 = vector.shape_cast %709 : vector<1x14x144xf32> to vector<14x144xf32>
    %711 = vector.shape_cast %710 : vector<14x144xf32> to vector<1x14x144xf32>
    %712 = vector.broadcast %711 : vector<1x14x144xf32> to vector<2x14x144xf32>
    %713 = arith.mulf %708, %712 : vector<2x14x144xf32>
    %714 = arith.addf %703, %713 : vector<2x14x144xf32>
    %715 = vector.extract_strided_slice %706 {offsets = [1, 0, 0], sizes = [2, 14, 144], strides = [1, 1, 1]} : vector<6x14x144xf32> to vector<2x14x144xf32>
    %716 = vector.extract_strided_slice %707 {offsets = [1, 0, 0], sizes = [1, 14, 144], strides = [1, 1, 1]} : vector<5x14x144xf32> to vector<1x14x144xf32>
    %717 = vector.shape_cast %716 : vector<1x14x144xf32> to vector<14x144xf32>
    %718 = vector.shape_cast %717 : vector<14x144xf32> to vector<1x14x144xf32>
    %719 = vector.broadcast %718 : vector<1x14x144xf32> to vector<2x14x144xf32>
    %720 = arith.mulf %715, %719 : vector<2x14x144xf32>
    %721 = arith.addf %714, %720 : vector<2x14x144xf32>
    %722 = vector.extract_strided_slice %706 {offsets = [2, 0, 0], sizes = [2, 14, 144], strides = [1, 1, 1]} : vector<6x14x144xf32> to vector<2x14x144xf32>
    %723 = vector.extract_strided_slice %707 {offsets = [2, 0, 0], sizes = [1, 14, 144], strides = [1, 1, 1]} : vector<5x14x144xf32> to vector<1x14x144xf32>
    %724 = vector.shape_cast %723 : vector<1x14x144xf32> to vector<14x144xf32>
    %725 = vector.shape_cast %724 : vector<14x144xf32> to vector<1x14x144xf32>
    %726 = vector.broadcast %725 : vector<1x14x144xf32> to vector<2x14x144xf32>
    %727 = arith.mulf %722, %726 : vector<2x14x144xf32>
    %728 = arith.addf %721, %727 : vector<2x14x144xf32>
    %729 = vector.extract_strided_slice %706 {offsets = [3, 0, 0], sizes = [2, 14, 144], strides = [1, 1, 1]} : vector<6x14x144xf32> to vector<2x14x144xf32>
    %730 = vector.extract_strided_slice %707 {offsets = [3, 0, 0], sizes = [1, 14, 144], strides = [1, 1, 1]} : vector<5x14x144xf32> to vector<1x14x144xf32>
    %731 = vector.shape_cast %730 : vector<1x14x144xf32> to vector<14x144xf32>
    %732 = vector.shape_cast %731 : vector<14x144xf32> to vector<1x14x144xf32>
    %733 = vector.broadcast %732 : vector<1x14x144xf32> to vector<2x14x144xf32>
    %734 = arith.mulf %729, %733 : vector<2x14x144xf32>
    %735 = arith.addf %728, %734 : vector<2x14x144xf32>
    %736 = vector.extract_strided_slice %706 {offsets = [4, 0, 0], sizes = [2, 14, 144], strides = [1, 1, 1]} : vector<6x14x144xf32> to vector<2x14x144xf32>
    %737 = vector.extract_strided_slice %707 {offsets = [4, 0, 0], sizes = [1, 14, 144], strides = [1, 1, 1]} : vector<5x14x144xf32> to vector<1x14x144xf32>
    %738 = vector.shape_cast %737 : vector<1x14x144xf32> to vector<14x144xf32>
    %739 = vector.shape_cast %738 : vector<14x144xf32> to vector<1x14x144xf32>
    %740 = vector.broadcast %739 : vector<1x14x144xf32> to vector<2x14x144xf32>
    %741 = arith.mulf %736, %740 : vector<2x14x144xf32>
    %742 = arith.addf %735, %741 : vector<2x14x144xf32>
    %c3_157 = arith.constant 3 : index
    %743 = arith.index_cast %624 : i32 to index
    %c0_158 = arith.constant 0 : index
    %c0_159 = arith.constant 0 : index
    %744 = vector.load %arg3[%c3_157, %743, %c0_158, %c0_159] : memref<5x18x14x144xf32, #tpu.memory_space<vmem>>, vector<1x6x14x144xf32>
    %745 = vector.shape_cast %744 : vector<1x6x14x144xf32> to vector<6x14x144xf32>
    %c15_160 = arith.constant 15 : index
    %c0_161 = arith.constant 0 : index
    %c0_162 = arith.constant 0 : index
    %746 = vector.load %arg4[%c15_160, %c0_161, %c0_162] : memref<25x14x144xf32, #tpu.memory_space<vmem>>, vector<5x14x144xf32>
    %747 = vector.extract_strided_slice %745 {offsets = [0, 0, 0], sizes = [2, 14, 144], strides = [1, 1, 1]} : vector<6x14x144xf32> to vector<2x14x144xf32>
    %748 = vector.extract_strided_slice %746 {offsets = [0, 0, 0], sizes = [1, 14, 144], strides = [1, 1, 1]} : vector<5x14x144xf32> to vector<1x14x144xf32>
    %749 = vector.shape_cast %748 : vector<1x14x144xf32> to vector<14x144xf32>
    %750 = vector.shape_cast %749 : vector<14x144xf32> to vector<1x14x144xf32>
    %751 = vector.broadcast %750 : vector<1x14x144xf32> to vector<2x14x144xf32>
    %752 = arith.mulf %747, %751 : vector<2x14x144xf32>
    %753 = arith.addf %742, %752 : vector<2x14x144xf32>
    %754 = vector.extract_strided_slice %745 {offsets = [1, 0, 0], sizes = [2, 14, 144], strides = [1, 1, 1]} : vector<6x14x144xf32> to vector<2x14x144xf32>
    %755 = vector.extract_strided_slice %746 {offsets = [1, 0, 0], sizes = [1, 14, 144], strides = [1, 1, 1]} : vector<5x14x144xf32> to vector<1x14x144xf32>
    %756 = vector.shape_cast %755 : vector<1x14x144xf32> to vector<14x144xf32>
    %757 = vector.shape_cast %756 : vector<14x144xf32> to vector<1x14x144xf32>
    %758 = vector.broadcast %757 : vector<1x14x144xf32> to vector<2x14x144xf32>
    %759 = arith.mulf %754, %758 : vector<2x14x144xf32>
    %760 = arith.addf %753, %759 : vector<2x14x144xf32>
    %761 = vector.extract_strided_slice %745 {offsets = [2, 0, 0], sizes = [2, 14, 144], strides = [1, 1, 1]} : vector<6x14x144xf32> to vector<2x14x144xf32>
    %762 = vector.extract_strided_slice %746 {offsets = [2, 0, 0], sizes = [1, 14, 144], strides = [1, 1, 1]} : vector<5x14x144xf32> to vector<1x14x144xf32>
    %763 = vector.shape_cast %762 : vector<1x14x144xf32> to vector<14x144xf32>
    %764 = vector.shape_cast %763 : vector<14x144xf32> to vector<1x14x144xf32>
    %765 = vector.broadcast %764 : vector<1x14x144xf32> to vector<2x14x144xf32>
    %766 = arith.mulf %761, %765 : vector<2x14x144xf32>
    %767 = arith.addf %760, %766 : vector<2x14x144xf32>
    %768 = vector.extract_strided_slice %745 {offsets = [3, 0, 0], sizes = [2, 14, 144], strides = [1, 1, 1]} : vector<6x14x144xf32> to vector<2x14x144xf32>
    %769 = vector.extract_strided_slice %746 {offsets = [3, 0, 0], sizes = [1, 14, 144], strides = [1, 1, 1]} : vector<5x14x144xf32> to vector<1x14x144xf32>
    %770 = vector.shape_cast %769 : vector<1x14x144xf32> to vector<14x144xf32>
    %771 = vector.shape_cast %770 : vector<14x144xf32> to vector<1x14x144xf32>
    %772 = vector.broadcast %771 : vector<1x14x144xf32> to vector<2x14x144xf32>
    %773 = arith.mulf %768, %772 : vector<2x14x144xf32>
    %774 = arith.addf %767, %773 : vector<2x14x144xf32>
    %775 = vector.extract_strided_slice %745 {offsets = [4, 0, 0], sizes = [2, 14, 144], strides = [1, 1, 1]} : vector<6x14x144xf32> to vector<2x14x144xf32>
    %776 = vector.extract_strided_slice %746 {offsets = [4, 0, 0], sizes = [1, 14, 144], strides = [1, 1, 1]} : vector<5x14x144xf32> to vector<1x14x144xf32>
    %777 = vector.shape_cast %776 : vector<1x14x144xf32> to vector<14x144xf32>
    %778 = vector.shape_cast %777 : vector<14x144xf32> to vector<1x14x144xf32>
    %779 = vector.broadcast %778 : vector<1x14x144xf32> to vector<2x14x144xf32>
    %780 = arith.mulf %775, %779 : vector<2x14x144xf32>
    %781 = arith.addf %774, %780 : vector<2x14x144xf32>
    %c4_163 = arith.constant 4 : index
    %782 = arith.index_cast %624 : i32 to index
    %c0_164 = arith.constant 0 : index
    %c0_165 = arith.constant 0 : index
    %783 = vector.load %arg3[%c4_163, %782, %c0_164, %c0_165] : memref<5x18x14x144xf32, #tpu.memory_space<vmem>>, vector<1x6x14x144xf32>
    %784 = vector.shape_cast %783 : vector<1x6x14x144xf32> to vector<6x14x144xf32>
    %c20_166 = arith.constant 20 : index
    %c0_167 = arith.constant 0 : index
    %c0_168 = arith.constant 0 : index
    %785 = vector.load %arg4[%c20_166, %c0_167, %c0_168] : memref<25x14x144xf32, #tpu.memory_space<vmem>>, vector<5x14x144xf32>
    %786 = vector.extract_strided_slice %784 {offsets = [0, 0, 0], sizes = [2, 14, 144], strides = [1, 1, 1]} : vector<6x14x144xf32> to vector<2x14x144xf32>
    %787 = vector.extract_strided_slice %785 {offsets = [0, 0, 0], sizes = [1, 14, 144], strides = [1, 1, 1]} : vector<5x14x144xf32> to vector<1x14x144xf32>
    %788 = vector.shape_cast %787 : vector<1x14x144xf32> to vector<14x144xf32>
    %789 = vector.shape_cast %788 : vector<14x144xf32> to vector<1x14x144xf32>
    %790 = vector.broadcast %789 : vector<1x14x144xf32> to vector<2x14x144xf32>
    %791 = arith.mulf %786, %790 : vector<2x14x144xf32>
    %792 = arith.addf %781, %791 : vector<2x14x144xf32>
    %793 = vector.extract_strided_slice %784 {offsets = [1, 0, 0], sizes = [2, 14, 144], strides = [1, 1, 1]} : vector<6x14x144xf32> to vector<2x14x144xf32>
    %794 = vector.extract_strided_slice %785 {offsets = [1, 0, 0], sizes = [1, 14, 144], strides = [1, 1, 1]} : vector<5x14x144xf32> to vector<1x14x144xf32>
    %795 = vector.shape_cast %794 : vector<1x14x144xf32> to vector<14x144xf32>
    %796 = vector.shape_cast %795 : vector<14x144xf32> to vector<1x14x144xf32>
    %797 = vector.broadcast %796 : vector<1x14x144xf32> to vector<2x14x144xf32>
    %798 = arith.mulf %793, %797 : vector<2x14x144xf32>
    %799 = arith.addf %792, %798 : vector<2x14x144xf32>
    %800 = vector.extract_strided_slice %784 {offsets = [2, 0, 0], sizes = [2, 14, 144], strides = [1, 1, 1]} : vector<6x14x144xf32> to vector<2x14x144xf32>
    %801 = vector.extract_strided_slice %785 {offsets = [2, 0, 0], sizes = [1, 14, 144], strides = [1, 1, 1]} : vector<5x14x144xf32> to vector<1x14x144xf32>
    %802 = vector.shape_cast %801 : vector<1x14x144xf32> to vector<14x144xf32>
    %803 = vector.shape_cast %802 : vector<14x144xf32> to vector<1x14x144xf32>
    %804 = vector.broadcast %803 : vector<1x14x144xf32> to vector<2x14x144xf32>
    %805 = arith.mulf %800, %804 : vector<2x14x144xf32>
    %806 = arith.addf %799, %805 : vector<2x14x144xf32>
    %807 = vector.extract_strided_slice %784 {offsets = [3, 0, 0], sizes = [2, 14, 144], strides = [1, 1, 1]} : vector<6x14x144xf32> to vector<2x14x144xf32>
    %808 = vector.extract_strided_slice %785 {offsets = [3, 0, 0], sizes = [1, 14, 144], strides = [1, 1, 1]} : vector<5x14x144xf32> to vector<1x14x144xf32>
    %809 = vector.shape_cast %808 : vector<1x14x144xf32> to vector<14x144xf32>
    %810 = vector.shape_cast %809 : vector<14x144xf32> to vector<1x14x144xf32>
    %811 = vector.broadcast %810 : vector<1x14x144xf32> to vector<2x14x144xf32>
    %812 = arith.mulf %807, %811 : vector<2x14x144xf32>
    %813 = arith.addf %806, %812 : vector<2x14x144xf32>
    %814 = vector.extract_strided_slice %784 {offsets = [4, 0, 0], sizes = [2, 14, 144], strides = [1, 1, 1]} : vector<6x14x144xf32> to vector<2x14x144xf32>
    %815 = vector.extract_strided_slice %785 {offsets = [4, 0, 0], sizes = [1, 14, 144], strides = [1, 1, 1]} : vector<5x14x144xf32> to vector<1x14x144xf32>
    %816 = vector.shape_cast %815 : vector<1x14x144xf32> to vector<14x144xf32>
    %817 = vector.shape_cast %816 : vector<14x144xf32> to vector<1x14x144xf32>
    %818 = vector.broadcast %817 : vector<1x14x144xf32> to vector<2x14x144xf32>
    %819 = arith.mulf %814, %818 : vector<2x14x144xf32>
    %820 = arith.addf %813, %819 : vector<2x14x144xf32>
    %821 = arith.index_cast %624 : i32 to index
    %c0_169 = arith.constant 0 : index
    %c0_170 = arith.constant 0 : index
    %822 = vector.load %arg2[%821, %c0_169, %c0_170] : memref<14x14x144xf32, #tpu.memory_space<vmem>>, vector<2x14x144xf32>
    tpu.vector_store %arg2[%821, %c0_169, %c0_170], %820 {strides = array<i32>} : memref<14x14x144xf32, #tpu.memory_space<vmem>>, vector<2x14x144xf32>,
    %c4_i32 = arith.constant 4 : i32
    %c2_i32_171 = arith.constant 2 : i32
    %823 = arith.muli %c4_i32, %c2_i32_171 : i32
    %cst_172 = arith.constant 0.000000e+00 : f32
    %824 = vector.broadcast %cst_172 : f32 to vector<2x14x144xf32>
    %c0_173 = arith.constant 0 : index
    %825 = arith.index_cast %823 : i32 to index
    %c0_174 = arith.constant 0 : index
    %c0_175 = arith.constant 0 : index
    %826 = vector.load %arg3[%c0_173, %825, %c0_174, %c0_175] : memref<5x18x14x144xf32, #tpu.memory_space<vmem>>, vector<1x6x14x144xf32>
    %827 = vector.shape_cast %826 : vector<1x6x14x144xf32> to vector<6x14x144xf32>
    %c0_176 = arith.constant 0 : index
    %c0_177 = arith.constant 0 : index
    %c0_178 = arith.constant 0 : index
    %828 = vector.load %arg4[%c0_176, %c0_177, %c0_178] : memref<25x14x144xf32, #tpu.memory_space<vmem>>, vector<5x14x144xf32>
    %829 = vector.extract_strided_slice %827 {offsets = [0, 0, 0], sizes = [2, 14, 144], strides = [1, 1, 1]} : vector<6x14x144xf32> to vector<2x14x144xf32>
    %830 = vector.extract_strided_slice %828 {offsets = [0, 0, 0], sizes = [1, 14, 144], strides = [1, 1, 1]} : vector<5x14x144xf32> to vector<1x14x144xf32>
    %831 = vector.shape_cast %830 : vector<1x14x144xf32> to vector<14x144xf32>
    %832 = vector.shape_cast %831 : vector<14x144xf32> to vector<1x14x144xf32>
    %833 = vector.broadcast %832 : vector<1x14x144xf32> to vector<2x14x144xf32>
    %834 = arith.mulf %829, %833 : vector<2x14x144xf32>
    %835 = arith.addf %824, %834 : vector<2x14x144xf32>
    %836 = vector.extract_strided_slice %827 {offsets = [1, 0, 0], sizes = [2, 14, 144], strides = [1, 1, 1]} : vector<6x14x144xf32> to vector<2x14x144xf32>
    %837 = vector.extract_strided_slice %828 {offsets = [1, 0, 0], sizes = [1, 14, 144], strides = [1, 1, 1]} : vector<5x14x144xf32> to vector<1x14x144xf32>
    %838 = vector.shape_cast %837 : vector<1x14x144xf32> to vector<14x144xf32>
    %839 = vector.shape_cast %838 : vector<14x144xf32> to vector<1x14x144xf32>
    %840 = vector.broadcast %839 : vector<1x14x144xf32> to vector<2x14x144xf32>
    %841 = arith.mulf %836, %840 : vector<2x14x144xf32>
    %842 = arith.addf %835, %841 : vector<2x14x144xf32>
    %843 = vector.extract_strided_slice %827 {offsets = [2, 0, 0], sizes = [2, 14, 144], strides = [1, 1, 1]} : vector<6x14x144xf32> to vector<2x14x144xf32>
    %844 = vector.extract_strided_slice %828 {offsets = [2, 0, 0], sizes = [1, 14, 144], strides = [1, 1, 1]} : vector<5x14x144xf32> to vector<1x14x144xf32>
    %845 = vector.shape_cast %844 : vector<1x14x144xf32> to vector<14x144xf32>
    %846 = vector.shape_cast %845 : vector<14x144xf32> to vector<1x14x144xf32>
    %847 = vector.broadcast %846 : vector<1x14x144xf32> to vector<2x14x144xf32>
    %848 = arith.mulf %843, %847 : vector<2x14x144xf32>
    %849 = arith.addf %842, %848 : vector<2x14x144xf32>
    %850 = vector.extract_strided_slice %827 {offsets = [3, 0, 0], sizes = [2, 14, 144], strides = [1, 1, 1]} : vector<6x14x144xf32> to vector<2x14x144xf32>
    %851 = vector.extract_strided_slice %828 {offsets = [3, 0, 0], sizes = [1, 14, 144], strides = [1, 1, 1]} : vector<5x14x144xf32> to vector<1x14x144xf32>
    %852 = vector.shape_cast %851 : vector<1x14x144xf32> to vector<14x144xf32>
    %853 = vector.shape_cast %852 : vector<14x144xf32> to vector<1x14x144xf32>
    %854 = vector.broadcast %853 : vector<1x14x144xf32> to vector<2x14x144xf32>
    %855 = arith.mulf %850, %854 : vector<2x14x144xf32>
    %856 = arith.addf %849, %855 : vector<2x14x144xf32>
    %857 = vector.extract_strided_slice %827 {offsets = [4, 0, 0], sizes = [2, 14, 144], strides = [1, 1, 1]} : vector<6x14x144xf32> to vector<2x14x144xf32>
    %858 = vector.extract_strided_slice %828 {offsets = [4, 0, 0], sizes = [1, 14, 144], strides = [1, 1, 1]} : vector<5x14x144xf32> to vector<1x14x144xf32>
    %859 = vector.shape_cast %858 : vector<1x14x144xf32> to vector<14x144xf32>
    %860 = vector.shape_cast %859 : vector<14x144xf32> to vector<1x14x144xf32>
    %861 = vector.broadcast %860 : vector<1x14x144xf32> to vector<2x14x144xf32>
    %862 = arith.mulf %857, %861 : vector<2x14x144xf32>
    %863 = arith.addf %856, %862 : vector<2x14x144xf32>
    %c1_179 = arith.constant 1 : index
    %864 = arith.index_cast %823 : i32 to index
    %c0_180 = arith.constant 0 : index
    %c0_181 = arith.constant 0 : index
    %865 = vector.load %arg3[%c1_179, %864, %c0_180, %c0_181] : memref<5x18x14x144xf32, #tpu.memory_space<vmem>>, vector<1x6x14x144xf32>
    %866 = vector.shape_cast %865 : vector<1x6x14x144xf32> to vector<6x14x144xf32>
    %c5_182 = arith.constant 5 : index
    %c0_183 = arith.constant 0 : index
    %c0_184 = arith.constant 0 : index
    %867 = vector.load %arg4[%c5_182, %c0_183, %c0_184] : memref<25x14x144xf32, #tpu.memory_space<vmem>>, vector<5x14x144xf32>
    %868 = vector.extract_strided_slice %866 {offsets = [0, 0, 0], sizes = [2, 14, 144], strides = [1, 1, 1]} : vector<6x14x144xf32> to vector<2x14x144xf32>
    %869 = vector.extract_strided_slice %867 {offsets = [0, 0, 0], sizes = [1, 14, 144], strides = [1, 1, 1]} : vector<5x14x144xf32> to vector<1x14x144xf32>
    %870 = vector.shape_cast %869 : vector<1x14x144xf32> to vector<14x144xf32>
    %871 = vector.shape_cast %870 : vector<14x144xf32> to vector<1x14x144xf32>
    %872 = vector.broadcast %871 : vector<1x14x144xf32> to vector<2x14x144xf32>
    %873 = arith.mulf %868, %872 : vector<2x14x144xf32>
    %874 = arith.addf %863, %873 : vector<2x14x144xf32>
    %875 = vector.extract_strided_slice %866 {offsets = [1, 0, 0], sizes = [2, 14, 144], strides = [1, 1, 1]} : vector<6x14x144xf32> to vector<2x14x144xf32>
    %876 = vector.extract_strided_slice %867 {offsets = [1, 0, 0], sizes = [1, 14, 144], strides = [1, 1, 1]} : vector<5x14x144xf32> to vector<1x14x144xf32>
    %877 = vector.shape_cast %876 : vector<1x14x144xf32> to vector<14x144xf32>
    %878 = vector.shape_cast %877 : vector<14x144xf32> to vector<1x14x144xf32>
    %879 = vector.broadcast %878 : vector<1x14x144xf32> to vector<2x14x144xf32>
    %880 = arith.mulf %875, %879 : vector<2x14x144xf32>
    %881 = arith.addf %874, %880 : vector<2x14x144xf32>
    %882 = vector.extract_strided_slice %866 {offsets = [2, 0, 0], sizes = [2, 14, 144], strides = [1, 1, 1]} : vector<6x14x144xf32> to vector<2x14x144xf32>
    %883 = vector.extract_strided_slice %867 {offsets = [2, 0, 0], sizes = [1, 14, 144], strides = [1, 1, 1]} : vector<5x14x144xf32> to vector<1x14x144xf32>
    %884 = vector.shape_cast %883 : vector<1x14x144xf32> to vector<14x144xf32>
    %885 = vector.shape_cast %884 : vector<14x144xf32> to vector<1x14x144xf32>
    %886 = vector.broadcast %885 : vector<1x14x144xf32> to vector<2x14x144xf32>
    %887 = arith.mulf %882, %886 : vector<2x14x144xf32>
    %888 = arith.addf %881, %887 : vector<2x14x144xf32>
    %889 = vector.extract_strided_slice %866 {offsets = [3, 0, 0], sizes = [2, 14, 144], strides = [1, 1, 1]} : vector<6x14x144xf32> to vector<2x14x144xf32>
    %890 = vector.extract_strided_slice %867 {offsets = [3, 0, 0], sizes = [1, 14, 144], strides = [1, 1, 1]} : vector<5x14x144xf32> to vector<1x14x144xf32>
    %891 = vector.shape_cast %890 : vector<1x14x144xf32> to vector<14x144xf32>
    %892 = vector.shape_cast %891 : vector<14x144xf32> to vector<1x14x144xf32>
    %893 = vector.broadcast %892 : vector<1x14x144xf32> to vector<2x14x144xf32>
    %894 = arith.mulf %889, %893 : vector<2x14x144xf32>
    %895 = arith.addf %888, %894 : vector<2x14x144xf32>
    %896 = vector.extract_strided_slice %866 {offsets = [4, 0, 0], sizes = [2, 14, 144], strides = [1, 1, 1]} : vector<6x14x144xf32> to vector<2x14x144xf32>
    %897 = vector.extract_strided_slice %867 {offsets = [4, 0, 0], sizes = [1, 14, 144], strides = [1, 1, 1]} : vector<5x14x144xf32> to vector<1x14x144xf32>
    %898 = vector.shape_cast %897 : vector<1x14x144xf32> to vector<14x144xf32>
    %899 = vector.shape_cast %898 : vector<14x144xf32> to vector<1x14x144xf32>
    %900 = vector.broadcast %899 : vector<1x14x144xf32> to vector<2x14x144xf32>
    %901 = arith.mulf %896, %900 : vector<2x14x144xf32>
    %902 = arith.addf %895, %901 : vector<2x14x144xf32>
    %c2_185 = arith.constant 2 : index
    %903 = arith.index_cast %823 : i32 to index
    %c0_186 = arith.constant 0 : index
    %c0_187 = arith.constant 0 : index
    %904 = vector.load %arg3[%c2_185, %903, %c0_186, %c0_187] : memref<5x18x14x144xf32, #tpu.memory_space<vmem>>, vector<1x6x14x144xf32>
    %905 = vector.shape_cast %904 : vector<1x6x14x144xf32> to vector<6x14x144xf32>
    %c10_188 = arith.constant 10 : index
    %c0_189 = arith.constant 0 : index
    %c0_190 = arith.constant 0 : index
    %906 = vector.load %arg4[%c10_188, %c0_189, %c0_190] : memref<25x14x144xf32, #tpu.memory_space<vmem>>, vector<5x14x144xf32>
    %907 = vector.extract_strided_slice %905 {offsets = [0, 0, 0], sizes = [2, 14, 144], strides = [1, 1, 1]} : vector<6x14x144xf32> to vector<2x14x144xf32>
    %908 = vector.extract_strided_slice %906 {offsets = [0, 0, 0], sizes = [1, 14, 144], strides = [1, 1, 1]} : vector<5x14x144xf32> to vector<1x14x144xf32>
    %909 = vector.shape_cast %908 : vector<1x14x144xf32> to vector<14x144xf32>
    %910 = vector.shape_cast %909 : vector<14x144xf32> to vector<1x14x144xf32>
    %911 = vector.broadcast %910 : vector<1x14x144xf32> to vector<2x14x144xf32>
    %912 = arith.mulf %907, %911 : vector<2x14x144xf32>
    %913 = arith.addf %902, %912 : vector<2x14x144xf32>
    %914 = vector.extract_strided_slice %905 {offsets = [1, 0, 0], sizes = [2, 14, 144], strides = [1, 1, 1]} : vector<6x14x144xf32> to vector<2x14x144xf32>
    %915 = vector.extract_strided_slice %906 {offsets = [1, 0, 0], sizes = [1, 14, 144], strides = [1, 1, 1]} : vector<5x14x144xf32> to vector<1x14x144xf32>
    %916 = vector.shape_cast %915 : vector<1x14x144xf32> to vector<14x144xf32>
    %917 = vector.shape_cast %916 : vector<14x144xf32> to vector<1x14x144xf32>
    %918 = vector.broadcast %917 : vector<1x14x144xf32> to vector<2x14x144xf32>
    %919 = arith.mulf %914, %918 : vector<2x14x144xf32>
    %920 = arith.addf %913, %919 : vector<2x14x144xf32>
    %921 = vector.extract_strided_slice %905 {offsets = [2, 0, 0], sizes = [2, 14, 144], strides = [1, 1, 1]} : vector<6x14x144xf32> to vector<2x14x144xf32>
    %922 = vector.extract_strided_slice %906 {offsets = [2, 0, 0], sizes = [1, 14, 144], strides = [1, 1, 1]} : vector<5x14x144xf32> to vector<1x14x144xf32>
    %923 = vector.shape_cast %922 : vector<1x14x144xf32> to vector<14x144xf32>
    %924 = vector.shape_cast %923 : vector<14x144xf32> to vector<1x14x144xf32>
    %925 = vector.broadcast %924 : vector<1x14x144xf32> to vector<2x14x144xf32>
    %926 = arith.mulf %921, %925 : vector<2x14x144xf32>
    %927 = arith.addf %920, %926 : vector<2x14x144xf32>
    %928 = vector.extract_strided_slice %905 {offsets = [3, 0, 0], sizes = [2, 14, 144], strides = [1, 1, 1]} : vector<6x14x144xf32> to vector<2x14x144xf32>
    %929 = vector.extract_strided_slice %906 {offsets = [3, 0, 0], sizes = [1, 14, 144], strides = [1, 1, 1]} : vector<5x14x144xf32> to vector<1x14x144xf32>
    %930 = vector.shape_cast %929 : vector<1x14x144xf32> to vector<14x144xf32>
    %931 = vector.shape_cast %930 : vector<14x144xf32> to vector<1x14x144xf32>
    %932 = vector.broadcast %931 : vector<1x14x144xf32> to vector<2x14x144xf32>
    %933 = arith.mulf %928, %932 : vector<2x14x144xf32>
    %934 = arith.addf %927, %933 : vector<2x14x144xf32>
    %935 = vector.extract_strided_slice %905 {offsets = [4, 0, 0], sizes = [2, 14, 144], strides = [1, 1, 1]} : vector<6x14x144xf32> to vector<2x14x144xf32>
    %936 = vector.extract_strided_slice %906 {offsets = [4, 0, 0], sizes = [1, 14, 144], strides = [1, 1, 1]} : vector<5x14x144xf32> to vector<1x14x144xf32>
    %937 = vector.shape_cast %936 : vector<1x14x144xf32> to vector<14x144xf32>
    %938 = vector.shape_cast %937 : vector<14x144xf32> to vector<1x14x144xf32>
    %939 = vector.broadcast %938 : vector<1x14x144xf32> to vector<2x14x144xf32>
    %940 = arith.mulf %935, %939 : vector<2x14x144xf32>
    %941 = arith.addf %934, %940 : vector<2x14x144xf32>
    %c3_191 = arith.constant 3 : index
    %942 = arith.index_cast %823 : i32 to index
    %c0_192 = arith.constant 0 : index
    %c0_193 = arith.constant 0 : index
    %943 = vector.load %arg3[%c3_191, %942, %c0_192, %c0_193] : memref<5x18x14x144xf32, #tpu.memory_space<vmem>>, vector<1x6x14x144xf32>
    %944 = vector.shape_cast %943 : vector<1x6x14x144xf32> to vector<6x14x144xf32>
    %c15_194 = arith.constant 15 : index
    %c0_195 = arith.constant 0 : index
    %c0_196 = arith.constant 0 : index
    %945 = vector.load %arg4[%c15_194, %c0_195, %c0_196] : memref<25x14x144xf32, #tpu.memory_space<vmem>>, vector<5x14x144xf32>
    %946 = vector.extract_strided_slice %944 {offsets = [0, 0, 0], sizes = [2, 14, 144], strides = [1, 1, 1]} : vector<6x14x144xf32> to vector<2x14x144xf32>
    %947 = vector.extract_strided_slice %945 {offsets = [0, 0, 0], sizes = [1, 14, 144], strides = [1, 1, 1]} : vector<5x14x144xf32> to vector<1x14x144xf32>
    %948 = vector.shape_cast %947 : vector<1x14x144xf32> to vector<14x144xf32>
    %949 = vector.shape_cast %948 : vector<14x144xf32> to vector<1x14x144xf32>
    %950 = vector.broadcast %949 : vector<1x14x144xf32> to vector<2x14x144xf32>
    %951 = arith.mulf %946, %950 : vector<2x14x144xf32>
    %952 = arith.addf %941, %951 : vector<2x14x144xf32>
    %953 = vector.extract_strided_slice %944 {offsets = [1, 0, 0], sizes = [2, 14, 144], strides = [1, 1, 1]} : vector<6x14x144xf32> to vector<2x14x144xf32>
    %954 = vector.extract_strided_slice %945 {offsets = [1, 0, 0], sizes = [1, 14, 144], strides = [1, 1, 1]} : vector<5x14x144xf32> to vector<1x14x144xf32>
    %955 = vector.shape_cast %954 : vector<1x14x144xf32> to vector<14x144xf32>
    %956 = vector.shape_cast %955 : vector<14x144xf32> to vector<1x14x144xf32>
    %957 = vector.broadcast %956 : vector<1x14x144xf32> to vector<2x14x144xf32>
    %958 = arith.mulf %953, %957 : vector<2x14x144xf32>
    %959 = arith.addf %952, %958 : vector<2x14x144xf32>
    %960 = vector.extract_strided_slice %944 {offsets = [2, 0, 0], sizes = [2, 14, 144], strides = [1, 1, 1]} : vector<6x14x144xf32> to vector<2x14x144xf32>
    %961 = vector.extract_strided_slice %945 {offsets = [2, 0, 0], sizes = [1, 14, 144], strides = [1, 1, 1]} : vector<5x14x144xf32> to vector<1x14x144xf32>
    %962 = vector.shape_cast %961 : vector<1x14x144xf32> to vector<14x144xf32>
    %963 = vector.shape_cast %962 : vector<14x144xf32> to vector<1x14x144xf32>
    %964 = vector.broadcast %963 : vector<1x14x144xf32> to vector<2x14x144xf32>
    %965 = arith.mulf %960, %964 : vector<2x14x144xf32>
    %966 = arith.addf %959, %965 : vector<2x14x144xf32>
    %967 = vector.extract_strided_slice %944 {offsets = [3, 0, 0], sizes = [2, 14, 144], strides = [1, 1, 1]} : vector<6x14x144xf32> to vector<2x14x144xf32>
    %968 = vector.extract_strided_slice %945 {offsets = [3, 0, 0], sizes = [1, 14, 144], strides = [1, 1, 1]} : vector<5x14x144xf32> to vector<1x14x144xf32>
    %969 = vector.shape_cast %968 : vector<1x14x144xf32> to vector<14x144xf32>
    %970 = vector.shape_cast %969 : vector<14x144xf32> to vector<1x14x144xf32>
    %971 = vector.broadcast %970 : vector<1x14x144xf32> to vector<2x14x144xf32>
    %972 = arith.mulf %967, %971 : vector<2x14x144xf32>
    %973 = arith.addf %966, %972 : vector<2x14x144xf32>
    %974 = vector.extract_strided_slice %944 {offsets = [4, 0, 0], sizes = [2, 14, 144], strides = [1, 1, 1]} : vector<6x14x144xf32> to vector<2x14x144xf32>
    %975 = vector.extract_strided_slice %945 {offsets = [4, 0, 0], sizes = [1, 14, 144], strides = [1, 1, 1]} : vector<5x14x144xf32> to vector<1x14x144xf32>
    %976 = vector.shape_cast %975 : vector<1x14x144xf32> to vector<14x144xf32>
    %977 = vector.shape_cast %976 : vector<14x144xf32> to vector<1x14x144xf32>
    %978 = vector.broadcast %977 : vector<1x14x144xf32> to vector<2x14x144xf32>
    %979 = arith.mulf %974, %978 : vector<2x14x144xf32>
    %980 = arith.addf %973, %979 : vector<2x14x144xf32>
    %c4_197 = arith.constant 4 : index
    %981 = arith.index_cast %823 : i32 to index
    %c0_198 = arith.constant 0 : index
    %c0_199 = arith.constant 0 : index
    %982 = vector.load %arg3[%c4_197, %981, %c0_198, %c0_199] : memref<5x18x14x144xf32, #tpu.memory_space<vmem>>, vector<1x6x14x144xf32>
    %983 = vector.shape_cast %982 : vector<1x6x14x144xf32> to vector<6x14x144xf32>
    %c20_200 = arith.constant 20 : index
    %c0_201 = arith.constant 0 : index
    %c0_202 = arith.constant 0 : index
    %984 = vector.load %arg4[%c20_200, %c0_201, %c0_202] : memref<25x14x144xf32, #tpu.memory_space<vmem>>, vector<5x14x144xf32>
    %985 = vector.extract_strided_slice %983 {offsets = [0, 0, 0], sizes = [2, 14, 144], strides = [1, 1, 1]} : vector<6x14x144xf32> to vector<2x14x144xf32>
    %986 = vector.extract_strided_slice %984 {offsets = [0, 0, 0], sizes = [1, 14, 144], strides = [1, 1, 1]} : vector<5x14x144xf32> to vector<1x14x144xf32>
    %987 = vector.shape_cast %986 : vector<1x14x144xf32> to vector<14x144xf32>
    %988 = vector.shape_cast %987 : vector<14x144xf32> to vector<1x14x144xf32>
    %989 = vector.broadcast %988 : vector<1x14x144xf32> to vector<2x14x144xf32>
    %990 = arith.mulf %985, %989 : vector<2x14x144xf32>
    %991 = arith.addf %980, %990 : vector<2x14x144xf32>
    %992 = vector.extract_strided_slice %983 {offsets = [1, 0, 0], sizes = [2, 14, 144], strides = [1, 1, 1]} : vector<6x14x144xf32> to vector<2x14x144xf32>
    %993 = vector.extract_strided_slice %984 {offsets = [1, 0, 0], sizes = [1, 14, 144], strides = [1, 1, 1]} : vector<5x14x144xf32> to vector<1x14x144xf32>
    %994 = vector.shape_cast %993 : vector<1x14x144xf32> to vector<14x144xf32>
    %995 = vector.shape_cast %994 : vector<14x144xf32> to vector<1x14x144xf32>
    %996 = vector.broadcast %995 : vector<1x14x144xf32> to vector<2x14x144xf32>
    %997 = arith.mulf %992, %996 : vector<2x14x144xf32>
    %998 = arith.addf %991, %997 : vector<2x14x144xf32>
    %999 = vector.extract_strided_slice %983 {offsets = [2, 0, 0], sizes = [2, 14, 144], strides = [1, 1, 1]} : vector<6x14x144xf32> to vector<2x14x144xf32>
    %1000 = vector.extract_strided_slice %984 {offsets = [2, 0, 0], sizes = [1, 14, 144], strides = [1, 1, 1]} : vector<5x14x144xf32> to vector<1x14x144xf32>
    %1001 = vector.shape_cast %1000 : vector<1x14x144xf32> to vector<14x144xf32>
    %1002 = vector.shape_cast %1001 : vector<14x144xf32> to vector<1x14x144xf32>
    %1003 = vector.broadcast %1002 : vector<1x14x144xf32> to vector<2x14x144xf32>
    %1004 = arith.mulf %999, %1003 : vector<2x14x144xf32>
    %1005 = arith.addf %998, %1004 : vector<2x14x144xf32>
    %1006 = vector.extract_strided_slice %983 {offsets = [3, 0, 0], sizes = [2, 14, 144], strides = [1, 1, 1]} : vector<6x14x144xf32> to vector<2x14x144xf32>
    %1007 = vector.extract_strided_slice %984 {offsets = [3, 0, 0], sizes = [1, 14, 144], strides = [1, 1, 1]} : vector<5x14x144xf32> to vector<1x14x144xf32>
    %1008 = vector.shape_cast %1007 : vector<1x14x144xf32> to vector<14x144xf32>
    %1009 = vector.shape_cast %1008 : vector<14x144xf32> to vector<1x14x144xf32>
    %1010 = vector.broadcast %1009 : vector<1x14x144xf32> to vector<2x14x144xf32>
    %1011 = arith.mulf %1006, %1010 : vector<2x14x144xf32>
    %1012 = arith.addf %1005, %1011 : vector<2x14x144xf32>
    %1013 = vector.extract_strided_slice %983 {offsets = [4, 0, 0], sizes = [2, 14, 144], strides = [1, 1, 1]} : vector<6x14x144xf32> to vector<2x14x144xf32>
    %1014 = vector.extract_strided_slice %984 {offsets = [4, 0, 0], sizes = [1, 14, 144], strides = [1, 1, 1]} : vector<5x14x144xf32> to vector<1x14x144xf32>
    %1015 = vector.shape_cast %1014 : vector<1x14x144xf32> to vector<14x144xf32>
    %1016 = vector.shape_cast %1015 : vector<14x144xf32> to vector<1x14x144xf32>
    %1017 = vector.broadcast %1016 : vector<1x14x144xf32> to vector<2x14x144xf32>
    %1018 = arith.mulf %1013, %1017 : vector<2x14x144xf32>
    %1019 = arith.addf %1012, %1018 : vector<2x14x144xf32>
    %1020 = arith.index_cast %823 : i32 to index
    %c0_203 = arith.constant 0 : index
    %c0_204 = arith.constant 0 : index
    %1021 = vector.load %arg2[%1020, %c0_203, %c0_204] : memref<14x14x144xf32, #tpu.memory_space<vmem>>, vector<2x14x144xf32>
    tpu.vector_store %arg2[%1020, %c0_203, %c0_204], %1019 {strides = array<i32>} : memref<14x14x144xf32, #tpu.memory_space<vmem>>, vector<2x14x144xf32>,
    %c5_i32 = arith.constant 5 : i32
    %c2_i32_205 = arith.constant 2 : i32
    %1022 = arith.muli %c5_i32, %c2_i32_205 : i32
    %cst_206 = arith.constant 0.000000e+00 : f32
    %1023 = vector.broadcast %cst_206 : f32 to vector<2x14x144xf32>
    %c0_207 = arith.constant 0 : index
    %1024 = arith.index_cast %1022 : i32 to index
    %c0_208 = arith.constant 0 : index
    %c0_209 = arith.constant 0 : index
    %1025 = vector.load %arg3[%c0_207, %1024, %c0_208, %c0_209] : memref<5x18x14x144xf32, #tpu.memory_space<vmem>>, vector<1x6x14x144xf32>
    %1026 = vector.shape_cast %1025 : vector<1x6x14x144xf32> to vector<6x14x144xf32>
    %c0_210 = arith.constant 0 : index
    %c0_211 = arith.constant 0 : index
    %c0_212 = arith.constant 0 : index
    %1027 = vector.load %arg4[%c0_210, %c0_211, %c0_212] : memref<25x14x144xf32, #tpu.memory_space<vmem>>, vector<5x14x144xf32>
    %1028 = vector.extract_strided_slice %1026 {offsets = [0, 0, 0], sizes = [2, 14, 144], strides = [1, 1, 1]} : vector<6x14x144xf32> to vector<2x14x144xf32>
    %1029 = vector.extract_strided_slice %1027 {offsets = [0, 0, 0], sizes = [1, 14, 144], strides = [1, 1, 1]} : vector<5x14x144xf32> to vector<1x14x144xf32>
    %1030 = vector.shape_cast %1029 : vector<1x14x144xf32> to vector<14x144xf32>
    %1031 = vector.shape_cast %1030 : vector<14x144xf32> to vector<1x14x144xf32>
    %1032 = vector.broadcast %1031 : vector<1x14x144xf32> to vector<2x14x144xf32>
    %1033 = arith.mulf %1028, %1032 : vector<2x14x144xf32>
    %1034 = arith.addf %1023, %1033 : vector<2x14x144xf32>
    %1035 = vector.extract_strided_slice %1026 {offsets = [1, 0, 0], sizes = [2, 14, 144], strides = [1, 1, 1]} : vector<6x14x144xf32> to vector<2x14x144xf32>
    %1036 = vector.extract_strided_slice %1027 {offsets = [1, 0, 0], sizes = [1, 14, 144], strides = [1, 1, 1]} : vector<5x14x144xf32> to vector<1x14x144xf32>
    %1037 = vector.shape_cast %1036 : vector<1x14x144xf32> to vector<14x144xf32>
    %1038 = vector.shape_cast %1037 : vector<14x144xf32> to vector<1x14x144xf32>
    %1039 = vector.broadcast %1038 : vector<1x14x144xf32> to vector<2x14x144xf32>
    %1040 = arith.mulf %1035, %1039 : vector<2x14x144xf32>
    %1041 = arith.addf %1034, %1040 : vector<2x14x144xf32>
    %1042 = vector.extract_strided_slice %1026 {offsets = [2, 0, 0], sizes = [2, 14, 144], strides = [1, 1, 1]} : vector<6x14x144xf32> to vector<2x14x144xf32>
    %1043 = vector.extract_strided_slice %1027 {offsets = [2, 0, 0], sizes = [1, 14, 144], strides = [1, 1, 1]} : vector<5x14x144xf32> to vector<1x14x144xf32>
    %1044 = vector.shape_cast %1043 : vector<1x14x144xf32> to vector<14x144xf32>
    %1045 = vector.shape_cast %1044 : vector<14x144xf32> to vector<1x14x144xf32>
    %1046 = vector.broadcast %1045 : vector<1x14x144xf32> to vector<2x14x144xf32>
    %1047 = arith.mulf %1042, %1046 : vector<2x14x144xf32>
    %1048 = arith.addf %1041, %1047 : vector<2x14x144xf32>
    %1049 = vector.extract_strided_slice %1026 {offsets = [3, 0, 0], sizes = [2, 14, 144], strides = [1, 1, 1]} : vector<6x14x144xf32> to vector<2x14x144xf32>
    %1050 = vector.extract_strided_slice %1027 {offsets = [3, 0, 0], sizes = [1, 14, 144], strides = [1, 1, 1]} : vector<5x14x144xf32> to vector<1x14x144xf32>
    %1051 = vector.shape_cast %1050 : vector<1x14x144xf32> to vector<14x144xf32>
    %1052 = vector.shape_cast %1051 : vector<14x144xf32> to vector<1x14x144xf32>
    %1053 = vector.broadcast %1052 : vector<1x14x144xf32> to vector<2x14x144xf32>
    %1054 = arith.mulf %1049, %1053 : vector<2x14x144xf32>
    %1055 = arith.addf %1048, %1054 : vector<2x14x144xf32>
    %1056 = vector.extract_strided_slice %1026 {offsets = [4, 0, 0], sizes = [2, 14, 144], strides = [1, 1, 1]} : vector<6x14x144xf32> to vector<2x14x144xf32>
    %1057 = vector.extract_strided_slice %1027 {offsets = [4, 0, 0], sizes = [1, 14, 144], strides = [1, 1, 1]} : vector<5x14x144xf32> to vector<1x14x144xf32>
    %1058 = vector.shape_cast %1057 : vector<1x14x144xf32> to vector<14x144xf32>
    %1059 = vector.shape_cast %1058 : vector<14x144xf32> to vector<1x14x144xf32>
    %1060 = vector.broadcast %1059 : vector<1x14x144xf32> to vector<2x14x144xf32>
    %1061 = arith.mulf %1056, %1060 : vector<2x14x144xf32>
    %1062 = arith.addf %1055, %1061 : vector<2x14x144xf32>
    %c1_213 = arith.constant 1 : index
    %1063 = arith.index_cast %1022 : i32 to index
    %c0_214 = arith.constant 0 : index
    %c0_215 = arith.constant 0 : index
    %1064 = vector.load %arg3[%c1_213, %1063, %c0_214, %c0_215] : memref<5x18x14x144xf32, #tpu.memory_space<vmem>>, vector<1x6x14x144xf32>
    %1065 = vector.shape_cast %1064 : vector<1x6x14x144xf32> to vector<6x14x144xf32>
    %c5_216 = arith.constant 5 : index
    %c0_217 = arith.constant 0 : index
    %c0_218 = arith.constant 0 : index
    %1066 = vector.load %arg4[%c5_216, %c0_217, %c0_218] : memref<25x14x144xf32, #tpu.memory_space<vmem>>, vector<5x14x144xf32>
    %1067 = vector.extract_strided_slice %1065 {offsets = [0, 0, 0], sizes = [2, 14, 144], strides = [1, 1, 1]} : vector<6x14x144xf32> to vector<2x14x144xf32>
    %1068 = vector.extract_strided_slice %1066 {offsets = [0, 0, 0], sizes = [1, 14, 144], strides = [1, 1, 1]} : vector<5x14x144xf32> to vector<1x14x144xf32>
    %1069 = vector.shape_cast %1068 : vector<1x14x144xf32> to vector<14x144xf32>
    %1070 = vector.shape_cast %1069 : vector<14x144xf32> to vector<1x14x144xf32>
    %1071 = vector.broadcast %1070 : vector<1x14x144xf32> to vector<2x14x144xf32>
    %1072 = arith.mulf %1067, %1071 : vector<2x14x144xf32>
    %1073 = arith.addf %1062, %1072 : vector<2x14x144xf32>
    %1074 = vector.extract_strided_slice %1065 {offsets = [1, 0, 0], sizes = [2, 14, 144], strides = [1, 1, 1]} : vector<6x14x144xf32> to vector<2x14x144xf32>
    %1075 = vector.extract_strided_slice %1066 {offsets = [1, 0, 0], sizes = [1, 14, 144], strides = [1, 1, 1]} : vector<5x14x144xf32> to vector<1x14x144xf32>
    %1076 = vector.shape_cast %1075 : vector<1x14x144xf32> to vector<14x144xf32>
    %1077 = vector.shape_cast %1076 : vector<14x144xf32> to vector<1x14x144xf32>
    %1078 = vector.broadcast %1077 : vector<1x14x144xf32> to vector<2x14x144xf32>
    %1079 = arith.mulf %1074, %1078 : vector<2x14x144xf32>
    %1080 = arith.addf %1073, %1079 : vector<2x14x144xf32>
    %1081 = vector.extract_strided_slice %1065 {offsets = [2, 0, 0], sizes = [2, 14, 144], strides = [1, 1, 1]} : vector<6x14x144xf32> to vector<2x14x144xf32>
    %1082 = vector.extract_strided_slice %1066 {offsets = [2, 0, 0], sizes = [1, 14, 144], strides = [1, 1, 1]} : vector<5x14x144xf32> to vector<1x14x144xf32>
    %1083 = vector.shape_cast %1082 : vector<1x14x144xf32> to vector<14x144xf32>
    %1084 = vector.shape_cast %1083 : vector<14x144xf32> to vector<1x14x144xf32>
    %1085 = vector.broadcast %1084 : vector<1x14x144xf32> to vector<2x14x144xf32>
    %1086 = arith.mulf %1081, %1085 : vector<2x14x144xf32>
    %1087 = arith.addf %1080, %1086 : vector<2x14x144xf32>
    %1088 = vector.extract_strided_slice %1065 {offsets = [3, 0, 0], sizes = [2, 14, 144], strides = [1, 1, 1]} : vector<6x14x144xf32> to vector<2x14x144xf32>
    %1089 = vector.extract_strided_slice %1066 {offsets = [3, 0, 0], sizes = [1, 14, 144], strides = [1, 1, 1]} : vector<5x14x144xf32> to vector<1x14x144xf32>
    %1090 = vector.shape_cast %1089 : vector<1x14x144xf32> to vector<14x144xf32>
    %1091 = vector.shape_cast %1090 : vector<14x144xf32> to vector<1x14x144xf32>
    %1092 = vector.broadcast %1091 : vector<1x14x144xf32> to vector<2x14x144xf32>
    %1093 = arith.mulf %1088, %1092 : vector<2x14x144xf32>
    %1094 = arith.addf %1087, %1093 : vector<2x14x144xf32>
    %1095 = vector.extract_strided_slice %1065 {offsets = [4, 0, 0], sizes = [2, 14, 144], strides = [1, 1, 1]} : vector<6x14x144xf32> to vector<2x14x144xf32>
    %1096 = vector.extract_strided_slice %1066 {offsets = [4, 0, 0], sizes = [1, 14, 144], strides = [1, 1, 1]} : vector<5x14x144xf32> to vector<1x14x144xf32>
    %1097 = vector.shape_cast %1096 : vector<1x14x144xf32> to vector<14x144xf32>
    %1098 = vector.shape_cast %1097 : vector<14x144xf32> to vector<1x14x144xf32>
    %1099 = vector.broadcast %1098 : vector<1x14x144xf32> to vector<2x14x144xf32>
    %1100 = arith.mulf %1095, %1099 : vector<2x14x144xf32>
    %1101 = arith.addf %1094, %1100 : vector<2x14x144xf32>
    %c2_219 = arith.constant 2 : index
    %1102 = arith.index_cast %1022 : i32 to index
    %c0_220 = arith.constant 0 : index
    %c0_221 = arith.constant 0 : index
    %1103 = vector.load %arg3[%c2_219, %1102, %c0_220, %c0_221] : memref<5x18x14x144xf32, #tpu.memory_space<vmem>>, vector<1x6x14x144xf32>
    %1104 = vector.shape_cast %1103 : vector<1x6x14x144xf32> to vector<6x14x144xf32>
    %c10_222 = arith.constant 10 : index
    %c0_223 = arith.constant 0 : index
    %c0_224 = arith.constant 0 : index
    %1105 = vector.load %arg4[%c10_222, %c0_223, %c0_224] : memref<25x14x144xf32, #tpu.memory_space<vmem>>, vector<5x14x144xf32>
    %1106 = vector.extract_strided_slice %1104 {offsets = [0, 0, 0], sizes = [2, 14, 144], strides = [1, 1, 1]} : vector<6x14x144xf32> to vector<2x14x144xf32>
    %1107 = vector.extract_strided_slice %1105 {offsets = [0, 0, 0], sizes = [1, 14, 144], strides = [1, 1, 1]} : vector<5x14x144xf32> to vector<1x14x144xf32>
    %1108 = vector.shape_cast %1107 : vector<1x14x144xf32> to vector<14x144xf32>
    %1109 = vector.shape_cast %1108 : vector<14x144xf32> to vector<1x14x144xf32>
    %1110 = vector.broadcast %1109 : vector<1x14x144xf32> to vector<2x14x144xf32>
    %1111 = arith.mulf %1106, %1110 : vector<2x14x144xf32>
    %1112 = arith.addf %1101, %1111 : vector<2x14x144xf32>
    %1113 = vector.extract_strided_slice %1104 {offsets = [1, 0, 0], sizes = [2, 14, 144], strides = [1, 1, 1]} : vector<6x14x144xf32> to vector<2x14x144xf32>
    %1114 = vector.extract_strided_slice %1105 {offsets = [1, 0, 0], sizes = [1, 14, 144], strides = [1, 1, 1]} : vector<5x14x144xf32> to vector<1x14x144xf32>
    %1115 = vector.shape_cast %1114 : vector<1x14x144xf32> to vector<14x144xf32>
    %1116 = vector.shape_cast %1115 : vector<14x144xf32> to vector<1x14x144xf32>
    %1117 = vector.broadcast %1116 : vector<1x14x144xf32> to vector<2x14x144xf32>
    %1118 = arith.mulf %1113, %1117 : vector<2x14x144xf32>
    %1119 = arith.addf %1112, %1118 : vector<2x14x144xf32>
    %1120 = vector.extract_strided_slice %1104 {offsets = [2, 0, 0], sizes = [2, 14, 144], strides = [1, 1, 1]} : vector<6x14x144xf32> to vector<2x14x144xf32>
    %1121 = vector.extract_strided_slice %1105 {offsets = [2, 0, 0], sizes = [1, 14, 144], strides = [1, 1, 1]} : vector<5x14x144xf32> to vector<1x14x144xf32>
    %1122 = vector.shape_cast %1121 : vector<1x14x144xf32> to vector<14x144xf32>
    %1123 = vector.shape_cast %1122 : vector<14x144xf32> to vector<1x14x144xf32>
    %1124 = vector.broadcast %1123 : vector<1x14x144xf32> to vector<2x14x144xf32>
    %1125 = arith.mulf %1120, %1124 : vector<2x14x144xf32>
    %1126 = arith.addf %1119, %1125 : vector<2x14x144xf32>
    %1127 = vector.extract_strided_slice %1104 {offsets = [3, 0, 0], sizes = [2, 14, 144], strides = [1, 1, 1]} : vector<6x14x144xf32> to vector<2x14x144xf32>
    %1128 = vector.extract_strided_slice %1105 {offsets = [3, 0, 0], sizes = [1, 14, 144], strides = [1, 1, 1]} : vector<5x14x144xf32> to vector<1x14x144xf32>
    %1129 = vector.shape_cast %1128 : vector<1x14x144xf32> to vector<14x144xf32>
    %1130 = vector.shape_cast %1129 : vector<14x144xf32> to vector<1x14x144xf32>
    %1131 = vector.broadcast %1130 : vector<1x14x144xf32> to vector<2x14x144xf32>
    %1132 = arith.mulf %1127, %1131 : vector<2x14x144xf32>
    %1133 = arith.addf %1126, %1132 : vector<2x14x144xf32>
    %1134 = vector.extract_strided_slice %1104 {offsets = [4, 0, 0], sizes = [2, 14, 144], strides = [1, 1, 1]} : vector<6x14x144xf32> to vector<2x14x144xf32>
    %1135 = vector.extract_strided_slice %1105 {offsets = [4, 0, 0], sizes = [1, 14, 144], strides = [1, 1, 1]} : vector<5x14x144xf32> to vector<1x14x144xf32>
    %1136 = vector.shape_cast %1135 : vector<1x14x144xf32> to vector<14x144xf32>
    %1137 = vector.shape_cast %1136 : vector<14x144xf32> to vector<1x14x144xf32>
    %1138 = vector.broadcast %1137 : vector<1x14x144xf32> to vector<2x14x144xf32>
    %1139 = arith.mulf %1134, %1138 : vector<2x14x144xf32>
    %1140 = arith.addf %1133, %1139 : vector<2x14x144xf32>
    %c3_225 = arith.constant 3 : index
    %1141 = arith.index_cast %1022 : i32 to index
    %c0_226 = arith.constant 0 : index
    %c0_227 = arith.constant 0 : index
    %1142 = vector.load %arg3[%c3_225, %1141, %c0_226, %c0_227] : memref<5x18x14x144xf32, #tpu.memory_space<vmem>>, vector<1x6x14x144xf32>
    %1143 = vector.shape_cast %1142 : vector<1x6x14x144xf32> to vector<6x14x144xf32>
    %c15_228 = arith.constant 15 : index
    %c0_229 = arith.constant 0 : index
    %c0_230 = arith.constant 0 : index
    %1144 = vector.load %arg4[%c15_228, %c0_229, %c0_230] : memref<25x14x144xf32, #tpu.memory_space<vmem>>, vector<5x14x144xf32>
    %1145 = vector.extract_strided_slice %1143 {offsets = [0, 0, 0], sizes = [2, 14, 144], strides = [1, 1, 1]} : vector<6x14x144xf32> to vector<2x14x144xf32>
    %1146 = vector.extract_strided_slice %1144 {offsets = [0, 0, 0], sizes = [1, 14, 144], strides = [1, 1, 1]} : vector<5x14x144xf32> to vector<1x14x144xf32>
    %1147 = vector.shape_cast %1146 : vector<1x14x144xf32> to vector<14x144xf32>
    %1148 = vector.shape_cast %1147 : vector<14x144xf32> to vector<1x14x144xf32>
    %1149 = vector.broadcast %1148 : vector<1x14x144xf32> to vector<2x14x144xf32>
    %1150 = arith.mulf %1145, %1149 : vector<2x14x144xf32>
    %1151 = arith.addf %1140, %1150 : vector<2x14x144xf32>
    %1152 = vector.extract_strided_slice %1143 {offsets = [1, 0, 0], sizes = [2, 14, 144], strides = [1, 1, 1]} : vector<6x14x144xf32> to vector<2x14x144xf32>
    %1153 = vector.extract_strided_slice %1144 {offsets = [1, 0, 0], sizes = [1, 14, 144], strides = [1, 1, 1]} : vector<5x14x144xf32> to vector<1x14x144xf32>
    %1154 = vector.shape_cast %1153 : vector<1x14x144xf32> to vector<14x144xf32>
    %1155 = vector.shape_cast %1154 : vector<14x144xf32> to vector<1x14x144xf32>
    %1156 = vector.broadcast %1155 : vector<1x14x144xf32> to vector<2x14x144xf32>
    %1157 = arith.mulf %1152, %1156 : vector<2x14x144xf32>
    %1158 = arith.addf %1151, %1157 : vector<2x14x144xf32>
    %1159 = vector.extract_strided_slice %1143 {offsets = [2, 0, 0], sizes = [2, 14, 144], strides = [1, 1, 1]} : vector<6x14x144xf32> to vector<2x14x144xf32>
    %1160 = vector.extract_strided_slice %1144 {offsets = [2, 0, 0], sizes = [1, 14, 144], strides = [1, 1, 1]} : vector<5x14x144xf32> to vector<1x14x144xf32>
    %1161 = vector.shape_cast %1160 : vector<1x14x144xf32> to vector<14x144xf32>
    %1162 = vector.shape_cast %1161 : vector<14x144xf32> to vector<1x14x144xf32>
    %1163 = vector.broadcast %1162 : vector<1x14x144xf32> to vector<2x14x144xf32>
    %1164 = arith.mulf %1159, %1163 : vector<2x14x144xf32>
    %1165 = arith.addf %1158, %1164 : vector<2x14x144xf32>
    %1166 = vector.extract_strided_slice %1143 {offsets = [3, 0, 0], sizes = [2, 14, 144], strides = [1, 1, 1]} : vector<6x14x144xf32> to vector<2x14x144xf32>
    %1167 = vector.extract_strided_slice %1144 {offsets = [3, 0, 0], sizes = [1, 14, 144], strides = [1, 1, 1]} : vector<5x14x144xf32> to vector<1x14x144xf32>
    %1168 = vector.shape_cast %1167 : vector<1x14x144xf32> to vector<14x144xf32>
    %1169 = vector.shape_cast %1168 : vector<14x144xf32> to vector<1x14x144xf32>
    %1170 = vector.broadcast %1169 : vector<1x14x144xf32> to vector<2x14x144xf32>
    %1171 = arith.mulf %1166, %1170 : vector<2x14x144xf32>
    %1172 = arith.addf %1165, %1171 : vector<2x14x144xf32>
    %1173 = vector.extract_strided_slice %1143 {offsets = [4, 0, 0], sizes = [2, 14, 144], strides = [1, 1, 1]} : vector<6x14x144xf32> to vector<2x14x144xf32>
    %1174 = vector.extract_strided_slice %1144 {offsets = [4, 0, 0], sizes = [1, 14, 144], strides = [1, 1, 1]} : vector<5x14x144xf32> to vector<1x14x144xf32>
    %1175 = vector.shape_cast %1174 : vector<1x14x144xf32> to vector<14x144xf32>
    %1176 = vector.shape_cast %1175 : vector<14x144xf32> to vector<1x14x144xf32>
    %1177 = vector.broadcast %1176 : vector<1x14x144xf32> to vector<2x14x144xf32>
    %1178 = arith.mulf %1173, %1177 : vector<2x14x144xf32>
    %1179 = arith.addf %1172, %1178 : vector<2x14x144xf32>
    %c4_231 = arith.constant 4 : index
    %1180 = arith.index_cast %1022 : i32 to index
    %c0_232 = arith.constant 0 : index
    %c0_233 = arith.constant 0 : index
    %1181 = vector.load %arg3[%c4_231, %1180, %c0_232, %c0_233] : memref<5x18x14x144xf32, #tpu.memory_space<vmem>>, vector<1x6x14x144xf32>
    %1182 = vector.shape_cast %1181 : vector<1x6x14x144xf32> to vector<6x14x144xf32>
    %c20_234 = arith.constant 20 : index
    %c0_235 = arith.constant 0 : index
    %c0_236 = arith.constant 0 : index
    %1183 = vector.load %arg4[%c20_234, %c0_235, %c0_236] : memref<25x14x144xf32, #tpu.memory_space<vmem>>, vector<5x14x144xf32>
    %1184 = vector.extract_strided_slice %1182 {offsets = [0, 0, 0], sizes = [2, 14, 144], strides = [1, 1, 1]} : vector<6x14x144xf32> to vector<2x14x144xf32>
    %1185 = vector.extract_strided_slice %1183 {offsets = [0, 0, 0], sizes = [1, 14, 144], strides = [1, 1, 1]} : vector<5x14x144xf32> to vector<1x14x144xf32>
    %1186 = vector.shape_cast %1185 : vector<1x14x144xf32> to vector<14x144xf32>
    %1187 = vector.shape_cast %1186 : vector<14x144xf32> to vector<1x14x144xf32>
    %1188 = vector.broadcast %1187 : vector<1x14x144xf32> to vector<2x14x144xf32>
    %1189 = arith.mulf %1184, %1188 : vector<2x14x144xf32>
    %1190 = arith.addf %1179, %1189 : vector<2x14x144xf32>
    %1191 = vector.extract_strided_slice %1182 {offsets = [1, 0, 0], sizes = [2, 14, 144], strides = [1, 1, 1]} : vector<6x14x144xf32> to vector<2x14x144xf32>
    %1192 = vector.extract_strided_slice %1183 {offsets = [1, 0, 0], sizes = [1, 14, 144], strides = [1, 1, 1]} : vector<5x14x144xf32> to vector<1x14x144xf32>
    %1193 = vector.shape_cast %1192 : vector<1x14x144xf32> to vector<14x144xf32>
    %1194 = vector.shape_cast %1193 : vector<14x144xf32> to vector<1x14x144xf32>
    %1195 = vector.broadcast %1194 : vector<1x14x144xf32> to vector<2x14x144xf32>
    %1196 = arith.mulf %1191, %1195 : vector<2x14x144xf32>
    %1197 = arith.addf %1190, %1196 : vector<2x14x144xf32>
    %1198 = vector.extract_strided_slice %1182 {offsets = [2, 0, 0], sizes = [2, 14, 144], strides = [1, 1, 1]} : vector<6x14x144xf32> to vector<2x14x144xf32>
    %1199 = vector.extract_strided_slice %1183 {offsets = [2, 0, 0], sizes = [1, 14, 144], strides = [1, 1, 1]} : vector<5x14x144xf32> to vector<1x14x144xf32>
    %1200 = vector.shape_cast %1199 : vector<1x14x144xf32> to vector<14x144xf32>
    %1201 = vector.shape_cast %1200 : vector<14x144xf32> to vector<1x14x144xf32>
    %1202 = vector.broadcast %1201 : vector<1x14x144xf32> to vector<2x14x144xf32>
    %1203 = arith.mulf %1198, %1202 : vector<2x14x144xf32>
    %1204 = arith.addf %1197, %1203 : vector<2x14x144xf32>
    %1205 = vector.extract_strided_slice %1182 {offsets = [3, 0, 0], sizes = [2, 14, 144], strides = [1, 1, 1]} : vector<6x14x144xf32> to vector<2x14x144xf32>
    %1206 = vector.extract_strided_slice %1183 {offsets = [3, 0, 0], sizes = [1, 14, 144], strides = [1, 1, 1]} : vector<5x14x144xf32> to vector<1x14x144xf32>
    %1207 = vector.shape_cast %1206 : vector<1x14x144xf32> to vector<14x144xf32>
    %1208 = vector.shape_cast %1207 : vector<14x144xf32> to vector<1x14x144xf32>
    %1209 = vector.broadcast %1208 : vector<1x14x144xf32> to vector<2x14x144xf32>
    %1210 = arith.mulf %1205, %1209 : vector<2x14x144xf32>
    %1211 = arith.addf %1204, %1210 : vector<2x14x144xf32>
    %1212 = vector.extract_strided_slice %1182 {offsets = [4, 0, 0], sizes = [2, 14, 144], strides = [1, 1, 1]} : vector<6x14x144xf32> to vector<2x14x144xf32>
    %1213 = vector.extract_strided_slice %1183 {offsets = [4, 0, 0], sizes = [1, 14, 144], strides = [1, 1, 1]} : vector<5x14x144xf32> to vector<1x14x144xf32>
    %1214 = vector.shape_cast %1213 : vector<1x14x144xf32> to vector<14x144xf32>
    %1215 = vector.shape_cast %1214 : vector<14x144xf32> to vector<1x14x144xf32>
    %1216 = vector.broadcast %1215 : vector<1x14x144xf32> to vector<2x14x144xf32>
    %1217 = arith.mulf %1212, %1216 : vector<2x14x144xf32>
    %1218 = arith.addf %1211, %1217 : vector<2x14x144xf32>
    %1219 = arith.index_cast %1022 : i32 to index
    %c0_237 = arith.constant 0 : index
    %c0_238 = arith.constant 0 : index
    %1220 = vector.load %arg2[%1219, %c0_237, %c0_238] : memref<14x14x144xf32, #tpu.memory_space<vmem>>, vector<2x14x144xf32>
    tpu.vector_store %arg2[%1219, %c0_237, %c0_238], %1218 {strides = array<i32>} : memref<14x14x144xf32, #tpu.memory_space<vmem>>, vector<2x14x144xf32>,
    %c6_i32 = arith.constant 6 : i32
    %c2_i32_239 = arith.constant 2 : i32
    %1221 = arith.muli %c6_i32, %c2_i32_239 : i32
    %cst_240 = arith.constant 0.000000e+00 : f32
    %1222 = vector.broadcast %cst_240 : f32 to vector<2x14x144xf32>
    %c0_241 = arith.constant 0 : index
    %1223 = arith.index_cast %1221 : i32 to index
    %c0_242 = arith.constant 0 : index
    %c0_243 = arith.constant 0 : index
    %1224 = vector.load %arg3[%c0_241, %1223, %c0_242, %c0_243] : memref<5x18x14x144xf32, #tpu.memory_space<vmem>>, vector<1x6x14x144xf32>
    %1225 = vector.shape_cast %1224 : vector<1x6x14x144xf32> to vector<6x14x144xf32>
    %c0_244 = arith.constant 0 : index
    %c0_245 = arith.constant 0 : index
    %c0_246 = arith.constant 0 : index
    %1226 = vector.load %arg4[%c0_244, %c0_245, %c0_246] : memref<25x14x144xf32, #tpu.memory_space<vmem>>, vector<5x14x144xf32>
    %1227 = vector.extract_strided_slice %1225 {offsets = [0, 0, 0], sizes = [2, 14, 144], strides = [1, 1, 1]} : vector<6x14x144xf32> to vector<2x14x144xf32>
    %1228 = vector.extract_strided_slice %1226 {offsets = [0, 0, 0], sizes = [1, 14, 144], strides = [1, 1, 1]} : vector<5x14x144xf32> to vector<1x14x144xf32>
    %1229 = vector.shape_cast %1228 : vector<1x14x144xf32> to vector<14x144xf32>
    %1230 = vector.shape_cast %1229 : vector<14x144xf32> to vector<1x14x144xf32>
    %1231 = vector.broadcast %1230 : vector<1x14x144xf32> to vector<2x14x144xf32>
    %1232 = arith.mulf %1227, %1231 : vector<2x14x144xf32>
    %1233 = arith.addf %1222, %1232 : vector<2x14x144xf32>
    %1234 = vector.extract_strided_slice %1225 {offsets = [1, 0, 0], sizes = [2, 14, 144], strides = [1, 1, 1]} : vector<6x14x144xf32> to vector<2x14x144xf32>
    %1235 = vector.extract_strided_slice %1226 {offsets = [1, 0, 0], sizes = [1, 14, 144], strides = [1, 1, 1]} : vector<5x14x144xf32> to vector<1x14x144xf32>
    %1236 = vector.shape_cast %1235 : vector<1x14x144xf32> to vector<14x144xf32>
    %1237 = vector.shape_cast %1236 : vector<14x144xf32> to vector<1x14x144xf32>
    %1238 = vector.broadcast %1237 : vector<1x14x144xf32> to vector<2x14x144xf32>
    %1239 = arith.mulf %1234, %1238 : vector<2x14x144xf32>
    %1240 = arith.addf %1233, %1239 : vector<2x14x144xf32>
    %1241 = vector.extract_strided_slice %1225 {offsets = [2, 0, 0], sizes = [2, 14, 144], strides = [1, 1, 1]} : vector<6x14x144xf32> to vector<2x14x144xf32>
    %1242 = vector.extract_strided_slice %1226 {offsets = [2, 0, 0], sizes = [1, 14, 144], strides = [1, 1, 1]} : vector<5x14x144xf32> to vector<1x14x144xf32>
    %1243 = vector.shape_cast %1242 : vector<1x14x144xf32> to vector<14x144xf32>
    %1244 = vector.shape_cast %1243 : vector<14x144xf32> to vector<1x14x144xf32>
    %1245 = vector.broadcast %1244 : vector<1x14x144xf32> to vector<2x14x144xf32>
    %1246 = arith.mulf %1241, %1245 : vector<2x14x144xf32>
    %1247 = arith.addf %1240, %1246 : vector<2x14x144xf32>
    %1248 = vector.extract_strided_slice %1225 {offsets = [3, 0, 0], sizes = [2, 14, 144], strides = [1, 1, 1]} : vector<6x14x144xf32> to vector<2x14x144xf32>
    %1249 = vector.extract_strided_slice %1226 {offsets = [3, 0, 0], sizes = [1, 14, 144], strides = [1, 1, 1]} : vector<5x14x144xf32> to vector<1x14x144xf32>
    %1250 = vector.shape_cast %1249 : vector<1x14x144xf32> to vector<14x144xf32>
    %1251 = vector.shape_cast %1250 : vector<14x144xf32> to vector<1x14x144xf32>
    %1252 = vector.broadcast %1251 : vector<1x14x144xf32> to vector<2x14x144xf32>
    %1253 = arith.mulf %1248, %1252 : vector<2x14x144xf32>
    %1254 = arith.addf %1247, %1253 : vector<2x14x144xf32>
    %1255 = vector.extract_strided_slice %1225 {offsets = [4, 0, 0], sizes = [2, 14, 144], strides = [1, 1, 1]} : vector<6x14x144xf32> to vector<2x14x144xf32>
    %1256 = vector.extract_strided_slice %1226 {offsets = [4, 0, 0], sizes = [1, 14, 144], strides = [1, 1, 1]} : vector<5x14x144xf32> to vector<1x14x144xf32>
    %1257 = vector.shape_cast %1256 : vector<1x14x144xf32> to vector<14x144xf32>
    %1258 = vector.shape_cast %1257 : vector<14x144xf32> to vector<1x14x144xf32>
    %1259 = vector.broadcast %1258 : vector<1x14x144xf32> to vector<2x14x144xf32>
    %1260 = arith.mulf %1255, %1259 : vector<2x14x144xf32>
    %1261 = arith.addf %1254, %1260 : vector<2x14x144xf32>
    %c1_247 = arith.constant 1 : index
    %1262 = arith.index_cast %1221 : i32 to index
    %c0_248 = arith.constant 0 : index
    %c0_249 = arith.constant 0 : index
    %1263 = vector.load %arg3[%c1_247, %1262, %c0_248, %c0_249] : memref<5x18x14x144xf32, #tpu.memory_space<vmem>>, vector<1x6x14x144xf32>
    %1264 = vector.shape_cast %1263 : vector<1x6x14x144xf32> to vector<6x14x144xf32>
    %c5_250 = arith.constant 5 : index
    %c0_251 = arith.constant 0 : index
    %c0_252 = arith.constant 0 : index
    %1265 = vector.load %arg4[%c5_250, %c0_251, %c0_252] : memref<25x14x144xf32, #tpu.memory_space<vmem>>, vector<5x14x144xf32>
    %1266 = vector.extract_strided_slice %1264 {offsets = [0, 0, 0], sizes = [2, 14, 144], strides = [1, 1, 1]} : vector<6x14x144xf32> to vector<2x14x144xf32>
    %1267 = vector.extract_strided_slice %1265 {offsets = [0, 0, 0], sizes = [1, 14, 144], strides = [1, 1, 1]} : vector<5x14x144xf32> to vector<1x14x144xf32>
    %1268 = vector.shape_cast %1267 : vector<1x14x144xf32> to vector<14x144xf32>
    %1269 = vector.shape_cast %1268 : vector<14x144xf32> to vector<1x14x144xf32>
    %1270 = vector.broadcast %1269 : vector<1x14x144xf32> to vector<2x14x144xf32>
    %1271 = arith.mulf %1266, %1270 : vector<2x14x144xf32>
    %1272 = arith.addf %1261, %1271 : vector<2x14x144xf32>
    %1273 = vector.extract_strided_slice %1264 {offsets = [1, 0, 0], sizes = [2, 14, 144], strides = [1, 1, 1]} : vector<6x14x144xf32> to vector<2x14x144xf32>
    %1274 = vector.extract_strided_slice %1265 {offsets = [1, 0, 0], sizes = [1, 14, 144], strides = [1, 1, 1]} : vector<5x14x144xf32> to vector<1x14x144xf32>
    %1275 = vector.shape_cast %1274 : vector<1x14x144xf32> to vector<14x144xf32>
    %1276 = vector.shape_cast %1275 : vector<14x144xf32> to vector<1x14x144xf32>
    %1277 = vector.broadcast %1276 : vector<1x14x144xf32> to vector<2x14x144xf32>
    %1278 = arith.mulf %1273, %1277 : vector<2x14x144xf32>
    %1279 = arith.addf %1272, %1278 : vector<2x14x144xf32>
    %1280 = vector.extract_strided_slice %1264 {offsets = [2, 0, 0], sizes = [2, 14, 144], strides = [1, 1, 1]} : vector<6x14x144xf32> to vector<2x14x144xf32>
    %1281 = vector.extract_strided_slice %1265 {offsets = [2, 0, 0], sizes = [1, 14, 144], strides = [1, 1, 1]} : vector<5x14x144xf32> to vector<1x14x144xf32>
    %1282 = vector.shape_cast %1281 : vector<1x14x144xf32> to vector<14x144xf32>
    %1283 = vector.shape_cast %1282 : vector<14x144xf32> to vector<1x14x144xf32>
    %1284 = vector.broadcast %1283 : vector<1x14x144xf32> to vector<2x14x144xf32>
    %1285 = arith.mulf %1280, %1284 : vector<2x14x144xf32>
    %1286 = arith.addf %1279, %1285 : vector<2x14x144xf32>
    %1287 = vector.extract_strided_slice %1264 {offsets = [3, 0, 0], sizes = [2, 14, 144], strides = [1, 1, 1]} : vector<6x14x144xf32> to vector<2x14x144xf32>
    %1288 = vector.extract_strided_slice %1265 {offsets = [3, 0, 0], sizes = [1, 14, 144], strides = [1, 1, 1]} : vector<5x14x144xf32> to vector<1x14x144xf32>
    %1289 = vector.shape_cast %1288 : vector<1x14x144xf32> to vector<14x144xf32>
    %1290 = vector.shape_cast %1289 : vector<14x144xf32> to vector<1x14x144xf32>
    %1291 = vector.broadcast %1290 : vector<1x14x144xf32> to vector<2x14x144xf32>
    %1292 = arith.mulf %1287, %1291 : vector<2x14x144xf32>
    %1293 = arith.addf %1286, %1292 : vector<2x14x144xf32>
    %1294 = vector.extract_strided_slice %1264 {offsets = [4, 0, 0], sizes = [2, 14, 144], strides = [1, 1, 1]} : vector<6x14x144xf32> to vector<2x14x144xf32>
    %1295 = vector.extract_strided_slice %1265 {offsets = [4, 0, 0], sizes = [1, 14, 144], strides = [1, 1, 1]} : vector<5x14x144xf32> to vector<1x14x144xf32>
    %1296 = vector.shape_cast %1295 : vector<1x14x144xf32> to vector<14x144xf32>
    %1297 = vector.shape_cast %1296 : vector<14x144xf32> to vector<1x14x144xf32>
    %1298 = vector.broadcast %1297 : vector<1x14x144xf32> to vector<2x14x144xf32>
    %1299 = arith.mulf %1294, %1298 : vector<2x14x144xf32>
    %1300 = arith.addf %1293, %1299 : vector<2x14x144xf32>
    %c2_253 = arith.constant 2 : index
    %1301 = arith.index_cast %1221 : i32 to index
    %c0_254 = arith.constant 0 : index
    %c0_255 = arith.constant 0 : index
    %1302 = vector.load %arg3[%c2_253, %1301, %c0_254, %c0_255] : memref<5x18x14x144xf32, #tpu.memory_space<vmem>>, vector<1x6x14x144xf32>
    %1303 = vector.shape_cast %1302 : vector<1x6x14x144xf32> to vector<6x14x144xf32>
    %c10_256 = arith.constant 10 : index
    %c0_257 = arith.constant 0 : index
    %c0_258 = arith.constant 0 : index
    %1304 = vector.load %arg4[%c10_256, %c0_257, %c0_258] : memref<25x14x144xf32, #tpu.memory_space<vmem>>, vector<5x14x144xf32>
    %1305 = vector.extract_strided_slice %1303 {offsets = [0, 0, 0], sizes = [2, 14, 144], strides = [1, 1, 1]} : vector<6x14x144xf32> to vector<2x14x144xf32>
    %1306 = vector.extract_strided_slice %1304 {offsets = [0, 0, 0], sizes = [1, 14, 144], strides = [1, 1, 1]} : vector<5x14x144xf32> to vector<1x14x144xf32>
    %1307 = vector.shape_cast %1306 : vector<1x14x144xf32> to vector<14x144xf32>
    %1308 = vector.shape_cast %1307 : vector<14x144xf32> to vector<1x14x144xf32>
    %1309 = vector.broadcast %1308 : vector<1x14x144xf32> to vector<2x14x144xf32>
    %1310 = arith.mulf %1305, %1309 : vector<2x14x144xf32>
    %1311 = arith.addf %1300, %1310 : vector<2x14x144xf32>
    %1312 = vector.extract_strided_slice %1303 {offsets = [1, 0, 0], sizes = [2, 14, 144], strides = [1, 1, 1]} : vector<6x14x144xf32> to vector<2x14x144xf32>
    %1313 = vector.extract_strided_slice %1304 {offsets = [1, 0, 0], sizes = [1, 14, 144], strides = [1, 1, 1]} : vector<5x14x144xf32> to vector<1x14x144xf32>
    %1314 = vector.shape_cast %1313 : vector<1x14x144xf32> to vector<14x144xf32>
    %1315 = vector.shape_cast %1314 : vector<14x144xf32> to vector<1x14x144xf32>
    %1316 = vector.broadcast %1315 : vector<1x14x144xf32> to vector<2x14x144xf32>
    %1317 = arith.mulf %1312, %1316 : vector<2x14x144xf32>
    %1318 = arith.addf %1311, %1317 : vector<2x14x144xf32>
    %1319 = vector.extract_strided_slice %1303 {offsets = [2, 0, 0], sizes = [2, 14, 144], strides = [1, 1, 1]} : vector<6x14x144xf32> to vector<2x14x144xf32>
    %1320 = vector.extract_strided_slice %1304 {offsets = [2, 0, 0], sizes = [1, 14, 144], strides = [1, 1, 1]} : vector<5x14x144xf32> to vector<1x14x144xf32>
    %1321 = vector.shape_cast %1320 : vector<1x14x144xf32> to vector<14x144xf32>
    %1322 = vector.shape_cast %1321 : vector<14x144xf32> to vector<1x14x144xf32>
    %1323 = vector.broadcast %1322 : vector<1x14x144xf32> to vector<2x14x144xf32>
    %1324 = arith.mulf %1319, %1323 : vector<2x14x144xf32>
    %1325 = arith.addf %1318, %1324 : vector<2x14x144xf32>
    %1326 = vector.extract_strided_slice %1303 {offsets = [3, 0, 0], sizes = [2, 14, 144], strides = [1, 1, 1]} : vector<6x14x144xf32> to vector<2x14x144xf32>
    %1327 = vector.extract_strided_slice %1304 {offsets = [3, 0, 0], sizes = [1, 14, 144], strides = [1, 1, 1]} : vector<5x14x144xf32> to vector<1x14x144xf32>
    %1328 = vector.shape_cast %1327 : vector<1x14x144xf32> to vector<14x144xf32>
    %1329 = vector.shape_cast %1328 : vector<14x144xf32> to vector<1x14x144xf32>
    %1330 = vector.broadcast %1329 : vector<1x14x144xf32> to vector<2x14x144xf32>
    %1331 = arith.mulf %1326, %1330 : vector<2x14x144xf32>
    %1332 = arith.addf %1325, %1331 : vector<2x14x144xf32>
    %1333 = vector.extract_strided_slice %1303 {offsets = [4, 0, 0], sizes = [2, 14, 144], strides = [1, 1, 1]} : vector<6x14x144xf32> to vector<2x14x144xf32>
    %1334 = vector.extract_strided_slice %1304 {offsets = [4, 0, 0], sizes = [1, 14, 144], strides = [1, 1, 1]} : vector<5x14x144xf32> to vector<1x14x144xf32>
    %1335 = vector.shape_cast %1334 : vector<1x14x144xf32> to vector<14x144xf32>
    %1336 = vector.shape_cast %1335 : vector<14x144xf32> to vector<1x14x144xf32>
    %1337 = vector.broadcast %1336 : vector<1x14x144xf32> to vector<2x14x144xf32>
    %1338 = arith.mulf %1333, %1337 : vector<2x14x144xf32>
    %1339 = arith.addf %1332, %1338 : vector<2x14x144xf32>
    %c3_259 = arith.constant 3 : index
    %1340 = arith.index_cast %1221 : i32 to index
    %c0_260 = arith.constant 0 : index
    %c0_261 = arith.constant 0 : index
    %1341 = vector.load %arg3[%c3_259, %1340, %c0_260, %c0_261] : memref<5x18x14x144xf32, #tpu.memory_space<vmem>>, vector<1x6x14x144xf32>
    %1342 = vector.shape_cast %1341 : vector<1x6x14x144xf32> to vector<6x14x144xf32>
    %c15_262 = arith.constant 15 : index
    %c0_263 = arith.constant 0 : index
    %c0_264 = arith.constant 0 : index
    %1343 = vector.load %arg4[%c15_262, %c0_263, %c0_264] : memref<25x14x144xf32, #tpu.memory_space<vmem>>, vector<5x14x144xf32>
    %1344 = vector.extract_strided_slice %1342 {offsets = [0, 0, 0], sizes = [2, 14, 144], strides = [1, 1, 1]} : vector<6x14x144xf32> to vector<2x14x144xf32>
    %1345 = vector.extract_strided_slice %1343 {offsets = [0, 0, 0], sizes = [1, 14, 144], strides = [1, 1, 1]} : vector<5x14x144xf32> to vector<1x14x144xf32>
    %1346 = vector.shape_cast %1345 : vector<1x14x144xf32> to vector<14x144xf32>
    %1347 = vector.shape_cast %1346 : vector<14x144xf32> to vector<1x14x144xf32>
    %1348 = vector.broadcast %1347 : vector<1x14x144xf32> to vector<2x14x144xf32>
    %1349 = arith.mulf %1344, %1348 : vector<2x14x144xf32>
    %1350 = arith.addf %1339, %1349 : vector<2x14x144xf32>
    %1351 = vector.extract_strided_slice %1342 {offsets = [1, 0, 0], sizes = [2, 14, 144], strides = [1, 1, 1]} : vector<6x14x144xf32> to vector<2x14x144xf32>
    %1352 = vector.extract_strided_slice %1343 {offsets = [1, 0, 0], sizes = [1, 14, 144], strides = [1, 1, 1]} : vector<5x14x144xf32> to vector<1x14x144xf32>
    %1353 = vector.shape_cast %1352 : vector<1x14x144xf32> to vector<14x144xf32>
    %1354 = vector.shape_cast %1353 : vector<14x144xf32> to vector<1x14x144xf32>
    %1355 = vector.broadcast %1354 : vector<1x14x144xf32> to vector<2x14x144xf32>
    %1356 = arith.mulf %1351, %1355 : vector<2x14x144xf32>
    %1357 = arith.addf %1350, %1356 : vector<2x14x144xf32>
    %1358 = vector.extract_strided_slice %1342 {offsets = [2, 0, 0], sizes = [2, 14, 144], strides = [1, 1, 1]} : vector<6x14x144xf32> to vector<2x14x144xf32>
    %1359 = vector.extract_strided_slice %1343 {offsets = [2, 0, 0], sizes = [1, 14, 144], strides = [1, 1, 1]} : vector<5x14x144xf32> to vector<1x14x144xf32>
    %1360 = vector.shape_cast %1359 : vector<1x14x144xf32> to vector<14x144xf32>
    %1361 = vector.shape_cast %1360 : vector<14x144xf32> to vector<1x14x144xf32>
    %1362 = vector.broadcast %1361 : vector<1x14x144xf32> to vector<2x14x144xf32>
    %1363 = arith.mulf %1358, %1362 : vector<2x14x144xf32>
    %1364 = arith.addf %1357, %1363 : vector<2x14x144xf32>
    %1365 = vector.extract_strided_slice %1342 {offsets = [3, 0, 0], sizes = [2, 14, 144], strides = [1, 1, 1]} : vector<6x14x144xf32> to vector<2x14x144xf32>
    %1366 = vector.extract_strided_slice %1343 {offsets = [3, 0, 0], sizes = [1, 14, 144], strides = [1, 1, 1]} : vector<5x14x144xf32> to vector<1x14x144xf32>
    %1367 = vector.shape_cast %1366 : vector<1x14x144xf32> to vector<14x144xf32>
    %1368 = vector.shape_cast %1367 : vector<14x144xf32> to vector<1x14x144xf32>
    %1369 = vector.broadcast %1368 : vector<1x14x144xf32> to vector<2x14x144xf32>
    %1370 = arith.mulf %1365, %1369 : vector<2x14x144xf32>
    %1371 = arith.addf %1364, %1370 : vector<2x14x144xf32>
    %1372 = vector.extract_strided_slice %1342 {offsets = [4, 0, 0], sizes = [2, 14, 144], strides = [1, 1, 1]} : vector<6x14x144xf32> to vector<2x14x144xf32>
    %1373 = vector.extract_strided_slice %1343 {offsets = [4, 0, 0], sizes = [1, 14, 144], strides = [1, 1, 1]} : vector<5x14x144xf32> to vector<1x14x144xf32>
    %1374 = vector.shape_cast %1373 : vector<1x14x144xf32> to vector<14x144xf32>
    %1375 = vector.shape_cast %1374 : vector<14x144xf32> to vector<1x14x144xf32>
    %1376 = vector.broadcast %1375 : vector<1x14x144xf32> to vector<2x14x144xf32>
    %1377 = arith.mulf %1372, %1376 : vector<2x14x144xf32>
    %1378 = arith.addf %1371, %1377 : vector<2x14x144xf32>
    %c4_265 = arith.constant 4 : index
    %1379 = arith.index_cast %1221 : i32 to index
    %c0_266 = arith.constant 0 : index
    %c0_267 = arith.constant 0 : index
    %1380 = vector.load %arg3[%c4_265, %1379, %c0_266, %c0_267] : memref<5x18x14x144xf32, #tpu.memory_space<vmem>>, vector<1x6x14x144xf32>
    %1381 = vector.shape_cast %1380 : vector<1x6x14x144xf32> to vector<6x14x144xf32>
    %c20_268 = arith.constant 20 : index
    %c0_269 = arith.constant 0 : index
    %c0_270 = arith.constant 0 : index
    %1382 = vector.load %arg4[%c20_268, %c0_269, %c0_270] : memref<25x14x144xf32, #tpu.memory_space<vmem>>, vector<5x14x144xf32>
    %1383 = vector.extract_strided_slice %1381 {offsets = [0, 0, 0], sizes = [2, 14, 144], strides = [1, 1, 1]} : vector<6x14x144xf32> to vector<2x14x144xf32>
    %1384 = vector.extract_strided_slice %1382 {offsets = [0, 0, 0], sizes = [1, 14, 144], strides = [1, 1, 1]} : vector<5x14x144xf32> to vector<1x14x144xf32>
    %1385 = vector.shape_cast %1384 : vector<1x14x144xf32> to vector<14x144xf32>
    %1386 = vector.shape_cast %1385 : vector<14x144xf32> to vector<1x14x144xf32>
    %1387 = vector.broadcast %1386 : vector<1x14x144xf32> to vector<2x14x144xf32>
    %1388 = arith.mulf %1383, %1387 : vector<2x14x144xf32>
    %1389 = arith.addf %1378, %1388 : vector<2x14x144xf32>
    %1390 = vector.extract_strided_slice %1381 {offsets = [1, 0, 0], sizes = [2, 14, 144], strides = [1, 1, 1]} : vector<6x14x144xf32> to vector<2x14x144xf32>
    %1391 = vector.extract_strided_slice %1382 {offsets = [1, 0, 0], sizes = [1, 14, 144], strides = [1, 1, 1]} : vector<5x14x144xf32> to vector<1x14x144xf32>
    %1392 = vector.shape_cast %1391 : vector<1x14x144xf32> to vector<14x144xf32>
    %1393 = vector.shape_cast %1392 : vector<14x144xf32> to vector<1x14x144xf32>
    %1394 = vector.broadcast %1393 : vector<1x14x144xf32> to vector<2x14x144xf32>
    %1395 = arith.mulf %1390, %1394 : vector<2x14x144xf32>
    %1396 = arith.addf %1389, %1395 : vector<2x14x144xf32>
    %1397 = vector.extract_strided_slice %1381 {offsets = [2, 0, 0], sizes = [2, 14, 144], strides = [1, 1, 1]} : vector<6x14x144xf32> to vector<2x14x144xf32>
    %1398 = vector.extract_strided_slice %1382 {offsets = [2, 0, 0], sizes = [1, 14, 144], strides = [1, 1, 1]} : vector<5x14x144xf32> to vector<1x14x144xf32>
    %1399 = vector.shape_cast %1398 : vector<1x14x144xf32> to vector<14x144xf32>
    %1400 = vector.shape_cast %1399 : vector<14x144xf32> to vector<1x14x144xf32>
    %1401 = vector.broadcast %1400 : vector<1x14x144xf32> to vector<2x14x144xf32>
    %1402 = arith.mulf %1397, %1401 : vector<2x14x144xf32>
    %1403 = arith.addf %1396, %1402 : vector<2x14x144xf32>
    %1404 = vector.extract_strided_slice %1381 {offsets = [3, 0, 0], sizes = [2, 14, 144], strides = [1, 1, 1]} : vector<6x14x144xf32> to vector<2x14x144xf32>
    %1405 = vector.extract_strided_slice %1382 {offsets = [3, 0, 0], sizes = [1, 14, 144], strides = [1, 1, 1]} : vector<5x14x144xf32> to vector<1x14x144xf32>
    %1406 = vector.shape_cast %1405 : vector<1x14x144xf32> to vector<14x144xf32>
    %1407 = vector.shape_cast %1406 : vector<14x144xf32> to vector<1x14x144xf32>
    %1408 = vector.broadcast %1407 : vector<1x14x144xf32> to vector<2x14x144xf32>
    %1409 = arith.mulf %1404, %1408 : vector<2x14x144xf32>
    %1410 = arith.addf %1403, %1409 : vector<2x14x144xf32>
    %1411 = vector.extract_strided_slice %1381 {offsets = [4, 0, 0], sizes = [2, 14, 144], strides = [1, 1, 1]} : vector<6x14x144xf32> to vector<2x14x144xf32>
    %1412 = vector.extract_strided_slice %1382 {offsets = [4, 0, 0], sizes = [1, 14, 144], strides = [1, 1, 1]} : vector<5x14x144xf32> to vector<1x14x144xf32>
    %1413 = vector.shape_cast %1412 : vector<1x14x144xf32> to vector<14x144xf32>
    %1414 = vector.shape_cast %1413 : vector<14x144xf32> to vector<1x14x144xf32>
    %1415 = vector.broadcast %1414 : vector<1x14x144xf32> to vector<2x14x144xf32>
    %1416 = arith.mulf %1411, %1415 : vector<2x14x144xf32>
    %1417 = arith.addf %1410, %1416 : vector<2x14x144xf32>
    %1418 = arith.index_cast %1221 : i32 to index
    %c0_271 = arith.constant 0 : index
    %c0_272 = arith.constant 0 : index
    %1419 = vector.load %arg2[%1418, %c0_271, %c0_272] : memref<14x14x144xf32, #tpu.memory_space<vmem>>, vector<2x14x144xf32>
    tpu.vector_store %arg2[%1418, %c0_271, %c0_272], %1417 {strides = array<i32>} : memref<14x14x144xf32, #tpu.memory_space<vmem>>, vector<2x14x144xf32>,
    %c7_i32 = arith.constant 7 : i32
    return
  }
}

</mosaic_0001>

<llo_original>
// kernel: depthwise_conv2d_pallas.1
$region0: #{depthwise_conv2d_pallas.1}
  #allocation0 [shape = 'u32[]', space=smem, size = 0x4, offset = 0x4, fixed_abs, tag = 'smem constant byte address 0x4 - core index']
  #allocation1 [shape = 'u32[144,128]{1,0:T(1,128)}', space=vmem, size = 0x12000, scoped, tag = 'internal scratch']
  #allocation2 [shape = 'f32[5,18,14,144]{3,2,1,0:T(8,128)}', space=vmem, size = 0x168000, scoped, tag = 'scratch operand']
  #allocation3 [shape = 'f32[25,14,144]{2,1,0:T(8,128)}', space=vmem, size = 0x64000, scoped, tag = 'scratch operand']
  %s0 = inlined_call_operand.vmem [shape: f32[14,14,144], index: 0, kind: input, shape index: {}]
  %s1 = inlined_call_operand.vmem [shape: f32[25,144], index: 1, kind: input, shape index: {}]
  %s2 = inlined_call_operand.vmem [shape: f32[14,14,144], index: 2, kind: output, shape index: {}]
  %s3 = sld [smem:[#allocation0]]
  $region18: #{depthwise_conv2d_pallas.1} parent=0
    _
  %s5 = ssub.s32 1, %s3
  %s6 = scalar_select 0, %s5, %s3
  // Predicated region
  $region2: #{depthwise_conv2d_pallas.1} parent=0 // pred_check
    _
  $region3: #{depthwise_conv2d_pallas.1} parent=0 // pred_check_branch
    %8 = sbr.rel (0) target = $region5
  $region4: #{depthwise_conv2d_pallas.1} parent=0 // pred_region
    _
  $region5: #{depthwise_conv2d_pallas.1} parent=0 // pred_fallthru
    _
  // Predicated region
  $region6: #{depthwise_conv2d_pallas.1} parent=0 // pred_check
    _
  $region7: #{depthwise_conv2d_pallas.1} parent=0 // pred_check_branch
    %10 = sbr.rel (0) target = $region9
  $region8: #{depthwise_conv2d_pallas.1} parent=0 // pred_region
    _
  $region9: #{depthwise_conv2d_pallas.1} parent=0 // pred_fallthru
    _
  %v11 = vld [vmem:[%s1] sm:$0xff]
  %v12 = vld [vmem:[%s1 + $0x8] sm:$0xff]
  %v13 = vld [vmem:[%s1 + $0x10] sm:$0xff]
  %v14 = vld [vmem:[%s1 + $0x18] sm:$0xff]
  %v15 = vld [vmem:[%s1 + $0x20] sm:$0xff]
  %v16 = vld [vmem:[%s1 + $0x28] sm:$0xff]
  %v17 = vld [vmem:[%s1 + $0x30] sm:$0x1]
  %v18 = vld [vmem:[%s1 + $0x38] sm:$0x1]
  %v27 = vcombine.low %v11, %v12
  %v28 = vcombine.high %v11, %v12
  %v30 = vunpack.c.l.s4 1966171168
  %v31 = vunpack.c.0.s8 %v30
  %v32 = vlaneseq
  %v33 = vshrl.u32 %v32, 7
  %v34 = vsub.s32 %v31, %v33
  %v35 = vrot.slane %v27, %v34
  %v37 = vunpack.c.l.s4 1966171168
  %v38 = vunpack.c.0.s8 %v37
  %v39 = vlaneseq
  %v40 = vshrl.u32 %v39, 7
  %v41 = vsub.s32 %v38, %v40
  %v42 = vrot.slane %v28, %v41
  %v43 = vcombine.high %v35, %v35
  %v44 = vcombine.high %v42, %v42
  %v46 = vunpack.c.l.s4 1966171168
  %v47 = vunpack.c.0.s8 %v46
  %v48 = vlaneseq
  %v49 = vshrl.u32 %v48, 7
  %v50 = vsub.s32 %v47, %v49
  %v51 = vrot.slane %v35, %v50
  %v53 = vunpack.c.l.s4 1966171168
  %v54 = vunpack.c.0.s8 %v53
  %v55 = vlaneseq
  %v56 = vshrl.u32 %v55, 7
  %v57 = vsub.s32 %v54, %v56
  %v58 = vrot.slane %v42, %v57
  %v60 = vunpack.c.l.s4 1966171168
  %v61 = vunpack.c.0.s8 %v60
  %v62 = vlaneseq
  %v63 = vshrl.u32 %v62, 7
  %v64 = vsub.s32 %v61, %v63
  %v65 = vrot.slane %v43, %v64
  %v67 = vunpack.c.l.s4 1966171168
  %v68 = vunpack.c.0.s8 %v67
  %v69 = vlaneseq
  %v70 = vshrl.u32 %v69, 7
  %v71 = vsub.s32 %v68, %v70
  %v72 = vrot.slane %v44, %v71
  %v73 = vcombine.high %v51, %v51
  %v74 = vcombine.high %v58, %v58
  %v75 = vcombine.high %v65, %v65
  %v76 = vcombine.high %v72, %v72
  %v77 = vcombine.low %v13, %v14
  %v78 = vcombine.high %v13, %v14
  %v80 = vunpack.c.l.s4 1966171168
  %v81 = vunpack.c.0.s8 %v80
  %v82 = vlaneseq
  %v83 = vshrl.u32 %v82, 7
  %v84 = vsub.s32 %v81, %v83
  %v85 = vrot.slane %v77, %v84
  %v87 = vunpack.c.l.s4 1966171168
  %v88 = vunpack.c.0.s8 %v87
  %v89 = vlaneseq
  %v90 = vshrl.u32 %v89, 7
  %v91 = vsub.s32 %v88, %v90
  %v92 = vrot.slane %v78, %v91
  %v93 = vcombine.high %v85, %v85
  %v94 = vcombine.high %v92, %v92
  %v96 = vunpack.c.l.s4 1966171168
  %v97 = vunpack.c.0.s8 %v96
  %v98 = vlaneseq
  %v99 = vshrl.u32 %v98, 7
  %v100 = vsub.s32 %v97, %v99
  %v101 = vrot.slane %v85, %v100
  %v103 = vunpack.c.l.s4 1966171168
  %v104 = vunpack.c.0.s8 %v103
  %v105 = vlaneseq
  %v106 = vshrl.u32 %v105, 7
  %v107 = vsub.s32 %v104, %v106
  %v108 = vrot.slane %v92, %v107
  %v110 = vunpack.c.l.s4 1966171168
  %v111 = vunpack.c.0.s8 %v110
  %v112 = vlaneseq
  %v113 = vshrl.u32 %v112, 7
  %v114 = vsub.s32 %v111, %v113
  %v115 = vrot.slane %v93, %v114
  %v117 = vunpack.c.l.s4 1966171168
  %v118 = vunpack.c.0.s8 %v117
  %v119 = vlaneseq
  %v120 = vshrl.u32 %v119, 7
  %v121 = vsub.s32 %v118, %v120
  %v122 = vrot.slane %v94, %v121
  %v123 = vcombine.high %v101, %v101
  %v124 = vcombine.high %v108, %v108
  %v125 = vcombine.high %v115, %v115
  %v126 = vcombine.high %v122, %v122
  %v127 = vcombine.low %v15, %v16
  %v128 = vcombine.high %v15, %v16
  %v130 = vunpack.c.l.s4 1966171168
  %v131 = vunpack.c.0.s8 %v130
  %v132 = vlaneseq
  %v133 = vshrl.u32 %v132, 7
  %v134 = vsub.s32 %v131, %v133
  %v135 = vrot.slane %v127, %v134
  %v137 = vunpack.c.l.s4 1966171168
  %v138 = vunpack.c.0.s8 %v137
  %v139 = vlaneseq
  %v140 = vshrl.u32 %v139, 7
  %v141 = vsub.s32 %v138, %v140
  %v142 = vrot.slane %v128, %v141
  %v143 = vcombine.high %v135, %v135
  %v144 = vcombine.high %v142, %v142
  %v146 = vunpack.c.l.s4 1966171168
  %v147 = vunpack.c.0.s8 %v146
  %v148 = vlaneseq
  %v149 = vshrl.u32 %v148, 7
  %v150 = vsub.s32 %v147, %v149
  %v151 = vrot.slane %v135, %v150
  %v153 = vunpack.c.l.s4 1966171168
  %v154 = vunpack.c.0.s8 %v153
  %v155 = vlaneseq
  %v156 = vshrl.u32 %v155, 7
  %v157 = vsub.s32 %v154, %v156
  %v158 = vrot.slane %v142, %v157
  %v160 = vunpack.c.l.s4 1966171168
  %v161 = vunpack.c.0.s8 %v160
  %v162 = vlaneseq
  %v163 = vshrl.u32 %v162, 7
  %v164 = vsub.s32 %v161, %v163
  %v165 = vrot.slane %v143, %v164
  %v167 = vunpack.c.l.s4 1966171168
  %v168 = vunpack.c.0.s8 %v167
  %v169 = vlaneseq
  %v170 = vshrl.u32 %v169, 7
  %v171 = vsub.s32 %v168, %v170
  %v172 = vrot.slane %v144, %v171
  %v173 = vcombine.high %v151, %v151
  %v174 = vcombine.high %v158, %v158
  %v175 = vcombine.high %v165, %v165
  %v176 = vcombine.high %v172, %v172
  %v177 = vcombine.low %v17, %v18
  %v179 = vunpack.c.l.s4 1966171168
  %v180 = vunpack.c.0.s8 %v179
  %v181 = vlaneseq
  %v182 = vshrl.u32 %v181, 7
  %v183 = vsub.s32 %v180, %v182
  %v184 = vrot.slane %v177, %v183
  %v186 = vunpack.c.l.s4 1966171168
  %v187 = vunpack.c.0.s8 %v186
  %v188 = vlaneseq
  %v189 = vshrl.u32 %v188, 7
  %v190 = vsub.s32 %v187, %v189
  %v191 = vrot.slane %v184, %v190
  %v192 = vlaneseq
  %v193 = vshrl.u32 %v192, 7
  %v194 = vsub.s32 0, %v193
  %v195 = vrot.slane %v51, %v194
  %v196 = vlaneseq
  %v197 = vshrl.u32 %v196, 7
  %v198 = vsub.s32 1, %v197
  %v199 = vrot.slane %v51, %v198
  %v200 = vlaneseq
  %v201 = vshrl.u32 %v200, 7
  %v202 = vsub.s32 0, %v201
  %v203 = vrot.slane %v65, %v202
  %v204 = vlaneseq
  %v205 = vshrl.u32 %v204, 7
  %v206 = vsub.s32 1, %v205
  %v207 = vrot.slane %v65, %v206
  %v208 = vlaneseq
  %v209 = vshrl.u32 %v208, 7
  %v210 = vsub.s32 0, %v209
  %v211 = vrot.slane %v73, %v210
  %v212 = vlaneseq
  %v213 = vshrl.u32 %v212, 7
  %v214 = vsub.s32 1, %v213
  %v215 = vrot.slane %v73, %v214
  %v216 = vlaneseq
  %v217 = vshrl.u32 %v216, 7
  %v218 = vsub.s32 0, %v217
  %v219 = vrot.slane %v75, %v218
  %v220 = vlaneseq
  %v221 = vshrl.u32 %v220, 7
  %v222 = vsub.s32 1, %v221
  %v223 = vrot.slane %v75, %v222
  %v224 = vlaneseq
  %v225 = vshrl.u32 %v224, 7
  %v226 = vsub.s32 0, %v225
  %v227 = vrot.slane %v58, %v226
  %v228 = vlaneseq
  %v229 = vshrl.u32 %v228, 7
  %v230 = vsub.s32 1, %v229
  %v231 = vrot.slane %v58, %v230
  %v232 = vlaneseq
  %v233 = vshrl.u32 %v232, 7
  %v234 = vsub.s32 0, %v233
  %v235 = vrot.slane %v72, %v234
  %v236 = vlaneseq
  %v237 = vshrl.u32 %v236, 7
  %v238 = vsub.s32 1, %v237
  %v239 = vrot.slane %v72, %v238
  %v240 = vlaneseq
  %v241 = vshrl.u32 %v240, 7
  %v242 = vsub.s32 0, %v241
  %v243 = vrot.slane %v74, %v242
  %v244 = vlaneseq
  %v245 = vshrl.u32 %v244, 7
  %v246 = vsub.s32 1, %v245
  %v247 = vrot.slane %v74, %v246
  %v248 = vlaneseq
  %v249 = vshrl.u32 %v248, 7
  %v250 = vsub.s32 0, %v249
  %v251 = vrot.slane %v76, %v250
  %v252 = vlaneseq
  %v253 = vshrl.u32 %v252, 7
  %v254 = vsub.s32 1, %v253
  %v255 = vrot.slane %v76, %v254
  %v256 = vlaneseq
  %v257 = vshrl.u32 %v256, 7
  %v258 = vsub.s32 0, %v257
  %v259 = vrot.slane %v101, %v258
  %v260 = vlaneseq
  %v261 = vshrl.u32 %v260, 7
  %v262 = vsub.s32 1, %v261
  %v263 = vrot.slane %v101, %v262
  %v264 = vlaneseq
  %v265 = vshrl.u32 %v264, 7
  %v266 = vsub.s32 0, %v265
  %v267 = vrot.slane %v115, %v266
  %v268 = vlaneseq
  %v269 = vshrl.u32 %v268, 7
  %v270 = vsub.s32 1, %v269
  %v271 = vrot.slane %v115, %v270
  %v272 = vlaneseq
  %v273 = vshrl.u32 %v272, 7
  %v274 = vsub.s32 0, %v273
  %v275 = vrot.slane %v123, %v274
  %v276 = vlaneseq
  %v277 = vshrl.u32 %v276, 7
  %v278 = vsub.s32 1, %v277
  %v279 = vrot.slane %v123, %v278
  %v280 = vlaneseq
  %v281 = vshrl.u32 %v280, 7
  %v282 = vsub.s32 0, %v281
  %v283 = vrot.slane %v125, %v282
  %v284 = vlaneseq
  %v285 = vshrl.u32 %v284, 7
  %v286 = vsub.s32 1, %v285
  %v287 = vrot.slane %v125, %v286
  %v288 = vlaneseq
  %v289 = vshrl.u32 %v288, 7
  %v290 = vsub.s32 0, %v289
  %v291 = vrot.slane %v108, %v290
  %v292 = vlaneseq
  %v293 = vshrl.u32 %v292, 7
  %v294 = vsub.s32 1, %v293
  %v295 = vrot.slane %v108, %v294
  %v296 = vlaneseq
  %v297 = vshrl.u32 %v296, 7
  %v298 = vsub.s32 0, %v297
  %v299 = vrot.slane %v122, %v298
  %v300 = vlaneseq
  %v301 = vshrl.u32 %v300, 7
  %v302 = vsub.s32 1, %v301
  %v303 = vrot.slane %v122, %v302
  %v304 = vlaneseq
  %v305 = vshrl.u32 %v304, 7
  %v306 = vsub.s32 0, %v305
  %v307 = vrot.slane %v124, %v306
  %v308 = vlaneseq
  %v309 = vshrl.u32 %v308, 7
  %v310 = vsub.s32 1, %v309
  %v311 = vrot.slane %v124, %v310
  %v312 = vlaneseq
  %v313 = vshrl.u32 %v312, 7
  %v314 = vsub.s32 0, %v313
  %v315 = vrot.slane %v126, %v314
  %v316 = vlaneseq
  %v317 = vshrl.u32 %v316, 7
  %v318 = vsub.s32 1, %v317
  %v319 = vrot.slane %v126, %v318
  %v320 = vlaneseq
  %v321 = vshrl.u32 %v320, 7
  %v322 = vsub.s32 0, %v321
  %v323 = vrot.slane %v151, %v322
  %v324 = vlaneseq
  %v325 = vshrl.u32 %v324, 7
  %v326 = vsub.s32 1, %v325
  %v327 = vrot.slane %v151, %v326
  %v328 = vlaneseq
  %v329 = vshrl.u32 %v328, 7
  %v330 = vsub.s32 0, %v329
  %v331 = vrot.slane %v165, %v330
  %v332 = vlaneseq
  %v333 = vshrl.u32 %v332, 7
  %v334 = vsub.s32 1, %v333
  %v335 = vrot.slane %v165, %v334
  %v336 = vlaneseq
  %v337 = vshrl.u32 %v336, 7
  %v338 = vsub.s32 0, %v337
  %v339 = vrot.slane %v173, %v338
  %v340 = vlaneseq
  %v341 = vshrl.u32 %v340, 7
  %v342 = vsub.s32 1, %v341
  %v343 = vrot.slane %v173, %v342
  %v344 = vlaneseq
  %v345 = vshrl.u32 %v344, 7
  %v346 = vsub.s32 0, %v345
  %v347 = vrot.slane %v175, %v346
  %v348 = vlaneseq
  %v349 = vshrl.u32 %v348, 7
  %v350 = vsub.s32 1, %v349
  %v351 = vrot.slane %v175, %v350
  %v352 = vlaneseq
  %v353 = vshrl.u32 %v352, 7
  %v354 = vsub.s32 0, %v353
  %v355 = vrot.slane %v158, %v354
  %v356 = vlaneseq
  %v357 = vshrl.u32 %v356, 7
  %v358 = vsub.s32 1, %v357
  %v359 = vrot.slane %v158, %v358
  %v360 = vlaneseq
  %v361 = vshrl.u32 %v360, 7
  %v362 = vsub.s32 0, %v361
  %v363 = vrot.slane %v172, %v362
  %v364 = vlaneseq
  %v365 = vshrl.u32 %v364, 7
  %v366 = vsub.s32 1, %v365
  %v367 = vrot.slane %v172, %v366
  %v368 = vlaneseq
  %v369 = vshrl.u32 %v368, 7
  %v370 = vsub.s32 0, %v369
  %v371 = vrot.slane %v174, %v370
  %v372 = vlaneseq
  %v373 = vshrl.u32 %v372, 7
  %v374 = vsub.s32 1, %v373
  %v375 = vrot.slane %v174, %v374
  %v376 = vlaneseq
  %v377 = vshrl.u32 %v376, 7
  %v378 = vsub.s32 0, %v377
  %v379 = vrot.slane %v176, %v378
  %v380 = vlaneseq
  %v381 = vshrl.u32 %v380, 7
  %v382 = vsub.s32 1, %v381
  %v383 = vrot.slane %v176, %v382
  %v384 = vlaneseq
  %v385 = vshrl.u32 %v384, 7
  %v386 = vsub.s32 0, %v385
  %v387 = vrot.slane %v191, %v386
  %v388 = vlaneseq
  %v389 = vshrl.u32 %v388, 7
  %v390 = vsub.s32 1, %v389
  %v391 = vrot.slane %v191, %v390
  %442 = vst [vmem:[#allocation3] sm:$0xff] %v195
  %vm443 = vcmask 130048
  %444 = vst.msk [vmem:[#allocation3 + $0x8] sm:$0xff] %vm443, %v199
  %445 = vst [vmem:[#allocation3 + $0x10] sm:$0x3f] %v195
  %vm446 = vcmask 128000
  %447 = vst.msk [vmem:[#allocation3 + $0x18] sm:$0x3f] %vm446, %v199
  %448 = vst [vmem:[#allocation3 + $0x20] sm:$0xff] %v203
  %449 = vst.msk [vmem:[#allocation3 + $0x28] sm:$0xff] %vm443, %v207
  %450 = vst [vmem:[#allocation3 + $0x30] sm:$0x3f] %v203
  %451 = vst.msk [vmem:[#allocation3 + $0x38] sm:$0x3f] %vm446, %v207
  %452 = vst [vmem:[#allocation3 + $0x40] sm:$0xff] %v211
  %453 = vst.msk [vmem:[#allocation3 + $0x48] sm:$0xff] %vm443, %v215
  %454 = vst [vmem:[#allocation3 + $0x50] sm:$0x3f] %v211
  %455 = vst.msk [vmem:[#allocation3 + $0x58] sm:$0x3f] %vm446, %v215
  %456 = vst [vmem:[#allocation3 + $0x60] sm:$0xff] %v219
  %457 = vst.msk [vmem:[#allocation3 + $0x68] sm:$0xff] %vm443, %v223
  %458 = vst [vmem:[#allocation3 + $0x70] sm:$0x3f] %v219
  %459 = vst.msk [vmem:[#allocation3 + $0x78] sm:$0x3f] %vm446, %v223
  %460 = vst [vmem:[#allocation3 + $0x80] sm:$0xff] %v227
  %461 = vst.msk [vmem:[#allocation3 + $0x88] sm:$0xff] %vm443, %v231
  %462 = vst [vmem:[#allocation3 + $0x90] sm:$0x3f] %v227
  %463 = vst.msk [vmem:[#allocation3 + $0x98] sm:$0x3f] %vm446, %v231
  %464 = vst [vmem:[#allocation3 + $0xa0] sm:$0xff] %v235
  %465 = vst.msk [vmem:[#allocation3 + $0xa8] sm:$0xff] %vm443, %v239
  %466 = vst [vmem:[#allocation3 + $0xb0] sm:$0x3f] %v235
  %467 = vst.msk [vmem:[#allocation3 + $0xb8] sm:$0x3f] %vm446, %v239
  %468 = vst [vmem:[#allocation3 + $0xc0] sm:$0xff] %v243
  %469 = vst.msk [vmem:[#allocation3 + $0xc8] sm:$0xff] %vm443, %v247
  %470 = vst [vmem:[#allocation3 + $0xd0] sm:$0x3f] %v243
  %471 = vst.msk [vmem:[#allocation3 + $0xd8] sm:$0x3f] %vm446, %v247
  %472 = vst [vmem:[#allocation3 + $0xe0] sm:$0xff] %v251
  %473 = vst.msk [vmem:[#allocation3 + $0xe8] sm:$0xff] %vm443, %v255
  %474 = vst [vmem:[#allocation3 + $0xf0] sm:$0x3f] %v251
  %475 = vst.msk [vmem:[#allocation3 + $0xf8] sm:$0x3f] %vm446, %v255
  %476 = vst [vmem:[#allocation3 + $0x100] sm:$0xff] %v259
  %477 = vst.msk [vmem:[#allocation3 + $0x108] sm:$0xff] %vm443, %v263
  %478 = vst [vmem:[#allocation3 + $0x110] sm:$0x3f] %v259
  %479 = vst.msk [vmem:[#allocation3 + $0x118] sm:$0x3f] %vm446, %v263
  %480 = vst [vmem:[#allocation3 + $0x120] sm:$0xff] %v267
  %481 = vst.msk [vmem:[#allocation3 + $0x128] sm:$0xff] %vm443, %v271
  %482 = vst [vmem:[#allocation3 + $0x130] sm:$0x3f] %v267
  %483 = vst.msk [vmem:[#allocation3 + $0x138] sm:$0x3f] %vm446, %v271
  %484 = vst [vmem:[#allocation3 + $0x140] sm:$0xff] %v275
  %485 = vst.msk [vmem:[#allocation3 + $0x148] sm:$0xff] %vm443, %v279
  %486 = vst [vmem:[#allocation3 + $0x150] sm:$0x3f] %v275
  %487 = vst.msk [vmem:[#allocation3 + $0x158] sm:$0x3f] %vm446, %v279
  %488 = vst [vmem:[#allocation3 + $0x160] sm:$0xff] %v283
  %489 = vst.msk [vmem:[#allocation3 + $0x168] sm:$0xff] %vm443, %v287
  %490 = vst [vmem:[#allocation3 + $0x170] sm:$0x3f] %v283
  %491 = vst.msk [vmem:[#allocation3 + $0x178] sm:$0x3f] %vm446, %v287
  %492 = vst [vmem:[#allocation3 + $0x180] sm:$0xff] %v291
  %493 = vst.msk [vmem:[#allocation3 + $0x188] sm:$0xff] %vm443, %v295
  %494 = vst [vmem:[#allocation3 + $0x190] sm:$0x3f] %v291
  %495 = vst.msk [vmem:[#allocation3 + $0x198] sm:$0x3f] %vm446, %v295
  %496 = vst [vmem:[#allocation3 + $0x1a0] sm:$0xff] %v299
  %497 = vst.msk [vmem:[#allocation3 + $0x1a8] sm:$0xff] %vm443, %v303
  %498 = vst [vmem:[#allocation3 + $0x1b0] sm:$0x3f] %v299
  %499 = vst.msk [vmem:[#allocation3 + $0x1b8] sm:$0x3f] %vm446, %v303
  %500 = vst [vmem:[#allocation3 + $0x1c0] sm:$0xff] %v307
  %501 = vst.msk [vmem:[#allocation3 + $0x1c8] sm:$0xff] %vm443, %v311
  %502 = vst [vmem:[#allocation3 + $0x1d0] sm:$0x3f] %v307
  %503 = vst.msk [vmem:[#allocation3 + $0x1d8] sm:$0x3f] %vm446, %v311
  %504 = vst [vmem:[#allocation3 + $0x1e0] sm:$0xff] %v315
  %505 = vst.msk [vmem:[#allocation3 + $0x1e8] sm:$0xff] %vm443, %v319
  %506 = vst [vmem:[#allocation3 + $0x1f0] sm:$0x3f] %v315
  %507 = vst.msk [vmem:[#allocation3 + $0x1f8] sm:$0x3f] %vm446, %v319
  %508 = vst [vmem:[#allocation3 + $0x200] sm:$0xff] %v323
  %509 = vst.msk [vmem:[#allocation3 + $0x208] sm:$0xff] %vm443, %v327
  %510 = vst [vmem:[#allocation3 + $0x210] sm:$0x3f] %v323
  %511 = vst.msk [vmem:[#allocation3 + $0x218] sm:$0x3f] %vm446, %v327
  %512 = vst [vmem:[#allocation3 + $0x220] sm:$0xff] %v331
  %513 = vst.msk [vmem:[#allocation3 + $0x228] sm:$0xff] %vm443, %v335
  %514 = vst [vmem:[#allocation3 + $0x230] sm:$0x3f] %v331
  %515 = vst.msk [vmem:[#allocation3 + $0x238] sm:$0x3f] %vm446, %v335
  %516 = vst [vmem:[#allocation3 + $0x240] sm:$0xff] %v339
  %517 = vst.msk [vmem:[#allocation3 + $0x248] sm:$0xff] %vm443, %v343
  %518 = vst [vmem:[#allocation3 + $0x250] sm:$0x3f] %v339
  %519 = vst.msk [vmem:[#allocation3 + $0x258] sm:$0x3f] %vm446, %v343
  %520 = vst [vmem:[#allocation3 + $0x260] sm:$0xff] %v347
  %521 = vst.msk [vmem:[#allocation3 + $0x268] sm:$0xff] %vm443, %v351
  %522 = vst [vmem:[#allocation3 + $0x270] sm:$0x3f] %v347
  %523 = vst.msk [vmem:[#allocation3 + $0x278] sm:$0x3f] %vm446, %v351
  %524 = vst [vmem:[#allocation3 + $0x280] sm:$0xff] %v355
  %525 = vst.msk [vmem:[#allocation3 + $0x288] sm:$0xff] %vm443, %v359
  %526 = vst [vmem:[#allocation3 + $0x290] sm:$0x3f] %v355
  %527 = vst.msk [vmem:[#allocation3 + $0x298] sm:$0x3f] %vm446, %v359
  %528 = vst [vmem:[#allocation3 + $0x2a0] sm:$0xff] %v363
  %529 = vst.msk [vmem:[#allocation3 + $0x2a8] sm:$0xff] %vm443, %v367
  %530 = vst [vmem:[#allocation3 + $0x2b0] sm:$0x3f] %v363
  %531 = vst.msk [vmem:[#allocation3 + $0x2b8] sm:$0x3f] %vm446, %v367
  %532 = vst [vmem:[#allocation3 + $0x2c0] sm:$0xff] %v371
  %533 = vst.msk [vmem:[#allocation3 + $0x2c8] sm:$0xff] %vm443, %v375
  %534 = vst [vmem:[#allocation3 + $0x2d0] sm:$0x3f] %v371
  %535 = vst.msk [vmem:[#allocation3 + $0x2d8] sm:$0x3f] %vm446, %v375
  %536 = vst [vmem:[#allocation3 + $0x2e0] sm:$0xff] %v379
  %537 = vst.msk [vmem:[#allocation3 + $0x2e8] sm:$0xff] %vm443, %v383
  %538 = vst [vmem:[#allocation3 + $0x2f0] sm:$0x3f] %v379
  %539 = vst.msk [vmem:[#allocation3 + $0x2f8] sm:$0x3f] %vm446, %v383
  %540 = vst [vmem:[#allocation3 + $0x300] sm:$0xff] %v387
  %541 = vst.msk [vmem:[#allocation3 + $0x308] sm:$0xff] %vm443, %v391
  %542 = vst [vmem:[#allocation3 + $0x310] sm:$0x3f] %v387
  %543 = vst.msk [vmem:[#allocation3 + $0x318] sm:$0x3f] %vm446, %v391
  %544 = vst [vmem:[#allocation2] sm:$0xff] 0.0
  %545 = vst.msk [vmem:[#allocation2 + $0x8] sm:$0xff] %vm443, 0.0
  %546 = vst [vmem:[#allocation2 + $0x10] sm:$0x3f] 0.0
  %547 = vst.msk [vmem:[#allocation2 + $0x18] sm:$0x3f] %vm446, 0.0
  %548 = vst [vmem:[#allocation2 + $0x20] sm:$0xff] 0.0
  %549 = vst.msk [vmem:[#allocation2 + $0x28] sm:$0xff] %vm443, 0.0
  %550 = vst [vmem:[#allocation2 + $0x30] sm:$0x3f] 0.0
  %551 = vst.msk [vmem:[#allocation2 + $0x38] sm:$0x3f] %vm446, 0.0
  %552 = vst [vmem:[#allocation2 + $0x40] sm:$0xff] 0.0
  %553 = vst.msk [vmem:[#allocation2 + $0x48] sm:$0xff] %vm443, 0.0
  %554 = vst [vmem:[#allocation2 + $0x50] sm:$0x3f] 0.0
  %555 = vst.msk [vmem:[#allocation2 + $0x58] sm:$0x3f] %vm446, 0.0
  %556 = vst [vmem:[#allocation2 + $0x60] sm:$0xff] 0.0
  %557 = vst.msk [vmem:[#allocation2 + $0x68] sm:$0xff] %vm443, 0.0
  %558 = vst [vmem:[#allocation2 + $0x70] sm:$0x3f] 0.0
  %559 = vst.msk [vmem:[#allocation2 + $0x78] sm:$0x3f] %vm446, 0.0
  %560 = vst [vmem:[#allocation2 + $0x80] sm:$0xff] 0.0
  %561 = vst.msk [vmem:[#allocation2 + $0x88] sm:$0xff] %vm443, 0.0
  %562 = vst [vmem:[#allocation2 + $0x90] sm:$0x3f] 0.0
  %563 = vst.msk [vmem:[#allocation2 + $0x98] sm:$0x3f] %vm446, 0.0
  %564 = vst [vmem:[#allocation2 + $0xa0] sm:$0xff] 0.0
  %565 = vst.msk [vmem:[#allocation2 + $0xa8] sm:$0xff] %vm443, 0.0
  %566 = vst [vmem:[#allocation2 + $0xb0] sm:$0x3f] 0.0
  %567 = vst.msk [vmem:[#allocation2 + $0xb8] sm:$0x3f] %vm446, 0.0
  %568 = vst [vmem:[#allocation2 + $0xc0] sm:$0xff] 0.0
  %569 = vst.msk [vmem:[#allocation2 + $0xc8] sm:$0xff] %vm443, 0.0
  %570 = vst [vmem:[#allocation2 + $0xd0] sm:$0x3f] 0.0
  %571 = vst.msk [vmem:[#allocation2 + $0xd8] sm:$0x3f] %vm446, 0.0
  %572 = vst [vmem:[#allocation2 + $0xe0] sm:$0xff] 0.0
  %573 = vst.msk [vmem:[#allocation2 + $0xe8] sm:$0xff] %vm443, 0.0
  %574 = vst [vmem:[#allocation2 + $0xf0] sm:$0x3f] 0.0
  %575 = vst.msk [vmem:[#allocation2 + $0xf8] sm:$0x3f] %vm446, 0.0
  %576 = vst [vmem:[#allocation2 + $0x100] sm:$0xff] 0.0
  %577 = vst.msk [vmem:[#allocation2 + $0x108] sm:$0xff] %vm443, 0.0
  %578 = vst [vmem:[#allocation2 + $0x110] sm:$0x3f] 0.0
  %579 = vst.msk [vmem:[#allocation2 + $0x118] sm:$0x3f] %vm446, 0.0
  %580 = vst [vmem:[#allocation2 + $0x120] sm:$0xff] 0.0
  %581 = vst.msk [vmem:[#allocation2 + $0x128] sm:$0xff] %vm443, 0.0
  %582 = vst [vmem:[#allocation2 + $0x130] sm:$0x3f] 0.0
  %583 = vst.msk [vmem:[#allocation2 + $0x138] sm:$0x3f] %vm446, 0.0
  %584 = vst [vmem:[#allocation2 + $0x140] sm:$0xff] 0.0
  %585 = vst.msk [vmem:[#allocation2 + $0x148] sm:$0xff] %vm443, 0.0
  %586 = vst [vmem:[#allocation2 + $0x150] sm:$0x3f] 0.0
  %587 = vst.msk [vmem:[#allocation2 + $0x158] sm:$0x3f] %vm446, 0.0
  %588 = vst [vmem:[#allocation2 + $0x160] sm:$0xff] 0.0
  %589 = vst.msk [vmem:[#allocation2 + $0x168] sm:$0xff] %vm443, 0.0
  %590 = vst [vmem:[#allocation2 + $0x170] sm:$0x3f] 0.0
  %591 = vst.msk [vmem:[#allocation2 + $0x178] sm:$0x3f] %vm446, 0.0
  %592 = vst [vmem:[#allocation2 + $0x180] sm:$0xff] 0.0
  %593 = vst.msk [vmem:[#allocation2 + $0x188] sm:$0xff] %vm443, 0.0
  %594 = vst [vmem:[#allocation2 + $0x190] sm:$0x3f] 0.0
  %595 = vst.msk [vmem:[#allocation2 + $0x198] sm:$0x3f] %vm446, 0.0
  %596 = vst [vmem:[#allocation2 + $0x1a0] sm:$0xff] 0.0
  %597 = vst.msk [vmem:[#allocation2 + $0x1a8] sm:$0xff] %vm443, 0.0
  %598 = vst [vmem:[#allocation2 + $0x1b0] sm:$0x3f] 0.0
  %599 = vst.msk [vmem:[#allocation2 + $0x1b8] sm:$0x3f] %vm446, 0.0
  %600 = vst [vmem:[#allocation2 + $0x1c0] sm:$0xff] 0.0
  %601 = vst.msk [vmem:[#allocation2 + $0x1c8] sm:$0xff] %vm443, 0.0
  %602 = vst [vmem:[#allocation2 + $0x1d0] sm:$0x3f] 0.0
  %603 = vst.msk [vmem:[#allocation2 + $0x1d8] sm:$0x3f] %vm446, 0.0
  %604 = vst [vmem:[#allocation2 + $0x1e0] sm:$0xff] 0.0
  %605 = vst.msk [vmem:[#allocation2 + $0x1e8] sm:$0xff] %vm443, 0.0
  %606 = vst [vmem:[#allocation2 + $0x1f0] sm:$0x3f] 0.0
  %607 = vst.msk [vmem:[#allocation2 + $0x1f8] sm:$0x3f] %vm446, 0.0
  %608 = vst [vmem:[#allocation2 + $0x200] sm:$0xff] 0.0
  %609 = vst.msk [vmem:[#allocation2 + $0x208] sm:$0xff] %vm443, 0.0
  %610 = vst [vmem:[#allocation2 + $0x210] sm:$0x3f] 0.0
  %611 = vst.msk [vmem:[#allocation2 + $0x218] sm:$0x3f] %vm446, 0.0
  %612 = vst [vmem:[#allocation2 + $0x220] sm:$0xff] 0.0
  %613 = vst.msk [vmem:[#allocation2 + $0x228] sm:$0xff] %vm443, 0.0
  %614 = vst [vmem:[#allocation2 + $0x230] sm:$0x3f] 0.0
  %615 = vst.msk [vmem:[#allocation2 + $0x238] sm:$0x3f] %vm446, 0.0
  %616 = vst [vmem:[#allocation2 + $0x240] sm:$0xff] 0.0
  %617 = vst.msk [vmem:[#allocation2 + $0x248] sm:$0xff] %vm443, 0.0
  %618 = vst [vmem:[#allocation2 + $0x250] sm:$0x3f] 0.0
  %619 = vst.msk [vmem:[#allocation2 + $0x258] sm:$0x3f] %vm446, 0.0
  %620 = vst [vmem:[#allocation2 + $0x260] sm:$0xff] 0.0
  %621 = vst.msk [vmem:[#allocation2 + $0x268] sm:$0xff] %vm443, 0.0
  %622 = vst [vmem:[#allocation2 + $0x270] sm:$0x3f] 0.0
  %623 = vst.msk [vmem:[#allocation2 + $0x278] sm:$0x3f] %vm446, 0.0
  %624 = vst [vmem:[#allocation2 + $0x280] sm:$0xff] 0.0
  %625 = vst.msk [vmem:[#allocation2 + $0x288] sm:$0xff] %vm443, 0.0
  %626 = vst [vmem:[#allocation2 + $0x290] sm:$0x3f] 0.0
  %627 = vst.msk [vmem:[#allocation2 + $0x298] sm:$0x3f] %vm446, 0.0
  %628 = vst [vmem:[#allocation2 + $0x2a0] sm:$0xff] 0.0
  %629 = vst.msk [vmem:[#allocation2 + $0x2a8] sm:$0xff] %vm443, 0.0
  %630 = vst [vmem:[#allocation2 + $0x2b0] sm:$0x3f] 0.0
  %631 = vst.msk [vmem:[#allocation2 + $0x2b8] sm:$0x3f] %vm446, 0.0
  %632 = vst [vmem:[#allocation2 + $0x2c0] sm:$0xff] 0.0
  %633 = vst.msk [vmem:[#allocation2 + $0x2c8] sm:$0xff] %vm443, 0.0
  %634 = vst [vmem:[#allocation2 + $0x2d0] sm:$0x3f] 0.0
  %635 = vst.msk [vmem:[#allocation2 + $0x2d8] sm:$0x3f] %vm446, 0.0
  %636 = vst [vmem:[#allocation2 + $0x2e0] sm:$0xff] 0.0
  %637 = vst.msk [vmem:[#allocation2 + $0x2e8] sm:$0xff] %vm443, 0.0
  %638 = vst [vmem:[#allocation2 + $0x2f0] sm:$0x3f] 0.0
  %639 = vst.msk [vmem:[#allocation2 + $0x2f8] sm:$0x3f] %vm446, 0.0
  %640 = vst [vmem:[#allocation2 + $0x300] sm:$0xff] 0.0
  %641 = vst.msk [vmem:[#allocation2 + $0x308] sm:$0xff] %vm443, 0.0
  %642 = vst [vmem:[#allocation2 + $0x310] sm:$0x3f] 0.0
  %643 = vst.msk [vmem:[#allocation2 + $0x318] sm:$0x3f] %vm446, 0.0
  %644 = vst [vmem:[#allocation2 + $0x320] sm:$0xff] 0.0
  %645 = vst.msk [vmem:[#allocation2 + $0x328] sm:$0xff] %vm443, 0.0
  %646 = vst [vmem:[#allocation2 + $0x330] sm:$0x3f] 0.0
  %647 = vst.msk [vmem:[#allocation2 + $0x338] sm:$0x3f] %vm446, 0.0
  %648 = vst [vmem:[#allocation2 + $0x340] sm:$0xff] 0.0
  %649 = vst.msk [vmem:[#allocation2 + $0x348] sm:$0xff] %vm443, 0.0
  %650 = vst [vmem:[#allocation2 + $0x350] sm:$0x3f] 0.0
  %651 = vst.msk [vmem:[#allocation2 + $0x358] sm:$0x3f] %vm446, 0.0
  %652 = vst [vmem:[#allocation2 + $0x360] sm:$0xff] 0.0
  %653 = vst.msk [vmem:[#allocation2 + $0x368] sm:$0xff] %vm443, 0.0
  %654 = vst [vmem:[#allocation2 + $0x370] sm:$0x3f] 0.0
  %655 = vst.msk [vmem:[#allocation2 + $0x378] sm:$0x3f] %vm446, 0.0
  %656 = vst [vmem:[#allocation2 + $0x380] sm:$0xff] 0.0
  %657 = vst.msk [vmem:[#allocation2 + $0x388] sm:$0xff] %vm443, 0.0
  %658 = vst [vmem:[#allocation2 + $0x390] sm:$0x3f] 0.0
  %659 = vst.msk [vmem:[#allocation2 + $0x398] sm:$0x3f] %vm446, 0.0
  %660 = vst [vmem:[#allocation2 + $0x3a0] sm:$0xff] 0.0
  %661 = vst.msk [vmem:[#allocation2 + $0x3a8] sm:$0xff] %vm443, 0.0
  %662 = vst [vmem:[#allocation2 + $0x3b0] sm:$0x3f] 0.0
  %663 = vst.msk [vmem:[#allocation2 + $0x3b8] sm:$0x3f] %vm446, 0.0
  %664 = vst [vmem:[#allocation2 + $0x3c0] sm:$0xff] 0.0
  %665 = vst.msk [vmem:[#allocation2 + $0x3c8] sm:$0xff] %vm443, 0.0
  %666 = vst [vmem:[#allocation2 + $0x3d0] sm:$0x3f] 0.0
  %667 = vst.msk [vmem:[#allocation2 + $0x3d8] sm:$0x3f] %vm446, 0.0
  %668 = vst [vmem:[#allocation2 + $0x3e0] sm:$0xff] 0.0
  %669 = vst.msk [vmem:[#allocation2 + $0x3e8] sm:$0xff] %vm443, 0.0
  %670 = vst [vmem:[#allocation2 + $0x3f0] sm:$0x3f] 0.0
  %671 = vst.msk [vmem:[#allocation2 + $0x3f8] sm:$0x3f] %vm446, 0.0
  %672 = vst [vmem:[#allocation2 + $0x400] sm:$0xff] 0.0
  %673 = vst.msk [vmem:[#allocation2 + $0x408] sm:$0xff] %vm443, 0.0
  %674 = vst [vmem:[#allocation2 + $0x410] sm:$0x3f] 0.0
  %675 = vst.msk [vmem:[#allocation2 + $0x418] sm:$0x3f] %vm446, 0.0
  %676 = vst [vmem:[#allocation2 + $0x420] sm:$0xff] 0.0
  %677 = vst.msk [vmem:[#allocation2 + $0x428] sm:$0xff] %vm443, 0.0
  %678 = vst [vmem:[#allocation2 + $0x430] sm:$0x3f] 0.0
  %679 = vst.msk [vmem:[#allocation2 + $0x438] sm:$0x3f] %vm446, 0.0
  %680 = vst [vmem:[#allocation2 + $0x440] sm:$0xff] 0.0
  %681 = vst.msk [vmem:[#allocation2 + $0x448] sm:$0xff] %vm443, 0.0
  %682 = vst [vmem:[#allocation2 + $0x450] sm:$0x3f] 0.0
  %683 = vst.msk [vmem:[#allocation2 + $0x458] sm:$0x3f] %vm446, 0.0
  %684 = vst [vmem:[#allocation2 + $0x460] sm:$0xff] 0.0
  %685 = vst.msk [vmem:[#allocation2 + $0x468] sm:$0xff] %vm443, 0.0
  %686 = vst [vmem:[#allocation2 + $0x470] sm:$0x3f] 0.0
  %687 = vst.msk [vmem:[#allocation2 + $0x478] sm:$0x3f] %vm446, 0.0
  %688 = vst [vmem:[#allocation2 + $0x480] sm:$0xff] 0.0
  %689 = vst.msk [vmem:[#allocation2 + $0x488] sm:$0xff] %vm443, 0.0
  %690 = vst [vmem:[#allocation2 + $0x490] sm:$0x3f] 0.0
  %691 = vst.msk [vmem:[#allocation2 + $0x498] sm:$0x3f] %vm446, 0.0
  %692 = vst [vmem:[#allocation2 + $0x4a0] sm:$0xff] 0.0
  %693 = vst.msk [vmem:[#allocation2 + $0x4a8] sm:$0xff] %vm443, 0.0
  %694 = vst [vmem:[#allocation2 + $0x4b0] sm:$0x3f] 0.0
  %695 = vst.msk [vmem:[#allocation2 + $0x4b8] sm:$0x3f] %vm446, 0.0
  %696 = vst [vmem:[#allocation2 + $0x4c0] sm:$0xff] 0.0
  %697 = vst.msk [vmem:[#allocation2 + $0x4c8] sm:$0xff] %vm443, 0.0
  %698 = vst [vmem:[#allocation2 + $0x4d0] sm:$0x3f] 0.0
  %699 = vst.msk [vmem:[#allocation2 + $0x4d8] sm:$0x3f] %vm446, 0.0
  %700 = vst [vmem:[#allocation2 + $0x4e0] sm:$0xff] 0.0
  %701 = vst.msk [vmem:[#allocation2 + $0x4e8] sm:$0xff] %vm443, 0.0
  %702 = vst [vmem:[#allocation2 + $0x4f0] sm:$0x3f] 0.0
  %703 = vst.msk [vmem:[#allocation2 + $0x4f8] sm:$0x3f] %vm446, 0.0
  %704 = vst [vmem:[#allocation2 + $0x500] sm:$0xff] 0.0
  %705 = vst.msk [vmem:[#allocation2 + $0x508] sm:$0xff] %vm443, 0.0
  %706 = vst [vmem:[#allocation2 + $0x510] sm:$0x3f] 0.0
  %707 = vst.msk [vmem:[#allocation2 + $0x518] sm:$0x3f] %vm446, 0.0
  %708 = vst [vmem:[#allocation2 + $0x520] sm:$0xff] 0.0
  %709 = vst.msk [vmem:[#allocation2 + $0x528] sm:$0xff] %vm443, 0.0
  %710 = vst [vmem:[#allocation2 + $0x530] sm:$0x3f] 0.0
  %711 = vst.msk [vmem:[#allocation2 + $0x538] sm:$0x3f] %vm446, 0.0
  %712 = vst [vmem:[#allocation2 + $0x540] sm:$0xff] 0.0
  %713 = vst.msk [vmem:[#allocation2 + $0x548] sm:$0xff] %vm443, 0.0
  %714 = vst [vmem:[#allocation2 + $0x550] sm:$0x3f] 0.0
  %715 = vst.msk [vmem:[#allocation2 + $0x558] sm:$0x3f] %vm446, 0.0
  %716 = vst [vmem:[#allocation2 + $0x560] sm:$0xff] 0.0
  %717 = vst.msk [vmem:[#allocation2 + $0x568] sm:$0xff] %vm443, 0.0
  %718 = vst [vmem:[#allocation2 + $0x570] sm:$0x3f] 0.0
  %719 = vst.msk [vmem:[#allocation2 + $0x578] sm:$0x3f] %vm446, 0.0
  %720 = vst [vmem:[#allocation2 + $0x580] sm:$0xff] 0.0
  %721 = vst.msk [vmem:[#allocation2 + $0x588] sm:$0xff] %vm443, 0.0
  %722 = vst [vmem:[#allocation2 + $0x590] sm:$0x3f] 0.0
  %723 = vst.msk [vmem:[#allocation2 + $0x598] sm:$0x3f] %vm446, 0.0
  %724 = vst [vmem:[#allocation2 + $0x5a0] sm:$0xff] 0.0
  %725 = vst.msk [vmem:[#allocation2 + $0x5a8] sm:$0xff] %vm443, 0.0
  %726 = vst [vmem:[#allocation2 + $0x5b0] sm:$0x3f] 0.0
  %727 = vst.msk [vmem:[#allocation2 + $0x5b8] sm:$0x3f] %vm446, 0.0
  %728 = vst [vmem:[#allocation2 + $0x5c0] sm:$0xff] 0.0
  %729 = vst.msk [vmem:[#allocation2 + $0x5c8] sm:$0xff] %vm443, 0.0
  %730 = vst [vmem:[#allocation2 + $0x5d0] sm:$0x3f] 0.0
  %731 = vst.msk [vmem:[#allocation2 + $0x5d8] sm:$0x3f] %vm446, 0.0
  %732 = vst [vmem:[#allocation2 + $0x5e0] sm:$0xff] 0.0
  %733 = vst.msk [vmem:[#allocation2 + $0x5e8] sm:$0xff] %vm443, 0.0
  %734 = vst [vmem:[#allocation2 + $0x5f0] sm:$0x3f] 0.0
  %735 = vst.msk [vmem:[#allocation2 + $0x5f8] sm:$0x3f] %vm446, 0.0
  %736 = vst [vmem:[#allocation2 + $0x600] sm:$0xff] 0.0
  %737 = vst.msk [vmem:[#allocation2 + $0x608] sm:$0xff] %vm443, 0.0
  %738 = vst [vmem:[#allocation2 + $0x610] sm:$0x3f] 0.0
  %739 = vst.msk [vmem:[#allocation2 + $0x618] sm:$0x3f] %vm446, 0.0
  %740 = vst [vmem:[#allocation2 + $0x620] sm:$0xff] 0.0
  %741 = vst.msk [vmem:[#allocation2 + $0x628] sm:$0xff] %vm443, 0.0
  %742 = vst [vmem:[#allocation2 + $0x630] sm:$0x3f] 0.0
  %743 = vst.msk [vmem:[#allocation2 + $0x638] sm:$0x3f] %vm446, 0.0
  %744 = vst [vmem:[#allocation2 + $0x640] sm:$0xff] 0.0
  %745 = vst.msk [vmem:[#allocation2 + $0x648] sm:$0xff] %vm443, 0.0
  %746 = vst [vmem:[#allocation2 + $0x650] sm:$0x3f] 0.0
  %747 = vst.msk [vmem:[#allocation2 + $0x658] sm:$0x3f] %vm446, 0.0
  %748 = vst [vmem:[#allocation2 + $0x660] sm:$0xff] 0.0
  %749 = vst.msk [vmem:[#allocation2 + $0x668] sm:$0xff] %vm443, 0.0
  %750 = vst [vmem:[#allocation2 + $0x670] sm:$0x3f] 0.0
  %751 = vst.msk [vmem:[#allocation2 + $0x678] sm:$0x3f] %vm446, 0.0
  %752 = vst [vmem:[#allocation2 + $0x680] sm:$0xff] 0.0
  %753 = vst.msk [vmem:[#allocation2 + $0x688] sm:$0xff] %vm443, 0.0
  %754 = vst [vmem:[#allocation2 + $0x690] sm:$0x3f] 0.0
  %755 = vst.msk [vmem:[#allocation2 + $0x698] sm:$0x3f] %vm446, 0.0
  %756 = vst [vmem:[#allocation2 + $0x6a0] sm:$0xff] 0.0
  %757 = vst.msk [vmem:[#allocation2 + $0x6a8] sm:$0xff] %vm443, 0.0
  %758 = vst [vmem:[#allocation2 + $0x6b0] sm:$0x3f] 0.0
  %759 = vst.msk [vmem:[#allocation2 + $0x6b8] sm:$0x3f] %vm446, 0.0
  %760 = vst [vmem:[#allocation2 + $0x6c0] sm:$0xff] 0.0
  %761 = vst.msk [vmem:[#allocation2 + $0x6c8] sm:$0xff] %vm443, 0.0
  %762 = vst [vmem:[#allocation2 + $0x6d0] sm:$0x3f] 0.0
  %763 = vst.msk [vmem:[#allocation2 + $0x6d8] sm:$0x3f] %vm446, 0.0
  %764 = vst [vmem:[#allocation2 + $0x6e0] sm:$0xff] 0.0
  %765 = vst.msk [vmem:[#allocation2 + $0x6e8] sm:$0xff] %vm443, 0.0
  %766 = vst [vmem:[#allocation2 + $0x6f0] sm:$0x3f] 0.0
  %767 = vst.msk [vmem:[#allocation2 + $0x6f8] sm:$0x3f] %vm446, 0.0
  %768 = vst [vmem:[#allocation2 + $0x700] sm:$0xff] 0.0
  %769 = vst.msk [vmem:[#allocation2 + $0x708] sm:$0xff] %vm443, 0.0
  %770 = vst [vmem:[#allocation2 + $0x710] sm:$0x3f] 0.0
  %771 = vst.msk [vmem:[#allocation2 + $0x718] sm:$0x3f] %vm446, 0.0
  %772 = vst [vmem:[#allocation2 + $0x720] sm:$0xff] 0.0
  %773 = vst.msk [vmem:[#allocation2 + $0x728] sm:$0xff] %vm443, 0.0
  %774 = vst [vmem:[#allocation2 + $0x730] sm:$0x3f] 0.0
  %775 = vst.msk [vmem:[#allocation2 + $0x738] sm:$0x3f] %vm446, 0.0
  %776 = vst [vmem:[#allocation2 + $0x740] sm:$0xff] 0.0
  %777 = vst.msk [vmem:[#allocation2 + $0x748] sm:$0xff] %vm443, 0.0
  %778 = vst [vmem:[#allocation2 + $0x750] sm:$0x3f] 0.0
  %779 = vst.msk [vmem:[#allocation2 + $0x758] sm:$0x3f] %vm446, 0.0
  %780 = vst [vmem:[#allocation2 + $0x760] sm:$0xff] 0.0
  %781 = vst.msk [vmem:[#allocation2 + $0x768] sm:$0xff] %vm443, 0.0
  %782 = vst [vmem:[#allocation2 + $0x770] sm:$0x3f] 0.0
  %783 = vst.msk [vmem:[#allocation2 + $0x778] sm:$0x3f] %vm446, 0.0
  %784 = vst [vmem:[#allocation2 + $0x780] sm:$0xff] 0.0
  %785 = vst.msk [vmem:[#allocation2 + $0x788] sm:$0xff] %vm443, 0.0
  %786 = vst [vmem:[#allocation2 + $0x790] sm:$0x3f] 0.0
  %787 = vst.msk [vmem:[#allocation2 + $0x798] sm:$0x3f] %vm446, 0.0
  %788 = vst [vmem:[#allocation2 + $0x7a0] sm:$0xff] 0.0
  %789 = vst.msk [vmem:[#allocation2 + $0x7a8] sm:$0xff] %vm443, 0.0
  %790 = vst [vmem:[#allocation2 + $0x7b0] sm:$0x3f] 0.0
  %791 = vst.msk [vmem:[#allocation2 + $0x7b8] sm:$0x3f] %vm446, 0.0
  %792 = vst [vmem:[#allocation2 + $0x7c0] sm:$0xff] 0.0
  %793 = vst.msk [vmem:[#allocation2 + $0x7c8] sm:$0xff] %vm443, 0.0
  %794 = vst [vmem:[#allocation2 + $0x7d0] sm:$0x3f] 0.0
  %795 = vst.msk [vmem:[#allocation2 + $0x7d8] sm:$0x3f] %vm446, 0.0
  %796 = vst [vmem:[#allocation2 + $0x7e0] sm:$0xff] 0.0
  %797 = vst.msk [vmem:[#allocation2 + $0x7e8] sm:$0xff] %vm443, 0.0
  %798 = vst [vmem:[#allocation2 + $0x7f0] sm:$0x3f] 0.0
  %799 = vst.msk [vmem:[#allocation2 + $0x7f8] sm:$0x3f] %vm446, 0.0
  %800 = vst [vmem:[#allocation2 + $0x800] sm:$0xff] 0.0
  %801 = vst.msk [vmem:[#allocation2 + $0x808] sm:$0xff] %vm443, 0.0
  %802 = vst [vmem:[#allocation2 + $0x810] sm:$0x3f] 0.0
  %803 = vst.msk [vmem:[#allocation2 + $0x818] sm:$0x3f] %vm446, 0.0
  %804 = vst [vmem:[#allocation2 + $0x820] sm:$0xff] 0.0
  %805 = vst.msk [vmem:[#allocation2 + $0x828] sm:$0xff] %vm443, 0.0
  %806 = vst [vmem:[#allocation2 + $0x830] sm:$0x3f] 0.0
  %807 = vst.msk [vmem:[#allocation2 + $0x838] sm:$0x3f] %vm446, 0.0
  %808 = vst [vmem:[#allocation2 + $0x840] sm:$0xff] 0.0
  %809 = vst.msk [vmem:[#allocation2 + $0x848] sm:$0xff] %vm443, 0.0
  %810 = vst [vmem:[#allocation2 + $0x850] sm:$0x3f] 0.0
  %811 = vst.msk [vmem:[#allocation2 + $0x858] sm:$0x3f] %vm446, 0.0
  %812 = vst [vmem:[#allocation2 + $0x860] sm:$0xff] 0.0
  %813 = vst.msk [vmem:[#allocation2 + $0x868] sm:$0xff] %vm443, 0.0
  %814 = vst [vmem:[#allocation2 + $0x870] sm:$0x3f] 0.0
  %815 = vst.msk [vmem:[#allocation2 + $0x878] sm:$0x3f] %vm446, 0.0
  %816 = vst [vmem:[#allocation2 + $0x880] sm:$0xff] 0.0
  %817 = vst.msk [vmem:[#allocation2 + $0x888] sm:$0xff] %vm443, 0.0
  %818 = vst [vmem:[#allocation2 + $0x890] sm:$0x3f] 0.0
  %819 = vst.msk [vmem:[#allocation2 + $0x898] sm:$0x3f] %vm446, 0.0
  %820 = vst [vmem:[#allocation2 + $0x8a0] sm:$0xff] 0.0
  %821 = vst.msk [vmem:[#allocation2 + $0x8a8] sm:$0xff] %vm443, 0.0
  %822 = vst [vmem:[#allocation2 + $0x8b0] sm:$0x3f] 0.0
  %823 = vst.msk [vmem:[#allocation2 + $0x8b8] sm:$0x3f] %vm446, 0.0
  %824 = vst [vmem:[#allocation2 + $0x8c0] sm:$0xff] 0.0
  %825 = vst.msk [vmem:[#allocation2 + $0x8c8] sm:$0xff] %vm443, 0.0
  %826 = vst [vmem:[#allocation2 + $0x8d0] sm:$0x3f] 0.0
  %827 = vst.msk [vmem:[#allocation2 + $0x8d8] sm:$0x3f] %vm446, 0.0
  %828 = vst [vmem:[#allocation2 + $0x8e0] sm:$0xff] 0.0
  %829 = vst.msk [vmem:[#allocation2 + $0x8e8] sm:$0xff] %vm443, 0.0
  %830 = vst [vmem:[#allocation2 + $0x8f0] sm:$0x3f] 0.0
  %831 = vst.msk [vmem:[#allocation2 + $0x8f8] sm:$0x3f] %vm446, 0.0
  %832 = vst [vmem:[#allocation2 + $0x900] sm:$0xff] 0.0
  %833 = vst.msk [vmem:[#allocation2 + $0x908] sm:$0xff] %vm443, 0.0
  %834 = vst [vmem:[#allocation2 + $0x910] sm:$0x3f] 0.0
  %835 = vst.msk [vmem:[#allocation2 + $0x918] sm:$0x3f] %vm446, 0.0
  %836 = vst [vmem:[#allocation2 + $0x920] sm:$0xff] 0.0
  %837 = vst.msk [vmem:[#allocation2 + $0x928] sm:$0xff] %vm443, 0.0
  %838 = vst [vmem:[#allocation2 + $0x930] sm:$0x3f] 0.0
  %839 = vst.msk [vmem:[#allocation2 + $0x938] sm:$0x3f] %vm446, 0.0
  %840 = vst [vmem:[#allocation2 + $0x940] sm:$0xff] 0.0
  %841 = vst.msk [vmem:[#allocation2 + $0x948] sm:$0xff] %vm443, 0.0
  %842 = vst [vmem:[#allocation2 + $0x950] sm:$0x3f] 0.0
  %843 = vst.msk [vmem:[#allocation2 + $0x958] sm:$0x3f] %vm446, 0.0
  %844 = vst [vmem:[#allocation2 + $0x960] sm:$0xff] 0.0
  %845 = vst.msk [vmem:[#allocation2 + $0x968] sm:$0xff] %vm443, 0.0
  %846 = vst [vmem:[#allocation2 + $0x970] sm:$0x3f] 0.0
  %847 = vst.msk [vmem:[#allocation2 + $0x978] sm:$0x3f] %vm446, 0.0
  %848 = vst [vmem:[#allocation2 + $0x980] sm:$0xff] 0.0
  %849 = vst.msk [vmem:[#allocation2 + $0x988] sm:$0xff] %vm443, 0.0
  %850 = vst [vmem:[#allocation2 + $0x990] sm:$0x3f] 0.0
  %851 = vst.msk [vmem:[#allocation2 + $0x998] sm:$0x3f] %vm446, 0.0
  %852 = vst [vmem:[#allocation2 + $0x9a0] sm:$0xff] 0.0
  %853 = vst.msk [vmem:[#allocation2 + $0x9a8] sm:$0xff] %vm443, 0.0
  %854 = vst [vmem:[#allocation2 + $0x9b0] sm:$0x3f] 0.0
  %855 = vst.msk [vmem:[#allocation2 + $0x9b8] sm:$0x3f] %vm446, 0.0
  %856 = vst [vmem:[#allocation2 + $0x9c0] sm:$0xff] 0.0
  %857 = vst.msk [vmem:[#allocation2 + $0x9c8] sm:$0xff] %vm443, 0.0
  %858 = vst [vmem:[#allocation2 + $0x9d0] sm:$0x3f] 0.0
  %859 = vst.msk [vmem:[#allocation2 + $0x9d8] sm:$0x3f] %vm446, 0.0
  %860 = vst [vmem:[#allocation2 + $0x9e0] sm:$0xff] 0.0
  %861 = vst.msk [vmem:[#allocation2 + $0x9e8] sm:$0xff] %vm443, 0.0
  %862 = vst [vmem:[#allocation2 + $0x9f0] sm:$0x3f] 0.0
  %863 = vst.msk [vmem:[#allocation2 + $0x9f8] sm:$0x3f] %vm446, 0.0
  %864 = vst [vmem:[#allocation2 + $0xa00] sm:$0xff] 0.0
  %865 = vst.msk [vmem:[#allocation2 + $0xa08] sm:$0xff] %vm443, 0.0
  %866 = vst [vmem:[#allocation2 + $0xa10] sm:$0x3f] 0.0
  %867 = vst.msk [vmem:[#allocation2 + $0xa18] sm:$0x3f] %vm446, 0.0
  %868 = vst [vmem:[#allocation2 + $0xa20] sm:$0xff] 0.0
  %869 = vst.msk [vmem:[#allocation2 + $0xa28] sm:$0xff] %vm443, 0.0
  %870 = vst [vmem:[#allocation2 + $0xa30] sm:$0x3f] 0.0
  %871 = vst.msk [vmem:[#allocation2 + $0xa38] sm:$0x3f] %vm446, 0.0
  %872 = vst [vmem:[#allocation2 + $0xa40] sm:$0xff] 0.0
  %873 = vst.msk [vmem:[#allocation2 + $0xa48] sm:$0xff] %vm443, 0.0
  %874 = vst [vmem:[#allocation2 + $0xa50] sm:$0x3f] 0.0
  %875 = vst.msk [vmem:[#allocation2 + $0xa58] sm:$0x3f] %vm446, 0.0
  %876 = vst [vmem:[#allocation2 + $0xa60] sm:$0xff] 0.0
  %877 = vst.msk [vmem:[#allocation2 + $0xa68] sm:$0xff] %vm443, 0.0
  %878 = vst [vmem:[#allocation2 + $0xa70] sm:$0x3f] 0.0
  %879 = vst.msk [vmem:[#allocation2 + $0xa78] sm:$0x3f] %vm446, 0.0
  %880 = vst [vmem:[#allocation2 + $0xa80] sm:$0xff] 0.0
  %881 = vst.msk [vmem:[#allocation2 + $0xa88] sm:$0xff] %vm443, 0.0
  %882 = vst [vmem:[#allocation2 + $0xa90] sm:$0x3f] 0.0
  %883 = vst.msk [vmem:[#allocation2 + $0xa98] sm:$0x3f] %vm446, 0.0
  %884 = vst [vmem:[#allocation2 + $0xaa0] sm:$0xff] 0.0
  %885 = vst.msk [vmem:[#allocation2 + $0xaa8] sm:$0xff] %vm443, 0.0
  %886 = vst [vmem:[#allocation2 + $0xab0] sm:$0x3f] 0.0
  %887 = vst.msk [vmem:[#allocation2 + $0xab8] sm:$0x3f] %vm446, 0.0
  %888 = vst [vmem:[#allocation2 + $0xac0] sm:$0xff] 0.0
  %889 = vst.msk [vmem:[#allocation2 + $0xac8] sm:$0xff] %vm443, 0.0
  %890 = vst [vmem:[#allocation2 + $0xad0] sm:$0x3f] 0.0
  %891 = vst.msk [vmem:[#allocation2 + $0xad8] sm:$0x3f] %vm446, 0.0
  %892 = vst [vmem:[#allocation2 + $0xae0] sm:$0xff] 0.0
  %893 = vst.msk [vmem:[#allocation2 + $0xae8] sm:$0xff] %vm443, 0.0
  %894 = vst [vmem:[#allocation2 + $0xaf0] sm:$0x3f] 0.0
  %895 = vst.msk [vmem:[#allocation2 + $0xaf8] sm:$0x3f] %vm446, 0.0
  %896 = vst [vmem:[#allocation2 + $0xb00] sm:$0xff] 0.0
  %897 = vst.msk [vmem:[#allocation2 + $0xb08] sm:$0xff] %vm443, 0.0
  %898 = vst [vmem:[#allocation2 + $0xb10] sm:$0x3f] 0.0
  %899 = vst.msk [vmem:[#allocation2 + $0xb18] sm:$0x3f] %vm446, 0.0
  %900 = vst [vmem:[#allocation2 + $0xb20] sm:$0xff] 0.0
  %901 = vst.msk [vmem:[#allocation2 + $0xb28] sm:$0xff] %vm443, 0.0
  %902 = vst [vmem:[#allocation2 + $0xb30] sm:$0x3f] 0.0
  %903 = vst.msk [vmem:[#allocation2 + $0xb38] sm:$0x3f] %vm446, 0.0
  %v904 = vld [vmem:[%s0] sm:$0xff]
  %v905 = vld [vmem:[%s0 + $0x8] sm:$0xff]
  %v906 = vld [vmem:[%s0 + $0x10] sm:$0xf]
  %v907 = vld [vmem:[%s0 + $0x18] sm:$0xf]
  %v908 = vld [vmem:[%s0 + $0x20] sm:$0xff]
  %v909 = vld [vmem:[%s0 + $0x28] sm:$0xff]
  %v910 = vld [vmem:[%s0 + $0x30] sm:$0xf]
  %v911 = vld [vmem:[%s0 + $0x38] sm:$0xf]
  %v912 = vld [vmem:[%s0 + $0x40] sm:$0xff]
  %v913 = vld [vmem:[%s0 + $0x48] sm:$0xff]
  %v914 = vld [vmem:[%s0 + $0x50] sm:$0xf]
  %v915 = vld [vmem:[%s0 + $0x58] sm:$0xf]
  %v916 = vld [vmem:[%s0 + $0x60] sm:$0xff]
  %v917 = vld [vmem:[%s0 + $0x68] sm:$0xff]
  %v918 = vld [vmem:[%s0 + $0x70] sm:$0xf]
  %v919 = vld [vmem:[%s0 + $0x78] sm:$0xf]
  %v920 = vld [vmem:[%s0 + $0x80] sm:$0xff]
  %v921 = vld [vmem:[%s0 + $0x88] sm:$0xff]
  %v922 = vld [vmem:[%s0 + $0x90] sm:$0xf]
  %v923 = vld [vmem:[%s0 + $0x98] sm:$0xf]
  %v924 = vld [vmem:[%s0 + $0xa0] sm:$0xff]
  %v925 = vld [vmem:[%s0 + $0xa8] sm:$0xff]
  %v926 = vld [vmem:[%s0 + $0xb0] sm:$0xf]
  %v927 = vld [vmem:[%s0 + $0xb8] sm:$0xf]
  %v928 = vld [vmem:[%s0 + $0xc0] sm:$0xff]
  %v929 = vld [vmem:[%s0 + $0xc8] sm:$0xff]
  %v930 = vld [vmem:[%s0 + $0xd0] sm:$0xf]
  %v931 = vld [vmem:[%s0 + $0xd8] sm:$0xf]
  %v932 = vld [vmem:[%s0 + $0xe0] sm:$0xff]
  %v933 = vld [vmem:[%s0 + $0xe8] sm:$0xff]
  %v934 = vld [vmem:[%s0 + $0xf0] sm:$0xf]
  %v935 = vld [vmem:[%s0 + $0xf8] sm:$0xf]
  %v936 = vld [vmem:[%s0 + $0x100] sm:$0xff]
  %v937 = vld [vmem:[%s0 + $0x108] sm:$0xff]
  %v938 = vld [vmem:[%s0 + $0x110] sm:$0xf]
  %v939 = vld [vmem:[%s0 + $0x118] sm:$0xf]
  %v940 = vld [vmem:[%s0 + $0x120] sm:$0xff]
  %v941 = vld [vmem:[%s0 + $0x128] sm:$0xff]
  %v942 = vld [vmem:[%s0 + $0x130] sm:$0xf]
  %v943 = vld [vmem:[%s0 + $0x138] sm:$0xf]
  %v944 = vld [vmem:[%s0 + $0x140] sm:$0xff]
  %v945 = vld [vmem:[%s0 + $0x148] sm:$0xff]
  %v946 = vld [vmem:[%s0 + $0x150] sm:$0xf]
  %v947 = vld [vmem:[%s0 + $0x158] sm:$0xf]
  %v948 = vld [vmem:[%s0 + $0x160] sm:$0xff]
  %v949 = vld [vmem:[%s0 + $0x168] sm:$0xff]
  %v950 = vld [vmem:[%s0 + $0x170] sm:$0xf]
  %v951 = vld [vmem:[%s0 + $0x178] sm:$0xf]
  %v952 = vld [vmem:[%s0 + $0x180] sm:$0xff]
  %v953 = vld [vmem:[%s0 + $0x188] sm:$0xff]
  %v954 = vld [vmem:[%s0 + $0x190] sm:$0xf]
  %v955 = vld [vmem:[%s0 + $0x198] sm:$0xf]
  %v956 = vld [vmem:[%s0 + $0x1a0] sm:$0xff]
  %v957 = vld [vmem:[%s0 + $0x1a8] sm:$0xff]
  %v958 = vld [vmem:[%s0 + $0x1b0] sm:$0xf]
  %v959 = vld [vmem:[%s0 + $0x1b8] sm:$0xf]
  %vm1016 = vcmask 1041408
  %v1017 = vrot.slane %v904, 6
  %v1018 = vrot.slane %v905, 6
  %v1019 = vrot.slane %v906, 6
  %v1020 = vsel %vm1016, %v1017, %v1019
  %v1021 = vrot.slane %v907, 6
  %v1022 = vsel %vm1016, %v1018, %v1021
  %v1023 = vrot.slane %v908, 6
  %v1024 = vrot.slane %v909, 6
  %v1025 = vrot.slane %v910, 6
  %v1026 = vsel %vm1016, %v1023, %v1025
  %v1027 = vrot.slane %v911, 6
  %v1028 = vsel %vm1016, %v1024, %v1027
  %v1029 = vrot.slane %v912, 6
  %v1030 = vrot.slane %v913, 6
  %v1031 = vrot.slane %v914, 6
  %v1032 = vsel %vm1016, %v1029, %v1031
  %v1033 = vrot.slane %v915, 6
  %v1034 = vsel %vm1016, %v1030, %v1033
  %v1035 = vrot.slane %v916, 6
  %v1036 = vrot.slane %v917, 6
  %v1037 = vrot.slane %v918, 6
  %v1038 = vsel %vm1016, %v1035, %v1037
  %v1039 = vrot.slane %v919, 6
  %v1040 = vsel %vm1016, %v1036, %v1039
  %v1041 = vrot.slane %v920, 6
  %v1042 = vrot.slane %v921, 6
  %v1043 = vrot.slane %v922, 6
  %v1044 = vsel %vm1016, %v1041, %v1043
  %v1045 = vrot.slane %v923, 6
  %v1046 = vsel %vm1016, %v1042, %v1045
  %v1047 = vrot.slane %v924, 6
  %v1048 = vrot.slane %v925, 6
  %v1049 = vrot.slane %v926, 6
  %v1050 = vsel %vm1016, %v1047, %v1049
  %v1051 = vrot.slane %v927, 6
  %v1052 = vsel %vm1016, %v1048, %v1051
  %v1053 = vrot.slane %v928, 6
  %v1054 = vrot.slane %v929, 6
  %v1055 = vrot.slane %v930, 6
  %v1056 = vsel %vm1016, %v1053, %v1055
  %v1057 = vrot.slane %v931, 6
  %v1058 = vsel %vm1016, %v1054, %v1057
  %v1059 = vrot.slane %v932, 6
  %v1060 = vrot.slane %v933, 6
  %v1061 = vrot.slane %v934, 6
  %v1062 = vsel %vm1016, %v1059, %v1061
  %v1063 = vrot.slane %v935, 6
  %v1064 = vsel %vm1016, %v1060, %v1063
  %v1065 = vrot.slane %v936, 6
  %v1066 = vrot.slane %v937, 6
  %v1067 = vrot.slane %v938, 6
  %v1068 = vsel %vm1016, %v1065, %v1067
  %v1069 = vrot.slane %v939, 6
  %v1070 = vsel %vm1016, %v1066, %v1069
  %v1071 = vrot.slane %v940, 6
  %v1072 = vrot.slane %v941, 6
  %v1073 = vrot.slane %v942, 6
  %v1074 = vsel %vm1016, %v1071, %v1073
  %v1075 = vrot.slane %v943, 6
  %v1076 = vsel %vm1016, %v1072, %v1075
  %v1077 = vrot.slane %v944, 6
  %v1078 = vrot.slane %v945, 6
  %v1079 = vrot.slane %v946, 6
  %v1080 = vsel %vm1016, %v1077, %v1079
  %v1081 = vrot.slane %v947, 6
  %v1082 = vsel %vm1016, %v1078, %v1081
  %v1083 = vrot.slane %v948, 6
  %v1084 = vrot.slane %v949, 6
  %v1085 = vrot.slane %v950, 6
  %v1086 = vsel %vm1016, %v1083, %v1085
  %v1087 = vrot.slane %v951, 6
  %v1088 = vsel %vm1016, %v1084, %v1087
  %v1089 = vrot.slane %v952, 6
  %v1090 = vrot.slane %v953, 6
  %v1091 = vrot.slane %v954, 6
  %v1092 = vsel %vm1016, %v1089, %v1091
  %v1093 = vrot.slane %v955, 6
  %v1094 = vsel %vm1016, %v1090, %v1093
  %v1095 = vrot.slane %v956, 6
  %v1096 = vrot.slane %v957, 6
  %v1097 = vrot.slane %v958, 6
  %v1098 = vsel %vm1016, %v1095, %v1097
  %v1099 = vrot.slane %v959, 6
  %v1100 = vsel %vm1016, %v1096, %v1099
  %s1157 = scalar_lea.vmem [#allocation2], 64
  %1158 = vst [vmem:[%s1157] sm:$0xfc] %v1017
  %vm1159 = vcmask 130050
  %1160 = vst.msk [vmem:[%s1157 + $0x8] sm:$0xfc] %vm1159, %v1018
  %1161 = vst [vmem:[%s1157 + $0x10] sm:$0x3f] %v1020
  %1162 = vst.msk [vmem:[%s1157 + $0x18] sm:$0x3f] %vm446, %v1022
  %1163 = vst [vmem:[%s1157 + $0x20] sm:$0xfc] %v1023
  %1164 = vst.msk [vmem:[%s1157 + $0x28] sm:$0xfc] %vm1159, %v1024
  %1165 = vst [vmem:[%s1157 + $0x30] sm:$0x3f] %v1026
  %1166 = vst.msk [vmem:[%s1157 + $0x38] sm:$0x3f] %vm446, %v1028
  %1167 = vst [vmem:[%s1157 + $0x40] sm:$0xfc] %v1029
  %1168 = vst.msk [vmem:[%s1157 + $0x48] sm:$0xfc] %vm1159, %v1030
  %1169 = vst [vmem:[%s1157 + $0x50] sm:$0x3f] %v1032
  %1170 = vst.msk [vmem:[%s1157 + $0x58] sm:$0x3f] %vm446, %v1034
  %1171 = vst [vmem:[%s1157 + $0x60] sm:$0xfc] %v1035
  %1172 = vst.msk [vmem:[%s1157 + $0x68] sm:$0xfc] %vm1159, %v1036
  %1173 = vst [vmem:[%s1157 + $0x70] sm:$0x3f] %v1038
  %1174 = vst.msk [vmem:[%s1157 + $0x78] sm:$0x3f] %vm446, %v1040
  %1175 = vst [vmem:[%s1157 + $0x80] sm:$0xfc] %v1041
  %1176 = vst.msk [vmem:[%s1157 + $0x88] sm:$0xfc] %vm1159, %v1042
  %1177 = vst [vmem:[%s1157 + $0x90] sm:$0x3f] %v1044
  %1178 = vst.msk [vmem:[%s1157 + $0x98] sm:$0x3f] %vm446, %v1046
  %1179 = vst [vmem:[%s1157 + $0xa0] sm:$0xfc] %v1047
  %1180 = vst.msk [vmem:[%s1157 + $0xa8] sm:$0xfc] %vm1159, %v1048
  %1181 = vst [vmem:[%s1157 + $0xb0] sm:$0x3f] %v1050
  %1182 = vst.msk [vmem:[%s1157 + $0xb8] sm:$0x3f] %vm446, %v1052
  %1183 = vst [vmem:[%s1157 + $0xc0] sm:$0xfc] %v1053
  %1184 = vst.msk [vmem:[%s1157 + $0xc8] sm:$0xfc] %vm1159, %v1054
  %1185 = vst [vmem:[%s1157 + $0xd0] sm:$0x3f] %v1056
  %1186 = vst.msk [vmem:[%s1157 + $0xd8] sm:$0x3f] %vm446, %v1058
  %1187 = vst [vmem:[%s1157 + $0xe0] sm:$0xfc] %v1059
  %1188 = vst.msk [vmem:[%s1157 + $0xe8] sm:$0xfc] %vm1159, %v1060
  %1189 = vst [vmem:[%s1157 + $0xf0] sm:$0x3f] %v1062
  %1190 = vst.msk [vmem:[%s1157 + $0xf8] sm:$0x3f] %vm446, %v1064
  %1191 = vst [vmem:[%s1157 + $0x100] sm:$0xfc] %v1065
  %1192 = vst.msk [vmem:[%s1157 + $0x108] sm:$0xfc] %vm1159, %v1066
  %1193 = vst [vmem:[%s1157 + $0x110] sm:$0x3f] %v1068
  %1194 = vst.msk [vmem:[%s1157 + $0x118] sm:$0x3f] %vm446, %v1070
  %1195 = vst [vmem:[%s1157 + $0x120] sm:$0xfc] %v1071
  %1196 = vst.msk [vmem:[%s1157 + $0x128] sm:$0xfc] %vm1159, %v1072
  %1197 = vst [vmem:[%s1157 + $0x130] sm:$0x3f] %v1074
  %1198 = vst.msk [vmem:[%s1157 + $0x138] sm:$0x3f] %vm446, %v1076
  %1199 = vst [vmem:[%s1157 + $0x140] sm:$0xfc] %v1077
  %1200 = vst.msk [vmem:[%s1157 + $0x148] sm:$0xfc] %vm1159, %v1078
  %1201 = vst [vmem:[%s1157 + $0x150] sm:$0x3f] %v1080
  %1202 = vst.msk [vmem:[%s1157 + $0x158] sm:$0x3f] %vm446, %v1082
  %1203 = vst [vmem:[%s1157 + $0x160] sm:$0xfc] %v1083
  %1204 = vst.msk [vmem:[%s1157 + $0x168] sm:$0xfc] %vm1159, %v1084
  %1205 = vst [vmem:[%s1157 + $0x170] sm:$0x3f] %v1086
  %1206 = vst.msk [vmem:[%s1157 + $0x178] sm:$0x3f] %vm446, %v1088
  %1207 = vst [vmem:[%s1157 + $0x180] sm:$0xfc] %v1089
  %1208 = vst.msk [vmem:[%s1157 + $0x188] sm:$0xfc] %vm1159, %v1090
  %1209 = vst [vmem:[%s1157 + $0x190] sm:$0x3f] %v1092
  %1210 = vst.msk [vmem:[%s1157 + $0x198] sm:$0x3f] %vm446, %v1094
  %1211 = vst [vmem:[%s1157 + $0x1a0] sm:$0xfc] %v1095
  %1212 = vst.msk [vmem:[%s1157 + $0x1a8] sm:$0xfc] %vm1159, %v1096
  %1213 = vst [vmem:[%s1157 + $0x1b0] sm:$0x3f] %v1098
  %1214 = vst.msk [vmem:[%s1157 + $0x1b8] sm:$0x3f] %vm446, %v1100
  %v1215 = vld [vmem:[%s0] sm:$0xff]
  %v1216 = vld [vmem:[%s0 + $0x8] sm:$0xff]
  %v1217 = vld [vmem:[%s0 + $0x10] sm:$0x1f]
  %v1218 = vld [vmem:[%s0 + $0x18] sm:$0x1f]
  %v1219 = vld [vmem:[%s0 + $0x20] sm:$0xff]
  %v1220 = vld [vmem:[%s0 + $0x28] sm:$0xff]
  %v1221 = vld [vmem:[%s0 + $0x30] sm:$0x1f]
  %v1222 = vld [vmem:[%s0 + $0x38] sm:$0x1f]
  %v1223 = vld [vmem:[%s0 + $0x40] sm:$0xff]
  %v1224 = vld [vmem:[%s0 + $0x48] sm:$0xff]
  %v1225 = vld [vmem:[%s0 + $0x50] sm:$0x1f]
  %v1226 = vld [vmem:[%s0 + $0x58] sm:$0x1f]
  %v1227 = vld [vmem:[%s0 + $0x60] sm:$0xff]
  %v1228 = vld [vmem:[%s0 + $0x68] sm:$0xff]
  %v1229 = vld [vmem:[%s0 + $0x70] sm:$0x1f]
  %v1230 = vld [vmem:[%s0 + $0x78] sm:$0x1f]
  %v1231 = vld [vmem:[%s0 + $0x80] sm:$0xff]
  %v1232 = vld [vmem:[%s0 + $0x88] sm:$0xff]
  %v1233 = vld [vmem:[%s0 + $0x90] sm:$0x1f]
  %v1234 = vld [vmem:[%s0 + $0x98] sm:$0x1f]
  %v1235 = vld [vmem:[%s0 + $0xa0] sm:$0xff]
  %v1236 = vld [vmem:[%s0 + $0xa8] sm:$0xff]
  %v1237 = vld [vmem:[%s0 + $0xb0] sm:$0x1f]
  %v1238 = vld [vmem:[%s0 + $0xb8] sm:$0x1f]
  %v1239 = vld [vmem:[%s0 + $0xc0] sm:$0xff]
  %v1240 = vld [vmem:[%s0 + $0xc8] sm:$0xff]
  %v1241 = vld [vmem:[%s0 + $0xd0] sm:$0x1f]
  %v1242 = vld [vmem:[%s0 + $0xd8] sm:$0x1f]
  %v1243 = vld [vmem:[%s0 + $0xe0] sm:$0xff]
  %v1244 = vld [vmem:[%s0 + $0xe8] sm:$0xff]
  %v1245 = vld [vmem:[%s0 + $0xf0] sm:$0x1f]
  %v1246 = vld [vmem:[%s0 + $0xf8] sm:$0x1f]
  %v1247 = vld [vmem:[%s0 + $0x100] sm:$0xff]
  %v1248 = vld [vmem:[%s0 + $0x108] sm:$0xff]
  %v1249 = vld [vmem:[%s0 + $0x110] sm:$0x1f]
  %v1250 = vld [vmem:[%s0 + $0x118] sm:$0x1f]
  %v1251 = vld [vmem:[%s0 + $0x120] sm:$0xff]
  %v1252 = vld [vmem:[%s0 + $0x128] sm:$0xff]
  %v1253 = vld [vmem:[%s0 + $0x130] sm:$0x1f]
  %v1254 = vld [vmem:[%s0 + $0x138] sm:$0x1f]
  %v1255 = vld [vmem:[%s0 + $0x140] sm:$0xff]
  %v1256 = vld [vmem:[%s0 + $0x148] sm:$0xff]
  %v1257 = vld [vmem:[%s0 + $0x150] sm:$0x1f]
  %v1258 = vld [vmem:[%s0 + $0x158] sm:$0x1f]
  %v1259 = vld [vmem:[%s0 + $0x160] sm:$0xff]
  %v1260 = vld [vmem:[%s0 + $0x168] sm:$0xff]
  %v1261 = vld [vmem:[%s0 + $0x170] sm:$0x1f]
  %v1262 = vld [vmem:[%s0 + $0x178] sm:$0x1f]
  %v1263 = vld [vmem:[%s0 + $0x180] sm:$0xff]
  %v1264 = vld [vmem:[%s0 + $0x188] sm:$0xff]
  %v1265 = vld [vmem:[%s0 + $0x190] sm:$0x1f]
  %v1266 = vld [vmem:[%s0 + $0x198] sm:$0x1f]
  %v1267 = vld [vmem:[%s0 + $0x1a0] sm:$0xff]
  %v1268 = vld [vmem:[%s0 + $0x1a8] sm:$0xff]
  %v1269 = vld [vmem:[%s0 + $0x1b0] sm:$0x1f]
  %v1270 = vld [vmem:[%s0 + $0x1b8] sm:$0x1f]
  %vm1327 = vcmask 1040384
  %v1328 = vrot.slane %v1215, 7
  %v1329 = vrot.slane %v1216, 7
  %v1330 = vrot.slane %v1217, 7
  %v1331 = vsel %vm1327, %v1328, %v1330
  %v1332 = vrot.slane %v1218, 7
  %v1333 = vsel %vm1327, %v1329, %v1332
  %v1334 = vrot.slane %v1219, 7
  %v1335 = vrot.slane %v1220, 7
  %v1336 = vrot.slane %v1221, 7
  %v1337 = vsel %vm1327, %v1334, %v1336
  %v1338 = vrot.slane %v1222, 7
  %v1339 = vsel %vm1327, %v1335, %v1338
  %v1340 = vrot.slane %v1223, 7
  %v1341 = vrot.slane %v1224, 7
  %v1342 = vrot.slane %v1225, 7
  %v1343 = vsel %vm1327, %v1340, %v1342
  %v1344 = vrot.slane %v1226, 7
  %v1345 = vsel %vm1327, %v1341, %v1344
  %v1346 = vrot.slane %v1227, 7
  %v1347 = vrot.slane %v1228, 7
  %v1348 = vrot.slane %v1229, 7
  %v1349 = vsel %vm1327, %v1346, %v1348
  %v1350 = vrot.slane %v1230, 7
  %v1351 = vsel %vm1327, %v1347, %v1350
  %v1352 = vrot.slane %v1231, 7
  %v1353 = vrot.slane %v1232, 7
  %v1354 = vrot.slane %v1233, 7
  %v1355 = vsel %vm1327, %v1352, %v1354
  %v1356 = vrot.slane %v1234, 7
  %v1357 = vsel %vm1327, %v1353, %v1356
  %v1358 = vrot.slane %v1235, 7
  %v1359 = vrot.slane %v1236, 7
  %v1360 = vrot.slane %v1237, 7
  %v1361 = vsel %vm1327, %v1358, %v1360
  %v1362 = vrot.slane %v1238, 7
  %v1363 = vsel %vm1327, %v1359, %v1362
  %v1364 = vrot.slane %v1239, 7
  %v1365 = vrot.slane %v1240, 7
  %v1366 = vrot.slane %v1241, 7
  %v1367 = vsel %vm1327, %v1364, %v1366
  %v1368 = vrot.slane %v1242, 7
  %v1369 = vsel %vm1327, %v1365, %v1368
  %v1370 = vrot.slane %v1243, 7
  %v1371 = vrot.slane %v1244, 7
  %v1372 = vrot.slane %v1245, 7
  %v1373 = vsel %vm1327, %v1370, %v1372
  %v1374 = vrot.slane %v1246, 7
  %v1375 = vsel %vm1327, %v1371, %v1374
  %v1376 = vrot.slane %v1247, 7
  %v1377 = vrot.slane %v1248, 7
  %v1378 = vrot.slane %v1249, 7
  %v1379 = vsel %vm1327, %v1376, %v1378
  %v1380 = vrot.slane %v1250, 7
  %v1381 = vsel %vm1327, %v1377, %v1380
  %v1382 = vrot.slane %v1251, 7
  %v1383 = vrot.slane %v1252, 7
  %v1384 = vrot.slane %v1253, 7
  %v1385 = vsel %vm1327, %v1382, %v1384
  %v1386 = vrot.slane %v1254, 7
  %v1387 = vsel %vm1327, %v1383, %v1386
  %v1388 = vrot.slane %v1255, 7
  %v1389 = vrot.slane %v1256, 7
  %v1390 = vrot.slane %v1257, 7
  %v1391 = vsel %vm1327, %v1388, %v1390
  %v1392 = vrot.slane %v1258, 7
  %v1393 = vsel %vm1327, %v1389, %v1392
  %v1394 = vrot.slane %v1259, 7
  %v1395 = vrot.slane %v1260, 7
  %v1396 = vrot.slane %v1261, 7
  %v1397 = vsel %vm1327, %v1394, %v1396
  %v1398 = vrot.slane %v1262, 7
  %v1399 = vsel %vm1327, %v1395, %v1398
  %v1400 = vrot.slane %v1263, 7
  %v1401 = vrot.slane %v1264, 7
  %v1402 = vrot.slane %v1265, 7
  %v1403 = vsel %vm1327, %v1400, %v1402
  %v1404 = vrot.slane %v1266, 7
  %v1405 = vsel %vm1327, %v1401, %v1404
  %v1406 = vrot.slane %v1267, 7
  %v1407 = vrot.slane %v1268, 7
  %v1408 = vrot.slane %v1269, 7
  %v1409 = vsel %vm1327, %v1406, %v1408
  %v1410 = vrot.slane %v1270, 7
  %v1411 = vsel %vm1327, %v1407, %v1410
  %s1468 = scalar_lea.vmem [#allocation2], 640
  %1469 = vst [vmem:[%s1468] sm:$0xfe] %v1328
  %vm1470 = vcmask 130049
  %1471 = vst.msk [vmem:[%s1468 + $0x8] sm:$0xfe] %vm1470, %v1329
  %1472 = vst [vmem:[%s1468 + $0x10] sm:$0x3f] %v1331
  %1473 = vst.msk [vmem:[%s1468 + $0x18] sm:$0x3f] %vm446, %v1333
  %1474 = vst [vmem:[%s1468 + $0x20] sm:$0xfe] %v1334
  %1475 = vst.msk [vmem:[%s1468 + $0x28] sm:$0xfe] %vm1470, %v1335
  %1476 = vst [vmem:[%s1468 + $0x30] sm:$0x3f] %v1337
  %1477 = vst.msk [vmem:[%s1468 + $0x38] sm:$0x3f] %vm446, %v1339
  %1478 = vst [vmem:[%s1468 + $0x40] sm:$0xfe] %v1340
  %1479 = vst.msk [vmem:[%s1468 + $0x48] sm:$0xfe] %vm1470, %v1341
  %1480 = vst [vmem:[%s1468 + $0x50] sm:$0x3f] %v1343
  %1481 = vst.msk [vmem:[%s1468 + $0x58] sm:$0x3f] %vm446, %v1345
  %1482 = vst [vmem:[%s1468 + $0x60] sm:$0xfe] %v1346
  %1483 = vst.msk [vmem:[%s1468 + $0x68] sm:$0xfe] %vm1470, %v1347
  %1484 = vst [vmem:[%s1468 + $0x70] sm:$0x3f] %v1349
  %1485 = vst.msk [vmem:[%s1468 + $0x78] sm:$0x3f] %vm446, %v1351
  %1486 = vst [vmem:[%s1468 + $0x80] sm:$0xfe] %v1352
  %1487 = vst.msk [vmem:[%s1468 + $0x88] sm:$0xfe] %vm1470, %v1353
  %1488 = vst [vmem:[%s1468 + $0x90] sm:$0x3f] %v1355
  %1489 = vst.msk [vmem:[%s1468 + $0x98] sm:$0x3f] %vm446, %v1357
  %1490 = vst [vmem:[%s1468 + $0xa0] sm:$0xfe] %v1358
  %1491 = vst.msk [vmem:[%s1468 + $0xa8] sm:$0xfe] %vm1470, %v1359
  %1492 = vst [vmem:[%s1468 + $0xb0] sm:$0x3f] %v1361
  %1493 = vst.msk [vmem:[%s1468 + $0xb8] sm:$0x3f] %vm446, %v1363
  %1494 = vst [vmem:[%s1468 + $0xc0] sm:$0xfe] %v1364
  %1495 = vst.msk [vmem:[%s1468 + $0xc8] sm:$0xfe] %vm1470, %v1365
  %1496 = vst [vmem:[%s1468 + $0xd0] sm:$0x3f] %v1367
  %1497 = vst.msk [vmem:[%s1468 + $0xd8] sm:$0x3f] %vm446, %v1369
  %1498 = vst [vmem:[%s1468 + $0xe0] sm:$0xfe] %v1370
  %1499 = vst.msk [vmem:[%s1468 + $0xe8] sm:$0xfe] %vm1470, %v1371
  %1500 = vst [vmem:[%s1468 + $0xf0] sm:$0x3f] %v1373
  %1501 = vst.msk [vmem:[%s1468 + $0xf8] sm:$0x3f] %vm446, %v1375
  %1502 = vst [vmem:[%s1468 + $0x100] sm:$0xfe] %v1376
  %1503 = vst.msk [vmem:[%s1468 + $0x108] sm:$0xfe] %vm1470, %v1377
  %1504 = vst [vmem:[%s1468 + $0x110] sm:$0x3f] %v1379
  %1505 = vst.msk [vmem:[%s1468 + $0x118] sm:$0x3f] %vm446, %v1381
  %1506 = vst [vmem:[%s1468 + $0x120] sm:$0xfe] %v1382
  %1507 = vst.msk [vmem:[%s1468 + $0x128] sm:$0xfe] %vm1470, %v1383
  %1508 = vst [vmem:[%s1468 + $0x130] sm:$0x3f] %v1385
  %1509 = vst.msk [vmem:[%s1468 + $0x138] sm:$0x3f] %vm446, %v1387
  %1510 = vst [vmem:[%s1468 + $0x140] sm:$0xfe] %v1388
  %1511 = vst.msk [vmem:[%s1468 + $0x148] sm:$0xfe] %vm1470, %v1389
  %1512 = vst [vmem:[%s1468 + $0x150] sm:$0x3f] %v1391
  %1513 = vst.msk [vmem:[%s1468 + $0x158] sm:$0x3f] %vm446, %v1393
  %1514 = vst [vmem:[%s1468 + $0x160] sm:$0xfe] %v1394
  %1515 = vst.msk [vmem:[%s1468 + $0x168] sm:$0xfe] %vm1470, %v1395
  %1516 = vst [vmem:[%s1468 + $0x170] sm:$0x3f] %v1397
  %1517 = vst.msk [vmem:[%s1468 + $0x178] sm:$0x3f] %vm446, %v1399
  %1518 = vst [vmem:[%s1468 + $0x180] sm:$0xfe] %v1400
  %1519 = vst.msk [vmem:[%s1468 + $0x188] sm:$0xfe] %vm1470, %v1401
  %1520 = vst [vmem:[%s1468 + $0x190] sm:$0x3f] %v1403
  %1521 = vst.msk [vmem:[%s1468 + $0x198] sm:$0x3f] %vm446, %v1405
  %1522 = vst [vmem:[%s1468 + $0x1a0] sm:$0xfe] %v1406
  %1523 = vst.msk [vmem:[%s1468 + $0x1a8] sm:$0xfe] %vm1470, %v1407
  %1524 = vst [vmem:[%s1468 + $0x1b0] sm:$0x3f] %v1409
  %1525 = vst.msk [vmem:[%s1468 + $0x1b8] sm:$0x3f] %vm446, %v1411
  %v1526 = vld [vmem:[%s0] sm:$0xff]
  %v1527 = vld [vmem:[%s0 + $0x8] sm:$0xff]
  %v1528 = vld [vmem:[%s0 + $0x10] sm:$0x3f]
  %v1529 = vld [vmem:[%s0 + $0x18] sm:$0x3f]
  %v1530 = vld [vmem:[%s0 + $0x20] sm:$0xff]
  %v1531 = vld [vmem:[%s0 + $0x28] sm:$0xff]
  %v1532 = vld [vmem:[%s0 + $0x30] sm:$0x3f]
  %v1533 = vld [vmem:[%s0 + $0x38] sm:$0x3f]
  %v1534 = vld [vmem:[%s0 + $0x40] sm:$0xff]
  %v1535 = vld [vmem:[%s0 + $0x48] sm:$0xff]
  %v1536 = vld [vmem:[%s0 + $0x50] sm:$0x3f]
  %v1537 = vld [vmem:[%s0 + $0x58] sm:$0x3f]
  %v1538 = vld [vmem:[%s0 + $0x60] sm:$0xff]
  %v1539 = vld [vmem:[%s0 + $0x68] sm:$0xff]
  %v1540 = vld [vmem:[%s0 + $0x70] sm:$0x3f]
  %v1541 = vld [vmem:[%s0 + $0x78] sm:$0x3f]
  %v1542 = vld [vmem:[%s0 + $0x80] sm:$0xff]
  %v1543 = vld [vmem:[%s0 + $0x88] sm:$0xff]
  %v1544 = vld [vmem:[%s0 + $0x90] sm:$0x3f]
  %v1545 = vld [vmem:[%s0 + $0x98] sm:$0x3f]
  %v1546 = vld [vmem:[%s0 + $0xa0] sm:$0xff]
  %v1547 = vld [vmem:[%s0 + $0xa8] sm:$0xff]
  %v1548 = vld [vmem:[%s0 + $0xb0] sm:$0x3f]
  %v1549 = vld [vmem:[%s0 + $0xb8] sm:$0x3f]
  %v1550 = vld [vmem:[%s0 + $0xc0] sm:$0xff]
  %v1551 = vld [vmem:[%s0 + $0xc8] sm:$0xff]
  %v1552 = vld [vmem:[%s0 + $0xd0] sm:$0x3f]
  %v1553 = vld [vmem:[%s0 + $0xd8] sm:$0x3f]
  %v1554 = vld [vmem:[%s0 + $0xe0] sm:$0xff]
  %v1555 = vld [vmem:[%s0 + $0xe8] sm:$0xff]
  %v1556 = vld [vmem:[%s0 + $0xf0] sm:$0x3f]
  %v1557 = vld [vmem:[%s0 + $0xf8] sm:$0x3f]
  %v1558 = vld [vmem:[%s0 + $0x100] sm:$0xff]
  %v1559 = vld [vmem:[%s0 + $0x108] sm:$0xff]
  %v1560 = vld [vmem:[%s0 + $0x110] sm:$0x3f]
  %v1561 = vld [vmem:[%s0 + $0x118] sm:$0x3f]
  %v1562 = vld [vmem:[%s0 + $0x120] sm:$0xff]
  %v1563 = vld [vmem:[%s0 + $0x128] sm:$0xff]
  %v1564 = vld [vmem:[%s0 + $0x130] sm:$0x3f]
  %v1565 = vld [vmem:[%s0 + $0x138] sm:$0x3f]
  %v1566 = vld [vmem:[%s0 + $0x140] sm:$0xff]
  %v1567 = vld [vmem:[%s0 + $0x148] sm:$0xff]
  %v1568 = vld [vmem:[%s0 + $0x150] sm:$0x3f]
  %v1569 = vld [vmem:[%s0 + $0x158] sm:$0x3f]
  %v1570 = vld [vmem:[%s0 + $0x160] sm:$0xff]
  %v1571 = vld [vmem:[%s0 + $0x168] sm:$0xff]
  %v1572 = vld [vmem:[%s0 + $0x170] sm:$0x3f]
  %v1573 = vld [vmem:[%s0 + $0x178] sm:$0x3f]
  %v1574 = vld [vmem:[%s0 + $0x180] sm:$0xff]
  %v1575 = vld [vmem:[%s0 + $0x188] sm:$0xff]
  %v1576 = vld [vmem:[%s0 + $0x190] sm:$0x3f]
  %v1577 = vld [vmem:[%s0 + $0x198] sm:$0x3f]
  %v1578 = vld [vmem:[%s0 + $0x1a0] sm:$0xff]
  %v1579 = vld [vmem:[%s0 + $0x1a8] sm:$0xff]
  %v1580 = vld [vmem:[%s0 + $0x1b0] sm:$0x3f]
  %v1581 = vld [vmem:[%s0 + $0x1b8] sm:$0x3f]
  %s1582 = scalar_lea.vmem [#allocation2], 1216
  %1583 = vst [vmem:[%s1582] sm:$0xff] %v1526
  %1584 = vst.msk [vmem:[%s1582 + $0x8] sm:$0xff] %vm443, %v1527
  %1585 = vst [vmem:[%s1582 + $0x10] sm:$0x3f] %v1528
  %1586 = vst.msk [vmem:[%s1582 + $0x18] sm:$0x3f] %vm446, %v1529
  %1587 = vst [vmem:[%s1582 + $0x20] sm:$0xff] %v1530
  %1588 = vst.msk [vmem:[%s1582 + $0x28] sm:$0xff] %vm443, %v1531
  %1589 = vst [vmem:[%s1582 + $0x30] sm:$0x3f] %v1532
  %1590 = vst.msk [vmem:[%s1582 + $0x38] sm:$0x3f] %vm446, %v1533
  %1591 = vst [vmem:[%s1582 + $0x40] sm:$0xff] %v1534
  %1592 = vst.msk [vmem:[%s1582 + $0x48] sm:$0xff] %vm443, %v1535
  %1593 = vst [vmem:[%s1582 + $0x50] sm:$0x3f] %v1536
  %1594 = vst.msk [vmem:[%s1582 + $0x58] sm:$0x3f] %vm446, %v1537
  %1595 = vst [vmem:[%s1582 + $0x60] sm:$0xff] %v1538
  %1596 = vst.msk [vmem:[%s1582 + $0x68] sm:$0xff] %vm443, %v1539
  %1597 = vst [vmem:[%s1582 + $0x70] sm:$0x3f] %v1540
  %1598 = vst.msk [vmem:[%s1582 + $0x78] sm:$0x3f] %vm446, %v1541
  %1599 = vst [vmem:[%s1582 + $0x80] sm:$0xff] %v1542
  %1600 = vst.msk [vmem:[%s1582 + $0x88] sm:$0xff] %vm443, %v1543
  %1601 = vst [vmem:[%s1582 + $0x90] sm:$0x3f] %v1544
  %1602 = vst.msk [vmem:[%s1582 + $0x98] sm:$0x3f] %vm446, %v1545
  %1603 = vst [vmem:[%s1582 + $0xa0] sm:$0xff] %v1546
  %1604 = vst.msk [vmem:[%s1582 + $0xa8] sm:$0xff] %vm443, %v1547
  %1605 = vst [vmem:[%s1582 + $0xb0] sm:$0x3f] %v1548
  %1606 = vst.msk [vmem:[%s1582 + $0xb8] sm:$0x3f] %vm446, %v1549
  %1607 = vst [vmem:[%s1582 + $0xc0] sm:$0xff] %v1550
  %1608 = vst.msk [vmem:[%s1582 + $0xc8] sm:$0xff] %vm443, %v1551
  %1609 = vst [vmem:[%s1582 + $0xd0] sm:$0x3f] %v1552
  %1610 = vst.msk [vmem:[%s1582 + $0xd8] sm:$0x3f] %vm446, %v1553
  %1611 = vst [vmem:[%s1582 + $0xe0] sm:$0xff] %v1554
  %1612 = vst.msk [vmem:[%s1582 + $0xe8] sm:$0xff] %vm443, %v1555
  %1613 = vst [vmem:[%s1582 + $0xf0] sm:$0x3f] %v1556
  %1614 = vst.msk [vmem:[%s1582 + $0xf8] sm:$0x3f] %vm446, %v1557
  %1615 = vst [vmem:[%s1582 + $0x100] sm:$0xff] %v1558
  %1616 = vst.msk [vmem:[%s1582 + $0x108] sm:$0xff] %vm443, %v1559
  %1617 = vst [vmem:[%s1582 + $0x110] sm:$0x3f] %v1560
  %1618 = vst.msk [vmem:[%s1582 + $0x118] sm:$0x3f] %vm446, %v1561
  %1619 = vst [vmem:[%s1582 + $0x120] sm:$0xff] %v1562
  %1620 = vst.msk [vmem:[%s1582 + $0x128] sm:$0xff] %vm443, %v1563
  %1621 = vst [vmem:[%s1582 + $0x130] sm:$0x3f] %v1564
  %1622 = vst.msk [vmem:[%s1582 + $0x138] sm:$0x3f] %vm446, %v1565
  %1623 = vst [vmem:[%s1582 + $0x140] sm:$0xff] %v1566
  %1624 = vst.msk [vmem:[%s1582 + $0x148] sm:$0xff] %vm443, %v1567
  %1625 = vst [vmem:[%s1582 + $0x150] sm:$0x3f] %v1568
  %1626 = vst.msk [vmem:[%s1582 + $0x158] sm:$0x3f] %vm446, %v1569
  %1627 = vst [vmem:[%s1582 + $0x160] sm:$0xff] %v1570
  %1628 = vst.msk [vmem:[%s1582 + $0x168] sm:$0xff] %vm443, %v1571
  %1629 = vst [vmem:[%s1582 + $0x170] sm:$0x3f] %v1572
  %1630 = vst.msk [vmem:[%s1582 + $0x178] sm:$0x3f] %vm446, %v1573
  %1631 = vst [vmem:[%s1582 + $0x180] sm:$0xff] %v1574
  %1632 = vst.msk [vmem:[%s1582 + $0x188] sm:$0xff] %vm443, %v1575
  %1633 = vst [vmem:[%s1582 + $0x190] sm:$0x3f] %v1576
  %1634 = vst.msk [vmem:[%s1582 + $0x198] sm:$0x3f] %vm446, %v1577
  %1635 = vst [vmem:[%s1582 + $0x1a0] sm:$0xff] %v1578
  %1636 = vst.msk [vmem:[%s1582 + $0x1a8] sm:$0xff] %vm443, %v1579
  %1637 = vst [vmem:[%s1582 + $0x1b0] sm:$0x3f] %v1580
  %1638 = vst.msk [vmem:[%s1582 + $0x1b8] sm:$0x3f] %vm446, %v1581
  %v1639 = vld [vmem:[%s0] sm:$0xfe]
  %v1640 = vld [vmem:[%s0 + $0x8] sm:$0xfe]
  %v1641 = vld [vmem:[%s0 + $0x10] sm:$0x3f]
  %v1642 = vld [vmem:[%s0 + $0x18] sm:$0x3f]
  %v1643 = vld [vmem:[%s0 + $0x20] sm:$0xfe]
  %v1644 = vld [vmem:[%s0 + $0x28] sm:$0xfe]
  %v1645 = vld [vmem:[%s0 + $0x30] sm:$0x3f]
  %v1646 = vld [vmem:[%s0 + $0x38] sm:$0x3f]
  %v1647 = vld [vmem:[%s0 + $0x40] sm:$0xfe]
  %v1648 = vld [vmem:[%s0 + $0x48] sm:$0xfe]
  %v1649 = vld [vmem:[%s0 + $0x50] sm:$0x3f]
  %v1650 = vld [vmem:[%s0 + $0x58] sm:$0x3f]
  %v1651 = vld [vmem:[%s0 + $0x60] sm:$0xfe]
  %v1652 = vld [vmem:[%s0 + $0x68] sm:$0xfe]
  %v1653 = vld [vmem:[%s0 + $0x70] sm:$0x3f]
  %v1654 = vld [vmem:[%s0 + $0x78] sm:$0x3f]
  %v1655 = vld [vmem:[%s0 + $0x80] sm:$0xfe]
  %v1656 = vld [vmem:[%s0 + $0x88] sm:$0xfe]
  %v1657 = vld [vmem:[%s0 + $0x90] sm:$0x3f]
  %v1658 = vld [vmem:[%s0 + $0x98] sm:$0x3f]
  %v1659 = vld [vmem:[%s0 + $0xa0] sm:$0xfe]
  %v1660 = vld [vmem:[%s0 + $0xa8] sm:$0xfe]
  %v1661 = vld [vmem:[%s0 + $0xb0] sm:$0x3f]
  %v1662 = vld [vmem:[%s0 + $0xb8] sm:$0x3f]
  %v1663 = vld [vmem:[%s0 + $0xc0] sm:$0xfe]
  %v1664 = vld [vmem:[%s0 + $0xc8] sm:$0xfe]
  %v1665 = vld [vmem:[%s0 + $0xd0] sm:$0x3f]
  %v1666 = vld [vmem:[%s0 + $0xd8] sm:$0x3f]
  %v1667 = vld [vmem:[%s0 + $0xe0] sm:$0xfe]
  %v1668 = vld [vmem:[%s0 + $0xe8] sm:$0xfe]
  %v1669 = vld [vmem:[%s0 + $0xf0] sm:$0x3f]
  %v1670 = vld [vmem:[%s0 + $0xf8] sm:$0x3f]
  %v1671 = vld [vmem:[%s0 + $0x100] sm:$0xfe]
  %v1672 = vld [vmem:[%s0 + $0x108] sm:$0xfe]
  %v1673 = vld [vmem:[%s0 + $0x110] sm:$0x3f]
  %v1674 = vld [vmem:[%s0 + $0x118] sm:$0x3f]
  %v1675 = vld [vmem:[%s0 + $0x120] sm:$0xfe]
  %v1676 = vld [vmem:[%s0 + $0x128] sm:$0xfe]
  %v1677 = vld [vmem:[%s0 + $0x130] sm:$0x3f]
  %v1678 = vld [vmem:[%s0 + $0x138] sm:$0x3f]
  %v1679 = vld [vmem:[%s0 + $0x140] sm:$0xfe]
  %v1680 = vld [vmem:[%s0 + $0x148] sm:$0xfe]
  %v1681 = vld [vmem:[%s0 + $0x150] sm:$0x3f]
  %v1682 = vld [vmem:[%s0 + $0x158] sm:$0x3f]
  %v1683 = vld [vmem:[%s0 + $0x160] sm:$0xfe]
  %v1684 = vld [vmem:[%s0 + $0x168] sm:$0xfe]
  %v1685 = vld [vmem:[%s0 + $0x170] sm:$0x3f]
  %v1686 = vld [vmem:[%s0 + $0x178] sm:$0x3f]
  %v1687 = vld [vmem:[%s0 + $0x180] sm:$0xfe]
  %v1688 = vld [vmem:[%s0 + $0x188] sm:$0xfe]
  %v1689 = vld [vmem:[%s0 + $0x190] sm:$0x3f]
  %v1690 = vld [vmem:[%s0 + $0x198] sm:$0x3f]
  %v1691 = vld [vmem:[%s0 + $0x1a0] sm:$0xfe]
  %v1692 = vld [vmem:[%s0 + $0x1a8] sm:$0xfe]
  %v1693 = vld [vmem:[%s0 + $0x1b0] sm:$0x3f]
  %v1694 = vld [vmem:[%s0 + $0x1b8] sm:$0x3f]
  %vm1751 = vcmask 1046528
  %v1752 = vrot.slane %v1639, 1
  %v1753 = vrot.slane %v1641, 1
  %v1754 = vsel %vm1751, %v1752, %v1753
  %v1755 = vrot.slane %v1640, 1
  %v1756 = vrot.slane %v1642, 1
  %v1757 = vsel %vm1751, %v1755, %v1756
  %v1758 = vrot.slane %v1643, 1
  %v1759 = vrot.slane %v1645, 1
  %v1760 = vsel %vm1751, %v1758, %v1759
  %v1761 = vrot.slane %v1644, 1
  %v1762 = vrot.slane %v1646, 1
  %v1763 = vsel %vm1751, %v1761, %v1762
  %v1764 = vrot.slane %v1647, 1
  %v1765 = vrot.slane %v1649, 1
  %v1766 = vsel %vm1751, %v1764, %v1765
  %v1767 = vrot.slane %v1648, 1
  %v1768 = vrot.slane %v1650, 1
  %v1769 = vsel %vm1751, %v1767, %v1768
  %v1770 = vrot.slane %v1651, 1
  %v1771 = vrot.slane %v1653, 1
  %v1772 = vsel %vm1751, %v1770, %v1771
  %v1773 = vrot.slane %v1652, 1
  %v1774 = vrot.slane %v1654, 1
  %v1775 = vsel %vm1751, %v1773, %v1774
  %v1776 = vrot.slane %v1655, 1
  %v1777 = vrot.slane %v1657, 1
  %v1778 = vsel %vm1751, %v1776, %v1777
  %v1779 = vrot.slane %v1656, 1
  %v1780 = vrot.slane %v1658, 1
  %v1781 = vsel %vm1751, %v1779, %v1780
  %v1782 = vrot.slane %v1659, 1
  %v1783 = vrot.slane %v1661, 1
  %v1784 = vsel %vm1751, %v1782, %v1783
  %v1785 = vrot.slane %v1660, 1
  %v1786 = vrot.slane %v1662, 1
  %v1787 = vsel %vm1751, %v1785, %v1786
  %v1788 = vrot.slane %v1663, 1
  %v1789 = vrot.slane %v1665, 1
  %v1790 = vsel %vm1751, %v1788, %v1789
  %v1791 = vrot.slane %v1664, 1
  %v1792 = vrot.slane %v1666, 1
  %v1793 = vsel %vm1751, %v1791, %v1792
  %v1794 = vrot.slane %v1667, 1
  %v1795 = vrot.slane %v1669, 1
  %v1796 = vsel %vm1751, %v1794, %v1795
  %v1797 = vrot.slane %v1668, 1
  %v1798 = vrot.slane %v1670, 1
  %v1799 = vsel %vm1751, %v1797, %v1798
  %v1800 = vrot.slane %v1671, 1
  %v1801 = vrot.slane %v1673, 1
  %v1802 = vsel %vm1751, %v1800, %v1801
  %v1803 = vrot.slane %v1672, 1
  %v1804 = vrot.slane %v1674, 1
  %v1805 = vsel %vm1751, %v1803, %v1804
  %v1806 = vrot.slane %v1675, 1
  %v1807 = vrot.slane %v1677, 1
  %v1808 = vsel %vm1751, %v1806, %v1807
  %v1809 = vrot.slane %v1676, 1
  %v1810 = vrot.slane %v1678, 1
  %v1811 = vsel %vm1751, %v1809, %v1810
  %v1812 = vrot.slane %v1679, 1
  %v1813 = vrot.slane %v1681, 1
  %v1814 = vsel %vm1751, %v1812, %v1813
  %v1815 = vrot.slane %v1680, 1
  %v1816 = vrot.slane %v1682, 1
  %v1817 = vsel %vm1751, %v1815, %v1816
  %v1818 = vrot.slane %v1683, 1
  %v1819 = vrot.slane %v1685, 1
  %v1820 = vsel %vm1751, %v1818, %v1819
  %v1821 = vrot.slane %v1684, 1
  %v1822 = vrot.slane %v1686, 1
  %v1823 = vsel %vm1751, %v1821, %v1822
  %v1824 = vrot.slane %v1687, 1
  %v1825 = vrot.slane %v1689, 1
  %v1826 = vsel %vm1751, %v1824, %v1825
  %v1827 = vrot.slane %v1688, 1
  %v1828 = vrot.slane %v1690, 1
  %v1829 = vsel %vm1751, %v1827, %v1828
  %v1830 = vrot.slane %v1691, 1
  %v1831 = vrot.slane %v1693, 1
  %v1832 = vsel %vm1751, %v1830, %v1831
  %v1833 = vrot.slane %v1692, 1
  %v1834 = vrot.slane %v1694, 1
  %v1835 = vsel %vm1751, %v1833, %v1834
  %s1892 = scalar_lea.vmem [#allocation2], 1792
  %1893 = vst [vmem:[%s1892] sm:$0xff] %v1754
  %1894 = vst.msk [vmem:[%s1892 + $0x8] sm:$0xff] %vm443, %v1757
  %1895 = vst [vmem:[%s1892 + $0x10] sm:$0x1f] %v1753
  %vm1896 = vcmask 126976
  %1897 = vst.msk [vmem:[%s1892 + $0x18] sm:$0x1f] %vm1896, %v1756
  %1898 = vst [vmem:[%s1892 + $0x20] sm:$0xff] %v1760
  %1899 = vst.msk [vmem:[%s1892 + $0x28] sm:$0xff] %vm443, %v1763
  %1900 = vst [vmem:[%s1892 + $0x30] sm:$0x1f] %v1759
  %1901 = vst.msk [vmem:[%s1892 + $0x38] sm:$0x1f] %vm1896, %v1762
  %1902 = vst [vmem:[%s1892 + $0x40] sm:$0xff] %v1766
  %1903 = vst.msk [vmem:[%s1892 + $0x48] sm:$0xff] %vm443, %v1769
  %1904 = vst [vmem:[%s1892 + $0x50] sm:$0x1f] %v1765
  %1905 = vst.msk [vmem:[%s1892 + $0x58] sm:$0x1f] %vm1896, %v1768
  %1906 = vst [vmem:[%s1892 + $0x60] sm:$0xff] %v1772
  %1907 = vst.msk [vmem:[%s1892 + $0x68] sm:$0xff] %vm443, %v1775
  %1908 = vst [vmem:[%s1892 + $0x70] sm:$0x1f] %v1771
  %1909 = vst.msk [vmem:[%s1892 + $0x78] sm:$0x1f] %vm1896, %v1774
  %1910 = vst [vmem:[%s1892 + $0x80] sm:$0xff] %v1778
  %1911 = vst.msk [vmem:[%s1892 + $0x88] sm:$0xff] %vm443, %v1781
  %1912 = vst [vmem:[%s1892 + $0x90] sm:$0x1f] %v1777
  %1913 = vst.msk [vmem:[%s1892 + $0x98] sm:$0x1f] %vm1896, %v1780
  %1914 = vst [vmem:[%s1892 + $0xa0] sm:$0xff] %v1784
  %1915 = vst.msk [vmem:[%s1892 + $0xa8] sm:$0xff] %vm443, %v1787
  %1916 = vst [vmem:[%s1892 + $0xb0] sm:$0x1f] %v1783
  %1917 = vst.msk [vmem:[%s1892 + $0xb8] sm:$0x1f] %vm1896, %v1786
  %1918 = vst [vmem:[%s1892 + $0xc0] sm:$0xff] %v1790
  %1919 = vst.msk [vmem:[%s1892 + $0xc8] sm:$0xff] %vm443, %v1793
  %1920 = vst [vmem:[%s1892 + $0xd0] sm:$0x1f] %v1789
  %1921 = vst.msk [vmem:[%s1892 + $0xd8] sm:$0x1f] %vm1896, %v1792
  %1922 = vst [vmem:[%s1892 + $0xe0] sm:$0xff] %v1796
  %1923 = vst.msk [vmem:[%s1892 + $0xe8] sm:$0xff] %vm443, %v1799
  %1924 = vst [vmem:[%s1892 + $0xf0] sm:$0x1f] %v1795
  %1925 = vst.msk [vmem:[%s1892 + $0xf8] sm:$0x1f] %vm1896, %v1798
  %1926 = vst [vmem:[%s1892 + $0x100] sm:$0xff] %v1802
  %1927 = vst.msk [vmem:[%s1892 + $0x108] sm:$0xff] %vm443, %v1805
  %1928 = vst [vmem:[%s1892 + $0x110] sm:$0x1f] %v1801
  %1929 = vst.msk [vmem:[%s1892 + $0x118] sm:$0x1f] %vm1896, %v1804
  %1930 = vst [vmem:[%s1892 + $0x120] sm:$0xff] %v1808
  %1931 = vst.msk [vmem:[%s1892 + $0x128] sm:$0xff] %vm443, %v1811
  %1932 = vst [vmem:[%s1892 + $0x130] sm:$0x1f] %v1807
  %1933 = vst.msk [vmem:[%s1892 + $0x138] sm:$0x1f] %vm1896, %v1810
  %1934 = vst [vmem:[%s1892 + $0x140] sm:$0xff] %v1814
  %1935 = vst.msk [vmem:[%s1892 + $0x148] sm:$0xff] %vm443, %v1817
  %1936 = vst [vmem:[%s1892 + $0x150] sm:$0x1f] %v1813
  %1937 = vst.msk [vmem:[%s1892 + $0x158] sm:$0x1f] %vm1896, %v1816
  %1938 = vst [vmem:[%s1892 + $0x160] sm:$0xff] %v1820
  %1939 = vst.msk [vmem:[%s1892 + $0x168] sm:$0xff] %vm443, %v1823
  %1940 = vst [vmem:[%s1892 + $0x170] sm:$0x1f] %v1819
  %1941 = vst.msk [vmem:[%s1892 + $0x178] sm:$0x1f] %vm1896, %v1822
  %1942 = vst [vmem:[%s1892 + $0x180] sm:$0xff] %v1826
  %1943 = vst.msk [vmem:[%s1892 + $0x188] sm:$0xff] %vm443, %v1829
  %1944 = vst [vmem:[%s1892 + $0x190] sm:$0x1f] %v1825
  %1945 = vst.msk [vmem:[%s1892 + $0x198] sm:$0x1f] %vm1896, %v1828
  %1946 = vst [vmem:[%s1892 + $0x1a0] sm:$0xff] %v1832
  %1947 = vst.msk [vmem:[%s1892 + $0x1a8] sm:$0xff] %vm443, %v1835
  %1948 = vst [vmem:[%s1892 + $0x1b0] sm:$0x1f] %v1831
  %1949 = vst.msk [vmem:[%s1892 + $0x1b8] sm:$0x1f] %vm1896, %v1834
  %v1950 = vld [vmem:[%s0] sm:$0xfc]
  %v1951 = vld [vmem:[%s0 + $0x8] sm:$0xfc]
  %v1952 = vld [vmem:[%s0 + $0x10] sm:$0x3f]
  %v1953 = vld [vmem:[%s0 + $0x18] sm:$0x3f]
  %v1954 = vld [vmem:[%s0 + $0x20] sm:$0xfc]
  %v1955 = vld [vmem:[%s0 + $0x28] sm:$0xfc]
  %v1956 = vld [vmem:[%s0 + $0x30] sm:$0x3f]
  %v1957 = vld [vmem:[%s0 + $0x38] sm:$0x3f]
  %v1958 = vld [vmem:[%s0 + $0x40] sm:$0xfc]
  %v1959 = vld [vmem:[%s0 + $0x48] sm:$0xfc]
  %v1960 = vld [vmem:[%s0 + $0x50] sm:$0x3f]
  %v1961 = vld [vmem:[%s0 + $0x58] sm:$0x3f]
  %v1962 = vld [vmem:[%s0 + $0x60] sm:$0xfc]
  %v1963 = vld [vmem:[%s0 + $0x68] sm:$0xfc]
  %v1964 = vld [vmem:[%s0 + $0x70] sm:$0x3f]
  %v1965 = vld [vmem:[%s0 + $0x78] sm:$0x3f]
  %v1966 = vld [vmem:[%s0 + $0x80] sm:$0xfc]
  %v1967 = vld [vmem:[%s0 + $0x88] sm:$0xfc]
  %v1968 = vld [vmem:[%s0 + $0x90] sm:$0x3f]
  %v1969 = vld [vmem:[%s0 + $0x98] sm:$0x3f]
  %v1970 = vld [vmem:[%s0 + $0xa0] sm:$0xfc]
  %v1971 = vld [vmem:[%s0 + $0xa8] sm:$0xfc]
  %v1972 = vld [vmem:[%s0 + $0xb0] sm:$0x3f]
  %v1973 = vld [vmem:[%s0 + $0xb8] sm:$0x3f]
  %v1974 = vld [vmem:[%s0 + $0xc0] sm:$0xfc]
  %v1975 = vld [vmem:[%s0 + $0xc8] sm:$0xfc]
  %v1976 = vld [vmem:[%s0 + $0xd0] sm:$0x3f]
  %v1977 = vld [vmem:[%s0 + $0xd8] sm:$0x3f]
  %v1978 = vld [vmem:[%s0 + $0xe0] sm:$0xfc]
  %v1979 = vld [vmem:[%s0 + $0xe8] sm:$0xfc]
  %v1980 = vld [vmem:[%s0 + $0xf0] sm:$0x3f]
  %v1981 = vld [vmem:[%s0 + $0xf8] sm:$0x3f]
  %v1982 = vld [vmem:[%s0 + $0x100] sm:$0xfc]
  %v1983 = vld [vmem:[%s0 + $0x108] sm:$0xfc]
  %v1984 = vld [vmem:[%s0 + $0x110] sm:$0x3f]
  %v1985 = vld [vmem:[%s0 + $0x118] sm:$0x3f]
  %v1986 = vld [vmem:[%s0 + $0x120] sm:$0xfc]
  %v1987 = vld [vmem:[%s0 + $0x128] sm:$0xfc]
  %v1988 = vld [vmem:[%s0 + $0x130] sm:$0x3f]
  %v1989 = vld [vmem:[%s0 + $0x138] sm:$0x3f]
  %v1990 = vld [vmem:[%s0 + $0x140] sm:$0xfc]
  %v1991 = vld [vmem:[%s0 + $0x148] sm:$0xfc]
  %v1992 = vld [vmem:[%s0 + $0x150] sm:$0x3f]
  %v1993 = vld [vmem:[%s0 + $0x158] sm:$0x3f]
  %v1994 = vld [vmem:[%s0 + $0x160] sm:$0xfc]
  %v1995 = vld [vmem:[%s0 + $0x168] sm:$0xfc]
  %v1996 = vld [vmem:[%s0 + $0x170] sm:$0x3f]
  %v1997 = vld [vmem:[%s0 + $0x178] sm:$0x3f]
  %v1998 = vld [vmem:[%s0 + $0x180] sm:$0xfc]
  %v1999 = vld [vmem:[%s0 + $0x188] sm:$0xfc]
  %v2000 = vld [vmem:[%s0 + $0x190] sm:$0x3f]
  %v2001 = vld [vmem:[%s0 + $0x198] sm:$0x3f]
  %v2002 = vld [vmem:[%s0 + $0x1a0] sm:$0xfc]
  %v2003 = vld [vmem:[%s0 + $0x1a8] sm:$0xfc]
  %v2004 = vld [vmem:[%s0 + $0x1b0] sm:$0x3f]
  %v2005 = vld [vmem:[%s0 + $0x1b8] sm:$0x3f]
  %vm2062 = vcmask 1045504
  %v2063 = vrot.slane %v1950, 2
  %v2064 = vrot.slane %v1952, 2
  %v2065 = vsel %vm2062, %v2063, %v2064
  %v2066 = vrot.slane %v1951, 2
  %v2067 = vrot.slane %v1953, 2
  %v2068 = vsel %vm2062, %v2066, %v2067
  %v2069 = vrot.slane %v1954, 2
  %v2070 = vrot.slane %v1956, 2
  %v2071 = vsel %vm2062, %v2069, %v2070
  %v2072 = vrot.slane %v1955, 2
  %v2073 = vrot.slane %v1957, 2
  %v2074 = vsel %vm2062, %v2072, %v2073
  %v2075 = vrot.slane %v1958, 2
  %v2076 = vrot.slane %v1960, 2
  %v2077 = vsel %vm2062, %v2075, %v2076
  %v2078 = vrot.slane %v1959, 2
  %v2079 = vrot.slane %v1961, 2
  %v2080 = vsel %vm2062, %v2078, %v2079
  %v2081 = vrot.slane %v1962, 2
  %v2082 = vrot.slane %v1964, 2
  %v2083 = vsel %vm2062, %v2081, %v2082
  %v2084 = vrot.slane %v1963, 2
  %v2085 = vrot.slane %v1965, 2
  %v2086 = vsel %vm2062, %v2084, %v2085
  %v2087 = vrot.slane %v1966, 2
  %v2088 = vrot.slane %v1968, 2
  %v2089 = vsel %vm2062, %v2087, %v2088
  %v2090 = vrot.slane %v1967, 2
  %v2091 = vrot.slane %v1969, 2
  %v2092 = vsel %vm2062, %v2090, %v2091
  %v2093 = vrot.slane %v1970, 2
  %v2094 = vrot.slane %v1972, 2
  %v2095 = vsel %vm2062, %v2093, %v2094
  %v2096 = vrot.slane %v1971, 2
  %v2097 = vrot.slane %v1973, 2
  %v2098 = vsel %vm2062, %v2096, %v2097
  %v2099 = vrot.slane %v1974, 2
  %v2100 = vrot.slane %v1976, 2
  %v2101 = vsel %vm2062, %v2099, %v2100
  %v2102 = vrot.slane %v1975, 2
  %v2103 = vrot.slane %v1977, 2
  %v2104 = vsel %vm2062, %v2102, %v2103
  %v2105 = vrot.slane %v1978, 2
  %v2106 = vrot.slane %v1980, 2
  %v2107 = vsel %vm2062, %v2105, %v2106
  %v2108 = vrot.slane %v1979, 2
  %v2109 = vrot.slane %v1981, 2
  %v2110 = vsel %vm2062, %v2108, %v2109
  %v2111 = vrot.slane %v1982, 2
  %v2112 = vrot.slane %v1984, 2
  %v2113 = vsel %vm2062, %v2111, %v2112
  %v2114 = vrot.slane %v1983, 2
  %v2115 = vrot.slane %v1985, 2
  %v2116 = vsel %vm2062, %v2114, %v2115
  %v2117 = vrot.slane %v1986, 2
  %v2118 = vrot.slane %v1988, 2
  %v2119 = vsel %vm2062, %v2117, %v2118
  %v2120 = vrot.slane %v1987, 2
  %v2121 = vrot.slane %v1989, 2
  %v2122 = vsel %vm2062, %v2120, %v2121
  %v2123 = vrot.slane %v1990, 2
  %v2124 = vrot.slane %v1992, 2
  %v2125 = vsel %vm2062, %v2123, %v2124
  %v2126 = vrot.slane %v1991, 2
  %v2127 = vrot.slane %v1993, 2
  %v2128 = vsel %vm2062, %v2126, %v2127
  %v2129 = vrot.slane %v1994, 2
  %v2130 = vrot.slane %v1996, 2
  %v2131 = vsel %vm2062, %v2129, %v2130
  %v2132 = vrot.slane %v1995, 2
  %v2133 = vrot.slane %v1997, 2
  %v2134 = vsel %vm2062, %v2132, %v2133
  %v2135 = vrot.slane %v1998, 2
  %v2136 = vrot.slane %v2000, 2
  %v2137 = vsel %vm2062, %v2135, %v2136
  %v2138 = vrot.slane %v1999, 2
  %v2139 = vrot.slane %v2001, 2
  %v2140 = vsel %vm2062, %v2138, %v2139
  %v2141 = vrot.slane %v2002, 2
  %v2142 = vrot.slane %v2004, 2
  %v2143 = vsel %vm2062, %v2141, %v2142
  %v2144 = vrot.slane %v2003, 2
  %v2145 = vrot.slane %v2005, 2
  %v2146 = vsel %vm2062, %v2144, %v2145
  %s2203 = scalar_lea.vmem [#allocation2], 2368
  %2204 = vst [vmem:[%s2203] sm:$0xff] %v2065
  %2205 = vst.msk [vmem:[%s2203 + $0x8] sm:$0xff] %vm443, %v2068
  %2206 = vst [vmem:[%s2203 + $0x10] sm:$0xf] %v2064
  %vm2207 = vcmask 125952
  %2208 = vst.msk [vmem:[%s2203 + $0x18] sm:$0xf] %vm2207, %v2067
  %2209 = vst [vmem:[%s2203 + $0x20] sm:$0xff] %v2071
  %2210 = vst.msk [vmem:[%s2203 + $0x28] sm:$0xff] %vm443, %v2074
  %2211 = vst [vmem:[%s2203 + $0x30] sm:$0xf] %v2070
  %2212 = vst.msk [vmem:[%s2203 + $0x38] sm:$0xf] %vm2207, %v2073
  %2213 = vst [vmem:[%s2203 + $0x40] sm:$0xff] %v2077
  %2214 = vst.msk [vmem:[%s2203 + $0x48] sm:$0xff] %vm443, %v2080
  %2215 = vst [vmem:[%s2203 + $0x50] sm:$0xf] %v2076
  %2216 = vst.msk [vmem:[%s2203 + $0x58] sm:$0xf] %vm2207, %v2079
  %2217 = vst [vmem:[%s2203 + $0x60] sm:$0xff] %v2083
  %2218 = vst.msk [vmem:[%s2203 + $0x68] sm:$0xff] %vm443, %v2086
  %2219 = vst [vmem:[%s2203 + $0x70] sm:$0xf] %v2082
  %2220 = vst.msk [vmem:[%s2203 + $0x78] sm:$0xf] %vm2207, %v2085
  %2221 = vst [vmem:[%s2203 + $0x80] sm:$0xff] %v2089
  %2222 = vst.msk [vmem:[%s2203 + $0x88] sm:$0xff] %vm443, %v2092
  %2223 = vst [vmem:[%s2203 + $0x90] sm:$0xf] %v2088
  %2224 = vst.msk [vmem:[%s2203 + $0x98] sm:$0xf] %vm2207, %v2091
  %2225 = vst [vmem:[%s2203 + $0xa0] sm:$0xff] %v2095
  %2226 = vst.msk [vmem:[%s2203 + $0xa8] sm:$0xff] %vm443, %v2098
  %2227 = vst [vmem:[%s2203 + $0xb0] sm:$0xf] %v2094
  %2228 = vst.msk [vmem:[%s2203 + $0xb8] sm:$0xf] %vm2207, %v2097
  %2229 = vst [vmem:[%s2203 + $0xc0] sm:$0xff] %v2101
  %2230 = vst.msk [vmem:[%s2203 + $0xc8] sm:$0xff] %vm443, %v2104
  %2231 = vst [vmem:[%s2203 + $0xd0] sm:$0xf] %v2100
  %2232 = vst.msk [vmem:[%s2203 + $0xd8] sm:$0xf] %vm2207, %v2103
  %2233 = vst [vmem:[%s2203 + $0xe0] sm:$0xff] %v2107
  %2234 = vst.msk [vmem:[%s2203 + $0xe8] sm:$0xff] %vm443, %v2110
  %2235 = vst [vmem:[%s2203 + $0xf0] sm:$0xf] %v2106
  %2236 = vst.msk [vmem:[%s2203 + $0xf8] sm:$0xf] %vm2207, %v2109
  %2237 = vst [vmem:[%s2203 + $0x100] sm:$0xff] %v2113
  %2238 = vst.msk [vmem:[%s2203 + $0x108] sm:$0xff] %vm443, %v2116
  %2239 = vst [vmem:[%s2203 + $0x110] sm:$0xf] %v2112
  %2240 = vst.msk [vmem:[%s2203 + $0x118] sm:$0xf] %vm2207, %v2115
  %2241 = vst [vmem:[%s2203 + $0x120] sm:$0xff] %v2119
  %2242 = vst.msk [vmem:[%s2203 + $0x128] sm:$0xff] %vm443, %v2122
  %2243 = vst [vmem:[%s2203 + $0x130] sm:$0xf] %v2118
  %2244 = vst.msk [vmem:[%s2203 + $0x138] sm:$0xf] %vm2207, %v2121
  %2245 = vst [vmem:[%s2203 + $0x140] sm:$0xff] %v2125
  %2246 = vst.msk [vmem:[%s2203 + $0x148] sm:$0xff] %vm443, %v2128
  %2247 = vst [vmem:[%s2203 + $0x150] sm:$0xf] %v2124
  %2248 = vst.msk [vmem:[%s2203 + $0x158] sm:$0xf] %vm2207, %v2127
  %2249 = vst [vmem:[%s2203 + $0x160] sm:$0xff] %v2131
  %2250 = vst.msk [vmem:[%s2203 + $0x168] sm:$0xff] %vm443, %v2134
  %2251 = vst [vmem:[%s2203 + $0x170] sm:$0xf] %v2130
  %2252 = vst.msk [vmem:[%s2203 + $0x178] sm:$0xf] %vm2207, %v2133
  %2253 = vst [vmem:[%s2203 + $0x180] sm:$0xff] %v2137
  %2254 = vst.msk [vmem:[%s2203 + $0x188] sm:$0xff] %vm443, %v2140
  %2255 = vst [vmem:[%s2203 + $0x190] sm:$0xf] %v2136
  %2256 = vst.msk [vmem:[%s2203 + $0x198] sm:$0xf] %vm2207, %v2139
  %2257 = vst [vmem:[%s2203 + $0x1a0] sm:$0xff] %v2143
  %2258 = vst.msk [vmem:[%s2203 + $0x1a8] sm:$0xff] %vm443, %v2146
  %2259 = vst [vmem:[%s2203 + $0x1b0] sm:$0xf] %v2142
  %2260 = vst.msk [vmem:[%s2203 + $0x1b8] sm:$0xf] %vm2207, %v2145
  %v2261 = vld [vmem:[#allocation2] sm:$0xff]
  %v2262 = vld [vmem:[#allocation2 + $0x8] sm:$0xff]
  %v2263 = vld [vmem:[#allocation2 + $0x10] sm:$0x3f]
  %v2264 = vld [vmem:[#allocation2 + $0x18] sm:$0x3f]
  %v2265 = vld [vmem:[#allocation2 + $0x20] sm:$0xff]
  %v2266 = vld [vmem:[#allocation2 + $0x28] sm:$0xff]
  %v2267 = vld [vmem:[#allocation2 + $0x30] sm:$0x3f]
  %v2268 = vld [vmem:[#allocation2 + $0x38] sm:$0x3f]
  %v2269 = vld [vmem:[#allocation2 + $0x40] sm:$0xff]
  %v2270 = vld [vmem:[#allocation2 + $0x48] sm:$0xff]
  %v2271 = vld [vmem:[#allocation2 + $0x50] sm:$0x3f]
  %v2272 = vld [vmem:[#allocation2 + $0x58] sm:$0x3f]
  %v2273 = vld [vmem:[#allocation2 + $0x60] sm:$0xff]
  %v2274 = vld [vmem:[#allocation2 + $0x68] sm:$0xff]
  %v2275 = vld [vmem:[#allocation2 + $0x70] sm:$0x3f]
  %v2276 = vld [vmem:[#allocation2 + $0x78] sm:$0x3f]
  %v2277 = vld [vmem:[#allocation2 + $0x80] sm:$0xff]
  %v2278 = vld [vmem:[#allocation2 + $0x88] sm:$0xff]
  %v2279 = vld [vmem:[#allocation2 + $0x90] sm:$0x3f]
  %v2280 = vld [vmem:[#allocation2 + $0x98] sm:$0x3f]
  %v2281 = vld [vmem:[#allocation2 + $0xa0] sm:$0xff]
  %v2282 = vld [vmem:[#allocation2 + $0xa8] sm:$0xff]
  %v2283 = vld [vmem:[#allocation2 + $0xb0] sm:$0x3f]
  %v2284 = vld [vmem:[#allocation2 + $0xb8] sm:$0x3f]
  %v2285 = vld [vmem:[#allocation3] sm:$0xff]
  %v2286 = vld [vmem:[#allocation3 + $0x8] sm:$0xff]
  %v2287 = vld [vmem:[#allocation3 + $0x10] sm:$0x3f]
  %v2288 = vld [vmem:[#allocation3 + $0x18] sm:$0x3f]
  %v2289 = vld [vmem:[#allocation3 + $0x20] sm:$0xff]
  %v2290 = vld [vmem:[#allocation3 + $0x28] sm:$0xff]
  %v2291 = vld [vmem:[#allocation3 + $0x30] sm:$0x3f]
  %v2292 = vld [vmem:[#allocation3 + $0x38] sm:$0x3f]
  %v2293 = vld [vmem:[#allocation3 + $0x40] sm:$0xff]
  %v2294 = vld [vmem:[#allocation3 + $0x48] sm:$0xff]
  %v2295 = vld [vmem:[#allocation3 + $0x50] sm:$0x3f]
  %v2296 = vld [vmem:[#allocation3 + $0x58] sm:$0x3f]
  %v2297 = vld [vmem:[#allocation3 + $0x60] sm:$0xff]
  %v2298 = vld [vmem:[#allocation3 + $0x68] sm:$0xff]
  %v2299 = vld [vmem:[#allocation3 + $0x70] sm:$0x3f]
  %v2300 = vld [vmem:[#allocation3 + $0x78] sm:$0x3f]
  %v2301 = vld [vmem:[#allocation3 + $0x80] sm:$0xff]
  %v2302 = vld [vmem:[#allocation3 + $0x88] sm:$0xff]
  %v2303 = vld [vmem:[#allocation3 + $0x90] sm:$0x3f]
  %v2304 = vld [vmem:[#allocation3 + $0x98] sm:$0x3f]
  %v2305 = vmul.f32 %v2261, %v2285
  %v2306 = vmul.f32 %v2262, %v2286
  %v2307 = vmul.f32 %v2263, %v2287
  %v2308 = vmul.f32 %v2264, %v2288
  %v2309 = vmul.f32 %v2265, %v2285
  %v2310 = vmul.f32 %v2266, %v2286
  %v2311 = vmul.f32 %v2267, %v2287
  %v2312 = vmul.f32 %v2268, %v2288
  %v2313 = vadd.f32 %v2305, 0.0
  %v2314 = vadd.f32 %v2306, 0.0
  %v2315 = vadd.f32 %v2307, 0.0
  %v2316 = vadd.f32 %v2308, 0.0
  %v2317 = vadd.f32 %v2309, 0.0
  %v2318 = vadd.f32 %v2310, 0.0
  %v2319 = vadd.f32 %v2311, 0.0
  %v2320 = vadd.f32 %v2312, 0.0
  %v2321 = vmul.f32 %v2265, %v2289
  %v2322 = vmul.f32 %v2266, %v2290
  %v2323 = vmul.f32 %v2267, %v2291
  %v2324 = vmul.f32 %v2268, %v2292
  %v2325 = vmul.f32 %v2269, %v2289
  %v2326 = vmul.f32 %v2270, %v2290
  %v2327 = vmul.f32 %v2271, %v2291
  %v2328 = vmul.f32 %v2272, %v2292
  %v2329 = vadd.f32 %v2313, %v2321
  %v2330 = vadd.f32 %v2314, %v2322
  %v2331 = vadd.f32 %v2315, %v2323
  %v2332 = vadd.f32 %v2316, %v2324
  %v2333 = vadd.f32 %v2317, %v2325
  %v2334 = vadd.f32 %v2318, %v2326
  %v2335 = vadd.f32 %v2319, %v2327
  %v2336 = vadd.f32 %v2320, %v2328
  %v2337 = vmul.f32 %v2269, %v2293
  %v2338 = vmul.f32 %v2270, %v2294
  %v2339 = vmul.f32 %v2271, %v2295
  %v2340 = vmul.f32 %v2272, %v2296
  %v2341 = vmul.f32 %v2273, %v2293
  %v2342 = vmul.f32 %v2274, %v2294
  %v2343 = vmul.f32 %v2275, %v2295
  %v2344 = vmul.f32 %v2276, %v2296
  %v2345 = vadd.f32 %v2329, %v2337
  %v2346 = vadd.f32 %v2330, %v2338
  %v2347 = vadd.f32 %v2331, %v2339
  %v2348 = vadd.f32 %v2332, %v2340
  %v2349 = vadd.f32 %v2333, %v2341
  %v2350 = vadd.f32 %v2334, %v2342
  %v2351 = vadd.f32 %v2335, %v2343
  %v2352 = vadd.f32 %v2336, %v2344
  %v2353 = vmul.f32 %v2273, %v2297
  %v2354 = vmul.f32 %v2274, %v2298
  %v2355 = vmul.f32 %v2275, %v2299
  %v2356 = vmul.f32 %v2276, %v2300
  %v2357 = vmul.f32 %v2277, %v2297
  %v2358 = vmul.f32 %v2278, %v2298
  %v2359 = vmul.f32 %v2279, %v2299
  %v2360 = vmul.f32 %v2280, %v2300
  %v2361 = vadd.f32 %v2345, %v2353
  %v2362 = vadd.f32 %v2346, %v2354
  %v2363 = vadd.f32 %v2347, %v2355
  %v2364 = vadd.f32 %v2348, %v2356
  %v2365 = vadd.f32 %v2349, %v2357
  %v2366 = vadd.f32 %v2350, %v2358
  %v2367 = vadd.f32 %v2351, %v2359
  %v2368 = vadd.f32 %v2352, %v2360
  %v2369 = vmul.f32 %v2277, %v2301
  %v2370 = vmul.f32 %v2278, %v2302
  %v2371 = vmul.f32 %v2279, %v2303
  %v2372 = vmul.f32 %v2280, %v2304
  %v2373 = vmul.f32 %v2281, %v2301
  %v2374 = vmul.f32 %v2282, %v2302
  %v2375 = vmul.f32 %v2283, %v2303
  %v2376 = vmul.f32 %v2284, %v2304
  %v2377 = vadd.f32 %v2361, %v2369
  %v2378 = vadd.f32 %v2362, %v2370
  %v2379 = vadd.f32 %v2363, %v2371
  %v2380 = vadd.f32 %v2364, %v2372
  %v2381 = vadd.f32 %v2365, %v2373
  %v2382 = vadd.f32 %v2366, %v2374
  %v2383 = vadd.f32 %v2367, %v2375
  %v2384 = vadd.f32 %v2368, %v2376
  %s2385 = scalar_lea.vmem [#allocation2], 576
  %v2386 = vld [vmem:[%s2385] sm:$0xff]
  %v2387 = vld [vmem:[%s2385 + $0x8] sm:$0xff]
  %v2388 = vld [vmem:[%s2385 + $0x10] sm:$0x3f]
  %v2389 = vld [vmem:[%s2385 + $0x18] sm:$0x3f]
  %v2390 = vld [vmem:[%s2385 + $0x20] sm:$0xff]
  %v2391 = vld [vmem:[%s2385 + $0x28] sm:$0xff]
  %v2392 = vld [vmem:[%s2385 + $0x30] sm:$0x3f]
  %v2393 = vld [vmem:[%s2385 + $0x38] sm:$0x3f]
  %v2394 = vld [vmem:[%s2385 + $0x40] sm:$0xff]
  %v2395 = vld [vmem:[%s2385 + $0x48] sm:$0xff]
  %v2396 = vld [vmem:[%s2385 + $0x50] sm:$0x3f]
  %v2397 = vld [vmem:[%s2385 + $0x58] sm:$0x3f]
  %v2398 = vld [vmem:[%s2385 + $0x60] sm:$0xff]
  %v2399 = vld [vmem:[%s2385 + $0x68] sm:$0xff]
  %v2400 = vld [vmem:[%s2385 + $0x70] sm:$0x3f]
  %v2401 = vld [vmem:[%s2385 + $0x78] sm:$0x3f]
  %v2402 = vld [vmem:[%s2385 + $0x80] sm:$0xff]
  %v2403 = vld [vmem:[%s2385 + $0x88] sm:$0xff]
  %v2404 = vld [vmem:[%s2385 + $0x90] sm:$0x3f]
  %v2405 = vld [vmem:[%s2385 + $0x98] sm:$0x3f]
  %v2406 = vld [vmem:[%s2385 + $0xa0] sm:$0xff]
  %v2407 = vld [vmem:[%s2385 + $0xa8] sm:$0xff]
  %v2408 = vld [vmem:[%s2385 + $0xb0] sm:$0x3f]
  %v2409 = vld [vmem:[%s2385 + $0xb8] sm:$0x3f]
  %s2410 = scalar_lea.vmem [#allocation3], 160
  %v2411 = vld [vmem:[%s2410] sm:$0xff]
  %v2412 = vld [vmem:[%s2410 + $0x8] sm:$0xff]
  %v2413 = vld [vmem:[%s2410 + $0x10] sm:$0x3f]
  %v2414 = vld [vmem:[%s2410 + $0x18] sm:$0x3f]
  %v2415 = vld [vmem:[%s2410 + $0x20] sm:$0xff]
  %v2416 = vld [vmem:[%s2410 + $0x28] sm:$0xff]
  %v2417 = vld [vmem:[%s2410 + $0x30] sm:$0x3f]
  %v2418 = vld [vmem:[%s2410 + $0x38] sm:$0x3f]
  %v2419 = vld [vmem:[%s2410 + $0x40] sm:$0xff]
  %v2420 = vld [vmem:[%s2410 + $0x48] sm:$0xff]
  %v2421 = vld [vmem:[%s2410 + $0x50] sm:$0x3f]
  %v2422 = vld [vmem:[%s2410 + $0x58] sm:$0x3f]
  %v2423 = vld [vmem:[%s2410 + $0x60] sm:$0xff]
  %v2424 = vld [vmem:[%s2410 + $0x68] sm:$0xff]
  %v2425 = vld [vmem:[%s2410 + $0x70] sm:$0x3f]
  %v2426 = vld [vmem:[%s2410 + $0x78] sm:$0x3f]
  %v2427 = vld [vmem:[%s2410 + $0x80] sm:$0xff]
  %v2428 = vld [vmem:[%s2410 + $0x88] sm:$0xff]
  %v2429 = vld [vmem:[%s2410 + $0x90] sm:$0x3f]
  %v2430 = vld [vmem:[%s2410 + $0x98] sm:$0x3f]
  %v2431 = vmul.f32 %v2386, %v2411
  %v2432 = vmul.f32 %v2387, %v2412
  %v2433 = vmul.f32 %v2388, %v2413
  %v2434 = vmul.f32 %v2389, %v2414
  %v2435 = vmul.f32 %v2390, %v2411
  %v2436 = vmul.f32 %v2391, %v2412
  %v2437 = vmul.f32 %v2392, %v2413
  %v2438 = vmul.f32 %v2393, %v2414
  %v2439 = vadd.f32 %v2377, %v2431
  %v2440 = vadd.f32 %v2378, %v2432
  %v2441 = vadd.f32 %v2379, %v2433
  %v2442 = vadd.f32 %v2380, %v2434
  %v2443 = vadd.f32 %v2381, %v2435
  %v2444 = vadd.f32 %v2382, %v2436
  %v2445 = vadd.f32 %v2383, %v2437
  %v2446 = vadd.f32 %v2384, %v2438
  %v2447 = vmul.f32 %v2390, %v2415
  %v2448 = vmul.f32 %v2391, %v2416
  %v2449 = vmul.f32 %v2392, %v2417
  %v2450 = vmul.f32 %v2393, %v2418
  %v2451 = vmul.f32 %v2394, %v2415
  %v2452 = vmul.f32 %v2395, %v2416
  %v2453 = vmul.f32 %v2396, %v2417
  %v2454 = vmul.f32 %v2397, %v2418
  %v2455 = vadd.f32 %v2439, %v2447
  %v2456 = vadd.f32 %v2440, %v2448
  %v2457 = vadd.f32 %v2441, %v2449
  %v2458 = vadd.f32 %v2442, %v2450
  %v2459 = vadd.f32 %v2443, %v2451
  %v2460 = vadd.f32 %v2444, %v2452
  %v2461 = vadd.f32 %v2445, %v2453
  %v2462 = vadd.f32 %v2446, %v2454
  %v2463 = vmul.f32 %v2394, %v2419
  %v2464 = vmul.f32 %v2395, %v2420
  %v2465 = vmul.f32 %v2396, %v2421
  %v2466 = vmul.f32 %v2397, %v2422
  %v2467 = vmul.f32 %v2398, %v2419
  %v2468 = vmul.f32 %v2399, %v2420
  %v2469 = vmul.f32 %v2400, %v2421
  %v2470 = vmul.f32 %v2401, %v2422
  %v2471 = vadd.f32 %v2455, %v2463
  %v2472 = vadd.f32 %v2456, %v2464
  %v2473 = vadd.f32 %v2457, %v2465
  %v2474 = vadd.f32 %v2458, %v2466
  %v2475 = vadd.f32 %v2459, %v2467
  %v2476 = vadd.f32 %v2460, %v2468
  %v2477 = vadd.f32 %v2461, %v2469
  %v2478 = vadd.f32 %v2462, %v2470
  %v2479 = vmul.f32 %v2398, %v2423
  %v2480 = vmul.f32 %v2399, %v2424
  %v2481 = vmul.f32 %v2400, %v2425
  %v2482 = vmul.f32 %v2401, %v2426
  %v2483 = vmul.f32 %v2402, %v2423
  %v2484 = vmul.f32 %v2403, %v2424
  %v2485 = vmul.f32 %v2404, %v2425
  %v2486 = vmul.f32 %v2405, %v2426
  %v2487 = vadd.f32 %v2471, %v2479
  %v2488 = vadd.f32 %v2472, %v2480
  %v2489 = vadd.f32 %v2473, %v2481
  %v2490 = vadd.f32 %v2474, %v2482
  %v2491 = vadd.f32 %v2475, %v2483
  %v2492 = vadd.f32 %v2476, %v2484
  %v2493 = vadd.f32 %v2477, %v2485
  %v2494 = vadd.f32 %v2478, %v2486
  %v2495 = vmul.f32 %v2402, %v2427
  %v2496 = vmul.f32 %v2403, %v2428
  %v2497 = vmul.f32 %v2404, %v2429
  %v2498 = vmul.f32 %v2405, %v2430
  %v2499 = vmul.f32 %v2406, %v2427
  %v2500 = vmul.f32 %v2407, %v2428
  %v2501 = vmul.f32 %v2408, %v2429
  %v2502 = vmul.f32 %v2409, %v2430
  %v2503 = vadd.f32 %v2487, %v2495
  %v2504 = vadd.f32 %v2488, %v2496
  %v2505 = vadd.f32 %v2489, %v2497
  %v2506 = vadd.f32 %v2490, %v2498
  %v2507 = vadd.f32 %v2491, %v2499
  %v2508 = vadd.f32 %v2492, %v2500
  %v2509 = vadd.f32 %v2493, %v2501
  %v2510 = vadd.f32 %v2494, %v2502
  %s2511 = scalar_lea.vmem [#allocation2], 1152
  %v2512 = vld [vmem:[%s2511] sm:$0xff]
  %v2513 = vld [vmem:[%s2511 + $0x8] sm:$0xff]
  %v2514 = vld [vmem:[%s2511 + $0x10] sm:$0x3f]
  %v2515 = vld [vmem:[%s2511 + $0x18] sm:$0x3f]
  %v2516 = vld [vmem:[%s2511 + $0x20] sm:$0xff]
  %v2517 = vld [vmem:[%s2511 + $0x28] sm:$0xff]
  %v2518 = vld [vmem:[%s2511 + $0x30] sm:$0x3f]
  %v2519 = vld [vmem:[%s2511 + $0x38] sm:$0x3f]
  %v2520 = vld [vmem:[%s2511 + $0x40] sm:$0xff]
  %v2521 = vld [vmem:[%s2511 + $0x48] sm:$0xff]
  %v2522 = vld [vmem:[%s2511 + $0x50] sm:$0x3f]
  %v2523 = vld [vmem:[%s2511 + $0x58] sm:$0x3f]
  %v2524 = vld [vmem:[%s2511 + $0x60] sm:$0xff]
  %v2525 = vld [vmem:[%s2511 + $0x68] sm:$0xff]
  %v2526 = vld [vmem:[%s2511 + $0x70] sm:$0x3f]
  %v2527 = vld [vmem:[%s2511 + $0x78] sm:$0x3f]
  %v2528 = vld [vmem:[%s2511 + $0x80] sm:$0xff]
  %v2529 = vld [vmem:[%s2511 + $0x88] sm:$0xff]
  %v2530 = vld [vmem:[%s2511 + $0x90] sm:$0x3f]
  %v2531 = vld [vmem:[%s2511 + $0x98] sm:$0x3f]
  %v2532 = vld [vmem:[%s2511 + $0xa0] sm:$0xff]
  %v2533 = vld [vmem:[%s2511 + $0xa8] sm:$0xff]
  %v2534 = vld [vmem:[%s2511 + $0xb0] sm:$0x3f]
  %v2535 = vld [vmem:[%s2511 + $0xb8] sm:$0x3f]
  %s2536 = scalar_lea.vmem [#allocation3], 320
  %v2537 = vld [vmem:[%s2536] sm:$0xff]
  %v2538 = vld [vmem:[%s2536 + $0x8] sm:$0xff]
  %v2539 = vld [vmem:[%s2536 + $0x10] sm:$0x3f]
  %v2540 = vld [vmem:[%s2536 + $0x18] sm:$0x3f]
  %v2541 = vld [vmem:[%s2536 + $0x20] sm:$0xff]
  %v2542 = vld [vmem:[%s2536 + $0x28] sm:$0xff]
  %v2543 = vld [vmem:[%s2536 + $0x30] sm:$0x3f]
  %v2544 = vld [vmem:[%s2536 + $0x38] sm:$0x3f]
  %v2545 = vld [vmem:[%s2536 + $0x40] sm:$0xff]
  %v2546 = vld [vmem:[%s2536 + $0x48] sm:$0xff]
  %v2547 = vld [vmem:[%s2536 + $0x50] sm:$0x3f]
  %v2548 = vld [vmem:[%s2536 + $0x58] sm:$0x3f]
  %v2549 = vld [vmem:[%s2536 + $0x60] sm:$0xff]
  %v2550 = vld [vmem:[%s2536 + $0x68] sm:$0xff]
  %v2551 = vld [vmem:[%s2536 + $0x70] sm:$0x3f]
  %v2552 = vld [vmem:[%s2536 + $0x78] sm:$0x3f]
  %v2553 = vld [vmem:[%s2536 + $0x80] sm:$0xff]
  %v2554 = vld [vmem:[%s2536 + $0x88] sm:$0xff]
  %v2555 = vld [vmem:[%s2536 + $0x90] sm:$0x3f]
  %v2556 = vld [vmem:[%s2536 + $0x98] sm:$0x3f]
  %v2557 = vmul.f32 %v2512, %v2537
  %v2558 = vmul.f32 %v2513, %v2538
  %v2559 = vmul.f32 %v2514, %v2539
  %v2560 = vmul.f32 %v2515, %v2540
  %v2561 = vmul.f32 %v2516, %v2537
  %v2562 = vmul.f32 %v2517, %v2538
  %v2563 = vmul.f32 %v2518, %v2539
  %v2564 = vmul.f32 %v2519, %v2540
  %v2565 = vadd.f32 %v2503, %v2557
  %v2566 = vadd.f32 %v2504, %v2558
  %v2567 = vadd.f32 %v2505, %v2559
  %v2568 = vadd.f32 %v2506, %v2560
  %v2569 = vadd.f32 %v2507, %v2561
  %v2570 = vadd.f32 %v2508, %v2562
  %v2571 = vadd.f32 %v2509, %v2563
  %v2572 = vadd.f32 %v2510, %v2564
  %v2573 = vmul.f32 %v2516, %v2541
  %v2574 = vmul.f32 %v2517, %v2542
  %v2575 = vmul.f32 %v2518, %v2543
  %v2576 = vmul.f32 %v2519, %v2544
  %v2577 = vmul.f32 %v2520, %v2541
  %v2578 = vmul.f32 %v2521, %v2542
  %v2579 = vmul.f32 %v2522, %v2543
  %v2580 = vmul.f32 %v2523, %v2544
  %v2581 = vadd.f32 %v2565, %v2573
  %v2582 = vadd.f32 %v2566, %v2574
  %v2583 = vadd.f32 %v2567, %v2575
  %v2584 = vadd.f32 %v2568, %v2576
  %v2585 = vadd.f32 %v2569, %v2577
  %v2586 = vadd.f32 %v2570, %v2578
  %v2587 = vadd.f32 %v2571, %v2579
  %v2588 = vadd.f32 %v2572, %v2580
  %v2589 = vmul.f32 %v2520, %v2545
  %v2590 = vmul.f32 %v2521, %v2546
  %v2591 = vmul.f32 %v2522, %v2547
  %v2592 = vmul.f32 %v2523, %v2548
  %v2593 = vmul.f32 %v2524, %v2545
  %v2594 = vmul.f32 %v2525, %v2546
  %v2595 = vmul.f32 %v2526, %v2547
  %v2596 = vmul.f32 %v2527, %v2548
  %v2597 = vadd.f32 %v2581, %v2589
  %v2598 = vadd.f32 %v2582, %v2590
  %v2599 = vadd.f32 %v2583, %v2591
  %v2600 = vadd.f32 %v2584, %v2592
  %v2601 = vadd.f32 %v2585, %v2593
  %v2602 = vadd.f32 %v2586, %v2594
  %v2603 = vadd.f32 %v2587, %v2595
  %v2604 = vadd.f32 %v2588, %v2596
  %v2605 = vmul.f32 %v2524, %v2549
  %v2606 = vmul.f32 %v2525, %v2550
  %v2607 = vmul.f32 %v2526, %v2551
  %v2608 = vmul.f32 %v2527, %v2552
  %v2609 = vmul.f32 %v2528, %v2549
  %v2610 = vmul.f32 %v2529, %v2550
  %v2611 = vmul.f32 %v2530, %v2551
  %v2612 = vmul.f32 %v2531, %v2552
  %v2613 = vadd.f32 %v2597, %v2605
  %v2614 = vadd.f32 %v2598, %v2606
  %v2615 = vadd.f32 %v2599, %v2607
  %v2616 = vadd.f32 %v2600, %v2608
  %v2617 = vadd.f32 %v2601, %v2609
  %v2618 = vadd.f32 %v2602, %v2610
  %v2619 = vadd.f32 %v2603, %v2611
  %v2620 = vadd.f32 %v2604, %v2612
  %v2621 = vmul.f32 %v2528, %v2553
  %v2622 = vmul.f32 %v2529, %v2554
  %v2623 = vmul.f32 %v2530, %v2555
  %v2624 = vmul.f32 %v2531, %v2556
  %v2625 = vmul.f32 %v2532, %v2553
  %v2626 = vmul.f32 %v2533, %v2554
  %v2627 = vmul.f32 %v2534, %v2555
  %v2628 = vmul.f32 %v2535, %v2556
  %v2629 = vadd.f32 %v2613, %v2621
  %v2630 = vadd.f32 %v2614, %v2622
  %v2631 = vadd.f32 %v2615, %v2623
  %v2632 = vadd.f32 %v2616, %v2624
  %v2633 = vadd.f32 %v2617, %v2625
  %v2634 = vadd.f32 %v2618, %v2626
  %v2635 = vadd.f32 %v2619, %v2627
  %v2636 = vadd.f32 %v2620, %v2628
  %s2637 = scalar_lea.vmem [#allocation2], 1728
  %v2638 = vld [vmem:[%s2637] sm:$0xff]
  %v2639 = vld [vmem:[%s2637 + $0x8] sm:$0xff]
  %v2640 = vld [vmem:[%s2637 + $0x10] sm:$0x3f]
  %v2641 = vld [vmem:[%s2637 + $0x18] sm:$0x3f]
  %v2642 = vld [vmem:[%s2637 + $0x20] sm:$0xff]
  %v2643 = vld [vmem:[%s2637 + $0x28] sm:$0xff]
  %v2644 = vld [vmem:[%s2637 + $0x30] sm:$0x3f]
  %v2645 = vld [vmem:[%s2637 + $0x38] sm:$0x3f]
  %v2646 = vld [vmem:[%s2637 + $0x40] sm:$0xff]
  %v2647 = vld [vmem:[%s2637 + $0x48] sm:$0xff]
  %v2648 = vld [vmem:[%s2637 + $0x50] sm:$0x3f]
  %v2649 = vld [vmem:[%s2637 + $0x58] sm:$0x3f]
  %v2650 = vld [vmem:[%s2637 + $0x60] sm:$0xff]
  %v2651 = vld [vmem:[%s2637 + $0x68] sm:$0xff]
  %v2652 = vld [vmem:[%s2637 + $0x70] sm:$0x3f]
  %v2653 = vld [vmem:[%s2637 + $0x78] sm:$0x3f]
  %v2654 = vld [vmem:[%s2637 + $0x80] sm:$0xff]
  %v2655 = vld [vmem:[%s2637 + $0x88] sm:$0xff]
  %v2656 = vld [vmem:[%s2637 + $0x90] sm:$0x3f]
  %v2657 = vld [vmem:[%s2637 + $0x98] sm:$0x3f]
  %v2658 = vld [vmem:[%s2637 + $0xa0] sm:$0xff]
  %v2659 = vld [vmem:[%s2637 + $0xa8] sm:$0xff]
  %v2660 = vld [vmem:[%s2637 + $0xb0] sm:$0x3f]
  %v2661 = vld [vmem:[%s2637 + $0xb8] sm:$0x3f]
  %s2662 = scalar_lea.vmem [#allocation3], 480
  %v2663 = vld [vmem:[%s2662] sm:$0xff]
  %v2664 = vld [vmem:[%s2662 + $0x8] sm:$0xff]
  %v2665 = vld [vmem:[%s2662 + $0x10] sm:$0x3f]
  %v2666 = vld [vmem:[%s2662 + $0x18] sm:$0x3f]
  %v2667 = vld [vmem:[%s2662 + $0x20] sm:$0xff]
  %v2668 = vld [vmem:[%s2662 + $0x28] sm:$0xff]
  %v2669 = vld [vmem:[%s2662 + $0x30] sm:$0x3f]
  %v2670 = vld [vmem:[%s2662 + $0x38] sm:$0x3f]
  %v2671 = vld [vmem:[%s2662 + $0x40] sm:$0xff]
  %v2672 = vld [vmem:[%s2662 + $0x48] sm:$0xff]
  %v2673 = vld [vmem:[%s2662 + $0x50] sm:$0x3f]
  %v2674 = vld [vmem:[%s2662 + $0x58] sm:$0x3f]
  %v2675 = vld [vmem:[%s2662 + $0x60] sm:$0xff]
  %v2676 = vld [vmem:[%s2662 + $0x68] sm:$0xff]
  %v2677 = vld [vmem:[%s2662 + $0x70] sm:$0x3f]
  %v2678 = vld [vmem:[%s2662 + $0x78] sm:$0x3f]
  %v2679 = vld [vmem:[%s2662 + $0x80] sm:$0xff]
  %v2680 = vld [vmem:[%s2662 + $0x88] sm:$0xff]
  %v2681 = vld [vmem:[%s2662 + $0x90] sm:$0x3f]
  %v2682 = vld [vmem:[%s2662 + $0x98] sm:$0x3f]
  %v2683 = vmul.f32 %v2638, %v2663
  %v2684 = vmul.f32 %v2639, %v2664
  %v2685 = vmul.f32 %v2640, %v2665
  %v2686 = vmul.f32 %v2641, %v2666
  %v2687 = vmul.f32 %v2642, %v2663
  %v2688 = vmul.f32 %v2643, %v2664
  %v2689 = vmul.f32 %v2644, %v2665
  %v2690 = vmul.f32 %v2645, %v2666
  %v2691 = vadd.f32 %v2629, %v2683
  %v2692 = vadd.f32 %v2630, %v2684
  %v2693 = vadd.f32 %v2631, %v2685
  %v2694 = vadd.f32 %v2632, %v2686
  %v2695 = vadd.f32 %v2633, %v2687
  %v2696 = vadd.f32 %v2634, %v2688
  %v2697 = vadd.f32 %v2635, %v2689
  %v2698 = vadd.f32 %v2636, %v2690
  %v2699 = vmul.f32 %v2642, %v2667
  %v2700 = vmul.f32 %v2643, %v2668
  %v2701 = vmul.f32 %v2644, %v2669
  %v2702 = vmul.f32 %v2645, %v2670
  %v2703 = vmul.f32 %v2646, %v2667
  %v2704 = vmul.f32 %v2647, %v2668
  %v2705 = vmul.f32 %v2648, %v2669
  %v2706 = vmul.f32 %v2649, %v2670
  %v2707 = vadd.f32 %v2691, %v2699
  %v2708 = vadd.f32 %v2692, %v2700
  %v2709 = vadd.f32 %v2693, %v2701
  %v2710 = vadd.f32 %v2694, %v2702
  %v2711 = vadd.f32 %v2695, %v2703
  %v2712 = vadd.f32 %v2696, %v2704
  %v2713 = vadd.f32 %v2697, %v2705
  %v2714 = vadd.f32 %v2698, %v2706
  %v2715 = vmul.f32 %v2646, %v2671
  %v2716 = vmul.f32 %v2647, %v2672
  %v2717 = vmul.f32 %v2648, %v2673
  %v2718 = vmul.f32 %v2649, %v2674
  %v2719 = vmul.f32 %v2650, %v2671
  %v2720 = vmul.f32 %v2651, %v2672
  %v2721 = vmul.f32 %v2652, %v2673
  %v2722 = vmul.f32 %v2653, %v2674
  %v2723 = vadd.f32 %v2707, %v2715
  %v2724 = vadd.f32 %v2708, %v2716
  %v2725 = vadd.f32 %v2709, %v2717
  %v2726 = vadd.f32 %v2710, %v2718
  %v2727 = vadd.f32 %v2711, %v2719
  %v2728 = vadd.f32 %v2712, %v2720
  %v2729 = vadd.f32 %v2713, %v2721
  %v2730 = vadd.f32 %v2714, %v2722
  %v2731 = vmul.f32 %v2650, %v2675
  %v2732 = vmul.f32 %v2651, %v2676
  %v2733 = vmul.f32 %v2652, %v2677
  %v2734 = vmul.f32 %v2653, %v2678
  %v2735 = vmul.f32 %v2654, %v2675
  %v2736 = vmul.f32 %v2655, %v2676
  %v2737 = vmul.f32 %v2656, %v2677
  %v2738 = vmul.f32 %v2657, %v2678
  %v2739 = vadd.f32 %v2723, %v2731
  %v2740 = vadd.f32 %v2724, %v2732
  %v2741 = vadd.f32 %v2725, %v2733
  %v2742 = vadd.f32 %v2726, %v2734
  %v2743 = vadd.f32 %v2727, %v2735
  %v2744 = vadd.f32 %v2728, %v2736
  %v2745 = vadd.f32 %v2729, %v2737
  %v2746 = vadd.f32 %v2730, %v2738
  %v2747 = vmul.f32 %v2654, %v2679
  %v2748 = vmul.f32 %v2655, %v2680
  %v2749 = vmul.f32 %v2656, %v2681
  %v2750 = vmul.f32 %v2657, %v2682
  %v2751 = vmul.f32 %v2658, %v2679
  %v2752 = vmul.f32 %v2659, %v2680
  %v2753 = vmul.f32 %v2660, %v2681
  %v2754 = vmul.f32 %v2661, %v2682
  %v2755 = vadd.f32 %v2739, %v2747
  %v2756 = vadd.f32 %v2740, %v2748
  %v2757 = vadd.f32 %v2741, %v2749
  %v2758 = vadd.f32 %v2742, %v2750
  %v2759 = vadd.f32 %v2743, %v2751
  %v2760 = vadd.f32 %v2744, %v2752
  %v2761 = vadd.f32 %v2745, %v2753
  %v2762 = vadd.f32 %v2746, %v2754
  %s2763 = scalar_lea.vmem [#allocation2], 2304
  %v2764 = vld [vmem:[%s2763] sm:$0xff]
  %v2765 = vld [vmem:[%s2763 + $0x8] sm:$0xff]
  %v2766 = vld [vmem:[%s2763 + $0x10] sm:$0x3f]
  %v2767 = vld [vmem:[%s2763 + $0x18] sm:$0x3f]
  %v2768 = vld [vmem:[%s2763 + $0x20] sm:$0xff]
  %v2769 = vld [vmem:[%s2763 + $0x28] sm:$0xff]
  %v2770 = vld [vmem:[%s2763 + $0x30] sm:$0x3f]
  %v2771 = vld [vmem:[%s2763 + $0x38] sm:$0x3f]
  %v2772 = vld [vmem:[%s2763 + $0x40] sm:$0xff]
  %v2773 = vld [vmem:[%s2763 + $0x48] sm:$0xff]
  %v2774 = vld [vmem:[%s2763 + $0x50] sm:$0x3f]
  %v2775 = vld [vmem:[%s2763 + $0x58] sm:$0x3f]
  %v2776 = vld [vmem:[%s2763 + $0x60] sm:$0xff]
  %v2777 = vld [vmem:[%s2763 + $0x68] sm:$0xff]
  %v2778 = vld [vmem:[%s2763 + $0x70] sm:$0x3f]
  %v2779 = vld [vmem:[%s2763 + $0x78] sm:$0x3f]
  %v2780 = vld [vmem:[%s2763 + $0x80] sm:$0xff]
  %v2781 = vld [vmem:[%s2763 + $0x88] sm:$0xff]
  %v2782 = vld [vmem:[%s2763 + $0x90] sm:$0x3f]
  %v2783 = vld [vmem:[%s2763 + $0x98] sm:$0x3f]
  %v2784 = vld [vmem:[%s2763 + $0xa0] sm:$0xff]
  %v2785 = vld [vmem:[%s2763 + $0xa8] sm:$0xff]
  %v2786 = vld [vmem:[%s2763 + $0xb0] sm:$0x3f]
  %v2787 = vld [vmem:[%s2763 + $0xb8] sm:$0x3f]
  %s2788 = scalar_lea.vmem [#allocation3], 640
  %v2789 = vld [vmem:[%s2788] sm:$0xff]
  %v2790 = vld [vmem:[%s2788 + $0x8] sm:$0xff]
  %v2791 = vld [vmem:[%s2788 + $0x10] sm:$0x3f]
  %v2792 = vld [vmem:[%s2788 + $0x18] sm:$0x3f]
  %v2793 = vld [vmem:[%s2788 + $0x20] sm:$0xff]
  %v2794 = vld [vmem:[%s2788 + $0x28] sm:$0xff]
  %v2795 = vld [vmem:[%s2788 + $0x30] sm:$0x3f]
  %v2796 = vld [vmem:[%s2788 + $0x38] sm:$0x3f]
  %v2797 = vld [vmem:[%s2788 + $0x40] sm:$0xff]
  %v2798 = vld [vmem:[%s2788 + $0x48] sm:$0xff]
  %v2799 = vld [vmem:[%s2788 + $0x50] sm:$0x3f]
  %v2800 = vld [vmem:[%s2788 + $0x58] sm:$0x3f]
  %v2801 = vld [vmem:[%s2788 + $0x60] sm:$0xff]
  %v2802 = vld [vmem:[%s2788 + $0x68] sm:$0xff]
  %v2803 = vld [vmem:[%s2788 + $0x70] sm:$0x3f]
  %v2804 = vld [vmem:[%s2788 + $0x78] sm:$0x3f]
  %v2805 = vld [vmem:[%s2788 + $0x80] sm:$0xff]
  %v2806 = vld [vmem:[%s2788 + $0x88] sm:$0xff]
  %v2807 = vld [vmem:[%s2788 + $0x90] sm:$0x3f]
  %v2808 = vld [vmem:[%s2788 + $0x98] sm:$0x3f]
  %v2809 = vmul.f32 %v2764, %v2789
  %v2810 = vmul.f32 %v2765, %v2790
  %v2811 = vmul.f32 %v2766, %v2791
  %v2812 = vmul.f32 %v2767, %v2792
  %v2813 = vmul.f32 %v2768, %v2789
  %v2814 = vmul.f32 %v2769, %v2790
  %v2815 = vmul.f32 %v2770, %v2791
  %v2816 = vmul.f32 %v2771, %v2792
  %v2817 = vadd.f32 %v2755, %v2809
  %v2818 = vadd.f32 %v2756, %v2810
  %v2819 = vadd.f32 %v2757, %v2811
  %v2820 = vadd.f32 %v2758, %v2812
  %v2821 = vadd.f32 %v2759, %v2813
  %v2822 = vadd.f32 %v2760, %v2814
  %v2823 = vadd.f32 %v2761, %v2815
  %v2824 = vadd.f32 %v2762, %v2816
  %v2825 = vmul.f32 %v2768, %v2793
  %v2826 = vmul.f32 %v2769, %v2794
  %v2827 = vmul.f32 %v2770, %v2795
  %v2828 = vmul.f32 %v2771, %v2796
  %v2829 = vmul.f32 %v2772, %v2793
  %v2830 = vmul.f32 %v2773, %v2794
  %v2831 = vmul.f32 %v2774, %v2795
  %v2832 = vmul.f32 %v2775, %v2796
  %v2833 = vadd.f32 %v2817, %v2825
  %v2834 = vadd.f32 %v2818, %v2826
  %v2835 = vadd.f32 %v2819, %v2827
  %v2836 = vadd.f32 %v2820, %v2828
  %v2837 = vadd.f32 %v2821, %v2829
  %v2838 = vadd.f32 %v2822, %v2830
  %v2839 = vadd.f32 %v2823, %v2831
  %v2840 = vadd.f32 %v2824, %v2832
  %v2841 = vmul.f32 %v2772, %v2797
  %v2842 = vmul.f32 %v2773, %v2798
  %v2843 = vmul.f32 %v2774, %v2799
  %v2844 = vmul.f32 %v2775, %v2800
  %v2845 = vmul.f32 %v2776, %v2797
  %v2846 = vmul.f32 %v2777, %v2798
  %v2847 = vmul.f32 %v2778, %v2799
  %v2848 = vmul.f32 %v2779, %v2800
  %v2849 = vadd.f32 %v2833, %v2841
  %v2850 = vadd.f32 %v2834, %v2842
  %v2851 = vadd.f32 %v2835, %v2843
  %v2852 = vadd.f32 %v2836, %v2844
  %v2853 = vadd.f32 %v2837, %v2845
  %v2854 = vadd.f32 %v2838, %v2846
  %v2855 = vadd.f32 %v2839, %v2847
  %v2856 = vadd.f32 %v2840, %v2848
  %v2857 = vmul.f32 %v2776, %v2801
  %v2858 = vmul.f32 %v2777, %v2802
  %v2859 = vmul.f32 %v2778, %v2803
  %v2860 = vmul.f32 %v2779, %v2804
  %v2861 = vmul.f32 %v2780, %v2801
  %v2862 = vmul.f32 %v2781, %v2802
  %v2863 = vmul.f32 %v2782, %v2803
  %v2864 = vmul.f32 %v2783, %v2804
  %v2865 = vadd.f32 %v2849, %v2857
  %v2866 = vadd.f32 %v2850, %v2858
  %v2867 = vadd.f32 %v2851, %v2859
  %v2868 = vadd.f32 %v2852, %v2860
  %v2869 = vadd.f32 %v2853, %v2861
  %v2870 = vadd.f32 %v2854, %v2862
  %v2871 = vadd.f32 %v2855, %v2863
  %v2872 = vadd.f32 %v2856, %v2864
  %v2873 = vmul.f32 %v2780, %v2805
  %v2874 = vmul.f32 %v2781, %v2806
  %v2875 = vmul.f32 %v2782, %v2807
  %v2876 = vmul.f32 %v2783, %v2808
  %v2877 = vmul.f32 %v2784, %v2805
  %v2878 = vmul.f32 %v2785, %v2806
  %v2879 = vmul.f32 %v2786, %v2807
  %v2880 = vmul.f32 %v2787, %v2808
  %v2881 = vadd.f32 %v2865, %v2873
  %v2882 = vadd.f32 %v2866, %v2874
  %v2883 = vadd.f32 %v2867, %v2875
  %v2884 = vadd.f32 %v2868, %v2876
  %v2885 = vadd.f32 %v2869, %v2877
  %v2886 = vadd.f32 %v2870, %v2878
  %v2887 = vadd.f32 %v2871, %v2879
  %v2888 = vadd.f32 %v2872, %v2880
  %2889 = vst [vmem:[%s2] sm:$0xff] %v2881
  %2890 = vst.msk [vmem:[%s2 + $0x8] sm:$0xff] %vm443, %v2882
  %2891 = vst [vmem:[%s2 + $0x10] sm:$0x3f] %v2883
  %2892 = vst.msk [vmem:[%s2 + $0x18] sm:$0x3f] %vm446, %v2884
  %2893 = vst [vmem:[%s2 + $0x20] sm:$0xff] %v2885
  %2894 = vst.msk [vmem:[%s2 + $0x28] sm:$0xff] %vm443, %v2886
  %2895 = vst [vmem:[%s2 + $0x30] sm:$0x3f] %v2887
  %2896 = vst.msk [vmem:[%s2 + $0x38] sm:$0x3f] %vm446, %v2888
  %v2897 = vld [vmem:[%s1157] sm:$0xff]
  %v2898 = vld [vmem:[%s1157 + $0x8] sm:$0xff]
  %v2899 = vld [vmem:[%s1157 + $0x10] sm:$0x3f]
  %v2900 = vld [vmem:[%s1157 + $0x18] sm:$0x3f]
  %v2901 = vld [vmem:[%s1157 + $0x20] sm:$0xff]
  %v2902 = vld [vmem:[%s1157 + $0x28] sm:$0xff]
  %v2903 = vld [vmem:[%s1157 + $0x30] sm:$0x3f]
  %v2904 = vld [vmem:[%s1157 + $0x38] sm:$0x3f]
  %v2905 = vld [vmem:[%s1157 + $0x40] sm:$0xff]
  %v2906 = vld [vmem:[%s1157 + $0x48] sm:$0xff]
  %v2907 = vld [vmem:[%s1157 + $0x50] sm:$0x3f]
  %v2908 = vld [vmem:[%s1157 + $0x58] sm:$0x3f]
  %v2909 = vld [vmem:[%s1157 + $0x60] sm:$0xff]
  %v2910 = vld [vmem:[%s1157 + $0x68] sm:$0xff]
  %v2911 = vld [vmem:[%s1157 + $0x70] sm:$0x3f]
  %v2912 = vld [vmem:[%s1157 + $0x78] sm:$0x3f]
  %v2913 = vld [vmem:[%s1157 + $0x80] sm:$0xff]
  %v2914 = vld [vmem:[%s1157 + $0x88] sm:$0xff]
  %v2915 = vld [vmem:[%s1157 + $0x90] sm:$0x3f]
  %v2916 = vld [vmem:[%s1157 + $0x98] sm:$0x3f]
  %v2917 = vld [vmem:[%s1157 + $0xa0] sm:$0xff]
  %v2918 = vld [vmem:[%s1157 + $0xa8] sm:$0xff]
  %v2919 = vld [vmem:[%s1157 + $0xb0] sm:$0x3f]
  %v2920 = vld [vmem:[%s1157 + $0xb8] sm:$0x3f]
  %v2921 = vld [vmem:[#allocation3] sm:$0xff]
  %v2922 = vld [vmem:[#allocation3 + $0x8] sm:$0xff]
  %v2923 = vld [vmem:[#allocation3 + $0x10] sm:$0x3f]
  %v2924 = vld [vmem:[#allocation3 + $0x18] sm:$0x3f]
  %v2925 = vld [vmem:[#allocation3 + $0x20] sm:$0xff]
  %v2926 = vld [vmem:[#allocation3 + $0x28] sm:$0xff]
  %v2927 = vld [vmem:[#allocation3 + $0x30] sm:$0x3f]
  %v2928 = vld [vmem:[#allocation3 + $0x38] sm:$0x3f]
  %v2929 = vld [vmem:[#allocation3 + $0x40] sm:$0xff]
  %v2930 = vld [vmem:[#allocation3 + $0x48] sm:$0xff]
  %v2931 = vld [vmem:[#allocation3 + $0x50] sm:$0x3f]
  %v2932 = vld [vmem:[#allocation3 + $0x58] sm:$0x3f]
  %v2933 = vld [vmem:[#allocation3 + $0x60] sm:$0xff]
  %v2934 = vld [vmem:[#allocation3 + $0x68] sm:$0xff]
  %v2935 = vld [vmem:[#allocation3 + $0x70] sm:$0x3f]
  %v2936 = vld [vmem:[#allocation3 + $0x78] sm:$0x3f]
  %v2937 = vld [vmem:[#allocation3 + $0x80] sm:$0xff]
  %v2938 = vld [vmem:[#allocation3 + $0x88] sm:$0xff]
  %v2939 = vld [vmem:[#allocation3 + $0x90] sm:$0x3f]
  %v2940 = vld [vmem:[#allocation3 + $0x98] sm:$0x3f]
  %v2941 = vmul.f32 %v2897, %v2921
  %v2942 = vmul.f32 %v2898, %v2922
  %v2943 = vmul.f32 %v2899, %v2923
  %v2944 = vmul.f32 %v2900, %v2924
  %v2945 = vmul.f32 %v2901, %v2921
  %v2946 = vmul.f32 %v2902, %v2922
  %v2947 = vmul.f32 %v2903, %v2923
  %v2948 = vmul.f32 %v2904, %v2924
  %v2949 = vadd.f32 %v2941, 0.0
  %v2950 = vadd.f32 %v2942, 0.0
  %v2951 = vadd.f32 %v2943, 0.0
  %v2952 = vadd.f32 %v2944, 0.0
  %v2953 = vadd.f32 %v2945, 0.0
  %v2954 = vadd.f32 %v2946, 0.0
  %v2955 = vadd.f32 %v2947, 0.0
  %v2956 = vadd.f32 %v2948, 0.0
  %v2957 = vmul.f32 %v2901, %v2925
  %v2958 = vmul.f32 %v2902, %v2926
  %v2959 = vmul.f32 %v2903, %v2927
  %v2960 = vmul.f32 %v2904, %v2928
  %v2961 = vmul.f32 %v2905, %v2925
  %v2962 = vmul.f32 %v2906, %v2926
  %v2963 = vmul.f32 %v2907, %v2927
  %v2964 = vmul.f32 %v2908, %v2928
  %v2965 = vadd.f32 %v2949, %v2957
  %v2966 = vadd.f32 %v2950, %v2958
  %v2967 = vadd.f32 %v2951, %v2959
  %v2968 = vadd.f32 %v2952, %v2960
  %v2969 = vadd.f32 %v2953, %v2961
  %v2970 = vadd.f32 %v2954, %v2962
  %v2971 = vadd.f32 %v2955, %v2963
  %v2972 = vadd.f32 %v2956, %v2964
  %v2973 = vmul.f32 %v2905, %v2929
  %v2974 = vmul.f32 %v2906, %v2930
  %v2975 = vmul.f32 %v2907, %v2931
  %v2976 = vmul.f32 %v2908, %v2932
  %v2977 = vmul.f32 %v2909, %v2929
  %v2978 = vmul.f32 %v2910, %v2930
  %v2979 = vmul.f32 %v2911, %v2931
  %v2980 = vmul.f32 %v2912, %v2932
  %v2981 = vadd.f32 %v2965, %v2973
  %v2982 = vadd.f32 %v2966, %v2974
  %v2983 = vadd.f32 %v2967, %v2975
  %v2984 = vadd.f32 %v2968, %v2976
  %v2985 = vadd.f32 %v2969, %v2977
  %v2986 = vadd.f32 %v2970, %v2978
  %v2987 = vadd.f32 %v2971, %v2979
  %v2988 = vadd.f32 %v2972, %v2980
  %v2989 = vmul.f32 %v2909, %v2933
  %v2990 = vmul.f32 %v2910, %v2934
  %v2991 = vmul.f32 %v2911, %v2935
  %v2992 = vmul.f32 %v2912, %v2936
  %v2993 = vmul.f32 %v2913, %v2933
  %v2994 = vmul.f32 %v2914, %v2934
  %v2995 = vmul.f32 %v2915, %v2935
  %v2996 = vmul.f32 %v2916, %v2936
  %v2997 = vadd.f32 %v2981, %v2989
  %v2998 = vadd.f32 %v2982, %v2990
  %v2999 = vadd.f32 %v2983, %v2991
  %v3000 = vadd.f32 %v2984, %v2992
  %v3001 = vadd.f32 %v2985, %v2993
  %v3002 = vadd.f32 %v2986, %v2994
  %v3003 = vadd.f32 %v2987, %v2995
  %v3004 = vadd.f32 %v2988, %v2996
  %v3005 = vmul.f32 %v2913, %v2937
  %v3006 = vmul.f32 %v2914, %v2938
  %v3007 = vmul.f32 %v2915, %v2939
  %v3008 = vmul.f32 %v2916, %v2940
  %v3009 = vmul.f32 %v2917, %v2937
  %v3010 = vmul.f32 %v2918, %v2938
  %v3011 = vmul.f32 %v2919, %v2939
  %v3012 = vmul.f32 %v2920, %v2940
  %v3013 = vadd.f32 %v2997, %v3005
  %v3014 = vadd.f32 %v2998, %v3006
  %v3015 = vadd.f32 %v2999, %v3007
  %v3016 = vadd.f32 %v3000, %v3008
  %v3017 = vadd.f32 %v3001, %v3009
  %v3018 = vadd.f32 %v3002, %v3010
  %v3019 = vadd.f32 %v3003, %v3011
  %v3020 = vadd.f32 %v3004, %v3012
  %v3021 = vld [vmem:[%s1468] sm:$0xff]
  %v3022 = vld [vmem:[%s1468 + $0x8] sm:$0xff]
  %v3023 = vld [vmem:[%s1468 + $0x10] sm:$0x3f]
  %v3024 = vld [vmem:[%s1468 + $0x18] sm:$0x3f]
  %v3025 = vld [vmem:[%s1468 + $0x20] sm:$0xff]
  %v3026 = vld [vmem:[%s1468 + $0x28] sm:$0xff]
  %v3027 = vld [vmem:[%s1468 + $0x30] sm:$0x3f]
  %v3028 = vld [vmem:[%s1468 + $0x38] sm:$0x3f]
  %v3029 = vld [vmem:[%s1468 + $0x40] sm:$0xff]
  %v3030 = vld [vmem:[%s1468 + $0x48] sm:$0xff]
  %v3031 = vld [vmem:[%s1468 + $0x50] sm:$0x3f]
  %v3032 = vld [vmem:[%s1468 + $0x58] sm:$0x3f]
  %v3033 = vld [vmem:[%s1468 + $0x60] sm:$0xff]
  %v3034 = vld [vmem:[%s1468 + $0x68] sm:$0xff]
  %v3035 = vld [vmem:[%s1468 + $0x70] sm:$0x3f]
  %v3036 = vld [vmem:[%s1468 + $0x78] sm:$0x3f]
  %v3037 = vld [vmem:[%s1468 + $0x80] sm:$0xff]
  %v3038 = vld [vmem:[%s1468 + $0x88] sm:$0xff]
  %v3039 = vld [vmem:[%s1468 + $0x90] sm:$0x3f]
  %v3040 = vld [vmem:[%s1468 + $0x98] sm:$0x3f]
  %v3041 = vld [vmem:[%s1468 + $0xa0] sm:$0xff]
  %v3042 = vld [vmem:[%s1468 + $0xa8] sm:$0xff]
  %v3043 = vld [vmem:[%s1468 + $0xb0] sm:$0x3f]
  %v3044 = vld [vmem:[%s1468 + $0xb8] sm:$0x3f]
  %v3045 = vld [vmem:[%s2410] sm:$0xff]
  %v3046 = vld [vmem:[%s2410 + $0x8] sm:$0xff]
  %v3047 = vld [vmem:[%s2410 + $0x10] sm:$0x3f]
  %v3048 = vld [vmem:[%s2410 + $0x18] sm:$0x3f]
  %v3049 = vld [vmem:[%s2410 + $0x20] sm:$0xff]
  %v3050 = vld [vmem:[%s2410 + $0x28] sm:$0xff]
  %v3051 = vld [vmem:[%s2410 + $0x30] sm:$0x3f]
  %v3052 = vld [vmem:[%s2410 + $0x38] sm:$0x3f]
  %v3053 = vld [vmem:[%s2410 + $0x40] sm:$0xff]
  %v3054 = vld [vmem:[%s2410 + $0x48] sm:$0xff]
  %v3055 = vld [vmem:[%s2410 + $0x50] sm:$0x3f]
  %v3056 = vld [vmem:[%s2410 + $0x58] sm:$0x3f]
  %v3057 = vld [vmem:[%s2410 + $0x60] sm:$0xff]
  %v3058 = vld [vmem:[%s2410 + $0x68] sm:$0xff]
  %v3059 = vld [vmem:[%s2410 + $0x70] sm:$0x3f]
  %v3060 = vld [vmem:[%s2410 + $0x78] sm:$0x3f]
  %v3061 = vld [vmem:[%s2410 + $0x80] sm:$0xff]
  %v3062 = vld [vmem:[%s2410 + $0x88] sm:$0xff]
  %v3063 = vld [vmem:[%s2410 + $0x90] sm:$0x3f]
  %v3064 = vld [vmem:[%s2410 + $0x98] sm:$0x3f]
  %v3065 = vmul.f32 %v3021, %v3045
  %v3066 = vmul.f32 %v3022, %v3046
  %v3067 = vmul.f32 %v3023, %v3047
  %v3068 = vmul.f32 %v3024, %v3048
  %v3069 = vmul.f32 %v3025, %v3045
  %v3070 = vmul.f32 %v3026, %v3046
  %v3071 = vmul.f32 %v3027, %v3047
  %v3072 = vmul.f32 %v3028, %v3048
  %v3073 = vadd.f32 %v3013, %v3065
  %v3074 = vadd.f32 %v3014, %v3066
  %v3075 = vadd.f32 %v3015, %v3067
  %v3076 = vadd.f32 %v3016, %v3068
  %v3077 = vadd.f32 %v3017, %v3069
  %v3078 = vadd.f32 %v3018, %v3070
  %v3079 = vadd.f32 %v3019, %v3071
  %v3080 = vadd.f32 %v3020, %v3072
  %v3081 = vmul.f32 %v3025, %v3049
  %v3082 = vmul.f32 %v3026, %v3050
  %v3083 = vmul.f32 %v3027, %v3051
  %v3084 = vmul.f32 %v3028, %v3052
  %v3085 = vmul.f32 %v3029, %v3049
  %v3086 = vmul.f32 %v3030, %v3050
  %v3087 = vmul.f32 %v3031, %v3051
  %v3088 = vmul.f32 %v3032, %v3052
  %v3089 = vadd.f32 %v3073, %v3081
  %v3090 = vadd.f32 %v3074, %v3082
  %v3091 = vadd.f32 %v3075, %v3083
  %v3092 = vadd.f32 %v3076, %v3084
  %v3093 = vadd.f32 %v3077, %v3085
  %v3094 = vadd.f32 %v3078, %v3086
  %v3095 = vadd.f32 %v3079, %v3087
  %v3096 = vadd.f32 %v3080, %v3088
  %v3097 = vmul.f32 %v3029, %v3053
  %v3098 = vmul.f32 %v3030, %v3054
  %v3099 = vmul.f32 %v3031, %v3055
  %v3100 = vmul.f32 %v3032, %v3056
  %v3101 = vmul.f32 %v3033, %v3053
  %v3102 = vmul.f32 %v3034, %v3054
  %v3103 = vmul.f32 %v3035, %v3055
  %v3104 = vmul.f32 %v3036, %v3056
  %v3105 = vadd.f32 %v3089, %v3097
  %v3106 = vadd.f32 %v3090, %v3098
  %v3107 = vadd.f32 %v3091, %v3099
  %v3108 = vadd.f32 %v3092, %v3100
  %v3109 = vadd.f32 %v3093, %v3101
  %v3110 = vadd.f32 %v3094, %v3102
  %v3111 = vadd.f32 %v3095, %v3103
  %v3112 = vadd.f32 %v3096, %v3104
  %v3113 = vmul.f32 %v3033, %v3057
  %v3114 = vmul.f32 %v3034, %v3058
  %v3115 = vmul.f32 %v3035, %v3059
  %v3116 = vmul.f32 %v3036, %v3060
  %v3117 = vmul.f32 %v3037, %v3057
  %v3118 = vmul.f32 %v3038, %v3058
  %v3119 = vmul.f32 %v3039, %v3059
  %v3120 = vmul.f32 %v3040, %v3060
  %v3121 = vadd.f32 %v3105, %v3113
  %v3122 = vadd.f32 %v3106, %v3114
  %v3123 = vadd.f32 %v3107, %v3115
  %v3124 = vadd.f32 %v3108, %v3116
  %v3125 = vadd.f32 %v3109, %v3117
  %v3126 = vadd.f32 %v3110, %v3118
  %v3127 = vadd.f32 %v3111, %v3119
  %v3128 = vadd.f32 %v3112, %v3120
  %v3129 = vmul.f32 %v3037, %v3061
  %v3130 = vmul.f32 %v3038, %v3062
  %v3131 = vmul.f32 %v3039, %v3063
  %v3132 = vmul.f32 %v3040, %v3064
  %v3133 = vmul.f32 %v3041, %v3061
  %v3134 = vmul.f32 %v3042, %v3062
  %v3135 = vmul.f32 %v3043, %v3063
  %v3136 = vmul.f32 %v3044, %v3064
  %v3137 = vadd.f32 %v3121, %v3129
  %v3138 = vadd.f32 %v3122, %v3130
  %v3139 = vadd.f32 %v3123, %v3131
  %v3140 = vadd.f32 %v3124, %v3132
  %v3141 = vadd.f32 %v3125, %v3133
  %v3142 = vadd.f32 %v3126, %v3134
  %v3143 = vadd.f32 %v3127, %v3135
  %v3144 = vadd.f32 %v3128, %v3136
  %v3145 = vld [vmem:[%s1582] sm:$0xff]
  %v3146 = vld [vmem:[%s1582 + $0x8] sm:$0xff]
  %v3147 = vld [vmem:[%s1582 + $0x10] sm:$0x3f]
  %v3148 = vld [vmem:[%s1582 + $0x18] sm:$0x3f]
  %v3149 = vld [vmem:[%s1582 + $0x20] sm:$0xff]
  %v3150 = vld [vmem:[%s1582 + $0x28] sm:$0xff]
  %v3151 = vld [vmem:[%s1582 + $0x30] sm:$0x3f]
  %v3152 = vld [vmem:[%s1582 + $0x38] sm:$0x3f]
  %v3153 = vld [vmem:[%s1582 + $0x40] sm:$0xff]
  %v3154 = vld [vmem:[%s1582 + $0x48] sm:$0xff]
  %v3155 = vld [vmem:[%s1582 + $0x50] sm:$0x3f]
  %v3156 = vld [vmem:[%s1582 + $0x58] sm:$0x3f]
  %v3157 = vld [vmem:[%s1582 + $0x60] sm:$0xff]
  %v3158 = vld [vmem:[%s1582 + $0x68] sm:$0xff]
  %v3159 = vld [vmem:[%s1582 + $0x70] sm:$0x3f]
  %v3160 = vld [vmem:[%s1582 + $0x78] sm:$0x3f]
  %v3161 = vld [vmem:[%s1582 + $0x80] sm:$0xff]
  %v3162 = vld [vmem:[%s1582 + $0x88] sm:$0xff]
  %v3163 = vld [vmem:[%s1582 + $0x90] sm:$0x3f]
  %v3164 = vld [vmem:[%s1582 + $0x98] sm:$0x3f]
  %v3165 = vld [vmem:[%s1582 + $0xa0] sm:$0xff]
  %v3166 = vld [vmem:[%s1582 + $0xa8] sm:$0xff]
  %v3167 = vld [vmem:[%s1582 + $0xb0] sm:$0x3f]
  %v3168 = vld [vmem:[%s1582 + $0xb8] sm:$0x3f]
  %v3169 = vld [vmem:[%s2536] sm:$0xff]
  %v3170 = vld [vmem:[%s2536 + $0x8] sm:$0xff]
  %v3171 = vld [vmem:[%s2536 + $0x10] sm:$0x3f]
  %v3172 = vld [vmem:[%s2536 + $0x18] sm:$0x3f]
  %v3173 = vld [vmem:[%s2536 + $0x20] sm:$0xff]
  %v3174 = vld [vmem:[%s2536 + $0x28] sm:$0xff]
  %v3175 = vld [vmem:[%s2536 + $0x30] sm:$0x3f]
  %v3176 = vld [vmem:[%s2536 + $0x38] sm:$0x3f]
  %v3177 = vld [vmem:[%s2536 + $0x40] sm:$0xff]
  %v3178 = vld [vmem:[%s2536 + $0x48] sm:$0xff]
  %v3179 = vld [vmem:[%s2536 + $0x50] sm:$0x3f]
  %v3180 = vld [vmem:[%s2536 + $0x58] sm:$0x3f]
  %v3181 = vld [vmem:[%s2536 + $0x60] sm:$0xff]
  %v3182 = vld [vmem:[%s2536 + $0x68] sm:$0xff]
  %v3183 = vld [vmem:[%s2536 + $0x70] sm:$0x3f]
  %v3184 = vld [vmem:[%s2536 + $0x78] sm:$0x3f]
  %v3185 = vld [vmem:[%s2536 + $0x80] sm:$0xff]
  %v3186 = vld [vmem:[%s2536 + $0x88] sm:$0xff]
  %v3187 = vld [vmem:[%s2536 + $0x90] sm:$0x3f]
  %v3188 = vld [vmem:[%s2536 + $0x98] sm:$0x3f]
  %v3189 = vmul.f32 %v3145, %v3169
  %v3190 = vmul.f32 %v3146, %v3170
  %v3191 = vmul.f32 %v3147, %v3171
  %v3192 = vmul.f32 %v3148, %v3172
  %v3193 = vmul.f32 %v3149, %v3169
  %v3194 = vmul.f32 %v3150, %v3170
  %v3195 = vmul.f32 %v3151, %v3171
  %v3196 = vmul.f32 %v3152, %v3172
  %v3197 = vadd.f32 %v3137, %v3189
  %v3198 = vadd.f32 %v3138, %v3190
  %v3199 = vadd.f32 %v3139, %v3191
  %v3200 = vadd.f32 %v3140, %v3192
  %v3201 = vadd.f32 %v3141, %v3193
  %v3202 = vadd.f32 %v3142, %v3194
  %v3203 = vadd.f32 %v3143, %v3195
  %v3204 = vadd.f32 %v3144, %v3196
  %v3205 = vmul.f32 %v3149, %v3173
  %v3206 = vmul.f32 %v3150, %v3174
  %v3207 = vmul.f32 %v3151, %v3175
  %v3208 = vmul.f32 %v3152, %v3176
  %v3209 = vmul.f32 %v3153, %v3173
  %v3210 = vmul.f32 %v3154, %v3174
  %v3211 = vmul.f32 %v3155, %v3175
  %v3212 = vmul.f32 %v3156, %v3176
  %v3213 = vadd.f32 %v3197, %v3205
  %v3214 = vadd.f32 %v3198, %v3206
  %v3215 = vadd.f32 %v3199, %v3207
  %v3216 = vadd.f32 %v3200, %v3208
  %v3217 = vadd.f32 %v3201, %v3209
  %v3218 = vadd.f32 %v3202, %v3210
  %v3219 = vadd.f32 %v3203, %v3211
  %v3220 = vadd.f32 %v3204, %v3212
  %v3221 = vmul.f32 %v3153, %v3177
  %v3222 = vmul.f32 %v3154, %v3178
  %v3223 = vmul.f32 %v3155, %v3179
  %v3224 = vmul.f32 %v3156, %v3180
  %v3225 = vmul.f32 %v3157, %v3177
  %v3226 = vmul.f32 %v3158, %v3178
  %v3227 = vmul.f32 %v3159, %v3179
  %v3228 = vmul.f32 %v3160, %v3180
  %v3229 = vadd.f32 %v3213, %v3221
  %v3230 = vadd.f32 %v3214, %v3222
  %v3231 = vadd.f32 %v3215, %v3223
  %v3232 = vadd.f32 %v3216, %v3224
  %v3233 = vadd.f32 %v3217, %v3225
  %v3234 = vadd.f32 %v3218, %v3226
  %v3235 = vadd.f32 %v3219, %v3227
  %v3236 = vadd.f32 %v3220, %v3228
  %v3237 = vmul.f32 %v3157, %v3181
  %v3238 = vmul.f32 %v3158, %v3182
  %v3239 = vmul.f32 %v3159, %v3183
  %v3240 = vmul.f32 %v3160, %v3184
  %v3241 = vmul.f32 %v3161, %v3181
  %v3242 = vmul.f32 %v3162, %v3182
  %v3243 = vmul.f32 %v3163, %v3183
  %v3244 = vmul.f32 %v3164, %v3184
  %v3245 = vadd.f32 %v3229, %v3237
  %v3246 = vadd.f32 %v3230, %v3238
  %v3247 = vadd.f32 %v3231, %v3239
  %v3248 = vadd.f32 %v3232, %v3240
  %v3249 = vadd.f32 %v3233, %v3241
  %v3250 = vadd.f32 %v3234, %v3242
  %v3251 = vadd.f32 %v3235, %v3243
  %v3252 = vadd.f32 %v3236, %v3244
  %v3253 = vmul.f32 %v3161, %v3185
  %v3254 = vmul.f32 %v3162, %v3186
  %v3255 = vmul.f32 %v3163, %v3187
  %v3256 = vmul.f32 %v3164, %v3188
  %v3257 = vmul.f32 %v3165, %v3185
  %v3258 = vmul.f32 %v3166, %v3186
  %v3259 = vmul.f32 %v3167, %v3187
  %v3260 = vmul.f32 %v3168, %v3188
  %v3261 = vadd.f32 %v3245, %v3253
  %v3262 = vadd.f32 %v3246, %v3254
  %v3263 = vadd.f32 %v3247, %v3255
  %v3264 = vadd.f32 %v3248, %v3256
  %v3265 = vadd.f32 %v3249, %v3257
  %v3266 = vadd.f32 %v3250, %v3258
  %v3267 = vadd.f32 %v3251, %v3259
  %v3268 = vadd.f32 %v3252, %v3260
  %v3269 = vld [vmem:[%s1892] sm:$0xff]
  %v3270 = vld [vmem:[%s1892 + $0x8] sm:$0xff]
  %v3271 = vld [vmem:[%s1892 + $0x10] sm:$0x3f]
  %v3272 = vld [vmem:[%s1892 + $0x18] sm:$0x3f]
  %v3273 = vld [vmem:[%s1892 + $0x20] sm:$0xff]
  %v3274 = vld [vmem:[%s1892 + $0x28] sm:$0xff]
  %v3275 = vld [vmem:[%s1892 + $0x30] sm:$0x3f]
  %v3276 = vld [vmem:[%s1892 + $0x38] sm:$0x3f]
  %v3277 = vld [vmem:[%s1892 + $0x40] sm:$0xff]
  %v3278 = vld [vmem:[%s1892 + $0x48] sm:$0xff]
  %v3279 = vld [vmem:[%s1892 + $0x50] sm:$0x3f]
  %v3280 = vld [vmem:[%s1892 + $0x58] sm:$0x3f]
  %v3281 = vld [vmem:[%s1892 + $0x60] sm:$0xff]
  %v3282 = vld [vmem:[%s1892 + $0x68] sm:$0xff]
  %v3283 = vld [vmem:[%s1892 + $0x70] sm:$0x3f]
  %v3284 = vld [vmem:[%s1892 + $0x78] sm:$0x3f]
  %v3285 = vld [vmem:[%s1892 + $0x80] sm:$0xff]
  %v3286 = vld [vmem:[%s1892 + $0x88] sm:$0xff]
  %v3287 = vld [vmem:[%s1892 + $0x90] sm:$0x3f]
  %v3288 = vld [vmem:[%s1892 + $0x98] sm:$0x3f]
  %v3289 = vld [vmem:[%s1892 + $0xa0] sm:$0xff]
  %v3290 = vld [vmem:[%s1892 + $0xa8] sm:$0xff]
  %v3291 = vld [vmem:[%s1892 + $0xb0] sm:$0x3f]
  %v3292 = vld [vmem:[%s1892 + $0xb8] sm:$0x3f]
  %v3293 = vld [vmem:[%s2662] sm:$0xff]
  %v3294 = vld [vmem:[%s2662 + $0x8] sm:$0xff]
  %v3295 = vld [vmem:[%s2662 + $0x10] sm:$0x3f]
  %v3296 = vld [vmem:[%s2662 + $0x18] sm:$0x3f]
  %v3297 = vld [vmem:[%s2662 + $0x20] sm:$0xff]
  %v3298 = vld [vmem:[%s2662 + $0x28] sm:$0xff]
  %v3299 = vld [vmem:[%s2662 + $0x30] sm:$0x3f]
  %v3300 = vld [vmem:[%s2662 + $0x38] sm:$0x3f]
  %v3301 = vld [vmem:[%s2662 + $0x40] sm:$0xff]
  %v3302 = vld [vmem:[%s2662 + $0x48] sm:$0xff]
  %v3303 = vld [vmem:[%s2662 + $0x50] sm:$0x3f]
  %v3304 = vld [vmem:[%s2662 + $0x58] sm:$0x3f]
  %v3305 = vld [vmem:[%s2662 + $0x60] sm:$0xff]
  %v3306 = vld [vmem:[%s2662 + $0x68] sm:$0xff]
  %v3307 = vld [vmem:[%s2662 + $0x70] sm:$0x3f]
  %v3308 = vld [vmem:[%s2662 + $0x78] sm:$0x3f]
  %v3309 = vld [vmem:[%s2662 + $0x80] sm:$0xff]
  %v3310 = vld [vmem:[%s2662 + $0x88] sm:$0xff]
  %v3311 = vld [vmem:[%s2662 + $0x90] sm:$0x3f]
  %v3312 = vld [vmem:[%s2662 + $0x98] sm:$0x3f]
  %v3313 = vmul.f32 %v3269, %v3293
  %v3314 = vmul.f32 %v3270, %v3294
  %v3315 = vmul.f32 %v3271, %v3295
  %v3316 = vmul.f32 %v3272, %v3296
  %v3317 = vmul.f32 %v3273, %v3293
  %v3318 = vmul.f32 %v3274, %v3294
  %v3319 = vmul.f32 %v3275, %v3295
  %v3320 = vmul.f32 %v3276, %v3296
  %v3321 = vadd.f32 %v3261, %v3313
  %v3322 = vadd.f32 %v3262, %v3314
  %v3323 = vadd.f32 %v3263, %v3315
  %v3324 = vadd.f32 %v3264, %v3316
  %v3325 = vadd.f32 %v3265, %v3317
  %v3326 = vadd.f32 %v3266, %v3318
  %v3327 = vadd.f32 %v3267, %v3319
  %v3328 = vadd.f32 %v3268, %v3320
  %v3329 = vmul.f32 %v3273, %v3297
  %v3330 = vmul.f32 %v3274, %v3298
  %v3331 = vmul.f32 %v3275, %v3299
  %v3332 = vmul.f32 %v3276, %v3300
  %v3333 = vmul.f32 %v3277, %v3297
  %v3334 = vmul.f32 %v3278, %v3298
  %v3335 = vmul.f32 %v3279, %v3299
  %v3336 = vmul.f32 %v3280, %v3300
  %v3337 = vadd.f32 %v3321, %v3329
  %v3338 = vadd.f32 %v3322, %v3330
  %v3339 = vadd.f32 %v3323, %v3331
  %v3340 = vadd.f32 %v3324, %v3332
  %v3341 = vadd.f32 %v3325, %v3333
  %v3342 = vadd.f32 %v3326, %v3334
  %v3343 = vadd.f32 %v3327, %v3335
  %v3344 = vadd.f32 %v3328, %v3336
  %v3345 = vmul.f32 %v3277, %v3301
  %v3346 = vmul.f32 %v3278, %v3302
  %v3347 = vmul.f32 %v3279, %v3303
  %v3348 = vmul.f32 %v3280, %v3304
  %v3349 = vmul.f32 %v3281, %v3301
  %v3350 = vmul.f32 %v3282, %v3302
  %v3351 = vmul.f32 %v3283, %v3303
  %v3352 = vmul.f32 %v3284, %v3304
  %v3353 = vadd.f32 %v3337, %v3345
  %v3354 = vadd.f32 %v3338, %v3346
  %v3355 = vadd.f32 %v3339, %v3347
  %v3356 = vadd.f32 %v3340, %v3348
  %v3357 = vadd.f32 %v3341, %v3349
  %v3358 = vadd.f32 %v3342, %v3350
  %v3359 = vadd.f32 %v3343, %v3351
  %v3360 = vadd.f32 %v3344, %v3352
  %v3361 = vmul.f32 %v3281, %v3305
  %v3362 = vmul.f32 %v3282, %v3306
  %v3363 = vmul.f32 %v3283, %v3307
  %v3364 = vmul.f32 %v3284, %v3308
  %v3365 = vmul.f32 %v3285, %v3305
  %v3366 = vmul.f32 %v3286, %v3306
  %v3367 = vmul.f32 %v3287, %v3307
  %v3368 = vmul.f32 %v3288, %v3308
  %v3369 = vadd.f32 %v3353, %v3361
  %v3370 = vadd.f32 %v3354, %v3362
  %v3371 = vadd.f32 %v3355, %v3363
  %v3372 = vadd.f32 %v3356, %v3364
  %v3373 = vadd.f32 %v3357, %v3365
  %v3374 = vadd.f32 %v3358, %v3366
  %v3375 = vadd.f32 %v3359, %v3367
  %v3376 = vadd.f32 %v3360, %v3368
  %v3377 = vmul.f32 %v3285, %v3309
  %v3378 = vmul.f32 %v3286, %v3310
  %v3379 = vmul.f32 %v3287, %v3311
  %v3380 = vmul.f32 %v3288, %v3312
  %v3381 = vmul.f32 %v3289, %v3309
  %v3382 = vmul.f32 %v3290, %v3310
  %v3383 = vmul.f32 %v3291, %v3311
  %v3384 = vmul.f32 %v3292, %v3312
  %v3385 = vadd.f32 %v3369, %v3377
  %v3386 = vadd.f32 %v3370, %v3378
  %v3387 = vadd.f32 %v3371, %v3379
  %v3388 = vadd.f32 %v3372, %v3380
  %v3389 = vadd.f32 %v3373, %v3381
  %v3390 = vadd.f32 %v3374, %v3382
  %v3391 = vadd.f32 %v3375, %v3383
  %v3392 = vadd.f32 %v3376, %v3384
  %v3393 = vld [vmem:[%s2203] sm:$0xff]
  %v3394 = vld [vmem:[%s2203 + $0x8] sm:$0xff]
  %v3395 = vld [vmem:[%s2203 + $0x10] sm:$0x3f]
  %v3396 = vld [vmem:[%s2203 + $0x18] sm:$0x3f]
  %v3397 = vld [vmem:[%s2203 + $0x20] sm:$0xff]
  %v3398 = vld [vmem:[%s2203 + $0x28] sm:$0xff]
  %v3399 = vld [vmem:[%s2203 + $0x30] sm:$0x3f]
  %v3400 = vld [vmem:[%s2203 + $0x38] sm:$0x3f]
  %v3401 = vld [vmem:[%s2203 + $0x40] sm:$0xff]
  %v3402 = vld [vmem:[%s2203 + $0x48] sm:$0xff]
  %v3403 = vld [vmem:[%s2203 + $0x50] sm:$0x3f]
  %v3404 = vld [vmem:[%s2203 + $0x58] sm:$0x3f]
  %v3405 = vld [vmem:[%s2203 + $0x60] sm:$0xff]
  %v3406 = vld [vmem:[%s2203 + $0x68] sm:$0xff]
  %v3407 = vld [vmem:[%s2203 + $0x70] sm:$0x3f]
  %v3408 = vld [vmem:[%s2203 + $0x78] sm:$0x3f]
  %v3409 = vld [vmem:[%s2203 + $0x80] sm:$0xff]
  %v3410 = vld [vmem:[%s2203 + $0x88] sm:$0xff]
  %v3411 = vld [vmem:[%s2203 + $0x90] sm:$0x3f]
  %v3412 = vld [vmem:[%s2203 + $0x98] sm:$0x3f]
  %v3413 = vld [vmem:[%s2203 + $0xa0] sm:$0xff]
  %v3414 = vld [vmem:[%s2203 + $0xa8] sm:$0xff]
  %v3415 = vld [vmem:[%s2203 + $0xb0] sm:$0x3f]
  %v3416 = vld [vmem:[%s2203 + $0xb8] sm:$0x3f]
  %v3417 = vld [vmem:[%s2788] sm:$0xff]
  %v3418 = vld [vmem:[%s2788 + $0x8] sm:$0xff]
  %v3419 = vld [vmem:[%s2788 + $0x10] sm:$0x3f]
  %v3420 = vld [vmem:[%s2788 + $0x18] sm:$0x3f]
  %v3421 = vld [vmem:[%s2788 + $0x20] sm:$0xff]
  %v3422 = vld [vmem:[%s2788 + $0x28] sm:$0xff]
  %v3423 = vld [vmem:[%s2788 + $0x30] sm:$0x3f]
  %v3424 = vld [vmem:[%s2788 + $0x38] sm:$0x3f]
  %v3425 = vld [vmem:[%s2788 + $0x40] sm:$0xff]
  %v3426 = vld [vmem:[%s2788 + $0x48] sm:$0xff]
  %v3427 = vld [vmem:[%s2788 + $0x50] sm:$0x3f]
  %v3428 = vld [vmem:[%s2788 + $0x58] sm:$0x3f]
  %v3429 = vld [vmem:[%s2788 + $0x60] sm:$0xff]
  %v3430 = vld [vmem:[%s2788 + $0x68] sm:$0xff]
  %v3431 = vld [vmem:[%s2788 + $0x70] sm:$0x3f]
  %v3432 = vld [vmem:[%s2788 + $0x78] sm:$0x3f]
  %v3433 = vld [vmem:[%s2788 + $0x80] sm:$0xff]
  %v3434 = vld [vmem:[%s2788 + $0x88] sm:$0xff]
  %v3435 = vld [vmem:[%s2788 + $0x90] sm:$0x3f]
  %v3436 = vld [vmem:[%s2788 + $0x98] sm:$0x3f]
  %v3437 = vmul.f32 %v3393, %v3417
  %v3438 = vmul.f32 %v3394, %v3418
  %v3439 = vmul.f32 %v3395, %v3419
  %v3440 = vmul.f32 %v3396, %v3420
  %v3441 = vmul.f32 %v3397, %v3417
  %v3442 = vmul.f32 %v3398, %v3418
  %v3443 = vmul.f32 %v3399, %v3419
  %v3444 = vmul.f32 %v3400, %v3420
  %v3445 = vadd.f32 %v3385, %v3437
  %v3446 = vadd.f32 %v3386, %v3438
  %v3447 = vadd.f32 %v3387, %v3439
  %v3448 = vadd.f32 %v3388, %v3440
  %v3449 = vadd.f32 %v3389, %v3441
  %v3450 = vadd.f32 %v3390, %v3442
  %v3451 = vadd.f32 %v3391, %v3443
  %v3452 = vadd.f32 %v3392, %v3444
  %v3453 = vmul.f32 %v3397, %v3421
  %v3454 = vmul.f32 %v3398, %v3422
  %v3455 = vmul.f32 %v3399, %v3423
  %v3456 = vmul.f32 %v3400, %v3424
  %v3457 = vmul.f32 %v3401, %v3421
  %v3458 = vmul.f32 %v3402, %v3422
  %v3459 = vmul.f32 %v3403, %v3423
  %v3460 = vmul.f32 %v3404, %v3424
  %v3461 = vadd.f32 %v3445, %v3453
  %v3462 = vadd.f32 %v3446, %v3454
  %v3463 = vadd.f32 %v3447, %v3455
  %v3464 = vadd.f32 %v3448, %v3456
  %v3465 = vadd.f32 %v3449, %v3457
  %v3466 = vadd.f32 %v3450, %v3458
  %v3467 = vadd.f32 %v3451, %v3459
  %v3468 = vadd.f32 %v3452, %v3460
  %v3469 = vmul.f32 %v3401, %v3425
  %v3470 = vmul.f32 %v3402, %v3426
  %v3471 = vmul.f32 %v3403, %v3427
  %v3472 = vmul.f32 %v3404, %v3428
  %v3473 = vmul.f32 %v3405, %v3425
  %v3474 = vmul.f32 %v3406, %v3426
  %v3475 = vmul.f32 %v3407, %v3427
  %v3476 = vmul.f32 %v3408, %v3428
  %v3477 = vadd.f32 %v3461, %v3469
  %v3478 = vadd.f32 %v3462, %v3470
  %v3479 = vadd.f32 %v3463, %v3471
  %v3480 = vadd.f32 %v3464, %v3472
  %v3481 = vadd.f32 %v3465, %v3473
  %v3482 = vadd.f32 %v3466, %v3474
  %v3483 = vadd.f32 %v3467, %v3475
  %v3484 = vadd.f32 %v3468, %v3476
  %v3485 = vmul.f32 %v3405, %v3429
  %v3486 = vmul.f32 %v3406, %v3430
  %v3487 = vmul.f32 %v3407, %v3431
  %v3488 = vmul.f32 %v3408, %v3432
  %v3489 = vmul.f32 %v3409, %v3429
  %v3490 = vmul.f32 %v3410, %v3430
  %v3491 = vmul.f32 %v3411, %v3431
  %v3492 = vmul.f32 %v3412, %v3432
  %v3493 = vadd.f32 %v3477, %v3485
  %v3494 = vadd.f32 %v3478, %v3486
  %v3495 = vadd.f32 %v3479, %v3487
  %v3496 = vadd.f32 %v3480, %v3488
  %v3497 = vadd.f32 %v3481, %v3489
  %v3498 = vadd.f32 %v3482, %v3490
  %v3499 = vadd.f32 %v3483, %v3491
  %v3500 = vadd.f32 %v3484, %v3492
  %v3501 = vmul.f32 %v3409, %v3433
  %v3502 = vmul.f32 %v3410, %v3434
  %v3503 = vmul.f32 %v3411, %v3435
  %v3504 = vmul.f32 %v3412, %v3436
  %v3505 = vmul.f32 %v3413, %v3433
  %v3506 = vmul.f32 %v3414, %v3434
  %v3507 = vmul.f32 %v3415, %v3435
  %v3508 = vmul.f32 %v3416, %v3436
  %v3509 = vadd.f32 %v3493, %v3501
  %v3510 = vadd.f32 %v3494, %v3502
  %v3511 = vadd.f32 %v3495, %v3503
  %v3512 = vadd.f32 %v3496, %v3504
  %v3513 = vadd.f32 %v3497, %v3505
  %v3514 = vadd.f32 %v3498, %v3506
  %v3515 = vadd.f32 %v3499, %v3507
  %v3516 = vadd.f32 %v3500, %v3508
  %s3517 = scalar_lea.vmem %s2, 64
  %3518 = vst [vmem:[%s3517] sm:$0xff] %v3509
  %3519 = vst.msk [vmem:[%s3517 + $0x8] sm:$0xff] %vm443, %v3510
  %3520 = vst [vmem:[%s3517 + $0x10] sm:$0x3f] %v3511
  %3521 = vst.msk [vmem:[%s3517 + $0x18] sm:$0x3f] %vm446, %v3512
  %3522 = vst [vmem:[%s3517 + $0x20] sm:$0xff] %v3513
  %3523 = vst.msk [vmem:[%s3517 + $0x28] sm:$0xff] %vm443, %v3514
  %3524 = vst [vmem:[%s3517 + $0x30] sm:$0x3f] %v3515
  %3525 = vst.msk [vmem:[%s3517 + $0x38] sm:$0x3f] %vm446, %v3516
  %s3526 = scalar_lea.vmem [#allocation2], 128
  %v3527 = vld [vmem:[%s3526] sm:$0xff]
  %v3528 = vld [vmem:[%s3526 + $0x8] sm:$0xff]
  %v3529 = vld [vmem:[%s3526 + $0x10] sm:$0x3f]
  %v3530 = vld [vmem:[%s3526 + $0x18] sm:$0x3f]
  %v3531 = vld [vmem:[%s3526 + $0x20] sm:$0xff]
  %v3532 = vld [vmem:[%s3526 + $0x28] sm:$0xff]
  %v3533 = vld [vmem:[%s3526 + $0x30] sm:$0x3f]
  %v3534 = vld [vmem:[%s3526 + $0x38] sm:$0x3f]
  %v3535 = vld [vmem:[%s3526 + $0x40] sm:$0xff]
  %v3536 = vld [vmem:[%s3526 + $0x48] sm:$0xff]
  %v3537 = vld [vmem:[%s3526 + $0x50] sm:$0x3f]
  %v3538 = vld [vmem:[%s3526 + $0x58] sm:$0x3f]
  %v3539 = vld [vmem:[%s3526 + $0x60] sm:$0xff]
  %v3540 = vld [vmem:[%s3526 + $0x68] sm:$0xff]
  %v3541 = vld [vmem:[%s3526 + $0x70] sm:$0x3f]
  %v3542 = vld [vmem:[%s3526 + $0x78] sm:$0x3f]
  %v3543 = vld [vmem:[%s3526 + $0x80] sm:$0xff]
  %v3544 = vld [vmem:[%s3526 + $0x88] sm:$0xff]
  %v3545 = vld [vmem:[%s3526 + $0x90] sm:$0x3f]
  %v3546 = vld [vmem:[%s3526 + $0x98] sm:$0x3f]
  %v3547 = vld [vmem:[%s3526 + $0xa0] sm:$0xff]
  %v3548 = vld [vmem:[%s3526 + $0xa8] sm:$0xff]
  %v3549 = vld [vmem:[%s3526 + $0xb0] sm:$0x3f]
  %v3550 = vld [vmem:[%s3526 + $0xb8] sm:$0x3f]
  %v3551 = vld [vmem:[#allocation3] sm:$0xff]
  %v3552 = vld [vmem:[#allocation3 + $0x8] sm:$0xff]
  %v3553 = vld [vmem:[#allocation3 + $0x10] sm:$0x3f]
  %v3554 = vld [vmem:[#allocation3 + $0x18] sm:$0x3f]
  %v3555 = vld [vmem:[#allocation3 + $0x20] sm:$0xff]
  %v3556 = vld [vmem:[#allocation3 + $0x28] sm:$0xff]
  %v3557 = vld [vmem:[#allocation3 + $0x30] sm:$0x3f]
  %v3558 = vld [vmem:[#allocation3 + $0x38] sm:$0x3f]
  %v3559 = vld [vmem:[#allocation3 + $0x40] sm:$0xff]
  %v3560 = vld [vmem:[#allocation3 + $0x48] sm:$0xff]
  %v3561 = vld [vmem:[#allocation3 + $0x50] sm:$0x3f]
  %v3562 = vld [vmem:[#allocation3 + $0x58] sm:$0x3f]
  %v3563 = vld [vmem:[#allocation3 + $0x60] sm:$0xff]
  %v3564 = vld [vmem:[#allocation3 + $0x68] sm:$0xff]
  %v3565 = vld [vmem:[#allocation3 + $0x70] sm:$0x3f]
  %v3566 = vld [vmem:[#allocation3 + $0x78] sm:$0x3f]
  %v3567 = vld [vmem:[#allocation3 + $0x80] sm:$0xff]
  %v3568 = vld [vmem:[#allocation3 + $0x88] sm:$0xff]
  %v3569 = vld [vmem:[#allocation3 + $0x90] sm:$0x3f]
  %v3570 = vld [vmem:[#allocation3 + $0x98] sm:$0x3f]
  %v3571 = vmul.f32 %v3527, %v3551
  %v3572 = vmul.f32 %v3528, %v3552
  %v3573 = vmul.f32 %v3529, %v3553
  %v3574 = vmul.f32 %v3530, %v3554
  %v3575 = vmul.f32 %v3531, %v3551
  %v3576 = vmul.f32 %v3532, %v3552
  %v3577 = vmul.f32 %v3533, %v3553
  %v3578 = vmul.f32 %v3534, %v3554
  %v3579 = vadd.f32 %v3571, 0.0
  %v3580 = vadd.f32 %v3572, 0.0
  %v3581 = vadd.f32 %v3573, 0.0
  %v3582 = vadd.f32 %v3574, 0.0
  %v3583 = vadd.f32 %v3575, 0.0
  %v3584 = vadd.f32 %v3576, 0.0
  %v3585 = vadd.f32 %v3577, 0.0
  %v3586 = vadd.f32 %v3578, 0.0
  %v3587 = vmul.f32 %v3531, %v3555
  %v3588 = vmul.f32 %v3532, %v3556
  %v3589 = vmul.f32 %v3533, %v3557
  %v3590 = vmul.f32 %v3534, %v3558
  %v3591 = vmul.f32 %v3535, %v3555
  %v3592 = vmul.f32 %v3536, %v3556
  %v3593 = vmul.f32 %v3537, %v3557
  %v3594 = vmul.f32 %v3538, %v3558
  %v3595 = vadd.f32 %v3579, %v3587
  %v3596 = vadd.f32 %v3580, %v3588
  %v3597 = vadd.f32 %v3581, %v3589
  %v3598 = vadd.f32 %v3582, %v3590
  %v3599 = vadd.f32 %v3583, %v3591
  %v3600 = vadd.f32 %v3584, %v3592
  %v3601 = vadd.f32 %v3585, %v3593
  %v3602 = vadd.f32 %v3586, %v3594
  %v3603 = vmul.f32 %v3535, %v3559
  %v3604 = vmul.f32 %v3536, %v3560
  %v3605 = vmul.f32 %v3537, %v3561
  %v3606 = vmul.f32 %v3538, %v3562
  %v3607 = vmul.f32 %v3539, %v3559
  %v3608 = vmul.f32 %v3540, %v3560
  %v3609 = vmul.f32 %v3541, %v3561
  %v3610 = vmul.f32 %v3542, %v3562
  %v3611 = vadd.f32 %v3595, %v3603
  %v3612 = vadd.f32 %v3596, %v3604
  %v3613 = vadd.f32 %v3597, %v3605
  %v3614 = vadd.f32 %v3598, %v3606
  %v3615 = vadd.f32 %v3599, %v3607
  %v3616 = vadd.f32 %v3600, %v3608
  %v3617 = vadd.f32 %v3601, %v3609
  %v3618 = vadd.f32 %v3602, %v3610
  %v3619 = vmul.f32 %v3539, %v3563
  %v3620 = vmul.f32 %v3540, %v3564
  %v3621 = vmul.f32 %v3541, %v3565
  %v3622 = vmul.f32 %v3542, %v3566
  %v3623 = vmul.f32 %v3543, %v3563
  %v3624 = vmul.f32 %v3544, %v3564
  %v3625 = vmul.f32 %v3545, %v3565
  %v3626 = vmul.f32 %v3546, %v3566
  %v3627 = vadd.f32 %v3611, %v3619
  %v3628 = vadd.f32 %v3612, %v3620
  %v3629 = vadd.f32 %v3613, %v3621
  %v3630 = vadd.f32 %v3614, %v3622
  %v3631 = vadd.f32 %v3615, %v3623
  %v3632 = vadd.f32 %v3616, %v3624
  %v3633 = vadd.f32 %v3617, %v3625
  %v3634 = vadd.f32 %v3618, %v3626
  %v3635 = vmul.f32 %v3543, %v3567
  %v3636 = vmul.f32 %v3544, %v3568
  %v3637 = vmul.f32 %v3545, %v3569
  %v3638 = vmul.f32 %v3546, %v3570
  %v3639 = vmul.f32 %v3547, %v3567
  %v3640 = vmul.f32 %v3548, %v3568
  %v3641 = vmul.f32 %v3549, %v3569
  %v3642 = vmul.f32 %v3550, %v3570
  %v3643 = vadd.f32 %v3627, %v3635
  %v3644 = vadd.f32 %v3628, %v3636
  %v3645 = vadd.f32 %v3629, %v3637
  %v3646 = vadd.f32 %v3630, %v3638
  %v3647 = vadd.f32 %v3631, %v3639
  %v3648 = vadd.f32 %v3632, %v3640
  %v3649 = vadd.f32 %v3633, %v3641
  %v3650 = vadd.f32 %v3634, %v3642
  %s3651 = scalar_lea.vmem [#allocation2], 704
  %v3652 = vld [vmem:[%s3651] sm:$0xff]
  %v3653 = vld [vmem:[%s3651 + $0x8] sm:$0xff]
  %v3654 = vld [vmem:[%s3651 + $0x10] sm:$0x3f]
  %v3655 = vld [vmem:[%s3651 + $0x18] sm:$0x3f]
  %v3656 = vld [vmem:[%s3651 + $0x20] sm:$0xff]
  %v3657 = vld [vmem:[%s3651 + $0x28] sm:$0xff]
  %v3658 = vld [vmem:[%s3651 + $0x30] sm:$0x3f]
  %v3659 = vld [vmem:[%s3651 + $0x38] sm:$0x3f]
  %v3660 = vld [vmem:[%s3651 + $0x40] sm:$0xff]
  %v3661 = vld [vmem:[%s3651 + $0x48] sm:$0xff]
  %v3662 = vld [vmem:[%s3651 + $0x50] sm:$0x3f]
  %v3663 = vld [vmem:[%s3651 + $0x58] sm:$0x3f]
  %v3664 = vld [vmem:[%s3651 + $0x60] sm:$0xff]
  %v3665 = vld [vmem:[%s3651 + $0x68] sm:$0xff]
  %v3666 = vld [vmem:[%s3651 + $0x70] sm:$0x3f]
  %v3667 = vld [vmem:[%s3651 + $0x78] sm:$0x3f]
  %v3668 = vld [vmem:[%s3651 + $0x80] sm:$0xff]
  %v3669 = vld [vmem:[%s3651 + $0x88] sm:$0xff]
  %v3670 = vld [vmem:[%s3651 + $0x90] sm:$0x3f]
  %v3671 = vld [vmem:[%s3651 + $0x98] sm:$0x3f]
  %v3672 = vld [vmem:[%s3651 + $0xa0] sm:$0xff]
  %v3673 = vld [vmem:[%s3651 + $0xa8] sm:$0xff]
  %v3674 = vld [vmem:[%s3651 + $0xb0] sm:$0x3f]
  %v3675 = vld [vmem:[%s3651 + $0xb8] sm:$0x3f]
  %v3676 = vld [vmem:[%s2410] sm:$0xff]
  %v3677 = vld [vmem:[%s2410 + $0x8] sm:$0xff]
  %v3678 = vld [vmem:[%s2410 + $0x10] sm:$0x3f]
  %v3679 = vld [vmem:[%s2410 + $0x18] sm:$0x3f]
  %v3680 = vld [vmem:[%s2410 + $0x20] sm:$0xff]
  %v3681 = vld [vmem:[%s2410 + $0x28] sm:$0xff]
  %v3682 = vld [vmem:[%s2410 + $0x30] sm:$0x3f]
  %v3683 = vld [vmem:[%s2410 + $0x38] sm:$0x3f]
  %v3684 = vld [vmem:[%s2410 + $0x40] sm:$0xff]
  %v3685 = vld [vmem:[%s2410 + $0x48] sm:$0xff]
  %v3686 = vld [vmem:[%s2410 + $0x50] sm:$0x3f]
  %v3687 = vld [vmem:[%s2410 + $0x58] sm:$0x3f]
  %v3688 = vld [vmem:[%s2410 + $0x60] sm:$0xff]
  %v3689 = vld [vmem:[%s2410 + $0x68] sm:$0xff]
  %v3690 = vld [vmem:[%s2410 + $0x70] sm:$0x3f]
  %v3691 = vld [vmem:[%s2410 + $0x78] sm:$0x3f]
  %v3692 = vld [vmem:[%s2410 + $0x80] sm:$0xff]
  %v3693 = vld [vmem:[%s2410 + $0x88] sm:$0xff]
  %v3694 = vld [vmem:[%s2410 + $0x90] sm:$0x3f]
  %v3695 = vld [vmem:[%s2410 + $0x98] sm:$0x3f]
  %v3696 = vmul.f32 %v3652, %v3676
  %v3697 = vmul.f32 %v3653, %v3677
  %v3698 = vmul.f32 %v3654, %v3678
  %v3699 = vmul.f32 %v3655, %v3679
  %v3700 = vmul.f32 %v3656, %v3676
  %v3701 = vmul.f32 %v3657, %v3677
  %v3702 = vmul.f32 %v3658, %v3678
  %v3703 = vmul.f32 %v3659, %v3679
  %v3704 = vadd.f32 %v3643, %v3696
  %v3705 = vadd.f32 %v3644, %v3697
  %v3706 = vadd.f32 %v3645, %v3698
  %v3707 = vadd.f32 %v3646, %v3699
  %v3708 = vadd.f32 %v3647, %v3700
  %v3709 = vadd.f32 %v3648, %v3701
  %v3710 = vadd.f32 %v3649, %v3702
  %v3711 = vadd.f32 %v3650, %v3703
  %v3712 = vmul.f32 %v3656, %v3680
  %v3713 = vmul.f32 %v3657, %v3681
  %v3714 = vmul.f32 %v3658, %v3682
  %v3715 = vmul.f32 %v3659, %v3683
  %v3716 = vmul.f32 %v3660, %v3680
  %v3717 = vmul.f32 %v3661, %v3681
  %v3718 = vmul.f32 %v3662, %v3682
  %v3719 = vmul.f32 %v3663, %v3683
  %v3720 = vadd.f32 %v3704, %v3712
  %v3721 = vadd.f32 %v3705, %v3713
  %v3722 = vadd.f32 %v3706, %v3714
  %v3723 = vadd.f32 %v3707, %v3715
  %v3724 = vadd.f32 %v3708, %v3716
  %v3725 = vadd.f32 %v3709, %v3717
  %v3726 = vadd.f32 %v3710, %v3718
  %v3727 = vadd.f32 %v3711, %v3719
  %v3728 = vmul.f32 %v3660, %v3684
  %v3729 = vmul.f32 %v3661, %v3685
  %v3730 = vmul.f32 %v3662, %v3686
  %v3731 = vmul.f32 %v3663, %v3687
  %v3732 = vmul.f32 %v3664, %v3684
  %v3733 = vmul.f32 %v3665, %v3685
  %v3734 = vmul.f32 %v3666, %v3686
  %v3735 = vmul.f32 %v3667, %v3687
  %v3736 = vadd.f32 %v3720, %v3728
  %v3737 = vadd.f32 %v3721, %v3729
  %v3738 = vadd.f32 %v3722, %v3730
  %v3739 = vadd.f32 %v3723, %v3731
  %v3740 = vadd.f32 %v3724, %v3732
  %v3741 = vadd.f32 %v3725, %v3733
  %v3742 = vadd.f32 %v3726, %v3734
  %v3743 = vadd.f32 %v3727, %v3735
  %v3744 = vmul.f32 %v3664, %v3688
  %v3745 = vmul.f32 %v3665, %v3689
  %v3746 = vmul.f32 %v3666, %v3690
  %v3747 = vmul.f32 %v3667, %v3691
  %v3748 = vmul.f32 %v3668, %v3688
  %v3749 = vmul.f32 %v3669, %v3689
  %v3750 = vmul.f32 %v3670, %v3690
  %v3751 = vmul.f32 %v3671, %v3691
  %v3752 = vadd.f32 %v3736, %v3744
  %v3753 = vadd.f32 %v3737, %v3745
  %v3754 = vadd.f32 %v3738, %v3746
  %v3755 = vadd.f32 %v3739, %v3747
  %v3756 = vadd.f32 %v3740, %v3748
  %v3757 = vadd.f32 %v3741, %v3749
  %v3758 = vadd.f32 %v3742, %v3750
  %v3759 = vadd.f32 %v3743, %v3751
  %v3760 = vmul.f32 %v3668, %v3692
  %v3761 = vmul.f32 %v3669, %v3693
  %v3762 = vmul.f32 %v3670, %v3694
  %v3763 = vmul.f32 %v3671, %v3695
  %v3764 = vmul.f32 %v3672, %v3692
  %v3765 = vmul.f32 %v3673, %v3693
  %v3766 = vmul.f32 %v3674, %v3694
  %v3767 = vmul.f32 %v3675, %v3695
  %v3768 = vadd.f32 %v3752, %v3760
  %v3769 = vadd.f32 %v3753, %v3761
  %v3770 = vadd.f32 %v3754, %v3762
  %v3771 = vadd.f32 %v3755, %v3763
  %v3772 = vadd.f32 %v3756, %v3764
  %v3773 = vadd.f32 %v3757, %v3765
  %v3774 = vadd.f32 %v3758, %v3766
  %v3775 = vadd.f32 %v3759, %v3767
  %s3776 = scalar_lea.vmem [#allocation2], 1280
  %v3777 = vld [vmem:[%s3776] sm:$0xff]
  %v3778 = vld [vmem:[%s3776 + $0x8] sm:$0xff]
  %v3779 = vld [vmem:[%s3776 + $0x10] sm:$0x3f]
  %v3780 = vld [vmem:[%s3776 + $0x18] sm:$0x3f]
  %v3781 = vld [vmem:[%s3776 + $0x20] sm:$0xff]
  %v3782 = vld [vmem:[%s3776 + $0x28] sm:$0xff]
  %v3783 = vld [vmem:[%s3776 + $0x30] sm:$0x3f]
  %v3784 = vld [vmem:[%s3776 + $0x38] sm:$0x3f]
  %v3785 = vld [vmem:[%s3776 + $0x40] sm:$0xff]
  %v3786 = vld [vmem:[%s3776 + $0x48] sm:$0xff]
  %v3787 = vld [vmem:[%s3776 + $0x50] sm:$0x3f]
  %v3788 = vld [vmem:[%s3776 + $0x58] sm:$0x3f]
  %v3789 = vld [vmem:[%s3776 + $0x60] sm:$0xff]
  %v3790 = vld [vmem:[%s3776 + $0x68] sm:$0xff]
  %v3791 = vld [vmem:[%s3776 + $0x70] sm:$0x3f]
  %v3792 = vld [vmem:[%s3776 + $0x78] sm:$0x3f]
  %v3793 = vld [vmem:[%s3776 + $0x80] sm:$0xff]
  %v3794 = vld [vmem:[%s3776 + $0x88] sm:$0xff]
  %v3795 = vld [vmem:[%s3776 + $0x90] sm:$0x3f]
  %v3796 = vld [vmem:[%s3776 + $0x98] sm:$0x3f]
  %v3797 = vld [vmem:[%s3776 + $0xa0] sm:$0xff]
  %v3798 = vld [vmem:[%s3776 + $0xa8] sm:$0xff]
  %v3799 = vld [vmem:[%s3776 + $0xb0] sm:$0x3f]
  %v3800 = vld [vmem:[%s3776 + $0xb8] sm:$0x3f]
  %v3801 = vld [vmem:[%s2536] sm:$0xff]
  %v3802 = vld [vmem:[%s2536 + $0x8] sm:$0xff]
  %v3803 = vld [vmem:[%s2536 + $0x10] sm:$0x3f]
  %v3804 = vld [vmem:[%s2536 + $0x18] sm:$0x3f]
  %v3805 = vld [vmem:[%s2536 + $0x20] sm:$0xff]
  %v3806 = vld [vmem:[%s2536 + $0x28] sm:$0xff]
  %v3807 = vld [vmem:[%s2536 + $0x30] sm:$0x3f]
  %v3808 = vld [vmem:[%s2536 + $0x38] sm:$0x3f]
  %v3809 = vld [vmem:[%s2536 + $0x40] sm:$0xff]
  %v3810 = vld [vmem:[%s2536 + $0x48] sm:$0xff]
  %v3811 = vld [vmem:[%s2536 + $0x50] sm:$0x3f]
  %v3812 = vld [vmem:[%s2536 + $0x58] sm:$0x3f]
  %v3813 = vld [vmem:[%s2536 + $0x60] sm:$0xff]
  %v3814 = vld [vmem:[%s2536 + $0x68] sm:$0xff]
  %v3815 = vld [vmem:[%s2536 + $0x70] sm:$0x3f]
  %v3816 = vld [vmem:[%s2536 + $0x78] sm:$0x3f]
  %v3817 = vld [vmem:[%s2536 + $0x80] sm:$0xff]
  %v3818 = vld [vmem:[%s2536 + $0x88] sm:$0xff]
  %v3819 = vld [vmem:[%s2536 + $0x90] sm:$0x3f]
  %v3820 = vld [vmem:[%s2536 + $0x98] sm:$0x3f]
  %v3821 = vmul.f32 %v3777, %v3801
  %v3822 = vmul.f32 %v3778, %v3802
  %v3823 = vmul.f32 %v3779, %v3803
  %v3824 = vmul.f32 %v3780, %v3804
  %v3825 = vmul.f32 %v3781, %v3801
  %v3826 = vmul.f32 %v3782, %v3802
  %v3827 = vmul.f32 %v3783, %v3803
  %v3828 = vmul.f32 %v3784, %v3804
  %v3829 = vadd.f32 %v3768, %v3821
  %v3830 = vadd.f32 %v3769, %v3822
  %v3831 = vadd.f32 %v3770, %v3823
  %v3832 = vadd.f32 %v3771, %v3824
  %v3833 = vadd.f32 %v3772, %v3825
  %v3834 = vadd.f32 %v3773, %v3826
  %v3835 = vadd.f32 %v3774, %v3827
  %v3836 = vadd.f32 %v3775, %v3828
  %v3837 = vmul.f32 %v3781, %v3805
  %v3838 = vmul.f32 %v3782, %v3806
  %v3839 = vmul.f32 %v3783, %v3807
  %v3840 = vmul.f32 %v3784, %v3808
  %v3841 = vmul.f32 %v3785, %v3805
  %v3842 = vmul.f32 %v3786, %v3806
  %v3843 = vmul.f32 %v3787, %v3807
  %v3844 = vmul.f32 %v3788, %v3808
  %v3845 = vadd.f32 %v3829, %v3837
  %v3846 = vadd.f32 %v3830, %v3838
  %v3847 = vadd.f32 %v3831, %v3839
  %v3848 = vadd.f32 %v3832, %v3840
  %v3849 = vadd.f32 %v3833, %v3841
  %v3850 = vadd.f32 %v3834, %v3842
  %v3851 = vadd.f32 %v3835, %v3843
  %v3852 = vadd.f32 %v3836, %v3844
  %v3853 = vmul.f32 %v3785, %v3809
  %v3854 = vmul.f32 %v3786, %v3810
  %v3855 = vmul.f32 %v3787, %v3811
  %v3856 = vmul.f32 %v3788, %v3812
  %v3857 = vmul.f32 %v3789, %v3809
  %v3858 = vmul.f32 %v3790, %v3810
  %v3859 = vmul.f32 %v3791, %v3811
  %v3860 = vmul.f32 %v3792, %v3812
  %v3861 = vadd.f32 %v3845, %v3853
  %v3862 = vadd.f32 %v3846, %v3854
  %v3863 = vadd.f32 %v3847, %v3855
  %v3864 = vadd.f32 %v3848, %v3856
  %v3865 = vadd.f32 %v3849, %v3857
  %v3866 = vadd.f32 %v3850, %v3858
  %v3867 = vadd.f32 %v3851, %v3859
  %v3868 = vadd.f32 %v3852, %v3860
  %v3869 = vmul.f32 %v3789, %v3813
  %v3870 = vmul.f32 %v3790, %v3814
  %v3871 = vmul.f32 %v3791, %v3815
  %v3872 = vmul.f32 %v3792, %v3816
  %v3873 = vmul.f32 %v3793, %v3813
  %v3874 = vmul.f32 %v3794, %v3814
  %v3875 = vmul.f32 %v3795, %v3815
  %v3876 = vmul.f32 %v3796, %v3816
  %v3877 = vadd.f32 %v3861, %v3869
  %v3878 = vadd.f32 %v3862, %v3870
  %v3879 = vadd.f32 %v3863, %v3871
  %v3880 = vadd.f32 %v3864, %v3872
  %v3881 = vadd.f32 %v3865, %v3873
  %v3882 = vadd.f32 %v3866, %v3874
  %v3883 = vadd.f32 %v3867, %v3875
  %v3884 = vadd.f32 %v3868, %v3876
  %v3885 = vmul.f32 %v3793, %v3817
  %v3886 = vmul.f32 %v3794, %v3818
  %v3887 = vmul.f32 %v3795, %v3819
  %v3888 = vmul.f32 %v3796, %v3820
  %v3889 = vmul.f32 %v3797, %v3817
  %v3890 = vmul.f32 %v3798, %v3818
  %v3891 = vmul.f32 %v3799, %v3819
  %v3892 = vmul.f32 %v3800, %v3820
  %v3893 = vadd.f32 %v3877, %v3885
  %v3894 = vadd.f32 %v3878, %v3886
  %v3895 = vadd.f32 %v3879, %v3887
  %v3896 = vadd.f32 %v3880, %v3888
  %v3897 = vadd.f32 %v3881, %v3889
  %v3898 = vadd.f32 %v3882, %v3890
  %v3899 = vadd.f32 %v3883, %v3891
  %v3900 = vadd.f32 %v3884, %v3892
  %s3901 = scalar_lea.vmem [#allocation2], 1856
  %v3902 = vld [vmem:[%s3901] sm:$0xff]
  %v3903 = vld [vmem:[%s3901 + $0x8] sm:$0xff]
  %v3904 = vld [vmem:[%s3901 + $0x10] sm:$0x3f]
  %v3905 = vld [vmem:[%s3901 + $0x18] sm:$0x3f]
  %v3906 = vld [vmem:[%s3901 + $0x20] sm:$0xff]
  %v3907 = vld [vmem:[%s3901 + $0x28] sm:$0xff]
  %v3908 = vld [vmem:[%s3901 + $0x30] sm:$0x3f]
  %v3909 = vld [vmem:[%s3901 + $0x38] sm:$0x3f]
  %v3910 = vld [vmem:[%s3901 + $0x40] sm:$0xff]
  %v3911 = vld [vmem:[%s3901 + $0x48] sm:$0xff]
  %v3912 = vld [vmem:[%s3901 + $0x50] sm:$0x3f]
  %v3913 = vld [vmem:[%s3901 + $0x58] sm:$0x3f]
  %v3914 = vld [vmem:[%s3901 + $0x60] sm:$0xff]
  %v3915 = vld [vmem:[%s3901 + $0x68] sm:$0xff]
  %v3916 = vld [vmem:[%s3901 + $0x70] sm:$0x3f]
  %v3917 = vld [vmem:[%s3901 + $0x78] sm:$0x3f]
  %v3918 = vld [vmem:[%s3901 + $0x80] sm:$0xff]
  %v3919 = vld [vmem:[%s3901 + $0x88] sm:$0xff]
  %v3920 = vld [vmem:[%s3901 + $0x90] sm:$0x3f]
  %v3921 = vld [vmem:[%s3901 + $0x98] sm:$0x3f]
  %v3922 = vld [vmem:[%s3901 + $0xa0] sm:$0xff]
  %v3923 = vld [vmem:[%s3901 + $0xa8] sm:$0xff]
  %v3924 = vld [vmem:[%s3901 + $0xb0] sm:$0x3f]
  %v3925 = vld [vmem:[%s3901 + $0xb8] sm:$0x3f]
  %v3926 = vld [vmem:[%s2662] sm:$0xff]
  %v3927 = vld [vmem:[%s2662 + $0x8] sm:$0xff]
  %v3928 = vld [vmem:[%s2662 + $0x10] sm:$0x3f]
  %v3929 = vld [vmem:[%s2662 + $0x18] sm:$0x3f]
  %v3930 = vld [vmem:[%s2662 + $0x20] sm:$0xff]
  %v3931 = vld [vmem:[%s2662 + $0x28] sm:$0xff]
  %v3932 = vld [vmem:[%s2662 + $0x30] sm:$0x3f]
  %v3933 = vld [vmem:[%s2662 + $0x38] sm:$0x3f]
  %v3934 = vld [vmem:[%s2662 + $0x40] sm:$0xff]
  %v3935 = vld [vmem:[%s2662 + $0x48] sm:$0xff]
  %v3936 = vld [vmem:[%s2662 + $0x50] sm:$0x3f]
  %v3937 = vld [vmem:[%s2662 + $0x58] sm:$0x3f]
  %v3938 = vld [vmem:[%s2662 + $0x60] sm:$0xff]
  %v3939 = vld [vmem:[%s2662 + $0x68] sm:$0xff]
  %v3940 = vld [vmem:[%s2662 + $0x70] sm:$0x3f]
  %v3941 = vld [vmem:[%s2662 + $0x78] sm:$0x3f]
  %v3942 = vld [vmem:[%s2662 + $0x80] sm:$0xff]
  %v3943 = vld [vmem:[%s2662 + $0x88] sm:$0xff]
  %v3944 = vld [vmem:[%s2662 + $0x90] sm:$0x3f]
  %v3945 = vld [vmem:[%s2662 + $0x98] sm:$0x3f]
  %v3946 = vmul.f32 %v3902, %v3926
  %v3947 = vmul.f32 %v3903, %v3927
  %v3948 = vmul.f32 %v3904, %v3928
  %v3949 = vmul.f32 %v3905, %v3929
  %v3950 = vmul.f32 %v3906, %v3926
  %v3951 = vmul.f32 %v3907, %v3927
  %v3952 = vmul.f32 %v3908, %v3928
  %v3953 = vmul.f32 %v3909, %v3929
  %v3954 = vadd.f32 %v3893, %v3946
  %v3955 = vadd.f32 %v3894, %v3947
  %v3956 = vadd.f32 %v3895, %v3948
  %v3957 = vadd.f32 %v3896, %v3949
  %v3958 = vadd.f32 %v3897, %v3950
  %v3959 = vadd.f32 %v3898, %v3951
  %v3960 = vadd.f32 %v3899, %v3952
  %v3961 = vadd.f32 %v3900, %v3953
  %v3962 = vmul.f32 %v3906, %v3930
  %v3963 = vmul.f32 %v3907, %v3931
  %v3964 = vmul.f32 %v3908, %v3932
  %v3965 = vmul.f32 %v3909, %v3933
  %v3966 = vmul.f32 %v3910, %v3930
  %v3967 = vmul.f32 %v3911, %v3931
  %v3968 = vmul.f32 %v3912, %v3932
  %v3969 = vmul.f32 %v3913, %v3933
  %v3970 = vadd.f32 %v3954, %v3962
  %v3971 = vadd.f32 %v3955, %v3963
  %v3972 = vadd.f32 %v3956, %v3964
  %v3973 = vadd.f32 %v3957, %v3965
  %v3974 = vadd.f32 %v3958, %v3966
  %v3975 = vadd.f32 %v3959, %v3967
  %v3976 = vadd.f32 %v3960, %v3968
  %v3977 = vadd.f32 %v3961, %v3969
  %v3978 = vmul.f32 %v3910, %v3934
  %v3979 = vmul.f32 %v3911, %v3935
  %v3980 = vmul.f32 %v3912, %v3936
  %v3981 = vmul.f32 %v3913, %v3937
  %v3982 = vmul.f32 %v3914, %v3934
  %v3983 = vmul.f32 %v3915, %v3935
  %v3984 = vmul.f32 %v3916, %v3936
  %v3985 = vmul.f32 %v3917, %v3937
  %v3986 = vadd.f32 %v3970, %v3978
  %v3987 = vadd.f32 %v3971, %v3979
  %v3988 = vadd.f32 %v3972, %v3980
  %v3989 = vadd.f32 %v3973, %v3981
  %v3990 = vadd.f32 %v3974, %v3982
  %v3991 = vadd.f32 %v3975, %v3983
  %v3992 = vadd.f32 %v3976, %v3984
  %v3993 = vadd.f32 %v3977, %v3985
  %v3994 = vmul.f32 %v3914, %v3938
  %v3995 = vmul.f32 %v3915, %v3939
  %v3996 = vmul.f32 %v3916, %v3940
  %v3997 = vmul.f32 %v3917, %v3941
  %v3998 = vmul.f32 %v3918, %v3938
  %v3999 = vmul.f32 %v3919, %v3939
  %v4000 = vmul.f32 %v3920, %v3940
  %v4001 = vmul.f32 %v3921, %v3941
  %v4002 = vadd.f32 %v3986, %v3994
  %v4003 = vadd.f32 %v3987, %v3995
  %v4004 = vadd.f32 %v3988, %v3996
  %v4005 = vadd.f32 %v3989, %v3997
  %v4006 = vadd.f32 %v3990, %v3998
  %v4007 = vadd.f32 %v3991, %v3999
  %v4008 = vadd.f32 %v3992, %v4000
  %v4009 = vadd.f32 %v3993, %v4001
  %v4010 = vmul.f32 %v3918, %v3942
  %v4011 = vmul.f32 %v3919, %v3943
  %v4012 = vmul.f32 %v3920, %v3944
  %v4013 = vmul.f32 %v3921, %v3945
  %v4014 = vmul.f32 %v3922, %v3942
  %v4015 = vmul.f32 %v3923, %v3943
  %v4016 = vmul.f32 %v3924, %v3944
  %v4017 = vmul.f32 %v3925, %v3945
  %v4018 = vadd.f32 %v4002, %v4010
  %v4019 = vadd.f32 %v4003, %v4011
  %v4020 = vadd.f32 %v4004, %v4012
  %v4021 = vadd.f32 %v4005, %v4013
  %v4022 = vadd.f32 %v4006, %v4014
  %v4023 = vadd.f32 %v4007, %v4015
  %v4024 = vadd.f32 %v4008, %v4016
  %v4025 = vadd.f32 %v4009, %v4017
  %s4026 = scalar_lea.vmem [#allocation2], 2432
  %v4027 = vld [vmem:[%s4026] sm:$0xff]
  %v4028 = vld [vmem:[%s4026 + $0x8] sm:$0xff]
  %v4029 = vld [vmem:[%s4026 + $0x10] sm:$0x3f]
  %v4030 = vld [vmem:[%s4026 + $0x18] sm:$0x3f]
  %v4031 = vld [vmem:[%s4026 + $0x20] sm:$0xff]
  %v4032 = vld [vmem:[%s4026 + $0x28] sm:$0xff]
  %v4033 = vld [vmem:[%s4026 + $0x30] sm:$0x3f]
  %v4034 = vld [vmem:[%s4026 + $0x38] sm:$0x3f]
  %v4035 = vld [vmem:[%s4026 + $0x40] sm:$0xff]
  %v4036 = vld [vmem:[%s4026 + $0x48] sm:$0xff]
  %v4037 = vld [vmem:[%s4026 + $0x50] sm:$0x3f]
  %v4038 = vld [vmem:[%s4026 + $0x58] sm:$0x3f]
  %v4039 = vld [vmem:[%s4026 + $0x60] sm:$0xff]
  %v4040 = vld [vmem:[%s4026 + $0x68] sm:$0xff]
  %v4041 = vld [vmem:[%s4026 + $0x70] sm:$0x3f]
  %v4042 = vld [vmem:[%s4026 + $0x78] sm:$0x3f]
  %v4043 = vld [vmem:[%s4026 + $0x80] sm:$0xff]
  %v4044 = vld [vmem:[%s4026 + $0x88] sm:$0xff]
  %v4045 = vld [vmem:[%s4026 + $0x90] sm:$0x3f]
  %v4046 = vld [vmem:[%s4026 + $0x98] sm:$0x3f]
  %v4047 = vld [vmem:[%s4026 + $0xa0] sm:$0xff]
  %v4048 = vld [vmem:[%s4026 + $0xa8] sm:$0xff]
  %v4049 = vld [vmem:[%s4026 + $0xb0] sm:$0x3f]
  %v4050 = vld [vmem:[%s4026 + $0xb8] sm:$0x3f]
  %v4051 = vld [vmem:[%s2788] sm:$0xff]
  %v4052 = vld [vmem:[%s2788 + $0x8] sm:$0xff]
  %v4053 = vld [vmem:[%s2788 + $0x10] sm:$0x3f]
  %v4054 = vld [vmem:[%s2788 + $0x18] sm:$0x3f]
  %v4055 = vld [vmem:[%s2788 + $0x20] sm:$0xff]
  %v4056 = vld [vmem:[%s2788 + $0x28] sm:$0xff]
  %v4057 = vld [vmem:[%s2788 + $0x30] sm:$0x3f]
  %v4058 = vld [vmem:[%s2788 + $0x38] sm:$0x3f]
  %v4059 = vld [vmem:[%s2788 + $0x40] sm:$0xff]
  %v4060 = vld [vmem:[%s2788 + $0x48] sm:$0xff]
  %v4061 = vld [vmem:[%s2788 + $0x50] sm:$0x3f]
  %v4062 = vld [vmem:[%s2788 + $0x58] sm:$0x3f]
  %v4063 = vld [vmem:[%s2788 + $0x60] sm:$0xff]
  %v4064 = vld [vmem:[%s2788 + $0x68] sm:$0xff]
  %v4065 = vld [vmem:[%s2788 + $0x70] sm:$0x3f]
  %v4066 = vld [vmem:[%s2788 + $0x78] sm:$0x3f]
  %v4067 = vld [vmem:[%s2788 + $0x80] sm:$0xff]
  %v4068 = vld [vmem:[%s2788 + $0x88] sm:$0xff]
  %v4069 = vld [vmem:[%s2788 + $0x90] sm:$0x3f]
  %v4070 = vld [vmem:[%s2788 + $0x98] sm:$0x3f]
  %v4071 = vmul.f32 %v4027, %v4051
  %v4072 = vmul.f32 %v4028, %v4052
  %v4073 = vmul.f32 %v4029, %v4053
  %v4074 = vmul.f32 %v4030, %v4054
  %v4075 = vmul.f32 %v4031, %v4051
  %v4076 = vmul.f32 %v4032, %v4052
  %v4077 = vmul.f32 %v4033, %v4053
  %v4078 = vmul.f32 %v4034, %v4054
  %v4079 = vadd.f32 %v4018, %v4071
  %v4080 = vadd.f32 %v4019, %v4072
  %v4081 = vadd.f32 %v4020, %v4073
  %v4082 = vadd.f32 %v4021, %v4074
  %v4083 = vadd.f32 %v4022, %v4075
  %v4084 = vadd.f32 %v4023, %v4076
  %v4085 = vadd.f32 %v4024, %v4077
  %v4086 = vadd.f32 %v4025, %v4078
  %v4087 = vmul.f32 %v4031, %v4055
  %v4088 = vmul.f32 %v4032, %v4056
  %v4089 = vmul.f32 %v4033, %v4057
  %v4090 = vmul.f32 %v4034, %v4058
  %v4091 = vmul.f32 %v4035, %v4055
  %v4092 = vmul.f32 %v4036, %v4056
  %v4093 = vmul.f32 %v4037, %v4057
  %v4094 = vmul.f32 %v4038, %v4058
  %v4095 = vadd.f32 %v4079, %v4087
  %v4096 = vadd.f32 %v4080, %v4088
  %v4097 = vadd.f32 %v4081, %v4089
  %v4098 = vadd.f32 %v4082, %v4090
  %v4099 = vadd.f32 %v4083, %v4091
  %v4100 = vadd.f32 %v4084, %v4092
  %v4101 = vadd.f32 %v4085, %v4093
  %v4102 = vadd.f32 %v4086, %v4094
  %v4103 = vmul.f32 %v4035, %v4059
  %v4104 = vmul.f32 %v4036, %v4060
  %v4105 = vmul.f32 %v4037, %v4061
  %v4106 = vmul.f32 %v4038, %v4062
  %v4107 = vmul.f32 %v4039, %v4059
  %v4108 = vmul.f32 %v4040, %v4060
  %v4109 = vmul.f32 %v4041, %v4061
  %v4110 = vmul.f32 %v4042, %v4062
  %v4111 = vadd.f32 %v4095, %v4103
  %v4112 = vadd.f32 %v4096, %v4104
  %v4113 = vadd.f32 %v4097, %v4105
  %v4114 = vadd.f32 %v4098, %v4106
  %v4115 = vadd.f32 %v4099, %v4107
  %v4116 = vadd.f32 %v4100, %v4108
  %v4117 = vadd.f32 %v4101, %v4109
  %v4118 = vadd.f32 %v4102, %v4110
  %v4119 = vmul.f32 %v4039, %v4063
  %v4120 = vmul.f32 %v4040, %v4064
  %v4121 = vmul.f32 %v4041, %v4065
  %v4122 = vmul.f32 %v4042, %v4066
  %v4123 = vmul.f32 %v4043, %v4063
  %v4124 = vmul.f32 %v4044, %v4064
  %v4125 = vmul.f32 %v4045, %v4065
  %v4126 = vmul.f32 %v4046, %v4066
  %v4127 = vadd.f32 %v4111, %v4119
  %v4128 = vadd.f32 %v4112, %v4120
  %v4129 = vadd.f32 %v4113, %v4121
  %v4130 = vadd.f32 %v4114, %v4122
  %v4131 = vadd.f32 %v4115, %v4123
  %v4132 = vadd.f32 %v4116, %v4124
  %v4133 = vadd.f32 %v4117, %v4125
  %v4134 = vadd.f32 %v4118, %v4126
  %v4135 = vmul.f32 %v4043, %v4067
  %v4136 = vmul.f32 %v4044, %v4068
  %v4137 = vmul.f32 %v4045, %v4069
  %v4138 = vmul.f32 %v4046, %v4070
  %v4139 = vmul.f32 %v4047, %v4067
  %v4140 = vmul.f32 %v4048, %v4068
  %v4141 = vmul.f32 %v4049, %v4069
  %v4142 = vmul.f32 %v4050, %v4070
  %v4143 = vadd.f32 %v4127, %v4135
  %v4144 = vadd.f32 %v4128, %v4136
  %v4145 = vadd.f32 %v4129, %v4137
  %v4146 = vadd.f32 %v4130, %v4138
  %v4147 = vadd.f32 %v4131, %v4139
  %v4148 = vadd.f32 %v4132, %v4140
  %v4149 = vadd.f32 %v4133, %v4141
  %v4150 = vadd.f32 %v4134, %v4142
  %s4151 = scalar_lea.vmem %s2, 128
  %4152 = vst [vmem:[%s4151] sm:$0xff] %v4143
  %4153 = vst.msk [vmem:[%s4151 + $0x8] sm:$0xff] %vm443, %v4144
  %4154 = vst [vmem:[%s4151 + $0x10] sm:$0x3f] %v4145
  %4155 = vst.msk [vmem:[%s4151 + $0x18] sm:$0x3f] %vm446, %v4146
  %4156 = vst [vmem:[%s4151 + $0x20] sm:$0xff] %v4147
  %4157 = vst.msk [vmem:[%s4151 + $0x28] sm:$0xff] %vm443, %v4148
  %4158 = vst [vmem:[%s4151 + $0x30] sm:$0x3f] %v4149
  %4159 = vst.msk [vmem:[%s4151 + $0x38] sm:$0x3f] %vm446, %v4150
  %s4160 = scalar_lea.vmem [#allocation2], 192
  %v4161 = vld [vmem:[%s4160] sm:$0xff]
  %v4162 = vld [vmem:[%s4160 + $0x8] sm:$0xff]
  %v4163 = vld [vmem:[%s4160 + $0x10] sm:$0x3f]
  %v4164 = vld [vmem:[%s4160 + $0x18] sm:$0x3f]
  %v4165 = vld [vmem:[%s4160 + $0x20] sm:$0xff]
  %v4166 = vld [vmem:[%s4160 + $0x28] sm:$0xff]
  %v4167 = vld [vmem:[%s4160 + $0x30] sm:$0x3f]
  %v4168 = vld [vmem:[%s4160 + $0x38] sm:$0x3f]
  %v4169 = vld [vmem:[%s4160 + $0x40] sm:$0xff]
  %v4170 = vld [vmem:[%s4160 + $0x48] sm:$0xff]
  %v4171 = vld [vmem:[%s4160 + $0x50] sm:$0x3f]
  %v4172 = vld [vmem:[%s4160 + $0x58] sm:$0x3f]
  %v4173 = vld [vmem:[%s4160 + $0x60] sm:$0xff]
  %v4174 = vld [vmem:[%s4160 + $0x68] sm:$0xff]
  %v4175 = vld [vmem:[%s4160 + $0x70] sm:$0x3f]
  %v4176 = vld [vmem:[%s4160 + $0x78] sm:$0x3f]
  %v4177 = vld [vmem:[%s4160 + $0x80] sm:$0xff]
  %v4178 = vld [vmem:[%s4160 + $0x88] sm:$0xff]
  %v4179 = vld [vmem:[%s4160 + $0x90] sm:$0x3f]
  %v4180 = vld [vmem:[%s4160 + $0x98] sm:$0x3f]
  %v4181 = vld [vmem:[%s4160 + $0xa0] sm:$0xff]
  %v4182 = vld [vmem:[%s4160 + $0xa8] sm:$0xff]
  %v4183 = vld [vmem:[%s4160 + $0xb0] sm:$0x3f]
  %v4184 = vld [vmem:[%s4160 + $0xb8] sm:$0x3f]
  %v4185 = vld [vmem:[#allocation3] sm:$0xff]
  %v4186 = vld [vmem:[#allocation3 + $0x8] sm:$0xff]
  %v4187 = vld [vmem:[#allocation3 + $0x10] sm:$0x3f]
  %v4188 = vld [vmem:[#allocation3 + $0x18] sm:$0x3f]
  %v4189 = vld [vmem:[#allocation3 + $0x20] sm:$0xff]
  %v4190 = vld [vmem:[#allocation3 + $0x28] sm:$0xff]
  %v4191 = vld [vmem:[#allocation3 + $0x30] sm:$0x3f]
  %v4192 = vld [vmem:[#allocation3 + $0x38] sm:$0x3f]
  %v4193 = vld [vmem:[#allocation3 + $0x40] sm:$0xff]
  %v4194 = vld [vmem:[#allocation3 + $0x48] sm:$0xff]
  %v4195 = vld [vmem:[#allocation3 + $0x50] sm:$0x3f]
  %v4196 = vld [vmem:[#allocation3 + $0x58] sm:$0x3f]
  %v4197 = vld [vmem:[#allocation3 + $0x60] sm:$0xff]
  %v4198 = vld [vmem:[#allocation3 + $0x68] sm:$0xff]
  %v4199 = vld [vmem:[#allocation3 + $0x70] sm:$0x3f]
  %v4200 = vld [vmem:[#allocation3 + $0x78] sm:$0x3f]
  %v4201 = vld [vmem:[#allocation3 + $0x80] sm:$0xff]
  %v4202 = vld [vmem:[#allocation3 + $0x88] sm:$0xff]
  %v4203 = vld [vmem:[#allocation3 + $0x90] sm:$0x3f]
  %v4204 = vld [vmem:[#allocation3 + $0x98] sm:$0x3f]
  %v4205 = vmul.f32 %v4161, %v4185
  %v4206 = vmul.f32 %v4162, %v4186
  %v4207 = vmul.f32 %v4163, %v4187
  %v4208 = vmul.f32 %v4164, %v4188
  %v4209 = vmul.f32 %v4165, %v4185
  %v4210 = vmul.f32 %v4166, %v4186
  %v4211 = vmul.f32 %v4167, %v4187
  %v4212 = vmul.f32 %v4168, %v4188
  %v4213 = vadd.f32 %v4205, 0.0
  %v4214 = vadd.f32 %v4206, 0.0
  %v4215 = vadd.f32 %v4207, 0.0
  %v4216 = vadd.f32 %v4208, 0.0
  %v4217 = vadd.f32 %v4209, 0.0
  %v4218 = vadd.f32 %v4210, 0.0
  %v4219 = vadd.f32 %v4211, 0.0
  %v4220 = vadd.f32 %v4212, 0.0
  %v4221 = vmul.f32 %v4165, %v4189
  %v4222 = vmul.f32 %v4166, %v4190
  %v4223 = vmul.f32 %v4167, %v4191
  %v4224 = vmul.f32 %v4168, %v4192
  %v4225 = vmul.f32 %v4169, %v4189
  %v4226 = vmul.f32 %v4170, %v4190
  %v4227 = vmul.f32 %v4171, %v4191
  %v4228 = vmul.f32 %v4172, %v4192
  %v4229 = vadd.f32 %v4213, %v4221
  %v4230 = vadd.f32 %v4214, %v4222
  %v4231 = vadd.f32 %v4215, %v4223
  %v4232 = vadd.f32 %v4216, %v4224
  %v4233 = vadd.f32 %v4217, %v4225
  %v4234 = vadd.f32 %v4218, %v4226
  %v4235 = vadd.f32 %v4219, %v4227
  %v4236 = vadd.f32 %v4220, %v4228
  %v4237 = vmul.f32 %v4169, %v4193
  %v4238 = vmul.f32 %v4170, %v4194
  %v4239 = vmul.f32 %v4171, %v4195
  %v4240 = vmul.f32 %v4172, %v4196
  %v4241 = vmul.f32 %v4173, %v4193
  %v4242 = vmul.f32 %v4174, %v4194
  %v4243 = vmul.f32 %v4175, %v4195
  %v4244 = vmul.f32 %v4176, %v4196
  %v4245 = vadd.f32 %v4229, %v4237
  %v4246 = vadd.f32 %v4230, %v4238
  %v4247 = vadd.f32 %v4231, %v4239
  %v4248 = vadd.f32 %v4232, %v4240
  %v4249 = vadd.f32 %v4233, %v4241
  %v4250 = vadd.f32 %v4234, %v4242
  %v4251 = vadd.f32 %v4235, %v4243
  %v4252 = vadd.f32 %v4236, %v4244
  %v4253 = vmul.f32 %v4173, %v4197
  %v4254 = vmul.f32 %v4174, %v4198
  %v4255 = vmul.f32 %v4175, %v4199
  %v4256 = vmul.f32 %v4176, %v4200
  %v4257 = vmul.f32 %v4177, %v4197
  %v4258 = vmul.f32 %v4178, %v4198
  %v4259 = vmul.f32 %v4179, %v4199
  %v4260 = vmul.f32 %v4180, %v4200
  %v4261 = vadd.f32 %v4245, %v4253
  %v4262 = vadd.f32 %v4246, %v4254
  %v4263 = vadd.f32 %v4247, %v4255
  %v4264 = vadd.f32 %v4248, %v4256
  %v4265 = vadd.f32 %v4249, %v4257
  %v4266 = vadd.f32 %v4250, %v4258
  %v4267 = vadd.f32 %v4251, %v4259
  %v4268 = vadd.f32 %v4252, %v4260
  %v4269 = vmul.f32 %v4177, %v4201
  %v4270 = vmul.f32 %v4178, %v4202
  %v4271 = vmul.f32 %v4179, %v4203
  %v4272 = vmul.f32 %v4180, %v4204
  %v4273 = vmul.f32 %v4181, %v4201
  %v4274 = vmul.f32 %v4182, %v4202
  %v4275 = vmul.f32 %v4183, %v4203
  %v4276 = vmul.f32 %v4184, %v4204
  %v4277 = vadd.f32 %v4261, %v4269
  %v4278 = vadd.f32 %v4262, %v4270
  %v4279 = vadd.f32 %v4263, %v4271
  %v4280 = vadd.f32 %v4264, %v4272
  %v4281 = vadd.f32 %v4265, %v4273
  %v4282 = vadd.f32 %v4266, %v4274
  %v4283 = vadd.f32 %v4267, %v4275
  %v4284 = vadd.f32 %v4268, %v4276
  %s4285 = scalar_lea.vmem [#allocation2], 768
  %v4286 = vld [vmem:[%s4285] sm:$0xff]
  %v4287 = vld [vmem:[%s4285 + $0x8] sm:$0xff]
  %v4288 = vld [vmem:[%s4285 + $0x10] sm:$0x3f]
  %v4289 = vld [vmem:[%s4285 + $0x18] sm:$0x3f]
  %v4290 = vld [vmem:[%s4285 + $0x20] sm:$0xff]
  %v4291 = vld [vmem:[%s4285 + $0x28] sm:$0xff]
  %v4292 = vld [vmem:[%s4285 + $0x30] sm:$0x3f]
  %v4293 = vld [vmem:[%s4285 + $0x38] sm:$0x3f]
  %v4294 = vld [vmem:[%s4285 + $0x40] sm:$0xff]
  %v4295 = vld [vmem:[%s4285 + $0x48] sm:$0xff]
  %v4296 = vld [vmem:[%s4285 + $0x50] sm:$0x3f]
  %v4297 = vld [vmem:[%s4285 + $0x58] sm:$0x3f]
  %v4298 = vld [vmem:[%s4285 + $0x60] sm:$0xff]
  %v4299 = vld [vmem:[%s4285 + $0x68] sm:$0xff]
  %v4300 = vld [vmem:[%s4285 + $0x70] sm:$0x3f]
  %v4301 = vld [vmem:[%s4285 + $0x78] sm:$0x3f]
  %v4302 = vld [vmem:[%s4285 + $0x80] sm:$0xff]
  %v4303 = vld [vmem:[%s4285 + $0x88] sm:$0xff]
  %v4304 = vld [vmem:[%s4285 + $0x90] sm:$0x3f]
  %v4305 = vld [vmem:[%s4285 + $0x98] sm:$0x3f]
  %v4306 = vld [vmem:[%s4285 + $0xa0] sm:$0xff]
  %v4307 = vld [vmem:[%s4285 + $0xa8] sm:$0xff]
  %v4308 = vld [vmem:[%s4285 + $0xb0] sm:$0x3f]
  %v4309 = vld [vmem:[%s4285 + $0xb8] sm:$0x3f]
  %v4310 = vld [vmem:[%s2410] sm:$0xff]
  %v4311 = vld [vmem:[%s2410 + $0x8] sm:$0xff]
  %v4312 = vld [vmem:[%s2410 + $0x10] sm:$0x3f]
  %v4313 = vld [vmem:[%s2410 + $0x18] sm:$0x3f]
  %v4314 = vld [vmem:[%s2410 + $0x20] sm:$0xff]
  %v4315 = vld [vmem:[%s2410 + $0x28] sm:$0xff]
  %v4316 = vld [vmem:[%s2410 + $0x30] sm:$0x3f]
  %v4317 = vld [vmem:[%s2410 + $0x38] sm:$0x3f]
  %v4318 = vld [vmem:[%s2410 + $0x40] sm:$0xff]
  %v4319 = vld [vmem:[%s2410 + $0x48] sm:$0xff]
  %v4320 = vld [vmem:[%s2410 + $0x50] sm:$0x3f]
  %v4321 = vld [vmem:[%s2410 + $0x58] sm:$0x3f]
  %v4322 = vld [vmem:[%s2410 + $0x60] sm:$0xff]
  %v4323 = vld [vmem:[%s2410 + $0x68] sm:$0xff]
  %v4324 = vld [vmem:[%s2410 + $0x70] sm:$0x3f]
  %v4325 = vld [vmem:[%s2410 + $0x78] sm:$0x3f]
  %v4326 = vld [vmem:[%s2410 + $0x80] sm:$0xff]
  %v4327 = vld [vmem:[%s2410 + $0x88] sm:$0xff]
  %v4328 = vld [vmem:[%s2410 + $0x90] sm:$0x3f]
  %v4329 = vld [vmem:[%s2410 + $0x98] sm:$0x3f]
  %v4330 = vmul.f32 %v4286, %v4310
  %v4331 = vmul.f32 %v4287, %v4311
  %v4332 = vmul.f32 %v4288, %v4312
  %v4333 = vmul.f32 %v4289, %v4313
  %v4334 = vmul.f32 %v4290, %v4310
  %v4335 = vmul.f32 %v4291, %v4311
  %v4336 = vmul.f32 %v4292, %v4312
  %v4337 = vmul.f32 %v4293, %v4313
  %v4338 = vadd.f32 %v4277, %v4330
  %v4339 = vadd.f32 %v4278, %v4331
  %v4340 = vadd.f32 %v4279, %v4332
  %v4341 = vadd.f32 %v4280, %v4333
  %v4342 = vadd.f32 %v4281, %v4334
  %v4343 = vadd.f32 %v4282, %v4335
  %v4344 = vadd.f32 %v4283, %v4336
  %v4345 = vadd.f32 %v4284, %v4337
  %v4346 = vmul.f32 %v4290, %v4314
  %v4347 = vmul.f32 %v4291, %v4315
  %v4348 = vmul.f32 %v4292, %v4316
  %v4349 = vmul.f32 %v4293, %v4317
  %v4350 = vmul.f32 %v4294, %v4314
  %v4351 = vmul.f32 %v4295, %v4315
  %v4352 = vmul.f32 %v4296, %v4316
  %v4353 = vmul.f32 %v4297, %v4317
  %v4354 = vadd.f32 %v4338, %v4346
  %v4355 = vadd.f32 %v4339, %v4347
  %v4356 = vadd.f32 %v4340, %v4348
  %v4357 = vadd.f32 %v4341, %v4349
  %v4358 = vadd.f32 %v4342, %v4350
  %v4359 = vadd.f32 %v4343, %v4351
  %v4360 = vadd.f32 %v4344, %v4352
  %v4361 = vadd.f32 %v4345, %v4353
  %v4362 = vmul.f32 %v4294, %v4318
  %v4363 = vmul.f32 %v4295, %v4319
  %v4364 = vmul.f32 %v4296, %v4320
  %v4365 = vmul.f32 %v4297, %v4321
  %v4366 = vmul.f32 %v4298, %v4318
  %v4367 = vmul.f32 %v4299, %v4319
  %v4368 = vmul.f32 %v4300, %v4320
  %v4369 = vmul.f32 %v4301, %v4321
  %v4370 = vadd.f32 %v4354, %v4362
  %v4371 = vadd.f32 %v4355, %v4363
  %v4372 = vadd.f32 %v4356, %v4364
  %v4373 = vadd.f32 %v4357, %v4365
  %v4374 = vadd.f32 %v4358, %v4366
  %v4375 = vadd.f32 %v4359, %v4367
  %v4376 = vadd.f32 %v4360, %v4368
  %v4377 = vadd.f32 %v4361, %v4369
  %v4378 = vmul.f32 %v4298, %v4322
  %v4379 = vmul.f32 %v4299, %v4323
  %v4380 = vmul.f32 %v4300, %v4324
  %v4381 = vmul.f32 %v4301, %v4325
  %v4382 = vmul.f32 %v4302, %v4322
  %v4383 = vmul.f32 %v4303, %v4323
  %v4384 = vmul.f32 %v4304, %v4324
  %v4385 = vmul.f32 %v4305, %v4325
  %v4386 = vadd.f32 %v4370, %v4378
  %v4387 = vadd.f32 %v4371, %v4379
  %v4388 = vadd.f32 %v4372, %v4380
  %v4389 = vadd.f32 %v4373, %v4381
  %v4390 = vadd.f32 %v4374, %v4382
  %v4391 = vadd.f32 %v4375, %v4383
  %v4392 = vadd.f32 %v4376, %v4384
  %v4393 = vadd.f32 %v4377, %v4385
  %v4394 = vmul.f32 %v4302, %v4326
  %v4395 = vmul.f32 %v4303, %v4327
  %v4396 = vmul.f32 %v4304, %v4328
  %v4397 = vmul.f32 %v4305, %v4329
  %v4398 = vmul.f32 %v4306, %v4326
  %v4399 = vmul.f32 %v4307, %v4327
  %v4400 = vmul.f32 %v4308, %v4328
  %v4401 = vmul.f32 %v4309, %v4329
  %v4402 = vadd.f32 %v4386, %v4394
  %v4403 = vadd.f32 %v4387, %v4395
  %v4404 = vadd.f32 %v4388, %v4396
  %v4405 = vadd.f32 %v4389, %v4397
  %v4406 = vadd.f32 %v4390, %v4398
  %v4407 = vadd.f32 %v4391, %v4399
  %v4408 = vadd.f32 %v4392, %v4400
  %v4409 = vadd.f32 %v4393, %v4401
  %s4410 = scalar_lea.vmem [#allocation2], 1344
  %v4411 = vld [vmem:[%s4410] sm:$0xff]
  %v4412 = vld [vmem:[%s4410 + $0x8] sm:$0xff]
  %v4413 = vld [vmem:[%s4410 + $0x10] sm:$0x3f]
  %v4414 = vld [vmem:[%s4410 + $0x18] sm:$0x3f]
  %v4415 = vld [vmem:[%s4410 + $0x20] sm:$0xff]
  %v4416 = vld [vmem:[%s4410 + $0x28] sm:$0xff]
  %v4417 = vld [vmem:[%s4410 + $0x30] sm:$0x3f]
  %v4418 = vld [vmem:[%s4410 + $0x38] sm:$0x3f]
  %v4419 = vld [vmem:[%s4410 + $0x40] sm:$0xff]
  %v4420 = vld [vmem:[%s4410 + $0x48] sm:$0xff]
  %v4421 = vld [vmem:[%s4410 + $0x50] sm:$0x3f]
  %v4422 = vld [vmem:[%s4410 + $0x58] sm:$0x3f]
  %v4423 = vld [vmem:[%s4410 + $0x60] sm:$0xff]
  %v4424 = vld [vmem:[%s4410 + $0x68] sm:$0xff]
  %v4425 = vld [vmem:[%s4410 + $0x70] sm:$0x3f]
  %v4426 = vld [vmem:[%s4410 + $0x78] sm:$0x3f]
  %v4427 = vld [vmem:[%s4410 + $0x80] sm:$0xff]
  %v4428 = vld [vmem:[%s4410 + $0x88] sm:$0xff]
  %v4429 = vld [vmem:[%s4410 + $0x90] sm:$0x3f]
  %v4430 = vld [vmem:[%s4410 + $0x98] sm:$0x3f]
  %v4431 = vld [vmem:[%s4410 + $0xa0] sm:$0xff]
  %v4432 = vld [vmem:[%s4410 + $0xa8] sm:$0xff]
  %v4433 = vld [vmem:[%s4410 + $0xb0] sm:$0x3f]
  %v4434 = vld [vmem:[%s4410 + $0xb8] sm:$0x3f]
  %v4435 = vld [vmem:[%s2536] sm:$0xff]
  %v4436 = vld [vmem:[%s2536 + $0x8] sm:$0xff]
  %v4437 = vld [vmem:[%s2536 + $0x10] sm:$0x3f]
  %v4438 = vld [vmem:[%s2536 + $0x18] sm:$0x3f]
  %v4439 = vld [vmem:[%s2536 + $0x20] sm:$0xff]
  %v4440 = vld [vmem:[%s2536 + $0x28] sm:$0xff]
  %v4441 = vld [vmem:[%s2536 + $0x30] sm:$0x3f]
  %v4442 = vld [vmem:[%s2536 + $0x38] sm:$0x3f]
  %v4443 = vld [vmem:[%s2536 + $0x40] sm:$0xff]
  %v4444 = vld [vmem:[%s2536 + $0x48] sm:$0xff]
  %v4445 = vld [vmem:[%s2536 + $0x50] sm:$0x3f]
  %v4446 = vld [vmem:[%s2536 + $0x58] sm:$0x3f]
  %v4447 = vld [vmem:[%s2536 + $0x60] sm:$0xff]
  %v4448 = vld [vmem:[%s2536 + $0x68] sm:$0xff]
  %v4449 = vld [vmem:[%s2536 + $0x70] sm:$0x3f]
  %v4450 = vld [vmem:[%s2536 + $0x78] sm:$0x3f]
  %v4451 = vld [vmem:[%s2536 + $0x80] sm:$0xff]
  %v4452 = vld [vmem:[%s2536 + $0x88] sm:$0xff]
  %v4453 = vld [vmem:[%s2536 + $0x90] sm:$0x3f]
  %v4454 = vld [vmem:[%s2536 + $0x98] sm:$0x3f]
  %v4455 = vmul.f32 %v4411, %v4435
  %v4456 = vmul.f32 %v4412, %v4436
  %v4457 = vmul.f32 %v4413, %v4437
  %v4458 = vmul.f32 %v4414, %v4438
  %v4459 = vmul.f32 %v4415, %v4435
  %v4460 = vmul.f32 %v4416, %v4436
  %v4461 = vmul.f32 %v4417, %v4437
  %v4462 = vmul.f32 %v4418, %v4438
  %v4463 = vadd.f32 %v4402, %v4455
  %v4464 = vadd.f32 %v4403, %v4456
  %v4465 = vadd.f32 %v4404, %v4457
  %v4466 = vadd.f32 %v4405, %v4458
  %v4467 = vadd.f32 %v4406, %v4459
  %v4468 = vadd.f32 %v4407, %v4460
  %v4469 = vadd.f32 %v4408, %v4461
  %v4470 = vadd.f32 %v4409, %v4462
  %v4471 = vmul.f32 %v4415, %v4439
  %v4472 = vmul.f32 %v4416, %v4440
  %v4473 = vmul.f32 %v4417, %v4441
  %v4474 = vmul.f32 %v4418, %v4442
  %v4475 = vmul.f32 %v4419, %v4439
  %v4476 = vmul.f32 %v4420, %v4440
  %v4477 = vmul.f32 %v4421, %v4441
  %v4478 = vmul.f32 %v4422, %v4442
  %v4479 = vadd.f32 %v4463, %v4471
  %v4480 = vadd.f32 %v4464, %v4472
  %v4481 = vadd.f32 %v4465, %v4473
  %v4482 = vadd.f32 %v4466, %v4474
  %v4483 = vadd.f32 %v4467, %v4475
  %v4484 = vadd.f32 %v4468, %v4476
  %v4485 = vadd.f32 %v4469, %v4477
  %v4486 = vadd.f32 %v4470, %v4478
  %v4487 = vmul.f32 %v4419, %v4443
  %v4488 = vmul.f32 %v4420, %v4444
  %v4489 = vmul.f32 %v4421, %v4445
  %v4490 = vmul.f32 %v4422, %v4446
  %v4491 = vmul.f32 %v4423, %v4443
  %v4492 = vmul.f32 %v4424, %v4444
  %v4493 = vmul.f32 %v4425, %v4445
  %v4494 = vmul.f32 %v4426, %v4446
  %v4495 = vadd.f32 %v4479, %v4487
  %v4496 = vadd.f32 %v4480, %v4488
  %v4497 = vadd.f32 %v4481, %v4489
  %v4498 = vadd.f32 %v4482, %v4490
  %v4499 = vadd.f32 %v4483, %v4491
  %v4500 = vadd.f32 %v4484, %v4492
  %v4501 = vadd.f32 %v4485, %v4493
  %v4502 = vadd.f32 %v4486, %v4494
  %v4503 = vmul.f32 %v4423, %v4447
  %v4504 = vmul.f32 %v4424, %v4448
  %v4505 = vmul.f32 %v4425, %v4449
  %v4506 = vmul.f32 %v4426, %v4450
  %v4507 = vmul.f32 %v4427, %v4447
  %v4508 = vmul.f32 %v4428, %v4448
  %v4509 = vmul.f32 %v4429, %v4449
  %v4510 = vmul.f32 %v4430, %v4450
  %v4511 = vadd.f32 %v4495, %v4503
  %v4512 = vadd.f32 %v4496, %v4504
  %v4513 = vadd.f32 %v4497, %v4505
  %v4514 = vadd.f32 %v4498, %v4506
  %v4515 = vadd.f32 %v4499, %v4507
  %v4516 = vadd.f32 %v4500, %v4508
  %v4517 = vadd.f32 %v4501, %v4509
  %v4518 = vadd.f32 %v4502, %v4510
  %v4519 = vmul.f32 %v4427, %v4451
  %v4520 = vmul.f32 %v4428, %v4452
  %v4521 = vmul.f32 %v4429, %v4453
  %v4522 = vmul.f32 %v4430, %v4454
  %v4523 = vmul.f32 %v4431, %v4451
  %v4524 = vmul.f32 %v4432, %v4452
  %v4525 = vmul.f32 %v4433, %v4453
  %v4526 = vmul.f32 %v4434, %v4454
  %v4527 = vadd.f32 %v4511, %v4519
  %v4528 = vadd.f32 %v4512, %v4520
  %v4529 = vadd.f32 %v4513, %v4521
  %v4530 = vadd.f32 %v4514, %v4522
  %v4531 = vadd.f32 %v4515, %v4523
  %v4532 = vadd.f32 %v4516, %v4524
  %v4533 = vadd.f32 %v4517, %v4525
  %v4534 = vadd.f32 %v4518, %v4526
  %s4535 = scalar_lea.vmem [#allocation2], 1920
  %v4536 = vld [vmem:[%s4535] sm:$0xff]
  %v4537 = vld [vmem:[%s4535 + $0x8] sm:$0xff]
  %v4538 = vld [vmem:[%s4535 + $0x10] sm:$0x3f]
  %v4539 = vld [vmem:[%s4535 + $0x18] sm:$0x3f]
  %v4540 = vld [vmem:[%s4535 + $0x20] sm:$0xff]
  %v4541 = vld [vmem:[%s4535 + $0x28] sm:$0xff]
  %v4542 = vld [vmem:[%s4535 + $0x30] sm:$0x3f]
  %v4543 = vld [vmem:[%s4535 + $0x38] sm:$0x3f]
  %v4544 = vld [vmem:[%s4535 + $0x40] sm:$0xff]
  %v4545 = vld [vmem:[%s4535 + $0x48] sm:$0xff]
  %v4546 = vld [vmem:[%s4535 + $0x50] sm:$0x3f]
  %v4547 = vld [vmem:[%s4535 + $0x58] sm:$0x3f]
  %v4548 = vld [vmem:[%s4535 + $0x60] sm:$0xff]
  %v4549 = vld [vmem:[%s4535 + $0x68] sm:$0xff]
  %v4550 = vld [vmem:[%s4535 + $0x70] sm:$0x3f]
  %v4551 = vld [vmem:[%s4535 + $0x78] sm:$0x3f]
  %v4552 = vld [vmem:[%s4535 + $0x80] sm:$0xff]
  %v4553 = vld [vmem:[%s4535 + $0x88] sm:$0xff]
  %v4554 = vld [vmem:[%s4535 + $0x90] sm:$0x3f]
  %v4555 = vld [vmem:[%s4535 + $0x98] sm:$0x3f]
  %v4556 = vld [vmem:[%s4535 + $0xa0] sm:$0xff]
  %v4557 = vld [vmem:[%s4535 + $0xa8] sm:$0xff]
  %v4558 = vld [vmem:[%s4535 + $0xb0] sm:$0x3f]
  %v4559 = vld [vmem:[%s4535 + $0xb8] sm:$0x3f]
  %v4560 = vld [vmem:[%s2662] sm:$0xff]
  %v4561 = vld [vmem:[%s2662 + $0x8] sm:$0xff]
  %v4562 = vld [vmem:[%s2662 + $0x10] sm:$0x3f]
  %v4563 = vld [vmem:[%s2662 + $0x18] sm:$0x3f]
  %v4564 = vld [vmem:[%s2662 + $0x20] sm:$0xff]
  %v4565 = vld [vmem:[%s2662 + $0x28] sm:$0xff]
  %v4566 = vld [vmem:[%s2662 + $0x30] sm:$0x3f]
  %v4567 = vld [vmem:[%s2662 + $0x38] sm:$0x3f]
  %v4568 = vld [vmem:[%s2662 + $0x40] sm:$0xff]
  %v4569 = vld [vmem:[%s2662 + $0x48] sm:$0xff]
  %v4570 = vld [vmem:[%s2662 + $0x50] sm:$0x3f]
  %v4571 = vld [vmem:[%s2662 + $0x58] sm:$0x3f]
  %v4572 = vld [vmem:[%s2662 + $0x60] sm:$0xff]
  %v4573 = vld [vmem:[%s2662 + $0x68] sm:$0xff]
  %v4574 = vld [vmem:[%s2662 + $0x70] sm:$0x3f]
  %v4575 = vld [vmem:[%s2662 + $0x78] sm:$0x3f]
  %v4576 = vld [vmem:[%s2662 + $0x80] sm:$0xff]
  %v4577 = vld [vmem:[%s2662 + $0x88] sm:$0xff]
  %v4578 = vld [vmem:[%s2662 + $0x90] sm:$0x3f]
  %v4579 = vld [vmem:[%s2662 + $0x98] sm:$0x3f]
  %v4580 = vmul.f32 %v4536, %v4560
  %v4581 = vmul.f32 %v4537, %v4561
  %v4582 = vmul.f32 %v4538, %v4562
  %v4583 = vmul.f32 %v4539, %v4563
  %v4584 = vmul.f32 %v4540, %v4560
  %v4585 = vmul.f32 %v4541, %v4561
  %v4586 = vmul.f32 %v4542, %v4562
  %v4587 = vmul.f32 %v4543, %v4563
  %v4588 = vadd.f32 %v4527, %v4580
  %v4589 = vadd.f32 %v4528, %v4581
  %v4590 = vadd.f32 %v4529, %v4582
  %v4591 = vadd.f32 %v4530, %v4583
  %v4592 = vadd.f32 %v4531, %v4584
  %v4593 = vadd.f32 %v4532, %v4585
  %v4594 = vadd.f32 %v4533, %v4586
  %v4595 = vadd.f32 %v4534, %v4587
  %v4596 = vmul.f32 %v4540, %v4564
  %v4597 = vmul.f32 %v4541, %v4565
  %v4598 = vmul.f32 %v4542, %v4566
  %v4599 = vmul.f32 %v4543, %v4567
  %v4600 = vmul.f32 %v4544, %v4564
  %v4601 = vmul.f32 %v4545, %v4565
  %v4602 = vmul.f32 %v4546, %v4566
  %v4603 = vmul.f32 %v4547, %v4567
  %v4604 = vadd.f32 %v4588, %v4596
  %v4605 = vadd.f32 %v4589, %v4597
  %v4606 = vadd.f32 %v4590, %v4598
  %v4607 = vadd.f32 %v4591, %v4599
  %v4608 = vadd.f32 %v4592, %v4600
  %v4609 = vadd.f32 %v4593, %v4601
  %v4610 = vadd.f32 %v4594, %v4602
  %v4611 = vadd.f32 %v4595, %v4603
  %v4612 = vmul.f32 %v4544, %v4568
  %v4613 = vmul.f32 %v4545, %v4569
  %v4614 = vmul.f32 %v4546, %v4570
  %v4615 = vmul.f32 %v4547, %v4571
  %v4616 = vmul.f32 %v4548, %v4568
  %v4617 = vmul.f32 %v4549, %v4569
  %v4618 = vmul.f32 %v4550, %v4570
  %v4619 = vmul.f32 %v4551, %v4571
  %v4620 = vadd.f32 %v4604, %v4612
  %v4621 = vadd.f32 %v4605, %v4613
  %v4622 = vadd.f32 %v4606, %v4614
  %v4623 = vadd.f32 %v4607, %v4615
  %v4624 = vadd.f32 %v4608, %v4616
  %v4625 = vadd.f32 %v4609, %v4617
  %v4626 = vadd.f32 %v4610, %v4618
  %v4627 = vadd.f32 %v4611, %v4619
  %v4628 = vmul.f32 %v4548, %v4572
  %v4629 = vmul.f32 %v4549, %v4573
  %v4630 = vmul.f32 %v4550, %v4574
  %v4631 = vmul.f32 %v4551, %v4575
  %v4632 = vmul.f32 %v4552, %v4572
  %v4633 = vmul.f32 %v4553, %v4573
  %v4634 = vmul.f32 %v4554, %v4574
  %v4635 = vmul.f32 %v4555, %v4575
  %v4636 = vadd.f32 %v4620, %v4628
  %v4637 = vadd.f32 %v4621, %v4629
  %v4638 = vadd.f32 %v4622, %v4630
  %v4639 = vadd.f32 %v4623, %v4631
  %v4640 = vadd.f32 %v4624, %v4632
  %v4641 = vadd.f32 %v4625, %v4633
  %v4642 = vadd.f32 %v4626, %v4634
  %v4643 = vadd.f32 %v4627, %v4635
  %v4644 = vmul.f32 %v4552, %v4576
  %v4645 = vmul.f32 %v4553, %v4577
  %v4646 = vmul.f32 %v4554, %v4578
  %v4647 = vmul.f32 %v4555, %v4579
  %v4648 = vmul.f32 %v4556, %v4576
  %v4649 = vmul.f32 %v4557, %v4577
  %v4650 = vmul.f32 %v4558, %v4578
  %v4651 = vmul.f32 %v4559, %v4579
  %v4652 = vadd.f32 %v4636, %v4644
  %v4653 = vadd.f32 %v4637, %v4645
  %v4654 = vadd.f32 %v4638, %v4646
  %v4655 = vadd.f32 %v4639, %v4647
  %v4656 = vadd.f32 %v4640, %v4648
  %v4657 = vadd.f32 %v4641, %v4649
  %v4658 = vadd.f32 %v4642, %v4650
  %v4659 = vadd.f32 %v4643, %v4651
  %s4660 = scalar_lea.vmem [#allocation2], 2496
  %v4661 = vld [vmem:[%s4660] sm:$0xff]
  %v4662 = vld [vmem:[%s4660 + $0x8] sm:$0xff]
  %v4663 = vld [vmem:[%s4660 + $0x10] sm:$0x3f]
  %v4664 = vld [vmem:[%s4660 + $0x18] sm:$0x3f]
  %v4665 = vld [vmem:[%s4660 + $0x20] sm:$0xff]
  %v4666 = vld [vmem:[%s4660 + $0x28] sm:$0xff]
  %v4667 = vld [vmem:[%s4660 + $0x30] sm:$0x3f]
  %v4668 = vld [vmem:[%s4660 + $0x38] sm:$0x3f]
  %v4669 = vld [vmem:[%s4660 + $0x40] sm:$0xff]
  %v4670 = vld [vmem:[%s4660 + $0x48] sm:$0xff]
  %v4671 = vld [vmem:[%s4660 + $0x50] sm:$0x3f]
  %v4672 = vld [vmem:[%s4660 + $0x58] sm:$0x3f]
  %v4673 = vld [vmem:[%s4660 + $0x60] sm:$0xff]
  %v4674 = vld [vmem:[%s4660 + $0x68] sm:$0xff]
  %v4675 = vld [vmem:[%s4660 + $0x70] sm:$0x3f]
  %v4676 = vld [vmem:[%s4660 + $0x78] sm:$0x3f]
  %v4677 = vld [vmem:[%s4660 + $0x80] sm:$0xff]
  %v4678 = vld [vmem:[%s4660 + $0x88] sm:$0xff]
  %v4679 = vld [vmem:[%s4660 + $0x90] sm:$0x3f]
  %v4680 = vld [vmem:[%s4660 + $0x98] sm:$0x3f]
  %v4681 = vld [vmem:[%s4660 + $0xa0] sm:$0xff]
  %v4682 = vld [vmem:[%s4660 + $0xa8] sm:$0xff]
  %v4683 = vld [vmem:[%s4660 + $0xb0] sm:$0x3f]
  %v4684 = vld [vmem:[%s4660 + $0xb8] sm:$0x3f]
  %v4685 = vld [vmem:[%s2788] sm:$0xff]
  %v4686 = vld [vmem:[%s2788 + $0x8] sm:$0xff]
  %v4687 = vld [vmem:[%s2788 + $0x10] sm:$0x3f]
  %v4688 = vld [vmem:[%s2788 + $0x18] sm:$0x3f]
  %v4689 = vld [vmem:[%s2788 + $0x20] sm:$0xff]
  %v4690 = vld [vmem:[%s2788 + $0x28] sm:$0xff]
  %v4691 = vld [vmem:[%s2788 + $0x30] sm:$0x3f]
  %v4692 = vld [vmem:[%s2788 + $0x38] sm:$0x3f]
  %v4693 = vld [vmem:[%s2788 + $0x40] sm:$0xff]
  %v4694 = vld [vmem:[%s2788 + $0x48] sm:$0xff]
  %v4695 = vld [vmem:[%s2788 + $0x50] sm:$0x3f]
  %v4696 = vld [vmem:[%s2788 + $0x58] sm:$0x3f]
  %v4697 = vld [vmem:[%s2788 + $0x60] sm:$0xff]
  %v4698 = vld [vmem:[%s2788 + $0x68] sm:$0xff]
  %v4699 = vld [vmem:[%s2788 + $0x70] sm:$0x3f]
  %v4700 = vld [vmem:[%s2788 + $0x78] sm:$0x3f]
  %v4701 = vld [vmem:[%s2788 + $0x80] sm:$0xff]
  %v4702 = vld [vmem:[%s2788 + $0x88] sm:$0xff]
  %v4703 = vld [vmem:[%s2788 + $0x90] sm:$0x3f]
  %v4704 = vld [vmem:[%s2788 + $0x98] sm:$0x3f]
  %v4705 = vmul.f32 %v4661, %v4685
  %v4706 = vmul.f32 %v4662, %v4686
  %v4707 = vmul.f32 %v4663, %v4687
  %v4708 = vmul.f32 %v4664, %v4688
  %v4709 = vmul.f32 %v4665, %v4685
  %v4710 = vmul.f32 %v4666, %v4686
  %v4711 = vmul.f32 %v4667, %v4687
  %v4712 = vmul.f32 %v4668, %v4688
  %v4713 = vadd.f32 %v4652, %v4705
  %v4714 = vadd.f32 %v4653, %v4706
  %v4715 = vadd.f32 %v4654, %v4707
  %v4716 = vadd.f32 %v4655, %v4708
  %v4717 = vadd.f32 %v4656, %v4709
  %v4718 = vadd.f32 %v4657, %v4710
  %v4719 = vadd.f32 %v4658, %v4711
  %v4720 = vadd.f32 %v4659, %v4712
  %v4721 = vmul.f32 %v4665, %v4689
  %v4722 = vmul.f32 %v4666, %v4690
  %v4723 = vmul.f32 %v4667, %v4691
  %v4724 = vmul.f32 %v4668, %v4692
  %v4725 = vmul.f32 %v4669, %v4689
  %v4726 = vmul.f32 %v4670, %v4690
  %v4727 = vmul.f32 %v4671, %v4691
  %v4728 = vmul.f32 %v4672, %v4692
  %v4729 = vadd.f32 %v4713, %v4721
  %v4730 = vadd.f32 %v4714, %v4722
  %v4731 = vadd.f32 %v4715, %v4723
  %v4732 = vadd.f32 %v4716, %v4724
  %v4733 = vadd.f32 %v4717, %v4725
  %v4734 = vadd.f32 %v4718, %v4726
  %v4735 = vadd.f32 %v4719, %v4727
  %v4736 = vadd.f32 %v4720, %v4728
  %v4737 = vmul.f32 %v4669, %v4693
  %v4738 = vmul.f32 %v4670, %v4694
  %v4739 = vmul.f32 %v4671, %v4695
  %v4740 = vmul.f32 %v4672, %v4696
  %v4741 = vmul.f32 %v4673, %v4693
  %v4742 = vmul.f32 %v4674, %v4694
  %v4743 = vmul.f32 %v4675, %v4695
  %v4744 = vmul.f32 %v4676, %v4696
  %v4745 = vadd.f32 %v4729, %v4737
  %v4746 = vadd.f32 %v4730, %v4738
  %v4747 = vadd.f32 %v4731, %v4739
  %v4748 = vadd.f32 %v4732, %v4740
  %v4749 = vadd.f32 %v4733, %v4741
  %v4750 = vadd.f32 %v4734, %v4742
  %v4751 = vadd.f32 %v4735, %v4743
  %v4752 = vadd.f32 %v4736, %v4744
  %v4753 = vmul.f32 %v4673, %v4697
  %v4754 = vmul.f32 %v4674, %v4698
  %v4755 = vmul.f32 %v4675, %v4699
  %v4756 = vmul.f32 %v4676, %v4700
  %v4757 = vmul.f32 %v4677, %v4697
  %v4758 = vmul.f32 %v4678, %v4698
  %v4759 = vmul.f32 %v4679, %v4699
  %v4760 = vmul.f32 %v4680, %v4700
  %v4761 = vadd.f32 %v4745, %v4753
  %v4762 = vadd.f32 %v4746, %v4754
  %v4763 = vadd.f32 %v4747, %v4755
  %v4764 = vadd.f32 %v4748, %v4756
  %v4765 = vadd.f32 %v4749, %v4757
  %v4766 = vadd.f32 %v4750, %v4758
  %v4767 = vadd.f32 %v4751, %v4759
  %v4768 = vadd.f32 %v4752, %v4760
  %v4769 = vmul.f32 %v4677, %v4701
  %v4770 = vmul.f32 %v4678, %v4702
  %v4771 = vmul.f32 %v4679, %v4703
  %v4772 = vmul.f32 %v4680, %v4704
  %v4773 = vmul.f32 %v4681, %v4701
  %v4774 = vmul.f32 %v4682, %v4702
  %v4775 = vmul.f32 %v4683, %v4703
  %v4776 = vmul.f32 %v4684, %v4704
  %v4777 = vadd.f32 %v4761, %v4769
  %v4778 = vadd.f32 %v4762, %v4770
  %v4779 = vadd.f32 %v4763, %v4771
  %v4780 = vadd.f32 %v4764, %v4772
  %v4781 = vadd.f32 %v4765, %v4773
  %v4782 = vadd.f32 %v4766, %v4774
  %v4783 = vadd.f32 %v4767, %v4775
  %v4784 = vadd.f32 %v4768, %v4776
  %s4785 = scalar_lea.vmem %s2, 192
  %4786 = vst [vmem:[%s4785] sm:$0xff] %v4777
  %4787 = vst.msk [vmem:[%s4785 + $0x8] sm:$0xff] %vm443, %v4778
  %4788 = vst [vmem:[%s4785 + $0x10] sm:$0x3f] %v4779
  %4789 = vst.msk [vmem:[%s4785 + $0x18] sm:$0x3f] %vm446, %v4780
  %4790 = vst [vmem:[%s4785 + $0x20] sm:$0xff] %v4781
  %4791 = vst.msk [vmem:[%s4785 + $0x28] sm:$0xff] %vm443, %v4782
  %4792 = vst [vmem:[%s4785 + $0x30] sm:$0x3f] %v4783
  %4793 = vst.msk [vmem:[%s4785 + $0x38] sm:$0x3f] %vm446, %v4784
  %s4794 = scalar_lea.vmem [#allocation2], 256
  %v4795 = vld [vmem:[%s4794] sm:$0xff]
  %v4796 = vld [vmem:[%s4794 + $0x8] sm:$0xff]
  %v4797 = vld [vmem:[%s4794 + $0x10] sm:$0x3f]
  %v4798 = vld [vmem:[%s4794 + $0x18] sm:$0x3f]
  %v4799 = vld [vmem:[%s4794 + $0x20] sm:$0xff]
  %v4800 = vld [vmem:[%s4794 + $0x28] sm:$0xff]
  %v4801 = vld [vmem:[%s4794 + $0x30] sm:$0x3f]
  %v4802 = vld [vmem:[%s4794 + $0x38] sm:$0x3f]
  %v4803 = vld [vmem:[%s4794 + $0x40] sm:$0xff]
  %v4804 = vld [vmem:[%s4794 + $0x48] sm:$0xff]
  %v4805 = vld [vmem:[%s4794 + $0x50] sm:$0x3f]
  %v4806 = vld [vmem:[%s4794 + $0x58] sm:$0x3f]
  %v4807 = vld [vmem:[%s4794 + $0x60] sm:$0xff]
  %v4808 = vld [vmem:[%s4794 + $0x68] sm:$0xff]
  %v4809 = vld [vmem:[%s4794 + $0x70] sm:$0x3f]
  %v4810 = vld [vmem:[%s4794 + $0x78] sm:$0x3f]
  %v4811 = vld [vmem:[%s4794 + $0x80] sm:$0xff]
  %v4812 = vld [vmem:[%s4794 + $0x88] sm:$0xff]
  %v4813 = vld [vmem:[%s4794 + $0x90] sm:$0x3f]
  %v4814 = vld [vmem:[%s4794 + $0x98] sm:$0x3f]
  %v4815 = vld [vmem:[%s4794 + $0xa0] sm:$0xff]
  %v4816 = vld [vmem:[%s4794 + $0xa8] sm:$0xff]
  %v4817 = vld [vmem:[%s4794 + $0xb0] sm:$0x3f]
  %v4818 = vld [vmem:[%s4794 + $0xb8] sm:$0x3f]
  %v4819 = vld [vmem:[#allocation3] sm:$0xff]
  %v4820 = vld [vmem:[#allocation3 + $0x8] sm:$0xff]
  %v4821 = vld [vmem:[#allocation3 + $0x10] sm:$0x3f]
  %v4822 = vld [vmem:[#allocation3 + $0x18] sm:$0x3f]
  %v4823 = vld [vmem:[#allocation3 + $0x20] sm:$0xff]
  %v4824 = vld [vmem:[#allocation3 + $0x28] sm:$0xff]
  %v4825 = vld [vmem:[#allocation3 + $0x30] sm:$0x3f]
  %v4826 = vld [vmem:[#allocation3 + $0x38] sm:$0x3f]
  %v4827 = vld [vmem:[#allocation3 + $0x40] sm:$0xff]
  %v4828 = vld [vmem:[#allocation3 + $0x48] sm:$0xff]
  %v4829 = vld [vmem:[#allocation3 + $0x50] sm:$0x3f]
  %v4830 = vld [vmem:[#allocation3 + $0x58] sm:$0x3f]
  %v4831 = vld [vmem:[#allocation3 + $0x60] sm:$0xff]
  %v4832 = vld [vmem:[#allocation3 + $0x68] sm:$0xff]
  %v4833 = vld [vmem:[#allocation3 + $0x70] sm:$0x3f]
  %v4834 = vld [vmem:[#allocation3 + $0x78] sm:$0x3f]
  %v4835 = vld [vmem:[#allocation3 + $0x80] sm:$0xff]
  %v4836 = vld [vmem:[#allocation3 + $0x88] sm:$0xff]
  %v4837 = vld [vmem:[#allocation3 + $0x90] sm:$0x3f]
  %v4838 = vld [vmem:[#allocation3 + $0x98] sm:$0x3f]
  %v4839 = vmul.f32 %v4795, %v4819
  %v4840 = vmul.f32 %v4796, %v4820
  %v4841 = vmul.f32 %v4797, %v4821
  %v4842 = vmul.f32 %v4798, %v4822
  %v4843 = vmul.f32 %v4799, %v4819
  %v4844 = vmul.f32 %v4800, %v4820
  %v4845 = vmul.f32 %v4801, %v4821
  %v4846 = vmul.f32 %v4802, %v4822
  %v4847 = vadd.f32 %v4839, 0.0
  %v4848 = vadd.f32 %v4840, 0.0
  %v4849 = vadd.f32 %v4841, 0.0
  %v4850 = vadd.f32 %v4842, 0.0
  %v4851 = vadd.f32 %v4843, 0.0
  %v4852 = vadd.f32 %v4844, 0.0
  %v4853 = vadd.f32 %v4845, 0.0
  %v4854 = vadd.f32 %v4846, 0.0
  %v4855 = vmul.f32 %v4799, %v4823
  %v4856 = vmul.f32 %v4800, %v4824
  %v4857 = vmul.f32 %v4801, %v4825
  %v4858 = vmul.f32 %v4802, %v4826
  %v4859 = vmul.f32 %v4803, %v4823
  %v4860 = vmul.f32 %v4804, %v4824
  %v4861 = vmul.f32 %v4805, %v4825
  %v4862 = vmul.f32 %v4806, %v4826
  %v4863 = vadd.f32 %v4847, %v4855
  %v4864 = vadd.f32 %v4848, %v4856
  %v4865 = vadd.f32 %v4849, %v4857
  %v4866 = vadd.f32 %v4850, %v4858
  %v4867 = vadd.f32 %v4851, %v4859
  %v4868 = vadd.f32 %v4852, %v4860
  %v4869 = vadd.f32 %v4853, %v4861
  %v4870 = vadd.f32 %v4854, %v4862
  %v4871 = vmul.f32 %v4803, %v4827
  %v4872 = vmul.f32 %v4804, %v4828
  %v4873 = vmul.f32 %v4805, %v4829
  %v4874 = vmul.f32 %v4806, %v4830
  %v4875 = vmul.f32 %v4807, %v4827
  %v4876 = vmul.f32 %v4808, %v4828
  %v4877 = vmul.f32 %v4809, %v4829
  %v4878 = vmul.f32 %v4810, %v4830
  %v4879 = vadd.f32 %v4863, %v4871
  %v4880 = vadd.f32 %v4864, %v4872
  %v4881 = vadd.f32 %v4865, %v4873
  %v4882 = vadd.f32 %v4866, %v4874
  %v4883 = vadd.f32 %v4867, %v4875
  %v4884 = vadd.f32 %v4868, %v4876
  %v4885 = vadd.f32 %v4869, %v4877
  %v4886 = vadd.f32 %v4870, %v4878
  %v4887 = vmul.f32 %v4807, %v4831
  %v4888 = vmul.f32 %v4808, %v4832
  %v4889 = vmul.f32 %v4809, %v4833
  %v4890 = vmul.f32 %v4810, %v4834
  %v4891 = vmul.f32 %v4811, %v4831
  %v4892 = vmul.f32 %v4812, %v4832
  %v4893 = vmul.f32 %v4813, %v4833
  %v4894 = vmul.f32 %v4814, %v4834
  %v4895 = vadd.f32 %v4879, %v4887
  %v4896 = vadd.f32 %v4880, %v4888
  %v4897 = vadd.f32 %v4881, %v4889
  %v4898 = vadd.f32 %v4882, %v4890
  %v4899 = vadd.f32 %v4883, %v4891
  %v4900 = vadd.f32 %v4884, %v4892
  %v4901 = vadd.f32 %v4885, %v4893
  %v4902 = vadd.f32 %v4886, %v4894
  %v4903 = vmul.f32 %v4811, %v4835
  %v4904 = vmul.f32 %v4812, %v4836
  %v4905 = vmul.f32 %v4813, %v4837
  %v4906 = vmul.f32 %v4814, %v4838
  %v4907 = vmul.f32 %v4815, %v4835
  %v4908 = vmul.f32 %v4816, %v4836
  %v4909 = vmul.f32 %v4817, %v4837
  %v4910 = vmul.f32 %v4818, %v4838
  %v4911 = vadd.f32 %v4895, %v4903
  %v4912 = vadd.f32 %v4896, %v4904
  %v4913 = vadd.f32 %v4897, %v4905
  %v4914 = vadd.f32 %v4898, %v4906
  %v4915 = vadd.f32 %v4899, %v4907
  %v4916 = vadd.f32 %v4900, %v4908
  %v4917 = vadd.f32 %v4901, %v4909
  %v4918 = vadd.f32 %v4902, %v4910
  %s4919 = scalar_lea.vmem [#allocation2], 832
  %v4920 = vld [vmem:[%s4919] sm:$0xff]
  %v4921 = vld [vmem:[%s4919 + $0x8] sm:$0xff]
  %v4922 = vld [vmem:[%s4919 + $0x10] sm:$0x3f]
  %v4923 = vld [vmem:[%s4919 + $0x18] sm:$0x3f]
  %v4924 = vld [vmem:[%s4919 + $0x20] sm:$0xff]
  %v4925 = vld [vmem:[%s4919 + $0x28] sm:$0xff]
  %v4926 = vld [vmem:[%s4919 + $0x30] sm:$0x3f]
  %v4927 = vld [vmem:[%s4919 + $0x38] sm:$0x3f]
  %v4928 = vld [vmem:[%s4919 + $0x40] sm:$0xff]
  %v4929 = vld [vmem:[%s4919 + $0x48] sm:$0xff]
  %v4930 = vld [vmem:[%s4919 + $0x50] sm:$0x3f]
  %v4931 = vld [vmem:[%s4919 + $0x58] sm:$0x3f]
  %v4932 = vld [vmem:[%s4919 + $0x60] sm:$0xff]
  %v4933 = vld [vmem:[%s4919 + $0x68] sm:$0xff]
  %v4934 = vld [vmem:[%s4919 + $0x70] sm:$0x3f]
  %v4935 = vld [vmem:[%s4919 + $0x78] sm:$0x3f]
  %v4936 = vld [vmem:[%s4919 + $0x80] sm:$0xff]
  %v4937 = vld [vmem:[%s4919 + $0x88] sm:$0xff]
  %v4938 = vld [vmem:[%s4919 + $0x90] sm:$0x3f]
  %v4939 = vld [vmem:[%s4919 + $0x98] sm:$0x3f]
  %v4940 = vld [vmem:[%s4919 + $0xa0] sm:$0xff]
  %v4941 = vld [vmem:[%s4919 + $0xa8] sm:$0xff]
  %v4942 = vld [vmem:[%s4919 + $0xb0] sm:$0x3f]
  %v4943 = vld [vmem:[%s4919 + $0xb8] sm:$0x3f]
  %v4944 = vld [vmem:[%s2410] sm:$0xff]
  %v4945 = vld [vmem:[%s2410 + $0x8] sm:$0xff]
  %v4946 = vld [vmem:[%s2410 + $0x10] sm:$0x3f]
  %v4947 = vld [vmem:[%s2410 + $0x18] sm:$0x3f]
  %v4948 = vld [vmem:[%s2410 + $0x20] sm:$0xff]
  %v4949 = vld [vmem:[%s2410 + $0x28] sm:$0xff]
  %v4950 = vld [vmem:[%s2410 + $0x30] sm:$0x3f]
  %v4951 = vld [vmem:[%s2410 + $0x38] sm:$0x3f]
  %v4952 = vld [vmem:[%s2410 + $0x40] sm:$0xff]
  %v4953 = vld [vmem:[%s2410 + $0x48] sm:$0xff]
  %v4954 = vld [vmem:[%s2410 + $0x50] sm:$0x3f]
  %v4955 = vld [vmem:[%s2410 + $0x58] sm:$0x3f]
  %v4956 = vld [vmem:[%s2410 + $0x60] sm:$0xff]
  %v4957 = vld [vmem:[%s2410 + $0x68] sm:$0xff]
  %v4958 = vld [vmem:[%s2410 + $0x70] sm:$0x3f]
  %v4959 = vld [vmem:[%s2410 + $0x78] sm:$0x3f]
  %v4960 = vld [vmem:[%s2410 + $0x80] sm:$0xff]
  %v4961 = vld [vmem:[%s2410 + $0x88] sm:$0xff]
  %v4962 = vld [vmem:[%s2410 + $0x90] sm:$0x3f]
  %v4963 = vld [vmem:[%s2410 + $0x98] sm:$0x3f]
  %v4964 = vmul.f32 %v4920, %v4944
  %v4965 = vmul.f32 %v4921, %v4945
  %v4966 = vmul.f32 %v4922, %v4946
  %v4967 = vmul.f32 %v4923, %v4947
  %v4968 = vmul.f32 %v4924, %v4944
  %v4969 = vmul.f32 %v4925, %v4945
  %v4970 = vmul.f32 %v4926, %v4946
  %v4971 = vmul.f32 %v4927, %v4947
  %v4972 = vadd.f32 %v4911, %v4964
  %v4973 = vadd.f32 %v4912, %v4965
  %v4974 = vadd.f32 %v4913, %v4966
  %v4975 = vadd.f32 %v4914, %v4967
  %v4976 = vadd.f32 %v4915, %v4968
  %v4977 = vadd.f32 %v4916, %v4969
  %v4978 = vadd.f32 %v4917, %v4970
  %v4979 = vadd.f32 %v4918, %v4971
  %v4980 = vmul.f32 %v4924, %v4948
  %v4981 = vmul.f32 %v4925, %v4949
  %v4982 = vmul.f32 %v4926, %v4950
  %v4983 = vmul.f32 %v4927, %v4951
  %v4984 = vmul.f32 %v4928, %v4948
  %v4985 = vmul.f32 %v4929, %v4949
  %v4986 = vmul.f32 %v4930, %v4950
  %v4987 = vmul.f32 %v4931, %v4951
  %v4988 = vadd.f32 %v4972, %v4980
  %v4989 = vadd.f32 %v4973, %v4981
  %v4990 = vadd.f32 %v4974, %v4982
  %v4991 = vadd.f32 %v4975, %v4983
  %v4992 = vadd.f32 %v4976, %v4984
  %v4993 = vadd.f32 %v4977, %v4985
  %v4994 = vadd.f32 %v4978, %v4986
  %v4995 = vadd.f32 %v4979, %v4987
  %v4996 = vmul.f32 %v4928, %v4952
  %v4997 = vmul.f32 %v4929, %v4953
  %v4998 = vmul.f32 %v4930, %v4954
  %v4999 = vmul.f32 %v4931, %v4955
  %v5000 = vmul.f32 %v4932, %v4952
  %v5001 = vmul.f32 %v4933, %v4953
  %v5002 = vmul.f32 %v4934, %v4954
  %v5003 = vmul.f32 %v4935, %v4955
  %v5004 = vadd.f32 %v4988, %v4996
  %v5005 = vadd.f32 %v4989, %v4997
  %v5006 = vadd.f32 %v4990, %v4998
  %v5007 = vadd.f32 %v4991, %v4999
  %v5008 = vadd.f32 %v4992, %v5000
  %v5009 = vadd.f32 %v4993, %v5001
  %v5010 = vadd.f32 %v4994, %v5002
  %v5011 = vadd.f32 %v4995, %v5003
  %v5012 = vmul.f32 %v4932, %v4956
  %v5013 = vmul.f32 %v4933, %v4957
  %v5014 = vmul.f32 %v4934, %v4958
  %v5015 = vmul.f32 %v4935, %v4959
  %v5016 = vmul.f32 %v4936, %v4956
  %v5017 = vmul.f32 %v4937, %v4957
  %v5018 = vmul.f32 %v4938, %v4958
  %v5019 = vmul.f32 %v4939, %v4959
  %v5020 = vadd.f32 %v5004, %v5012
  %v5021 = vadd.f32 %v5005, %v5013
  %v5022 = vadd.f32 %v5006, %v5014
  %v5023 = vadd.f32 %v5007, %v5015
  %v5024 = vadd.f32 %v5008, %v5016
  %v5025 = vadd.f32 %v5009, %v5017
  %v5026 = vadd.f32 %v5010, %v5018
  %v5027 = vadd.f32 %v5011, %v5019
  %v5028 = vmul.f32 %v4936, %v4960
  %v5029 = vmul.f32 %v4937, %v4961
  %v5030 = vmul.f32 %v4938, %v4962
  %v5031 = vmul.f32 %v4939, %v4963
  %v5032 = vmul.f32 %v4940, %v4960
  %v5033 = vmul.f32 %v4941, %v4961
  %v5034 = vmul.f32 %v4942, %v4962
  %v5035 = vmul.f32 %v4943, %v4963
  %v5036 = vadd.f32 %v5020, %v5028
  %v5037 = vadd.f32 %v5021, %v5029
  %v5038 = vadd.f32 %v5022, %v5030
  %v5039 = vadd.f32 %v5023, %v5031
  %v5040 = vadd.f32 %v5024, %v5032
  %v5041 = vadd.f32 %v5025, %v5033
  %v5042 = vadd.f32 %v5026, %v5034
  %v5043 = vadd.f32 %v5027, %v5035
  %s5044 = scalar_lea.vmem [#allocation2], 1408
  %v5045 = vld [vmem:[%s5044] sm:$0xff]
  %v5046 = vld [vmem:[%s5044 + $0x8] sm:$0xff]
  %v5047 = vld [vmem:[%s5044 + $0x10] sm:$0x3f]
  %v5048 = vld [vmem:[%s5044 + $0x18] sm:$0x3f]
  %v5049 = vld [vmem:[%s5044 + $0x20] sm:$0xff]
  %v5050 = vld [vmem:[%s5044 + $0x28] sm:$0xff]
  %v5051 = vld [vmem:[%s5044 + $0x30] sm:$0x3f]
  %v5052 = vld [vmem:[%s5044 + $0x38] sm:$0x3f]
  %v5053 = vld [vmem:[%s5044 + $0x40] sm:$0xff]
  %v5054 = vld [vmem:[%s5044 + $0x48] sm:$0xff]
  %v5055 = vld [vmem:[%s5044 + $0x50] sm:$0x3f]
  %v5056 = vld [vmem:[%s5044 + $0x58] sm:$0x3f]
  %v5057 = vld [vmem:[%s5044 + $0x60] sm:$0xff]
  %v5058 = vld [vmem:[%s5044 + $0x68] sm:$0xff]
  %v5059 = vld [vmem:[%s5044 + $0x70] sm:$0x3f]
  %v5060 = vld [vmem:[%s5044 + $0x78] sm:$0x3f]
  %v5061 = vld [vmem:[%s5044 + $0x80] sm:$0xff]
  %v5062 = vld [vmem:[%s5044 + $0x88] sm:$0xff]
  %v5063 = vld [vmem:[%s5044 + $0x90] sm:$0x3f]
  %v5064 = vld [vmem:[%s5044 + $0x98] sm:$0x3f]
  %v5065 = vld [vmem:[%s5044 + $0xa0] sm:$0xff]
  %v5066 = vld [vmem:[%s5044 + $0xa8] sm:$0xff]
  %v5067 = vld [vmem:[%s5044 + $0xb0] sm:$0x3f]
  %v5068 = vld [vmem:[%s5044 + $0xb8] sm:$0x3f]
  %v5069 = vld [vmem:[%s2536] sm:$0xff]
  %v5070 = vld [vmem:[%s2536 + $0x8] sm:$0xff]
  %v5071 = vld [vmem:[%s2536 + $0x10] sm:$0x3f]
  %v5072 = vld [vmem:[%s2536 + $0x18] sm:$0x3f]
  %v5073 = vld [vmem:[%s2536 + $0x20] sm:$0xff]
  %v5074 = vld [vmem:[%s2536 + $0x28] sm:$0xff]
  %v5075 = vld [vmem:[%s2536 + $0x30] sm:$0x3f]
  %v5076 = vld [vmem:[%s2536 + $0x38] sm:$0x3f]
  %v5077 = vld [vmem:[%s2536 + $0x40] sm:$0xff]
  %v5078 = vld [vmem:[%s2536 + $0x48] sm:$0xff]
  %v5079 = vld [vmem:[%s2536 + $0x50] sm:$0x3f]
  %v5080 = vld [vmem:[%s2536 + $0x58] sm:$0x3f]
  %v5081 = vld [vmem:[%s2536 + $0x60] sm:$0xff]
  %v5082 = vld [vmem:[%s2536 + $0x68] sm:$0xff]
  %v5083 = vld [vmem:[%s2536 + $0x70] sm:$0x3f]
  %v5084 = vld [vmem:[%s2536 + $0x78] sm:$0x3f]
  %v5085 = vld [vmem:[%s2536 + $0x80] sm:$0xff]
  %v5086 = vld [vmem:[%s2536 + $0x88] sm:$0xff]
  %v5087 = vld [vmem:[%s2536 + $0x90] sm:$0x3f]
  %v5088 = vld [vmem:[%s2536 + $0x98] sm:$0x3f]
  %v5089 = vmul.f32 %v5045, %v5069
  %v5090 = vmul.f32 %v5046, %v5070
  %v5091 = vmul.f32 %v5047, %v5071
  %v5092 = vmul.f32 %v5048, %v5072
  %v5093 = vmul.f32 %v5049, %v5069
  %v5094 = vmul.f32 %v5050, %v5070
  %v5095 = vmul.f32 %v5051, %v5071
  %v5096 = vmul.f32 %v5052, %v5072
  %v5097 = vadd.f32 %v5036, %v5089
  %v5098 = vadd.f32 %v5037, %v5090
  %v5099 = vadd.f32 %v5038, %v5091
  %v5100 = vadd.f32 %v5039, %v5092
  %v5101 = vadd.f32 %v5040, %v5093
  %v5102 = vadd.f32 %v5041, %v5094
  %v5103 = vadd.f32 %v5042, %v5095
  %v5104 = vadd.f32 %v5043, %v5096
  %v5105 = vmul.f32 %v5049, %v5073
  %v5106 = vmul.f32 %v5050, %v5074
  %v5107 = vmul.f32 %v5051, %v5075
  %v5108 = vmul.f32 %v5052, %v5076
  %v5109 = vmul.f32 %v5053, %v5073
  %v5110 = vmul.f32 %v5054, %v5074
  %v5111 = vmul.f32 %v5055, %v5075
  %v5112 = vmul.f32 %v5056, %v5076
  %v5113 = vadd.f32 %v5097, %v5105
  %v5114 = vadd.f32 %v5098, %v5106
  %v5115 = vadd.f32 %v5099, %v5107
  %v5116 = vadd.f32 %v5100, %v5108
  %v5117 = vadd.f32 %v5101, %v5109
  %v5118 = vadd.f32 %v5102, %v5110
  %v5119 = vadd.f32 %v5103, %v5111
  %v5120 = vadd.f32 %v5104, %v5112
  %v5121 = vmul.f32 %v5053, %v5077
  %v5122 = vmul.f32 %v5054, %v5078
  %v5123 = vmul.f32 %v5055, %v5079
  %v5124 = vmul.f32 %v5056, %v5080
  %v5125 = vmul.f32 %v5057, %v5077
  %v5126 = vmul.f32 %v5058, %v5078
  %v5127 = vmul.f32 %v5059, %v5079
  %v5128 = vmul.f32 %v5060, %v5080
  %v5129 = vadd.f32 %v5113, %v5121
  %v5130 = vadd.f32 %v5114, %v5122
  %v5131 = vadd.f32 %v5115, %v5123
  %v5132 = vadd.f32 %v5116, %v5124
  %v5133 = vadd.f32 %v5117, %v5125
  %v5134 = vadd.f32 %v5118, %v5126
  %v5135 = vadd.f32 %v5119, %v5127
  %v5136 = vadd.f32 %v5120, %v5128
  %v5137 = vmul.f32 %v5057, %v5081
  %v5138 = vmul.f32 %v5058, %v5082
  %v5139 = vmul.f32 %v5059, %v5083
  %v5140 = vmul.f32 %v5060, %v5084
  %v5141 = vmul.f32 %v5061, %v5081
  %v5142 = vmul.f32 %v5062, %v5082
  %v5143 = vmul.f32 %v5063, %v5083
  %v5144 = vmul.f32 %v5064, %v5084
  %v5145 = vadd.f32 %v5129, %v5137
  %v5146 = vadd.f32 %v5130, %v5138
  %v5147 = vadd.f32 %v5131, %v5139
  %v5148 = vadd.f32 %v5132, %v5140
  %v5149 = vadd.f32 %v5133, %v5141
  %v5150 = vadd.f32 %v5134, %v5142
  %v5151 = vadd.f32 %v5135, %v5143
  %v5152 = vadd.f32 %v5136, %v5144
  %v5153 = vmul.f32 %v5061, %v5085
  %v5154 = vmul.f32 %v5062, %v5086
  %v5155 = vmul.f32 %v5063, %v5087
  %v5156 = vmul.f32 %v5064, %v5088
  %v5157 = vmul.f32 %v5065, %v5085
  %v5158 = vmul.f32 %v5066, %v5086
  %v5159 = vmul.f32 %v5067, %v5087
  %v5160 = vmul.f32 %v5068, %v5088
  %v5161 = vadd.f32 %v5145, %v5153
  %v5162 = vadd.f32 %v5146, %v5154
  %v5163 = vadd.f32 %v5147, %v5155
  %v5164 = vadd.f32 %v5148, %v5156
  %v5165 = vadd.f32 %v5149, %v5157
  %v5166 = vadd.f32 %v5150, %v5158
  %v5167 = vadd.f32 %v5151, %v5159
  %v5168 = vadd.f32 %v5152, %v5160
  %s5169 = scalar_lea.vmem [#allocation2], 1984
  %v5170 = vld [vmem:[%s5169] sm:$0xff]
  %v5171 = vld [vmem:[%s5169 + $0x8] sm:$0xff]
  %v5172 = vld [vmem:[%s5169 + $0x10] sm:$0x3f]
  %v5173 = vld [vmem:[%s5169 + $0x18] sm:$0x3f]
  %v5174 = vld [vmem:[%s5169 + $0x20] sm:$0xff]
  %v5175 = vld [vmem:[%s5169 + $0x28] sm:$0xff]
  %v5176 = vld [vmem:[%s5169 + $0x30] sm:$0x3f]
  %v5177 = vld [vmem:[%s5169 + $0x38] sm:$0x3f]
  %v5178 = vld [vmem:[%s5169 + $0x40] sm:$0xff]
  %v5179 = vld [vmem:[%s5169 + $0x48] sm:$0xff]
  %v5180 = vld [vmem:[%s5169 + $0x50] sm:$0x3f]
  %v5181 = vld [vmem:[%s5169 + $0x58] sm:$0x3f]
  %v5182 = vld [vmem:[%s5169 + $0x60] sm:$0xff]
  %v5183 = vld [vmem:[%s5169 + $0x68] sm:$0xff]
  %v5184 = vld [vmem:[%s5169 + $0x70] sm:$0x3f]
  %v5185 = vld [vmem:[%s5169 + $0x78] sm:$0x3f]
  %v5186 = vld [vmem:[%s5169 + $0x80] sm:$0xff]
  %v5187 = vld [vmem:[%s5169 + $0x88] sm:$0xff]
  %v5188 = vld [vmem:[%s5169 + $0x90] sm:$0x3f]
  %v5189 = vld [vmem:[%s5169 + $0x98] sm:$0x3f]
  %v5190 = vld [vmem:[%s5169 + $0xa0] sm:$0xff]
  %v5191 = vld [vmem:[%s5169 + $0xa8] sm:$0xff]
  %v5192 = vld [vmem:[%s5169 + $0xb0] sm:$0x3f]
  %v5193 = vld [vmem:[%s5169 + $0xb8] sm:$0x3f]
  %v5194 = vld [vmem:[%s2662] sm:$0xff]
  %v5195 = vld [vmem:[%s2662 + $0x8] sm:$0xff]
  %v5196 = vld [vmem:[%s2662 + $0x10] sm:$0x3f]
  %v5197 = vld [vmem:[%s2662 + $0x18] sm:$0x3f]
  %v5198 = vld [vmem:[%s2662 + $0x20] sm:$0xff]
  %v5199 = vld [vmem:[%s2662 + $0x28] sm:$0xff]
  %v5200 = vld [vmem:[%s2662 + $0x30] sm:$0x3f]
  %v5201 = vld [vmem:[%s2662 + $0x38] sm:$0x3f]
  %v5202 = vld [vmem:[%s2662 + $0x40] sm:$0xff]
  %v5203 = vld [vmem:[%s2662 + $0x48] sm:$0xff]
  %v5204 = vld [vmem:[%s2662 + $0x50] sm:$0x3f]
  %v5205 = vld [vmem:[%s2662 + $0x58] sm:$0x3f]
  %v5206 = vld [vmem:[%s2662 + $0x60] sm:$0xff]
  %v5207 = vld [vmem:[%s2662 + $0x68] sm:$0xff]
  %v5208 = vld [vmem:[%s2662 + $0x70] sm:$0x3f]
  %v5209 = vld [vmem:[%s2662 + $0x78] sm:$0x3f]
  %v5210 = vld [vmem:[%s2662 + $0x80] sm:$0xff]
  %v5211 = vld [vmem:[%s2662 + $0x88] sm:$0xff]
  %v5212 = vld [vmem:[%s2662 + $0x90] sm:$0x3f]
  %v5213 = vld [vmem:[%s2662 + $0x98] sm:$0x3f]
  %v5214 = vmul.f32 %v5170, %v5194
  %v5215 = vmul.f32 %v5171, %v5195
  %v5216 = vmul.f32 %v5172, %v5196
  %v5217 = vmul.f32 %v5173, %v5197
  %v5218 = vmul.f32 %v5174, %v5194
  %v5219 = vmul.f32 %v5175, %v5195
  %v5220 = vmul.f32 %v5176, %v5196
  %v5221 = vmul.f32 %v5177, %v5197
  %v5222 = vadd.f32 %v5161, %v5214
  %v5223 = vadd.f32 %v5162, %v5215
  %v5224 = vadd.f32 %v5163, %v5216
  %v5225 = vadd.f32 %v5164, %v5217
  %v5226 = vadd.f32 %v5165, %v5218
  %v5227 = vadd.f32 %v5166, %v5219
  %v5228 = vadd.f32 %v5167, %v5220
  %v5229 = vadd.f32 %v5168, %v5221
  %v5230 = vmul.f32 %v5174, %v5198
  %v5231 = vmul.f32 %v5175, %v5199
  %v5232 = vmul.f32 %v5176, %v5200
  %v5233 = vmul.f32 %v5177, %v5201
  %v5234 = vmul.f32 %v5178, %v5198
  %v5235 = vmul.f32 %v5179, %v5199
  %v5236 = vmul.f32 %v5180, %v5200
  %v5237 = vmul.f32 %v5181, %v5201
  %v5238 = vadd.f32 %v5222, %v5230
  %v5239 = vadd.f32 %v5223, %v5231
  %v5240 = vadd.f32 %v5224, %v5232
  %v5241 = vadd.f32 %v5225, %v5233
  %v5242 = vadd.f32 %v5226, %v5234
  %v5243 = vadd.f32 %v5227, %v5235
  %v5244 = vadd.f32 %v5228, %v5236
  %v5245 = vadd.f32 %v5229, %v5237
  %v5246 = vmul.f32 %v5178, %v5202
  %v5247 = vmul.f32 %v5179, %v5203
  %v5248 = vmul.f32 %v5180, %v5204
  %v5249 = vmul.f32 %v5181, %v5205
  %v5250 = vmul.f32 %v5182, %v5202
  %v5251 = vmul.f32 %v5183, %v5203
  %v5252 = vmul.f32 %v5184, %v5204
  %v5253 = vmul.f32 %v5185, %v5205
  %v5254 = vadd.f32 %v5238, %v5246
  %v5255 = vadd.f32 %v5239, %v5247
  %v5256 = vadd.f32 %v5240, %v5248
  %v5257 = vadd.f32 %v5241, %v5249
  %v5258 = vadd.f32 %v5242, %v5250
  %v5259 = vadd.f32 %v5243, %v5251
  %v5260 = vadd.f32 %v5244, %v5252
  %v5261 = vadd.f32 %v5245, %v5253
  %v5262 = vmul.f32 %v5182, %v5206
  %v5263 = vmul.f32 %v5183, %v5207
  %v5264 = vmul.f32 %v5184, %v5208
  %v5265 = vmul.f32 %v5185, %v5209
  %v5266 = vmul.f32 %v5186, %v5206
  %v5267 = vmul.f32 %v5187, %v5207
  %v5268 = vmul.f32 %v5188, %v5208
  %v5269 = vmul.f32 %v5189, %v5209
  %v5270 = vadd.f32 %v5254, %v5262
  %v5271 = vadd.f32 %v5255, %v5263
  %v5272 = vadd.f32 %v5256, %v5264
  %v5273 = vadd.f32 %v5257, %v5265
  %v5274 = vadd.f32 %v5258, %v5266
  %v5275 = vadd.f32 %v5259, %v5267
  %v5276 = vadd.f32 %v5260, %v5268
  %v5277 = vadd.f32 %v5261, %v5269
  %v5278 = vmul.f32 %v5186, %v5210
  %v5279 = vmul.f32 %v5187, %v5211
  %v5280 = vmul.f32 %v5188, %v5212
  %v5281 = vmul.f32 %v5189, %v5213
  %v5282 = vmul.f32 %v5190, %v5210
  %v5283 = vmul.f32 %v5191, %v5211
  %v5284 = vmul.f32 %v5192, %v5212
  %v5285 = vmul.f32 %v5193, %v5213
  %v5286 = vadd.f32 %v5270, %v5278
  %v5287 = vadd.f32 %v5271, %v5279
  %v5288 = vadd.f32 %v5272, %v5280
  %v5289 = vadd.f32 %v5273, %v5281
  %v5290 = vadd.f32 %v5274, %v5282
  %v5291 = vadd.f32 %v5275, %v5283
  %v5292 = vadd.f32 %v5276, %v5284
  %v5293 = vadd.f32 %v5277, %v5285
  %s5294 = scalar_lea.vmem [#allocation2], 2560
  %v5295 = vld [vmem:[%s5294] sm:$0xff]
  %v5296 = vld [vmem:[%s5294 + $0x8] sm:$0xff]
  %v5297 = vld [vmem:[%s5294 + $0x10] sm:$0x3f]
  %v5298 = vld [vmem:[%s5294 + $0x18] sm:$0x3f]
  %v5299 = vld [vmem:[%s5294 + $0x20] sm:$0xff]
  %v5300 = vld [vmem:[%s5294 + $0x28] sm:$0xff]
  %v5301 = vld [vmem:[%s5294 + $0x30] sm:$0x3f]
  %v5302 = vld [vmem:[%s5294 + $0x38] sm:$0x3f]
  %v5303 = vld [vmem:[%s5294 + $0x40] sm:$0xff]
  %v5304 = vld [vmem:[%s5294 + $0x48] sm:$0xff]
  %v5305 = vld [vmem:[%s5294 + $0x50] sm:$0x3f]
  %v5306 = vld [vmem:[%s5294 + $0x58] sm:$0x3f]
  %v5307 = vld [vmem:[%s5294 + $0x60] sm:$0xff]
  %v5308 = vld [vmem:[%s5294 + $0x68] sm:$0xff]
  %v5309 = vld [vmem:[%s5294 + $0x70] sm:$0x3f]
  %v5310 = vld [vmem:[%s5294 + $0x78] sm:$0x3f]
  %v5311 = vld [vmem:[%s5294 + $0x80] sm:$0xff]
  %v5312 = vld [vmem:[%s5294 + $0x88] sm:$0xff]
  %v5313 = vld [vmem:[%s5294 + $0x90] sm:$0x3f]
  %v5314 = vld [vmem:[%s5294 + $0x98] sm:$0x3f]
  %v5315 = vld [vmem:[%s5294 + $0xa0] sm:$0xff]
  %v5316 = vld [vmem:[%s5294 + $0xa8] sm:$0xff]
  %v5317 = vld [vmem:[%s5294 + $0xb0] sm:$0x3f]
  %v5318 = vld [vmem:[%s5294 + $0xb8] sm:$0x3f]
  %v5319 = vld [vmem:[%s2788] sm:$0xff]
  %v5320 = vld [vmem:[%s2788 + $0x8] sm:$0xff]
  %v5321 = vld [vmem:[%s2788 + $0x10] sm:$0x3f]
  %v5322 = vld [vmem:[%s2788 + $0x18] sm:$0x3f]
  %v5323 = vld [vmem:[%s2788 + $0x20] sm:$0xff]
  %v5324 = vld [vmem:[%s2788 + $0x28] sm:$0xff]
  %v5325 = vld [vmem:[%s2788 + $0x30] sm:$0x3f]
  %v5326 = vld [vmem:[%s2788 + $0x38] sm:$0x3f]
  %v5327 = vld [vmem:[%s2788 + $0x40] sm:$0xff]
  %v5328 = vld [vmem:[%s2788 + $0x48] sm:$0xff]
  %v5329 = vld [vmem:[%s2788 + $0x50] sm:$0x3f]
  %v5330 = vld [vmem:[%s2788 + $0x58] sm:$0x3f]
  %v5331 = vld [vmem:[%s2788 + $0x60] sm:$0xff]
  %v5332 = vld [vmem:[%s2788 + $0x68] sm:$0xff]
  %v5333 = vld [vmem:[%s2788 + $0x70] sm:$0x3f]
  %v5334 = vld [vmem:[%s2788 + $0x78] sm:$0x3f]
  %v5335 = vld [vmem:[%s2788 + $0x80] sm:$0xff]
  %v5336 = vld [vmem:[%s2788 + $0x88] sm:$0xff]
  %v5337 = vld [vmem:[%s2788 + $0x90] sm:$0x3f]
  %v5338 = vld [vmem:[%s2788 + $0x98] sm:$0x3f]
  %v5339 = vmul.f32 %v5295, %v5319
  %v5340 = vmul.f32 %v5296, %v5320
  %v5341 = vmul.f32 %v5297, %v5321
  %v5342 = vmul.f32 %v5298, %v5322
  %v5343 = vmul.f32 %v5299, %v5319
  %v5344 = vmul.f32 %v5300, %v5320
  %v5345 = vmul.f32 %v5301, %v5321
  %v5346 = vmul.f32 %v5302, %v5322
  %v5347 = vadd.f32 %v5286, %v5339
  %v5348 = vadd.f32 %v5287, %v5340
  %v5349 = vadd.f32 %v5288, %v5341
  %v5350 = vadd.f32 %v5289, %v5342
  %v5351 = vadd.f32 %v5290, %v5343
  %v5352 = vadd.f32 %v5291, %v5344
  %v5353 = vadd.f32 %v5292, %v5345
  %v5354 = vadd.f32 %v5293, %v5346
  %v5355 = vmul.f32 %v5299, %v5323
  %v5356 = vmul.f32 %v5300, %v5324
  %v5357 = vmul.f32 %v5301, %v5325
  %v5358 = vmul.f32 %v5302, %v5326
  %v5359 = vmul.f32 %v5303, %v5323
  %v5360 = vmul.f32 %v5304, %v5324
  %v5361 = vmul.f32 %v5305, %v5325
  %v5362 = vmul.f32 %v5306, %v5326
  %v5363 = vadd.f32 %v5347, %v5355
  %v5364 = vadd.f32 %v5348, %v5356
  %v5365 = vadd.f32 %v5349, %v5357
  %v5366 = vadd.f32 %v5350, %v5358
  %v5367 = vadd.f32 %v5351, %v5359
  %v5368 = vadd.f32 %v5352, %v5360
  %v5369 = vadd.f32 %v5353, %v5361
  %v5370 = vadd.f32 %v5354, %v5362
  %v5371 = vmul.f32 %v5303, %v5327
  %v5372 = vmul.f32 %v5304, %v5328
  %v5373 = vmul.f32 %v5305, %v5329
  %v5374 = vmul.f32 %v5306, %v5330
  %v5375 = vmul.f32 %v5307, %v5327
  %v5376 = vmul.f32 %v5308, %v5328
  %v5377 = vmul.f32 %v5309, %v5329
  %v5378 = vmul.f32 %v5310, %v5330
  %v5379 = vadd.f32 %v5363, %v5371
  %v5380 = vadd.f32 %v5364, %v5372
  %v5381 = vadd.f32 %v5365, %v5373
  %v5382 = vadd.f32 %v5366, %v5374
  %v5383 = vadd.f32 %v5367, %v5375
  %v5384 = vadd.f32 %v5368, %v5376
  %v5385 = vadd.f32 %v5369, %v5377
  %v5386 = vadd.f32 %v5370, %v5378
  %v5387 = vmul.f32 %v5307, %v5331
  %v5388 = vmul.f32 %v5308, %v5332
  %v5389 = vmul.f32 %v5309, %v5333
  %v5390 = vmul.f32 %v5310, %v5334
  %v5391 = vmul.f32 %v5311, %v5331
  %v5392 = vmul.f32 %v5312, %v5332
  %v5393 = vmul.f32 %v5313, %v5333
  %v5394 = vmul.f32 %v5314, %v5334
  %v5395 = vadd.f32 %v5379, %v5387
  %v5396 = vadd.f32 %v5380, %v5388
  %v5397 = vadd.f32 %v5381, %v5389
  %v5398 = vadd.f32 %v5382, %v5390
  %v5399 = vadd.f32 %v5383, %v5391
  %v5400 = vadd.f32 %v5384, %v5392
  %v5401 = vadd.f32 %v5385, %v5393
  %v5402 = vadd.f32 %v5386, %v5394
  %v5403 = vmul.f32 %v5311, %v5335
  %v5404 = vmul.f32 %v5312, %v5336
  %v5405 = vmul.f32 %v5313, %v5337
  %v5406 = vmul.f32 %v5314, %v5338
  %v5407 = vmul.f32 %v5315, %v5335
  %v5408 = vmul.f32 %v5316, %v5336
  %v5409 = vmul.f32 %v5317, %v5337
  %v5410 = vmul.f32 %v5318, %v5338
  %v5411 = vadd.f32 %v5395, %v5403
  %v5412 = vadd.f32 %v5396, %v5404
  %v5413 = vadd.f32 %v5397, %v5405
  %v5414 = vadd.f32 %v5398, %v5406
  %v5415 = vadd.f32 %v5399, %v5407
  %v5416 = vadd.f32 %v5400, %v5408
  %v5417 = vadd.f32 %v5401, %v5409
  %v5418 = vadd.f32 %v5402, %v5410
  %s5419 = scalar_lea.vmem %s2, 256
  %5420 = vst [vmem:[%s5419] sm:$0xff] %v5411
  %5421 = vst.msk [vmem:[%s5419 + $0x8] sm:$0xff] %vm443, %v5412
  %5422 = vst [vmem:[%s5419 + $0x10] sm:$0x3f] %v5413
  %5423 = vst.msk [vmem:[%s5419 + $0x18] sm:$0x3f] %vm446, %v5414
  %5424 = vst [vmem:[%s5419 + $0x20] sm:$0xff] %v5415
  %5425 = vst.msk [vmem:[%s5419 + $0x28] sm:$0xff] %vm443, %v5416
  %5426 = vst [vmem:[%s5419 + $0x30] sm:$0x3f] %v5417
  %5427 = vst.msk [vmem:[%s5419 + $0x38] sm:$0x3f] %vm446, %v5418
  %s5428 = scalar_lea.vmem [#allocation2], 320
  %v5429 = vld [vmem:[%s5428] sm:$0xff]
  %v5430 = vld [vmem:[%s5428 + $0x8] sm:$0xff]
  %v5431 = vld [vmem:[%s5428 + $0x10] sm:$0x3f]
  %v5432 = vld [vmem:[%s5428 + $0x18] sm:$0x3f]
  %v5433 = vld [vmem:[%s5428 + $0x20] sm:$0xff]
  %v5434 = vld [vmem:[%s5428 + $0x28] sm:$0xff]
  %v5435 = vld [vmem:[%s5428 + $0x30] sm:$0x3f]
  %v5436 = vld [vmem:[%s5428 + $0x38] sm:$0x3f]
  %v5437 = vld [vmem:[%s5428 + $0x40] sm:$0xff]
  %v5438 = vld [vmem:[%s5428 + $0x48] sm:$0xff]
  %v5439 = vld [vmem:[%s5428 + $0x50] sm:$0x3f]
  %v5440 = vld [vmem:[%s5428 + $0x58] sm:$0x3f]
  %v5441 = vld [vmem:[%s5428 + $0x60] sm:$0xff]
  %v5442 = vld [vmem:[%s5428 + $0x68] sm:$0xff]
  %v5443 = vld [vmem:[%s5428 + $0x70] sm:$0x3f]
  %v5444 = vld [vmem:[%s5428 + $0x78] sm:$0x3f]
  %v5445 = vld [vmem:[%s5428 + $0x80] sm:$0xff]
  %v5446 = vld [vmem:[%s5428 + $0x88] sm:$0xff]
  %v5447 = vld [vmem:[%s5428 + $0x90] sm:$0x3f]
  %v5448 = vld [vmem:[%s5428 + $0x98] sm:$0x3f]
  %v5449 = vld [vmem:[%s5428 + $0xa0] sm:$0xff]
  %v5450 = vld [vmem:[%s5428 + $0xa8] sm:$0xff]
  %v5451 = vld [vmem:[%s5428 + $0xb0] sm:$0x3f]
  %v5452 = vld [vmem:[%s5428 + $0xb8] sm:$0x3f]
  %v5453 = vld [vmem:[#allocation3] sm:$0xff]
  %v5454 = vld [vmem:[#allocation3 + $0x8] sm:$0xff]
  %v5455 = vld [vmem:[#allocation3 + $0x10] sm:$0x3f]
  %v5456 = vld [vmem:[#allocation3 + $0x18] sm:$0x3f]
  %v5457 = vld [vmem:[#allocation3 + $0x20] sm:$0xff]
  %v5458 = vld [vmem:[#allocation3 + $0x28] sm:$0xff]
  %v5459 = vld [vmem:[#allocation3 + $0x30] sm:$0x3f]
  %v5460 = vld [vmem:[#allocation3 + $0x38] sm:$0x3f]
  %v5461 = vld [vmem:[#allocation3 + $0x40] sm:$0xff]
  %v5462 = vld [vmem:[#allocation3 + $0x48] sm:$0xff]
  %v5463 = vld [vmem:[#allocation3 + $0x50] sm:$0x3f]
  %v5464 = vld [vmem:[#allocation3 + $0x58] sm:$0x3f]
  %v5465 = vld [vmem:[#allocation3 + $0x60] sm:$0xff]
  %v5466 = vld [vmem:[#allocation3 + $0x68] sm:$0xff]
  %v5467 = vld [vmem:[#allocation3 + $0x70] sm:$0x3f]
  %v5468 = vld [vmem:[#allocation3 + $0x78] sm:$0x3f]
  %v5469 = vld [vmem:[#allocation3 + $0x80] sm:$0xff]
  %v5470 = vld [vmem:[#allocation3 + $0x88] sm:$0xff]
  %v5471 = vld [vmem:[#allocation3 + $0x90] sm:$0x3f]
  %v5472 = vld [vmem:[#allocation3 + $0x98] sm:$0x3f]
  %v5473 = vmul.f32 %v5429, %v5453
  %v5474 = vmul.f32 %v5430, %v5454
  %v5475 = vmul.f32 %v5431, %v5455
  %v5476 = vmul.f32 %v5432, %v5456
  %v5477 = vmul.f32 %v5433, %v5453
  %v5478 = vmul.f32 %v5434, %v5454
  %v5479 = vmul.f32 %v5435, %v5455
  %v5480 = vmul.f32 %v5436, %v5456
  %v5481 = vadd.f32 %v5473, 0.0
  %v5482 = vadd.f32 %v5474, 0.0
  %v5483 = vadd.f32 %v5475, 0.0
  %v5484 = vadd.f32 %v5476, 0.0
  %v5485 = vadd.f32 %v5477, 0.0
  %v5486 = vadd.f32 %v5478, 0.0
  %v5487 = vadd.f32 %v5479, 0.0
  %v5488 = vadd.f32 %v5480, 0.0
  %v5489 = vmul.f32 %v5433, %v5457
  %v5490 = vmul.f32 %v5434, %v5458
  %v5491 = vmul.f32 %v5435, %v5459
  %v5492 = vmul.f32 %v5436, %v5460
  %v5493 = vmul.f32 %v5437, %v5457
  %v5494 = vmul.f32 %v5438, %v5458
  %v5495 = vmul.f32 %v5439, %v5459
  %v5496 = vmul.f32 %v5440, %v5460
  %v5497 = vadd.f32 %v5481, %v5489
  %v5498 = vadd.f32 %v5482, %v5490
  %v5499 = vadd.f32 %v5483, %v5491
  %v5500 = vadd.f32 %v5484, %v5492
  %v5501 = vadd.f32 %v5485, %v5493
  %v5502 = vadd.f32 %v5486, %v5494
  %v5503 = vadd.f32 %v5487, %v5495
  %v5504 = vadd.f32 %v5488, %v5496
  %v5505 = vmul.f32 %v5437, %v5461
  %v5506 = vmul.f32 %v5438, %v5462
  %v5507 = vmul.f32 %v5439, %v5463
  %v5508 = vmul.f32 %v5440, %v5464
  %v5509 = vmul.f32 %v5441, %v5461
  %v5510 = vmul.f32 %v5442, %v5462
  %v5511 = vmul.f32 %v5443, %v5463
  %v5512 = vmul.f32 %v5444, %v5464
  %v5513 = vadd.f32 %v5497, %v5505
  %v5514 = vadd.f32 %v5498, %v5506
  %v5515 = vadd.f32 %v5499, %v5507
  %v5516 = vadd.f32 %v5500, %v5508
  %v5517 = vadd.f32 %v5501, %v5509
  %v5518 = vadd.f32 %v5502, %v5510
  %v5519 = vadd.f32 %v5503, %v5511
  %v5520 = vadd.f32 %v5504, %v5512
  %v5521 = vmul.f32 %v5441, %v5465
  %v5522 = vmul.f32 %v5442, %v5466
  %v5523 = vmul.f32 %v5443, %v5467
  %v5524 = vmul.f32 %v5444, %v5468
  %v5525 = vmul.f32 %v5445, %v5465
  %v5526 = vmul.f32 %v5446, %v5466
  %v5527 = vmul.f32 %v5447, %v5467
  %v5528 = vmul.f32 %v5448, %v5468
  %v5529 = vadd.f32 %v5513, %v5521
  %v5530 = vadd.f32 %v5514, %v5522
  %v5531 = vadd.f32 %v5515, %v5523
  %v5532 = vadd.f32 %v5516, %v5524
  %v5533 = vadd.f32 %v5517, %v5525
  %v5534 = vadd.f32 %v5518, %v5526
  %v5535 = vadd.f32 %v5519, %v5527
  %v5536 = vadd.f32 %v5520, %v5528
  %v5537 = vmul.f32 %v5445, %v5469
  %v5538 = vmul.f32 %v5446, %v5470
  %v5539 = vmul.f32 %v5447, %v5471
  %v5540 = vmul.f32 %v5448, %v5472
  %v5541 = vmul.f32 %v5449, %v5469
  %v5542 = vmul.f32 %v5450, %v5470
  %v5543 = vmul.f32 %v5451, %v5471
  %v5544 = vmul.f32 %v5452, %v5472
  %v5545 = vadd.f32 %v5529, %v5537
  %v5546 = vadd.f32 %v5530, %v5538
  %v5547 = vadd.f32 %v5531, %v5539
  %v5548 = vadd.f32 %v5532, %v5540
  %v5549 = vadd.f32 %v5533, %v5541
  %v5550 = vadd.f32 %v5534, %v5542
  %v5551 = vadd.f32 %v5535, %v5543
  %v5552 = vadd.f32 %v5536, %v5544
  %s5553 = scalar_lea.vmem [#allocation2], 896
  %v5554 = vld [vmem:[%s5553] sm:$0xff]
  %v5555 = vld [vmem:[%s5553 + $0x8] sm:$0xff]
  %v5556 = vld [vmem:[%s5553 + $0x10] sm:$0x3f]
  %v5557 = vld [vmem:[%s5553 + $0x18] sm:$0x3f]
  %v5558 = vld [vmem:[%s5553 + $0x20] sm:$0xff]
  %v5559 = vld [vmem:[%s5553 + $0x28] sm:$0xff]
  %v5560 = vld [vmem:[%s5553 + $0x30] sm:$0x3f]
  %v5561 = vld [vmem:[%s5553 + $0x38] sm:$0x3f]
  %v5562 = vld [vmem:[%s5553 + $0x40] sm:$0xff]
  %v5563 = vld [vmem:[%s5553 + $0x48] sm:$0xff]
  %v5564 = vld [vmem:[%s5553 + $0x50] sm:$0x3f]
  %v5565 = vld [vmem:[%s5553 + $0x58] sm:$0x3f]
  %v5566 = vld [vmem:[%s5553 + $0x60] sm:$0xff]
  %v5567 = vld [vmem:[%s5553 + $0x68] sm:$0xff]
  %v5568 = vld [vmem:[%s5553 + $0x70] sm:$0x3f]
  %v5569 = vld [vmem:[%s5553 + $0x78] sm:$0x3f]
  %v5570 = vld [vmem:[%s5553 + $0x80] sm:$0xff]
  %v5571 = vld [vmem:[%s5553 + $0x88] sm:$0xff]
  %v5572 = vld [vmem:[%s5553 + $0x90] sm:$0x3f]
  %v5573 = vld [vmem:[%s5553 + $0x98] sm:$0x3f]
  %v5574 = vld [vmem:[%s5553 + $0xa0] sm:$0xff]
  %v5575 = vld [vmem:[%s5553 + $0xa8] sm:$0xff]
  %v5576 = vld [vmem:[%s5553 + $0xb0] sm:$0x3f]
  %v5577 = vld [vmem:[%s5553 + $0xb8] sm:$0x3f]
  %v5578 = vld [vmem:[%s2410] sm:$0xff]
  %v5579 = vld [vmem:[%s2410 + $0x8] sm:$0xff]
  %v5580 = vld [vmem:[%s2410 + $0x10] sm:$0x3f]
  %v5581 = vld [vmem:[%s2410 + $0x18] sm:$0x3f]
  %v5582 = vld [vmem:[%s2410 + $0x20] sm:$0xff]
  %v5583 = vld [vmem:[%s2410 + $0x28] sm:$0xff]
  %v5584 = vld [vmem:[%s2410 + $0x30] sm:$0x3f]
  %v5585 = vld [vmem:[%s2410 + $0x38] sm:$0x3f]
  %v5586 = vld [vmem:[%s2410 + $0x40] sm:$0xff]
  %v5587 = vld [vmem:[%s2410 + $0x48] sm:$0xff]
  %v5588 = vld [vmem:[%s2410 + $0x50] sm:$0x3f]
  %v5589 = vld [vmem:[%s2410 + $0x58] sm:$0x3f]
  %v5590 = vld [vmem:[%s2410 + $0x60] sm:$0xff]
  %v5591 = vld [vmem:[%s2410 + $0x68] sm:$0xff]
  %v5592 = vld [vmem:[%s2410 + $0x70] sm:$0x3f]
  %v5593 = vld [vmem:[%s2410 + $0x78] sm:$0x3f]
  %v5594 = vld [vmem:[%s2410 + $0x80] sm:$0xff]
  %v5595 = vld [vmem:[%s2410 + $0x88] sm:$0xff]
  %v5596 = vld [vmem:[%s2410 + $0x90] sm:$0x3f]
  %v5597 = vld [vmem:[%s2410 + $0x98] sm:$0x3f]
  %v5598 = vmul.f32 %v5554, %v5578
  %v5599 = vmul.f32 %v5555, %v5579
  %v5600 = vmul.f32 %v5556, %v5580
  %v5601 = vmul.f32 %v5557, %v5581
  %v5602 = vmul.f32 %v5558, %v5578
  %v5603 = vmul.f32 %v5559, %v5579
  %v5604 = vmul.f32 %v5560, %v5580
  %v5605 = vmul.f32 %v5561, %v5581
  %v5606 = vadd.f32 %v5545, %v5598
  %v5607 = vadd.f32 %v5546, %v5599
  %v5608 = vadd.f32 %v5547, %v5600
  %v5609 = vadd.f32 %v5548, %v5601
  %v5610 = vadd.f32 %v5549, %v5602
  %v5611 = vadd.f32 %v5550, %v5603
  %v5612 = vadd.f32 %v5551, %v5604
  %v5613 = vadd.f32 %v5552, %v5605
  %v5614 = vmul.f32 %v5558, %v5582
  %v5615 = vmul.f32 %v5559, %v5583
  %v5616 = vmul.f32 %v5560, %v5584
  %v5617 = vmul.f32 %v5561, %v5585
  %v5618 = vmul.f32 %v5562, %v5582
  %v5619 = vmul.f32 %v5563, %v5583
  %v5620 = vmul.f32 %v5564, %v5584
  %v5621 = vmul.f32 %v5565, %v5585
  %v5622 = vadd.f32 %v5606, %v5614
  %v5623 = vadd.f32 %v5607, %v5615
  %v5624 = vadd.f32 %v5608, %v5616
  %v5625 = vadd.f32 %v5609, %v5617
  %v5626 = vadd.f32 %v5610, %v5618
  %v5627 = vadd.f32 %v5611, %v5619
  %v5628 = vadd.f32 %v5612, %v5620
  %v5629 = vadd.f32 %v5613, %v5621
  %v5630 = vmul.f32 %v5562, %v5586
  %v5631 = vmul.f32 %v5563, %v5587
  %v5632 = vmul.f32 %v5564, %v5588
  %v5633 = vmul.f32 %v5565, %v5589
  %v5634 = vmul.f32 %v5566, %v5586
  %v5635 = vmul.f32 %v5567, %v5587
  %v5636 = vmul.f32 %v5568, %v5588
  %v5637 = vmul.f32 %v5569, %v5589
  %v5638 = vadd.f32 %v5622, %v5630
  %v5639 = vadd.f32 %v5623, %v5631
  %v5640 = vadd.f32 %v5624, %v5632
  %v5641 = vadd.f32 %v5625, %v5633
  %v5642 = vadd.f32 %v5626, %v5634
  %v5643 = vadd.f32 %v5627, %v5635
  %v5644 = vadd.f32 %v5628, %v5636
  %v5645 = vadd.f32 %v5629, %v5637
  %v5646 = vmul.f32 %v5566, %v5590
  %v5647 = vmul.f32 %v5567, %v5591
  %v5648 = vmul.f32 %v5568, %v5592
  %v5649 = vmul.f32 %v5569, %v5593
  %v5650 = vmul.f32 %v5570, %v5590
  %v5651 = vmul.f32 %v5571, %v5591
  %v5652 = vmul.f32 %v5572, %v5592
  %v5653 = vmul.f32 %v5573, %v5593
  %v5654 = vadd.f32 %v5638, %v5646
  %v5655 = vadd.f32 %v5639, %v5647
  %v5656 = vadd.f32 %v5640, %v5648
  %v5657 = vadd.f32 %v5641, %v5649
  %v5658 = vadd.f32 %v5642, %v5650
  %v5659 = vadd.f32 %v5643, %v5651
  %v5660 = vadd.f32 %v5644, %v5652
  %v5661 = vadd.f32 %v5645, %v5653
  %v5662 = vmul.f32 %v5570, %v5594
  %v5663 = vmul.f32 %v5571, %v5595
  %v5664 = vmul.f32 %v5572, %v5596
  %v5665 = vmul.f32 %v5573, %v5597
  %v5666 = vmul.f32 %v5574, %v5594
  %v5667 = vmul.f32 %v5575, %v5595
  %v5668 = vmul.f32 %v5576, %v5596
  %v5669 = vmul.f32 %v5577, %v5597
  %v5670 = vadd.f32 %v5654, %v5662
  %v5671 = vadd.f32 %v5655, %v5663
  %v5672 = vadd.f32 %v5656, %v5664
  %v5673 = vadd.f32 %v5657, %v5665
  %v5674 = vadd.f32 %v5658, %v5666
  %v5675 = vadd.f32 %v5659, %v5667
  %v5676 = vadd.f32 %v5660, %v5668
  %v5677 = vadd.f32 %v5661, %v5669
  %s5678 = scalar_lea.vmem [#allocation2], 1472
  %v5679 = vld [vmem:[%s5678] sm:$0xff]
  %v5680 = vld [vmem:[%s5678 + $0x8] sm:$0xff]
  %v5681 = vld [vmem:[%s5678 + $0x10] sm:$0x3f]
  %v5682 = vld [vmem:[%s5678 + $0x18] sm:$0x3f]
  %v5683 = vld [vmem:[%s5678 + $0x20] sm:$0xff]
  %v5684 = vld [vmem:[%s5678 + $0x28] sm:$0xff]
  %v5685 = vld [vmem:[%s5678 + $0x30] sm:$0x3f]
  %v5686 = vld [vmem:[%s5678 + $0x38] sm:$0x3f]
  %v5687 = vld [vmem:[%s5678 + $0x40] sm:$0xff]
  %v5688 = vld [vmem:[%s5678 + $0x48] sm:$0xff]
  %v5689 = vld [vmem:[%s5678 + $0x50] sm:$0x3f]
  %v5690 = vld [vmem:[%s5678 + $0x58] sm:$0x3f]
  %v5691 = vld [vmem:[%s5678 + $0x60] sm:$0xff]
  %v5692 = vld [vmem:[%s5678 + $0x68] sm:$0xff]
  %v5693 = vld [vmem:[%s5678 + $0x70] sm:$0x3f]
  %v5694 = vld [vmem:[%s5678 + $0x78] sm:$0x3f]
  %v5695 = vld [vmem:[%s5678 + $0x80] sm:$0xff]
  %v5696 = vld [vmem:[%s5678 + $0x88] sm:$0xff]
  %v5697 = vld [vmem:[%s5678 + $0x90] sm:$0x3f]
  %v5698 = vld [vmem:[%s5678 + $0x98] sm:$0x3f]
  %v5699 = vld [vmem:[%s5678 + $0xa0] sm:$0xff]
  %v5700 = vld [vmem:[%s5678 + $0xa8] sm:$0xff]
  %v5701 = vld [vmem:[%s5678 + $0xb0] sm:$0x3f]
  %v5702 = vld [vmem:[%s5678 + $0xb8] sm:$0x3f]
  %v5703 = vld [vmem:[%s2536] sm:$0xff]
  %v5704 = vld [vmem:[%s2536 + $0x8] sm:$0xff]
  %v5705 = vld [vmem:[%s2536 + $0x10] sm:$0x3f]
  %v5706 = vld [vmem:[%s2536 + $0x18] sm:$0x3f]
  %v5707 = vld [vmem:[%s2536 + $0x20] sm:$0xff]
  %v5708 = vld [vmem:[%s2536 + $0x28] sm:$0xff]
  %v5709 = vld [vmem:[%s2536 + $0x30] sm:$0x3f]
  %v5710 = vld [vmem:[%s2536 + $0x38] sm:$0x3f]
  %v5711 = vld [vmem:[%s2536 + $0x40] sm:$0xff]
  %v5712 = vld [vmem:[%s2536 + $0x48] sm:$0xff]
  %v5713 = vld [vmem:[%s2536 + $0x50] sm:$0x3f]
  %v5714 = vld [vmem:[%s2536 + $0x58] sm:$0x3f]
  %v5715 = vld [vmem:[%s2536 + $0x60] sm:$0xff]
  %v5716 = vld [vmem:[%s2536 + $0x68] sm:$0xff]
  %v5717 = vld [vmem:[%s2536 + $0x70] sm:$0x3f]
  %v5718 = vld [vmem:[%s2536 + $0x78] sm:$0x3f]
  %v5719 = vld [vmem:[%s2536 + $0x80] sm:$0xff]
  %v5720 = vld [vmem:[%s2536 + $0x88] sm:$0xff]
  %v5721 = vld [vmem:[%s2536 + $0x90] sm:$0x3f]
  %v5722 = vld [vmem:[%s2536 + $0x98] sm:$0x3f]
  %v5723 = vmul.f32 %v5679, %v5703
  %v5724 = vmul.f32 %v5680, %v5704
  %v5725 = vmul.f32 %v5681, %v5705
  %v5726 = vmul.f32 %v5682, %v5706
  %v5727 = vmul.f32 %v5683, %v5703
  %v5728 = vmul.f32 %v5684, %v5704
  %v5729 = vmul.f32 %v5685, %v5705
  %v5730 = vmul.f32 %v5686, %v5706
  %v5731 = vadd.f32 %v5670, %v5723
  %v5732 = vadd.f32 %v5671, %v5724
  %v5733 = vadd.f32 %v5672, %v5725
  %v5734 = vadd.f32 %v5673, %v5726
  %v5735 = vadd.f32 %v5674, %v5727
  %v5736 = vadd.f32 %v5675, %v5728
  %v5737 = vadd.f32 %v5676, %v5729
  %v5738 = vadd.f32 %v5677, %v5730
  %v5739 = vmul.f32 %v5683, %v5707
  %v5740 = vmul.f32 %v5684, %v5708
  %v5741 = vmul.f32 %v5685, %v5709
  %v5742 = vmul.f32 %v5686, %v5710
  %v5743 = vmul.f32 %v5687, %v5707
  %v5744 = vmul.f32 %v5688, %v5708
  %v5745 = vmul.f32 %v5689, %v5709
  %v5746 = vmul.f32 %v5690, %v5710
  %v5747 = vadd.f32 %v5731, %v5739
  %v5748 = vadd.f32 %v5732, %v5740
  %v5749 = vadd.f32 %v5733, %v5741
  %v5750 = vadd.f32 %v5734, %v5742
  %v5751 = vadd.f32 %v5735, %v5743
  %v5752 = vadd.f32 %v5736, %v5744
  %v5753 = vadd.f32 %v5737, %v5745
  %v5754 = vadd.f32 %v5738, %v5746
  %v5755 = vmul.f32 %v5687, %v5711
  %v5756 = vmul.f32 %v5688, %v5712
  %v5757 = vmul.f32 %v5689, %v5713
  %v5758 = vmul.f32 %v5690, %v5714
  %v5759 = vmul.f32 %v5691, %v5711
  %v5760 = vmul.f32 %v5692, %v5712
  %v5761 = vmul.f32 %v5693, %v5713
  %v5762 = vmul.f32 %v5694, %v5714
  %v5763 = vadd.f32 %v5747, %v5755
  %v5764 = vadd.f32 %v5748, %v5756
  %v5765 = vadd.f32 %v5749, %v5757
  %v5766 = vadd.f32 %v5750, %v5758
  %v5767 = vadd.f32 %v5751, %v5759
  %v5768 = vadd.f32 %v5752, %v5760
  %v5769 = vadd.f32 %v5753, %v5761
  %v5770 = vadd.f32 %v5754, %v5762
  %v5771 = vmul.f32 %v5691, %v5715
  %v5772 = vmul.f32 %v5692, %v5716
  %v5773 = vmul.f32 %v5693, %v5717
  %v5774 = vmul.f32 %v5694, %v5718
  %v5775 = vmul.f32 %v5695, %v5715
  %v5776 = vmul.f32 %v5696, %v5716
  %v5777 = vmul.f32 %v5697, %v5717
  %v5778 = vmul.f32 %v5698, %v5718
  %v5779 = vadd.f32 %v5763, %v5771
  %v5780 = vadd.f32 %v5764, %v5772
  %v5781 = vadd.f32 %v5765, %v5773
  %v5782 = vadd.f32 %v5766, %v5774
  %v5783 = vadd.f32 %v5767, %v5775
  %v5784 = vadd.f32 %v5768, %v5776
  %v5785 = vadd.f32 %v5769, %v5777
  %v5786 = vadd.f32 %v5770, %v5778
  %v5787 = vmul.f32 %v5695, %v5719
  %v5788 = vmul.f32 %v5696, %v5720
  %v5789 = vmul.f32 %v5697, %v5721
  %v5790 = vmul.f32 %v5698, %v5722
  %v5791 = vmul.f32 %v5699, %v5719
  %v5792 = vmul.f32 %v5700, %v5720
  %v5793 = vmul.f32 %v5701, %v5721
  %v5794 = vmul.f32 %v5702, %v5722
  %v5795 = vadd.f32 %v5779, %v5787
  %v5796 = vadd.f32 %v5780, %v5788
  %v5797 = vadd.f32 %v5781, %v5789
  %v5798 = vadd.f32 %v5782, %v5790
  %v5799 = vadd.f32 %v5783, %v5791
  %v5800 = vadd.f32 %v5784, %v5792
  %v5801 = vadd.f32 %v5785, %v5793
  %v5802 = vadd.f32 %v5786, %v5794
  %s5803 = scalar_lea.vmem [#allocation2], 2048
  %v5804 = vld [vmem:[%s5803] sm:$0xff]
  %v5805 = vld [vmem:[%s5803 + $0x8] sm:$0xff]
  %v5806 = vld [vmem:[%s5803 + $0x10] sm:$0x3f]
  %v5807 = vld [vmem:[%s5803 + $0x18] sm:$0x3f]
  %v5808 = vld [vmem:[%s5803 + $0x20] sm:$0xff]
  %v5809 = vld [vmem:[%s5803 + $0x28] sm:$0xff]
  %v5810 = vld [vmem:[%s5803 + $0x30] sm:$0x3f]
  %v5811 = vld [vmem:[%s5803 + $0x38] sm:$0x3f]
  %v5812 = vld [vmem:[%s5803 + $0x40] sm:$0xff]
  %v5813 = vld [vmem:[%s5803 + $0x48] sm:$0xff]
  %v5814 = vld [vmem:[%s5803 + $0x50] sm:$0x3f]
  %v5815 = vld [vmem:[%s5803 + $0x58] sm:$0x3f]
  %v5816 = vld [vmem:[%s5803 + $0x60] sm:$0xff]
  %v5817 = vld [vmem:[%s5803 + $0x68] sm:$0xff]
  %v5818 = vld [vmem:[%s5803 + $0x70] sm:$0x3f]
  %v5819 = vld [vmem:[%s5803 + $0x78] sm:$0x3f]
  %v5820 = vld [vmem:[%s5803 + $0x80] sm:$0xff]
  %v5821 = vld [vmem:[%s5803 + $0x88] sm:$0xff]
  %v5822 = vld [vmem:[%s5803 + $0x90] sm:$0x3f]
  %v5823 = vld [vmem:[%s5803 + $0x98] sm:$0x3f]
  %v5824 = vld [vmem:[%s5803 + $0xa0] sm:$0xff]
  %v5825 = vld [vmem:[%s5803 + $0xa8] sm:$0xff]
  %v5826 = vld [vmem:[%s5803 + $0xb0] sm:$0x3f]
  %v5827 = vld [vmem:[%s5803 + $0xb8] sm:$0x3f]
  %v5828 = vld [vmem:[%s2662] sm:$0xff]
  %v5829 = vld [vmem:[%s2662 + $0x8] sm:$0xff]
  %v5830 = vld [vmem:[%s2662 + $0x10] sm:$0x3f]
  %v5831 = vld [vmem:[%s2662 + $0x18] sm:$0x3f]
  %v5832 = vld [vmem:[%s2662 + $0x20] sm:$0xff]
  %v5833 = vld [vmem:[%s2662 + $0x28] sm:$0xff]
  %v5834 = vld [vmem:[%s2662 + $0x30] sm:$0x3f]
  %v5835 = vld [vmem:[%s2662 + $0x38] sm:$0x3f]
  %v5836 = vld [vmem:[%s2662 + $0x40] sm:$0xff]
  %v5837 = vld [vmem:[%s2662 + $0x48] sm:$0xff]
  %v5838 = vld [vmem:[%s2662 + $0x50] sm:$0x3f]
  %v5839 = vld [vmem:[%s2662 + $0x58] sm:$0x3f]
  %v5840 = vld [vmem:[%s2662 + $0x60] sm:$0xff]
  %v5841 = vld [vmem:[%s2662 + $0x68] sm:$0xff]
  %v5842 = vld [vmem:[%s2662 + $0x70] sm:$0x3f]
  %v5843 = vld [vmem:[%s2662 + $0x78] sm:$0x3f]
  %v5844 = vld [vmem:[%s2662 + $0x80] sm:$0xff]
  %v5845 = vld [vmem:[%s2662 + $0x88] sm:$0xff]
  %v5846 = vld [vmem:[%s2662 + $0x90] sm:$0x3f]
  %v5847 = vld [vmem:[%s2662 + $0x98] sm:$0x3f]
  %v5848 = vmul.f32 %v5804, %v5828
  %v5849 = vmul.f32 %v5805, %v5829
  %v5850 = vmul.f32 %v5806, %v5830
  %v5851 = vmul.f32 %v5807, %v5831
  %v5852 = vmul.f32 %v5808, %v5828
  %v5853 = vmul.f32 %v5809, %v5829
  %v5854 = vmul.f32 %v5810, %v5830
  %v5855 = vmul.f32 %v5811, %v5831
  %v5856 = vadd.f32 %v5795, %v5848
  %v5857 = vadd.f32 %v5796, %v5849
  %v5858 = vadd.f32 %v5797, %v5850
  %v5859 = vadd.f32 %v5798, %v5851
  %v5860 = vadd.f32 %v5799, %v5852
  %v5861 = vadd.f32 %v5800, %v5853
  %v5862 = vadd.f32 %v5801, %v5854
  %v5863 = vadd.f32 %v5802, %v5855
  %v5864 = vmul.f32 %v5808, %v5832
  %v5865 = vmul.f32 %v5809, %v5833
  %v5866 = vmul.f32 %v5810, %v5834
  %v5867 = vmul.f32 %v5811, %v5835
  %v5868 = vmul.f32 %v5812, %v5832
  %v5869 = vmul.f32 %v5813, %v5833
  %v5870 = vmul.f32 %v5814, %v5834
  %v5871 = vmul.f32 %v5815, %v5835
  %v5872 = vadd.f32 %v5856, %v5864
  %v5873 = vadd.f32 %v5857, %v5865
  %v5874 = vadd.f32 %v5858, %v5866
  %v5875 = vadd.f32 %v5859, %v5867
  %v5876 = vadd.f32 %v5860, %v5868
  %v5877 = vadd.f32 %v5861, %v5869
  %v5878 = vadd.f32 %v5862, %v5870
  %v5879 = vadd.f32 %v5863, %v5871
  %v5880 = vmul.f32 %v5812, %v5836
  %v5881 = vmul.f32 %v5813, %v5837
  %v5882 = vmul.f32 %v5814, %v5838
  %v5883 = vmul.f32 %v5815, %v5839
  %v5884 = vmul.f32 %v5816, %v5836
  %v5885 = vmul.f32 %v5817, %v5837
  %v5886 = vmul.f32 %v5818, %v5838
  %v5887 = vmul.f32 %v5819, %v5839
  %v5888 = vadd.f32 %v5872, %v5880
  %v5889 = vadd.f32 %v5873, %v5881
  %v5890 = vadd.f32 %v5874, %v5882
  %v5891 = vadd.f32 %v5875, %v5883
  %v5892 = vadd.f32 %v5876, %v5884
  %v5893 = vadd.f32 %v5877, %v5885
  %v5894 = vadd.f32 %v5878, %v5886
  %v5895 = vadd.f32 %v5879, %v5887
  %v5896 = vmul.f32 %v5816, %v5840
  %v5897 = vmul.f32 %v5817, %v5841
  %v5898 = vmul.f32 %v5818, %v5842
  %v5899 = vmul.f32 %v5819, %v5843
  %v5900 = vmul.f32 %v5820, %v5840
  %v5901 = vmul.f32 %v5821, %v5841
  %v5902 = vmul.f32 %v5822, %v5842
  %v5903 = vmul.f32 %v5823, %v5843
  %v5904 = vadd.f32 %v5888, %v5896
  %v5905 = vadd.f32 %v5889, %v5897
  %v5906 = vadd.f32 %v5890, %v5898
  %v5907 = vadd.f32 %v5891, %v5899
  %v5908 = vadd.f32 %v5892, %v5900
  %v5909 = vadd.f32 %v5893, %v5901
  %v5910 = vadd.f32 %v5894, %v5902
  %v5911 = vadd.f32 %v5895, %v5903
  %v5912 = vmul.f32 %v5820, %v5844
  %v5913 = vmul.f32 %v5821, %v5845
  %v5914 = vmul.f32 %v5822, %v5846
  %v5915 = vmul.f32 %v5823, %v5847
  %v5916 = vmul.f32 %v5824, %v5844
  %v5917 = vmul.f32 %v5825, %v5845
  %v5918 = vmul.f32 %v5826, %v5846
  %v5919 = vmul.f32 %v5827, %v5847
  %v5920 = vadd.f32 %v5904, %v5912
  %v5921 = vadd.f32 %v5905, %v5913
  %v5922 = vadd.f32 %v5906, %v5914
  %v5923 = vadd.f32 %v5907, %v5915
  %v5924 = vadd.f32 %v5908, %v5916
  %v5925 = vadd.f32 %v5909, %v5917
  %v5926 = vadd.f32 %v5910, %v5918
  %v5927 = vadd.f32 %v5911, %v5919
  %s5928 = scalar_lea.vmem [#allocation2], 2624
  %v5929 = vld [vmem:[%s5928] sm:$0xff]
  %v5930 = vld [vmem:[%s5928 + $0x8] sm:$0xff]
  %v5931 = vld [vmem:[%s5928 + $0x10] sm:$0x3f]
  %v5932 = vld [vmem:[%s5928 + $0x18] sm:$0x3f]
  %v5933 = vld [vmem:[%s5928 + $0x20] sm:$0xff]
  %v5934 = vld [vmem:[%s5928 + $0x28] sm:$0xff]
  %v5935 = vld [vmem:[%s5928 + $0x30] sm:$0x3f]
  %v5936 = vld [vmem:[%s5928 + $0x38] sm:$0x3f]
  %v5937 = vld [vmem:[%s5928 + $0x40] sm:$0xff]
  %v5938 = vld [vmem:[%s5928 + $0x48] sm:$0xff]
  %v5939 = vld [vmem:[%s5928 + $0x50] sm:$0x3f]
  %v5940 = vld [vmem:[%s5928 + $0x58] sm:$0x3f]
  %v5941 = vld [vmem:[%s5928 + $0x60] sm:$0xff]
  %v5942 = vld [vmem:[%s5928 + $0x68] sm:$0xff]
  %v5943 = vld [vmem:[%s5928 + $0x70] sm:$0x3f]
  %v5944 = vld [vmem:[%s5928 + $0x78] sm:$0x3f]
  %v5945 = vld [vmem:[%s5928 + $0x80] sm:$0xff]
  %v5946 = vld [vmem:[%s5928 + $0x88] sm:$0xff]
  %v5947 = vld [vmem:[%s5928 + $0x90] sm:$0x3f]
  %v5948 = vld [vmem:[%s5928 + $0x98] sm:$0x3f]
  %v5949 = vld [vmem:[%s5928 + $0xa0] sm:$0xff]
  %v5950 = vld [vmem:[%s5928 + $0xa8] sm:$0xff]
  %v5951 = vld [vmem:[%s5928 + $0xb0] sm:$0x3f]
  %v5952 = vld [vmem:[%s5928 + $0xb8] sm:$0x3f]
  %v5953 = vld [vmem:[%s2788] sm:$0xff]
  %v5954 = vld [vmem:[%s2788 + $0x8] sm:$0xff]
  %v5955 = vld [vmem:[%s2788 + $0x10] sm:$0x3f]
  %v5956 = vld [vmem:[%s2788 + $0x18] sm:$0x3f]
  %v5957 = vld [vmem:[%s2788 + $0x20] sm:$0xff]
  %v5958 = vld [vmem:[%s2788 + $0x28] sm:$0xff]
  %v5959 = vld [vmem:[%s2788 + $0x30] sm:$0x3f]
  %v5960 = vld [vmem:[%s2788 + $0x38] sm:$0x3f]
  %v5961 = vld [vmem:[%s2788 + $0x40] sm:$0xff]
  %v5962 = vld [vmem:[%s2788 + $0x48] sm:$0xff]
  %v5963 = vld [vmem:[%s2788 + $0x50] sm:$0x3f]
  %v5964 = vld [vmem:[%s2788 + $0x58] sm:$0x3f]
  %v5965 = vld [vmem:[%s2788 + $0x60] sm:$0xff]
  %v5966 = vld [vmem:[%s2788 + $0x68] sm:$0xff]
  %v5967 = vld [vmem:[%s2788 + $0x70] sm:$0x3f]
  %v5968 = vld [vmem:[%s2788 + $0x78] sm:$0x3f]
  %v5969 = vld [vmem:[%s2788 + $0x80] sm:$0xff]
  %v5970 = vld [vmem:[%s2788 + $0x88] sm:$0xff]
  %v5971 = vld [vmem:[%s2788 + $0x90] sm:$0x3f]
  %v5972 = vld [vmem:[%s2788 + $0x98] sm:$0x3f]
  %v5973 = vmul.f32 %v5929, %v5953
  %v5974 = vmul.f32 %v5930, %v5954
  %v5975 = vmul.f32 %v5931, %v5955
  %v5976 = vmul.f32 %v5932, %v5956
  %v5977 = vmul.f32 %v5933, %v5953
  %v5978 = vmul.f32 %v5934, %v5954
  %v5979 = vmul.f32 %v5935, %v5955
  %v5980 = vmul.f32 %v5936, %v5956
  %v5981 = vadd.f32 %v5920, %v5973
  %v5982 = vadd.f32 %v5921, %v5974
  %v5983 = vadd.f32 %v5922, %v5975
  %v5984 = vadd.f32 %v5923, %v5976
  %v5985 = vadd.f32 %v5924, %v5977
  %v5986 = vadd.f32 %v5925, %v5978
  %v5987 = vadd.f32 %v5926, %v5979
  %v5988 = vadd.f32 %v5927, %v5980
  %v5989 = vmul.f32 %v5933, %v5957
  %v5990 = vmul.f32 %v5934, %v5958
  %v5991 = vmul.f32 %v5935, %v5959
  %v5992 = vmul.f32 %v5936, %v5960
  %v5993 = vmul.f32 %v5937, %v5957
  %v5994 = vmul.f32 %v5938, %v5958
  %v5995 = vmul.f32 %v5939, %v5959
  %v5996 = vmul.f32 %v5940, %v5960
  %v5997 = vadd.f32 %v5981, %v5989
  %v5998 = vadd.f32 %v5982, %v5990
  %v5999 = vadd.f32 %v5983, %v5991
  %v6000 = vadd.f32 %v5984, %v5992
  %v6001 = vadd.f32 %v5985, %v5993
  %v6002 = vadd.f32 %v5986, %v5994
  %v6003 = vadd.f32 %v5987, %v5995
  %v6004 = vadd.f32 %v5988, %v5996
  %v6005 = vmul.f32 %v5937, %v5961
  %v6006 = vmul.f32 %v5938, %v5962
  %v6007 = vmul.f32 %v5939, %v5963
  %v6008 = vmul.f32 %v5940, %v5964
  %v6009 = vmul.f32 %v5941, %v5961
  %v6010 = vmul.f32 %v5942, %v5962
  %v6011 = vmul.f32 %v5943, %v5963
  %v6012 = vmul.f32 %v5944, %v5964
  %v6013 = vadd.f32 %v5997, %v6005
  %v6014 = vadd.f32 %v5998, %v6006
  %v6015 = vadd.f32 %v5999, %v6007
  %v6016 = vadd.f32 %v6000, %v6008
  %v6017 = vadd.f32 %v6001, %v6009
  %v6018 = vadd.f32 %v6002, %v6010
  %v6019 = vadd.f32 %v6003, %v6011
  %v6020 = vadd.f32 %v6004, %v6012
  %v6021 = vmul.f32 %v5941, %v5965
  %v6022 = vmul.f32 %v5942, %v5966
  %v6023 = vmul.f32 %v5943, %v5967
  %v6024 = vmul.f32 %v5944, %v5968
  %v6025 = vmul.f32 %v5945, %v5965
  %v6026 = vmul.f32 %v5946, %v5966
  %v6027 = vmul.f32 %v5947, %v5967
  %v6028 = vmul.f32 %v5948, %v5968
  %v6029 = vadd.f32 %v6013, %v6021
  %v6030 = vadd.f32 %v6014, %v6022
  %v6031 = vadd.f32 %v6015, %v6023
  %v6032 = vadd.f32 %v6016, %v6024
  %v6033 = vadd.f32 %v6017, %v6025
  %v6034 = vadd.f32 %v6018, %v6026
  %v6035 = vadd.f32 %v6019, %v6027
  %v6036 = vadd.f32 %v6020, %v6028
  %v6037 = vmul.f32 %v5945, %v5969
  %v6038 = vmul.f32 %v5946, %v5970
  %v6039 = vmul.f32 %v5947, %v5971
  %v6040 = vmul.f32 %v5948, %v5972
  %v6041 = vmul.f32 %v5949, %v5969
  %v6042 = vmul.f32 %v5950, %v5970
  %v6043 = vmul.f32 %v5951, %v5971
  %v6044 = vmul.f32 %v5952, %v5972
  %v6045 = vadd.f32 %v6029, %v6037
  %v6046 = vadd.f32 %v6030, %v6038
  %v6047 = vadd.f32 %v6031, %v6039
  %v6048 = vadd.f32 %v6032, %v6040
  %v6049 = vadd.f32 %v6033, %v6041
  %v6050 = vadd.f32 %v6034, %v6042
  %v6051 = vadd.f32 %v6035, %v6043
  %v6052 = vadd.f32 %v6036, %v6044
  %s6053 = scalar_lea.vmem %s2, 320
  %6054 = vst [vmem:[%s6053] sm:$0xff] %v6045
  %6055 = vst.msk [vmem:[%s6053 + $0x8] sm:$0xff] %vm443, %v6046
  %6056 = vst [vmem:[%s6053 + $0x10] sm:$0x3f] %v6047
  %6057 = vst.msk [vmem:[%s6053 + $0x18] sm:$0x3f] %vm446, %v6048
  %6058 = vst [vmem:[%s6053 + $0x20] sm:$0xff] %v6049
  %6059 = vst.msk [vmem:[%s6053 + $0x28] sm:$0xff] %vm443, %v6050
  %6060 = vst [vmem:[%s6053 + $0x30] sm:$0x3f] %v6051
  %6061 = vst.msk [vmem:[%s6053 + $0x38] sm:$0x3f] %vm446, %v6052
  %s6062 = scalar_lea.vmem [#allocation2], 384
  %v6063 = vld [vmem:[%s6062] sm:$0xff]
  %v6064 = vld [vmem:[%s6062 + $0x8] sm:$0xff]
  %v6065 = vld [vmem:[%s6062 + $0x10] sm:$0x3f]
  %v6066 = vld [vmem:[%s6062 + $0x18] sm:$0x3f]
  %v6067 = vld [vmem:[%s6062 + $0x20] sm:$0xff]
  %v6068 = vld [vmem:[%s6062 + $0x28] sm:$0xff]
  %v6069 = vld [vmem:[%s6062 + $0x30] sm:$0x3f]
  %v6070 = vld [vmem:[%s6062 + $0x38] sm:$0x3f]
  %v6071 = vld [vmem:[%s6062 + $0x40] sm:$0xff]
  %v6072 = vld [vmem:[%s6062 + $0x48] sm:$0xff]
  %v6073 = vld [vmem:[%s6062 + $0x50] sm:$0x3f]
  %v6074 = vld [vmem:[%s6062 + $0x58] sm:$0x3f]
  %v6075 = vld [vmem:[%s6062 + $0x60] sm:$0xff]
  %v6076 = vld [vmem:[%s6062 + $0x68] sm:$0xff]
  %v6077 = vld [vmem:[%s6062 + $0x70] sm:$0x3f]
  %v6078 = vld [vmem:[%s6062 + $0x78] sm:$0x3f]
  %v6079 = vld [vmem:[%s6062 + $0x80] sm:$0xff]
  %v6080 = vld [vmem:[%s6062 + $0x88] sm:$0xff]
  %v6081 = vld [vmem:[%s6062 + $0x90] sm:$0x3f]
  %v6082 = vld [vmem:[%s6062 + $0x98] sm:$0x3f]
  %v6083 = vld [vmem:[%s6062 + $0xa0] sm:$0xff]
  %v6084 = vld [vmem:[%s6062 + $0xa8] sm:$0xff]
  %v6085 = vld [vmem:[%s6062 + $0xb0] sm:$0x3f]
  %v6086 = vld [vmem:[%s6062 + $0xb8] sm:$0x3f]
  %v6087 = vld [vmem:[#allocation3] sm:$0xff]
  %v6088 = vld [vmem:[#allocation3 + $0x8] sm:$0xff]
  %v6089 = vld [vmem:[#allocation3 + $0x10] sm:$0x3f]
  %v6090 = vld [vmem:[#allocation3 + $0x18] sm:$0x3f]
  %v6091 = vld [vmem:[#allocation3 + $0x20] sm:$0xff]
  %v6092 = vld [vmem:[#allocation3 + $0x28] sm:$0xff]
  %v6093 = vld [vmem:[#allocation3 + $0x30] sm:$0x3f]
  %v6094 = vld [vmem:[#allocation3 + $0x38] sm:$0x3f]
  %v6095 = vld [vmem:[#allocation3 + $0x40] sm:$0xff]
  %v6096 = vld [vmem:[#allocation3 + $0x48] sm:$0xff]
  %v6097 = vld [vmem:[#allocation3 + $0x50] sm:$0x3f]
  %v6098 = vld [vmem:[#allocation3 + $0x58] sm:$0x3f]
  %v6099 = vld [vmem:[#allocation3 + $0x60] sm:$0xff]
  %v6100 = vld [vmem:[#allocation3 + $0x68] sm:$0xff]
  %v6101 = vld [vmem:[#allocation3 + $0x70] sm:$0x3f]
  %v6102 = vld [vmem:[#allocation3 + $0x78] sm:$0x3f]
  %v6103 = vld [vmem:[#allocation3 + $0x80] sm:$0xff]
  %v6104 = vld [vmem:[#allocation3 + $0x88] sm:$0xff]
  %v6105 = vld [vmem:[#allocation3 + $0x90] sm:$0x3f]
  %v6106 = vld [vmem:[#allocation3 + $0x98] sm:$0x3f]
  %v6107 = vmul.f32 %v6063, %v6087
  %v6108 = vmul.f32 %v6064, %v6088
  %v6109 = vmul.f32 %v6065, %v6089
  %v6110 = vmul.f32 %v6066, %v6090
  %v6111 = vmul.f32 %v6067, %v6087
  %v6112 = vmul.f32 %v6068, %v6088
  %v6113 = vmul.f32 %v6069, %v6089
  %v6114 = vmul.f32 %v6070, %v6090
  %v6115 = vadd.f32 %v6107, 0.0
  %v6116 = vadd.f32 %v6108, 0.0
  %v6117 = vadd.f32 %v6109, 0.0
  %v6118 = vadd.f32 %v6110, 0.0
  %v6119 = vadd.f32 %v6111, 0.0
  %v6120 = vadd.f32 %v6112, 0.0
  %v6121 = vadd.f32 %v6113, 0.0
  %v6122 = vadd.f32 %v6114, 0.0
  %v6123 = vmul.f32 %v6067, %v6091
  %v6124 = vmul.f32 %v6068, %v6092
  %v6125 = vmul.f32 %v6069, %v6093
  %v6126 = vmul.f32 %v6070, %v6094
  %v6127 = vmul.f32 %v6071, %v6091
  %v6128 = vmul.f32 %v6072, %v6092
  %v6129 = vmul.f32 %v6073, %v6093
  %v6130 = vmul.f32 %v6074, %v6094
  %v6131 = vadd.f32 %v6115, %v6123
  %v6132 = vadd.f32 %v6116, %v6124
  %v6133 = vadd.f32 %v6117, %v6125
  %v6134 = vadd.f32 %v6118, %v6126
  %v6135 = vadd.f32 %v6119, %v6127
  %v6136 = vadd.f32 %v6120, %v6128
  %v6137 = vadd.f32 %v6121, %v6129
  %v6138 = vadd.f32 %v6122, %v6130
  %v6139 = vmul.f32 %v6071, %v6095
  %v6140 = vmul.f32 %v6072, %v6096
  %v6141 = vmul.f32 %v6073, %v6097
  %v6142 = vmul.f32 %v6074, %v6098
  %v6143 = vmul.f32 %v6075, %v6095
  %v6144 = vmul.f32 %v6076, %v6096
  %v6145 = vmul.f32 %v6077, %v6097
  %v6146 = vmul.f32 %v6078, %v6098
  %v6147 = vadd.f32 %v6131, %v6139
  %v6148 = vadd.f32 %v6132, %v6140
  %v6149 = vadd.f32 %v6133, %v6141
  %v6150 = vadd.f32 %v6134, %v6142
  %v6151 = vadd.f32 %v6135, %v6143
  %v6152 = vadd.f32 %v6136, %v6144
  %v6153 = vadd.f32 %v6137, %v6145
  %v6154 = vadd.f32 %v6138, %v6146
  %v6155 = vmul.f32 %v6075, %v6099
  %v6156 = vmul.f32 %v6076, %v6100
  %v6157 = vmul.f32 %v6077, %v6101
  %v6158 = vmul.f32 %v6078, %v6102
  %v6159 = vmul.f32 %v6079, %v6099
  %v6160 = vmul.f32 %v6080, %v6100
  %v6161 = vmul.f32 %v6081, %v6101
  %v6162 = vmul.f32 %v6082, %v6102
  %v6163 = vadd.f32 %v6147, %v6155
  %v6164 = vadd.f32 %v6148, %v6156
  %v6165 = vadd.f32 %v6149, %v6157
  %v6166 = vadd.f32 %v6150, %v6158
  %v6167 = vadd.f32 %v6151, %v6159
  %v6168 = vadd.f32 %v6152, %v6160
  %v6169 = vadd.f32 %v6153, %v6161
  %v6170 = vadd.f32 %v6154, %v6162
  %v6171 = vmul.f32 %v6079, %v6103
  %v6172 = vmul.f32 %v6080, %v6104
  %v6173 = vmul.f32 %v6081, %v6105
  %v6174 = vmul.f32 %v6082, %v6106
  %v6175 = vmul.f32 %v6083, %v6103
  %v6176 = vmul.f32 %v6084, %v6104
  %v6177 = vmul.f32 %v6085, %v6105
  %v6178 = vmul.f32 %v6086, %v6106
  %v6179 = vadd.f32 %v6163, %v6171
  %v6180 = vadd.f32 %v6164, %v6172
  %v6181 = vadd.f32 %v6165, %v6173
  %v6182 = vadd.f32 %v6166, %v6174
  %v6183 = vadd.f32 %v6167, %v6175
  %v6184 = vadd.f32 %v6168, %v6176
  %v6185 = vadd.f32 %v6169, %v6177
  %v6186 = vadd.f32 %v6170, %v6178
  %s6187 = scalar_lea.vmem [#allocation2], 960
  %v6188 = vld [vmem:[%s6187] sm:$0xff]
  %v6189 = vld [vmem:[%s6187 + $0x8] sm:$0xff]
  %v6190 = vld [vmem:[%s6187 + $0x10] sm:$0x3f]
  %v6191 = vld [vmem:[%s6187 + $0x18] sm:$0x3f]
  %v6192 = vld [vmem:[%s6187 + $0x20] sm:$0xff]
  %v6193 = vld [vmem:[%s6187 + $0x28] sm:$0xff]
  %v6194 = vld [vmem:[%s6187 + $0x30] sm:$0x3f]
  %v6195 = vld [vmem:[%s6187 + $0x38] sm:$0x3f]
  %v6196 = vld [vmem:[%s6187 + $0x40] sm:$0xff]
  %v6197 = vld [vmem:[%s6187 + $0x48] sm:$0xff]
  %v6198 = vld [vmem:[%s6187 + $0x50] sm:$0x3f]
  %v6199 = vld [vmem:[%s6187 + $0x58] sm:$0x3f]
  %v6200 = vld [vmem:[%s6187 + $0x60] sm:$0xff]
  %v6201 = vld [vmem:[%s6187 + $0x68] sm:$0xff]
  %v6202 = vld [vmem:[%s6187 + $0x70] sm:$0x3f]
  %v6203 = vld [vmem:[%s6187 + $0x78] sm:$0x3f]
  %v6204 = vld [vmem:[%s6187 + $0x80] sm:$0xff]
  %v6205 = vld [vmem:[%s6187 + $0x88] sm:$0xff]
  %v6206 = vld [vmem:[%s6187 + $0x90] sm:$0x3f]
  %v6207 = vld [vmem:[%s6187 + $0x98] sm:$0x3f]
  %v6208 = vld [vmem:[%s6187 + $0xa0] sm:$0xff]
  %v6209 = vld [vmem:[%s6187 + $0xa8] sm:$0xff]
  %v6210 = vld [vmem:[%s6187 + $0xb0] sm:$0x3f]
  %v6211 = vld [vmem:[%s6187 + $0xb8] sm:$0x3f]
  %v6212 = vld [vmem:[%s2410] sm:$0xff]
  %v6213 = vld [vmem:[%s2410 + $0x8] sm:$0xff]
  %v6214 = vld [vmem:[%s2410 + $0x10] sm:$0x3f]
  %v6215 = vld [vmem:[%s2410 + $0x18] sm:$0x3f]
  %v6216 = vld [vmem:[%s2410 + $0x20] sm:$0xff]
  %v6217 = vld [vmem:[%s2410 + $0x28] sm:$0xff]
  %v6218 = vld [vmem:[%s2410 + $0x30] sm:$0x3f]
  %v6219 = vld [vmem:[%s2410 + $0x38] sm:$0x3f]
  %v6220 = vld [vmem:[%s2410 + $0x40] sm:$0xff]
  %v6221 = vld [vmem:[%s2410 + $0x48] sm:$0xff]
  %v6222 = vld [vmem:[%s2410 + $0x50] sm:$0x3f]
  %v6223 = vld [vmem:[%s2410 + $0x58] sm:$0x3f]
  %v6224 = vld [vmem:[%s2410 + $0x60] sm:$0xff]
  %v6225 = vld [vmem:[%s2410 + $0x68] sm:$0xff]
  %v6226 = vld [vmem:[%s2410 + $0x70] sm:$0x3f]
  %v6227 = vld [vmem:[%s2410 + $0x78] sm:$0x3f]
  %v6228 = vld [vmem:[%s2410 + $0x80] sm:$0xff]
  %v6229 = vld [vmem:[%s2410 + $0x88] sm:$0xff]
  %v6230 = vld [vmem:[%s2410 + $0x90] sm:$0x3f]
  %v6231 = vld [vmem:[%s2410 + $0x98] sm:$0x3f]
  %v6232 = vmul.f32 %v6188, %v6212
  %v6233 = vmul.f32 %v6189, %v6213
  %v6234 = vmul.f32 %v6190, %v6214
  %v6235 = vmul.f32 %v6191, %v6215
  %v6236 = vmul.f32 %v6192, %v6212
  %v6237 = vmul.f32 %v6193, %v6213
  %v6238 = vmul.f32 %v6194, %v6214
  %v6239 = vmul.f32 %v6195, %v6215
  %v6240 = vadd.f32 %v6179, %v6232
  %v6241 = vadd.f32 %v6180, %v6233
  %v6242 = vadd.f32 %v6181, %v6234
  %v6243 = vadd.f32 %v6182, %v6235
  %v6244 = vadd.f32 %v6183, %v6236
  %v6245 = vadd.f32 %v6184, %v6237
  %v6246 = vadd.f32 %v6185, %v6238
  %v6247 = vadd.f32 %v6186, %v6239
  %v6248 = vmul.f32 %v6192, %v6216
  %v6249 = vmul.f32 %v6193, %v6217
  %v6250 = vmul.f32 %v6194, %v6218
  %v6251 = vmul.f32 %v6195, %v6219
  %v6252 = vmul.f32 %v6196, %v6216
  %v6253 = vmul.f32 %v6197, %v6217
  %v6254 = vmul.f32 %v6198, %v6218
  %v6255 = vmul.f32 %v6199, %v6219
  %v6256 = vadd.f32 %v6240, %v6248
  %v6257 = vadd.f32 %v6241, %v6249
  %v6258 = vadd.f32 %v6242, %v6250
  %v6259 = vadd.f32 %v6243, %v6251
  %v6260 = vadd.f32 %v6244, %v6252
  %v6261 = vadd.f32 %v6245, %v6253
  %v6262 = vadd.f32 %v6246, %v6254
  %v6263 = vadd.f32 %v6247, %v6255
  %v6264 = vmul.f32 %v6196, %v6220
  %v6265 = vmul.f32 %v6197, %v6221
  %v6266 = vmul.f32 %v6198, %v6222
  %v6267 = vmul.f32 %v6199, %v6223
  %v6268 = vmul.f32 %v6200, %v6220
  %v6269 = vmul.f32 %v6201, %v6221
  %v6270 = vmul.f32 %v6202, %v6222
  %v6271 = vmul.f32 %v6203, %v6223
  %v6272 = vadd.f32 %v6256, %v6264
  %v6273 = vadd.f32 %v6257, %v6265
  %v6274 = vadd.f32 %v6258, %v6266
  %v6275 = vadd.f32 %v6259, %v6267
  %v6276 = vadd.f32 %v6260, %v6268
  %v6277 = vadd.f32 %v6261, %v6269
  %v6278 = vadd.f32 %v6262, %v6270
  %v6279 = vadd.f32 %v6263, %v6271
  %v6280 = vmul.f32 %v6200, %v6224
  %v6281 = vmul.f32 %v6201, %v6225
  %v6282 = vmul.f32 %v6202, %v6226
  %v6283 = vmul.f32 %v6203, %v6227
  %v6284 = vmul.f32 %v6204, %v6224
  %v6285 = vmul.f32 %v6205, %v6225
  %v6286 = vmul.f32 %v6206, %v6226
  %v6287 = vmul.f32 %v6207, %v6227
  %v6288 = vadd.f32 %v6272, %v6280
  %v6289 = vadd.f32 %v6273, %v6281
  %v6290 = vadd.f32 %v6274, %v6282
  %v6291 = vadd.f32 %v6275, %v6283
  %v6292 = vadd.f32 %v6276, %v6284
  %v6293 = vadd.f32 %v6277, %v6285
  %v6294 = vadd.f32 %v6278, %v6286
  %v6295 = vadd.f32 %v6279, %v6287
  %v6296 = vmul.f32 %v6204, %v6228
  %v6297 = vmul.f32 %v6205, %v6229
  %v6298 = vmul.f32 %v6206, %v6230
  %v6299 = vmul.f32 %v6207, %v6231
  %v6300 = vmul.f32 %v6208, %v6228
  %v6301 = vmul.f32 %v6209, %v6229
  %v6302 = vmul.f32 %v6210, %v6230
  %v6303 = vmul.f32 %v6211, %v6231
  %v6304 = vadd.f32 %v6288, %v6296
  %v6305 = vadd.f32 %v6289, %v6297
  %v6306 = vadd.f32 %v6290, %v6298
  %v6307 = vadd.f32 %v6291, %v6299
  %v6308 = vadd.f32 %v6292, %v6300
  %v6309 = vadd.f32 %v6293, %v6301
  %v6310 = vadd.f32 %v6294, %v6302
  %v6311 = vadd.f32 %v6295, %v6303
  %s6312 = scalar_lea.vmem [#allocation2], 1536
  %v6313 = vld [vmem:[%s6312] sm:$0xff]
  %v6314 = vld [vmem:[%s6312 + $0x8] sm:$0xff]
  %v6315 = vld [vmem:[%s6312 + $0x10] sm:$0x3f]
  %v6316 = vld [vmem:[%s6312 + $0x18] sm:$0x3f]
  %v6317 = vld [vmem:[%s6312 + $0x20] sm:$0xff]
  %v6318 = vld [vmem:[%s6312 + $0x28] sm:$0xff]
  %v6319 = vld [vmem:[%s6312 + $0x30] sm:$0x3f]
  %v6320 = vld [vmem:[%s6312 + $0x38] sm:$0x3f]
  %v6321 = vld [vmem:[%s6312 + $0x40] sm:$0xff]
  %v6322 = vld [vmem:[%s6312 + $0x48] sm:$0xff]
  %v6323 = vld [vmem:[%s6312 + $0x50] sm:$0x3f]
  %v6324 = vld [vmem:[%s6312 + $0x58] sm:$0x3f]
  %v6325 = vld [vmem:[%s6312 + $0x60] sm:$0xff]
  %v6326 = vld [vmem:[%s6312 + $0x68] sm:$0xff]
  %v6327 = vld [vmem:[%s6312 + $0x70] sm:$0x3f]
  %v6328 = vld [vmem:[%s6312 + $0x78] sm:$0x3f]
  %v6329 = vld [vmem:[%s6312 + $0x80] sm:$0xff]
  %v6330 = vld [vmem:[%s6312 + $0x88] sm:$0xff]
  %v6331 = vld [vmem:[%s6312 + $0x90] sm:$0x3f]
  %v6332 = vld [vmem:[%s6312 + $0x98] sm:$0x3f]
  %v6333 = vld [vmem:[%s6312 + $0xa0] sm:$0xff]
  %v6334 = vld [vmem:[%s6312 + $0xa8] sm:$0xff]
  %v6335 = vld [vmem:[%s6312 + $0xb0] sm:$0x3f]
  %v6336 = vld [vmem:[%s6312 + $0xb8] sm:$0x3f]
  %v6337 = vld [vmem:[%s2536] sm:$0xff]
  %v6338 = vld [vmem:[%s2536 + $0x8] sm:$0xff]
  %v6339 = vld [vmem:[%s2536 + $0x10] sm:$0x3f]
  %v6340 = vld [vmem:[%s2536 + $0x18] sm:$0x3f]
  %v6341 = vld [vmem:[%s2536 + $0x20] sm:$0xff]
  %v6342 = vld [vmem:[%s2536 + $0x28] sm:$0xff]
  %v6343 = vld [vmem:[%s2536 + $0x30] sm:$0x3f]
  %v6344 = vld [vmem:[%s2536 + $0x38] sm:$0x3f]
  %v6345 = vld [vmem:[%s2536 + $0x40] sm:$0xff]
  %v6346 = vld [vmem:[%s2536 + $0x48] sm:$0xff]
  %v6347 = vld [vmem:[%s2536 + $0x50] sm:$0x3f]
  %v6348 = vld [vmem:[%s2536 + $0x58] sm:$0x3f]
  %v6349 = vld [vmem:[%s2536 + $0x60] sm:$0xff]
  %v6350 = vld [vmem:[%s2536 + $0x68] sm:$0xff]
  %v6351 = vld [vmem:[%s2536 + $0x70] sm:$0x3f]
  %v6352 = vld [vmem:[%s2536 + $0x78] sm:$0x3f]
  %v6353 = vld [vmem:[%s2536 + $0x80] sm:$0xff]
  %v6354 = vld [vmem:[%s2536 + $0x88] sm:$0xff]
  %v6355 = vld [vmem:[%s2536 + $0x90] sm:$0x3f]
  %v6356 = vld [vmem:[%s2536 + $0x98] sm:$0x3f]
  %v6357 = vmul.f32 %v6313, %v6337
  %v6358 = vmul.f32 %v6314, %v6338
  %v6359 = vmul.f32 %v6315, %v6339
  %v6360 = vmul.f32 %v6316, %v6340
  %v6361 = vmul.f32 %v6317, %v6337
  %v6362 = vmul.f32 %v6318, %v6338
  %v6363 = vmul.f32 %v6319, %v6339
  %v6364 = vmul.f32 %v6320, %v6340
  %v6365 = vadd.f32 %v6304, %v6357
  %v6366 = vadd.f32 %v6305, %v6358
  %v6367 = vadd.f32 %v6306, %v6359
  %v6368 = vadd.f32 %v6307, %v6360
  %v6369 = vadd.f32 %v6308, %v6361
  %v6370 = vadd.f32 %v6309, %v6362
  %v6371 = vadd.f32 %v6310, %v6363
  %v6372 = vadd.f32 %v6311, %v6364
  %v6373 = vmul.f32 %v6317, %v6341
  %v6374 = vmul.f32 %v6318, %v6342
  %v6375 = vmul.f32 %v6319, %v6343
  %v6376 = vmul.f32 %v6320, %v6344
  %v6377 = vmul.f32 %v6321, %v6341
  %v6378 = vmul.f32 %v6322, %v6342
  %v6379 = vmul.f32 %v6323, %v6343
  %v6380 = vmul.f32 %v6324, %v6344
  %v6381 = vadd.f32 %v6365, %v6373
  %v6382 = vadd.f32 %v6366, %v6374
  %v6383 = vadd.f32 %v6367, %v6375
  %v6384 = vadd.f32 %v6368, %v6376
  %v6385 = vadd.f32 %v6369, %v6377
  %v6386 = vadd.f32 %v6370, %v6378
  %v6387 = vadd.f32 %v6371, %v6379
  %v6388 = vadd.f32 %v6372, %v6380
  %v6389 = vmul.f32 %v6321, %v6345
  %v6390 = vmul.f32 %v6322, %v6346
  %v6391 = vmul.f32 %v6323, %v6347
  %v6392 = vmul.f32 %v6324, %v6348
  %v6393 = vmul.f32 %v6325, %v6345
  %v6394 = vmul.f32 %v6326, %v6346
  %v6395 = vmul.f32 %v6327, %v6347
  %v6396 = vmul.f32 %v6328, %v6348
  %v6397 = vadd.f32 %v6381, %v6389
  %v6398 = vadd.f32 %v6382, %v6390
  %v6399 = vadd.f32 %v6383, %v6391
  %v6400 = vadd.f32 %v6384, %v6392
  %v6401 = vadd.f32 %v6385, %v6393
  %v6402 = vadd.f32 %v6386, %v6394
  %v6403 = vadd.f32 %v6387, %v6395
  %v6404 = vadd.f32 %v6388, %v6396
  %v6405 = vmul.f32 %v6325, %v6349
  %v6406 = vmul.f32 %v6326, %v6350
  %v6407 = vmul.f32 %v6327, %v6351
  %v6408 = vmul.f32 %v6328, %v6352
  %v6409 = vmul.f32 %v6329, %v6349
  %v6410 = vmul.f32 %v6330, %v6350
  %v6411 = vmul.f32 %v6331, %v6351
  %v6412 = vmul.f32 %v6332, %v6352
  %v6413 = vadd.f32 %v6397, %v6405
  %v6414 = vadd.f32 %v6398, %v6406
  %v6415 = vadd.f32 %v6399, %v6407
  %v6416 = vadd.f32 %v6400, %v6408
  %v6417 = vadd.f32 %v6401, %v6409
  %v6418 = vadd.f32 %v6402, %v6410
  %v6419 = vadd.f32 %v6403, %v6411
  %v6420 = vadd.f32 %v6404, %v6412
  %v6421 = vmul.f32 %v6329, %v6353
  %v6422 = vmul.f32 %v6330, %v6354
  %v6423 = vmul.f32 %v6331, %v6355
  %v6424 = vmul.f32 %v6332, %v6356
  %v6425 = vmul.f32 %v6333, %v6353
  %v6426 = vmul.f32 %v6334, %v6354
  %v6427 = vmul.f32 %v6335, %v6355
  %v6428 = vmul.f32 %v6336, %v6356
  %v6429 = vadd.f32 %v6413, %v6421
  %v6430 = vadd.f32 %v6414, %v6422
  %v6431 = vadd.f32 %v6415, %v6423
  %v6432 = vadd.f32 %v6416, %v6424
  %v6433 = vadd.f32 %v6417, %v6425
  %v6434 = vadd.f32 %v6418, %v6426
  %v6435 = vadd.f32 %v6419, %v6427
  %v6436 = vadd.f32 %v6420, %v6428
  %s6437 = scalar_lea.vmem [#allocation2], 2112
  %v6438 = vld [vmem:[%s6437] sm:$0xff]
  %v6439 = vld [vmem:[%s6437 + $0x8] sm:$0xff]
  %v6440 = vld [vmem:[%s6437 + $0x10] sm:$0x3f]
  %v6441 = vld [vmem:[%s6437 + $0x18] sm:$0x3f]
  %v6442 = vld [vmem:[%s6437 + $0x20] sm:$0xff]
  %v6443 = vld [vmem:[%s6437 + $0x28] sm:$0xff]
  %v6444 = vld [vmem:[%s6437 + $0x30] sm:$0x3f]
  %v6445 = vld [vmem:[%s6437 + $0x38] sm:$0x3f]
  %v6446 = vld [vmem:[%s6437 + $0x40] sm:$0xff]
  %v6447 = vld [vmem:[%s6437 + $0x48] sm:$0xff]
  %v6448 = vld [vmem:[%s6437 + $0x50] sm:$0x3f]
  %v6449 = vld [vmem:[%s6437 + $0x58] sm:$0x3f]
  %v6450 = vld [vmem:[%s6437 + $0x60] sm:$0xff]
  %v6451 = vld [vmem:[%s6437 + $0x68] sm:$0xff]
  %v6452 = vld [vmem:[%s6437 + $0x70] sm:$0x3f]
  %v6453 = vld [vmem:[%s6437 + $0x78] sm:$0x3f]
  %v6454 = vld [vmem:[%s6437 + $0x80] sm:$0xff]
  %v6455 = vld [vmem:[%s6437 + $0x88] sm:$0xff]
  %v6456 = vld [vmem:[%s6437 + $0x90] sm:$0x3f]
  %v6457 = vld [vmem:[%s6437 + $0x98] sm:$0x3f]
  %v6458 = vld [vmem:[%s6437 + $0xa0] sm:$0xff]
  %v6459 = vld [vmem:[%s6437 + $0xa8] sm:$0xff]
  %v6460 = vld [vmem:[%s6437 + $0xb0] sm:$0x3f]
  %v6461 = vld [vmem:[%s6437 + $0xb8] sm:$0x3f]
  %v6462 = vld [vmem:[%s2662] sm:$0xff]
  %v6463 = vld [vmem:[%s2662 + $0x8] sm:$0xff]
  %v6464 = vld [vmem:[%s2662 + $0x10] sm:$0x3f]
  %v6465 = vld [vmem:[%s2662 + $0x18] sm:$0x3f]
  %v6466 = vld [vmem:[%s2662 + $0x20] sm:$0xff]
  %v6467 = vld [vmem:[%s2662 + $0x28] sm:$0xff]
  %v6468 = vld [vmem:[%s2662 + $0x30] sm:$0x3f]
  %v6469 = vld [vmem:[%s2662 + $0x38] sm:$0x3f]
  %v6470 = vld [vmem:[%s2662 + $0x40] sm:$0xff]
  %v6471 = vld [vmem:[%s2662 + $0x48] sm:$0xff]
  %v6472 = vld [vmem:[%s2662 + $0x50] sm:$0x3f]
  %v6473 = vld [vmem:[%s2662 + $0x58] sm:$0x3f]
  %v6474 = vld [vmem:[%s2662 + $0x60] sm:$0xff]
  %v6475 = vld [vmem:[%s2662 + $0x68] sm:$0xff]
  %v6476 = vld [vmem:[%s2662 + $0x70] sm:$0x3f]
  %v6477 = vld [vmem:[%s2662 + $0x78] sm:$0x3f]
  %v6478 = vld [vmem:[%s2662 + $0x80] sm:$0xff]
  %v6479 = vld [vmem:[%s2662 + $0x88] sm:$0xff]
  %v6480 = vld [vmem:[%s2662 + $0x90] sm:$0x3f]
  %v6481 = vld [vmem:[%s2662 + $0x98] sm:$0x3f]
  %v6482 = vmul.f32 %v6438, %v6462
  %v6483 = vmul.f32 %v6439, %v6463
  %v6484 = vmul.f32 %v6440, %v6464
  %v6485 = vmul.f32 %v6441, %v6465
  %v6486 = vmul.f32 %v6442, %v6462
  %v6487 = vmul.f32 %v6443, %v6463
  %v6488 = vmul.f32 %v6444, %v6464
  %v6489 = vmul.f32 %v6445, %v6465
  %v6490 = vadd.f32 %v6429, %v6482
  %v6491 = vadd.f32 %v6430, %v6483
  %v6492 = vadd.f32 %v6431, %v6484
  %v6493 = vadd.f32 %v6432, %v6485
  %v6494 = vadd.f32 %v6433, %v6486
  %v6495 = vadd.f32 %v6434, %v6487
  %v6496 = vadd.f32 %v6435, %v6488
  %v6497 = vadd.f32 %v6436, %v6489
  %v6498 = vmul.f32 %v6442, %v6466
  %v6499 = vmul.f32 %v6443, %v6467
  %v6500 = vmul.f32 %v6444, %v6468
  %v6501 = vmul.f32 %v6445, %v6469
  %v6502 = vmul.f32 %v6446, %v6466
  %v6503 = vmul.f32 %v6447, %v6467
  %v6504 = vmul.f32 %v6448, %v6468
  %v6505 = vmul.f32 %v6449, %v6469
  %v6506 = vadd.f32 %v6490, %v6498
  %v6507 = vadd.f32 %v6491, %v6499
  %v6508 = vadd.f32 %v6492, %v6500
  %v6509 = vadd.f32 %v6493, %v6501
  %v6510 = vadd.f32 %v6494, %v6502
  %v6511 = vadd.f32 %v6495, %v6503
  %v6512 = vadd.f32 %v6496, %v6504
  %v6513 = vadd.f32 %v6497, %v6505
  %v6514 = vmul.f32 %v6446, %v6470
  %v6515 = vmul.f32 %v6447, %v6471
  %v6516 = vmul.f32 %v6448, %v6472
  %v6517 = vmul.f32 %v6449, %v6473
  %v6518 = vmul.f32 %v6450, %v6470
  %v6519 = vmul.f32 %v6451, %v6471
  %v6520 = vmul.f32 %v6452, %v6472
  %v6521 = vmul.f32 %v6453, %v6473
  %v6522 = vadd.f32 %v6506, %v6514
  %v6523 = vadd.f32 %v6507, %v6515
  %v6524 = vadd.f32 %v6508, %v6516
  %v6525 = vadd.f32 %v6509, %v6517
  %v6526 = vadd.f32 %v6510, %v6518
  %v6527 = vadd.f32 %v6511, %v6519
  %v6528 = vadd.f32 %v6512, %v6520
  %v6529 = vadd.f32 %v6513, %v6521
  %v6530 = vmul.f32 %v6450, %v6474
  %v6531 = vmul.f32 %v6451, %v6475
  %v6532 = vmul.f32 %v6452, %v6476
  %v6533 = vmul.f32 %v6453, %v6477
  %v6534 = vmul.f32 %v6454, %v6474
  %v6535 = vmul.f32 %v6455, %v6475
  %v6536 = vmul.f32 %v6456, %v6476
  %v6537 = vmul.f32 %v6457, %v6477
  %v6538 = vadd.f32 %v6522, %v6530
  %v6539 = vadd.f32 %v6523, %v6531
  %v6540 = vadd.f32 %v6524, %v6532
  %v6541 = vadd.f32 %v6525, %v6533
  %v6542 = vadd.f32 %v6526, %v6534
  %v6543 = vadd.f32 %v6527, %v6535
  %v6544 = vadd.f32 %v6528, %v6536
  %v6545 = vadd.f32 %v6529, %v6537
  %v6546 = vmul.f32 %v6454, %v6478
  %v6547 = vmul.f32 %v6455, %v6479
  %v6548 = vmul.f32 %v6456, %v6480
  %v6549 = vmul.f32 %v6457, %v6481
  %v6550 = vmul.f32 %v6458, %v6478
  %v6551 = vmul.f32 %v6459, %v6479
  %v6552 = vmul.f32 %v6460, %v6480
  %v6553 = vmul.f32 %v6461, %v6481
  %v6554 = vadd.f32 %v6538, %v6546
  %v6555 = vadd.f32 %v6539, %v6547
  %v6556 = vadd.f32 %v6540, %v6548
  %v6557 = vadd.f32 %v6541, %v6549
  %v6558 = vadd.f32 %v6542, %v6550
  %v6559 = vadd.f32 %v6543, %v6551
  %v6560 = vadd.f32 %v6544, %v6552
  %v6561 = vadd.f32 %v6545, %v6553
  %s6562 = scalar_lea.vmem [#allocation2], 2688
  %v6563 = vld [vmem:[%s6562] sm:$0xff]
  %v6564 = vld [vmem:[%s6562 + $0x8] sm:$0xff]
  %v6565 = vld [vmem:[%s6562 + $0x10] sm:$0x3f]
  %v6566 = vld [vmem:[%s6562 + $0x18] sm:$0x3f]
  %v6567 = vld [vmem:[%s6562 + $0x20] sm:$0xff]
  %v6568 = vld [vmem:[%s6562 + $0x28] sm:$0xff]
  %v6569 = vld [vmem:[%s6562 + $0x30] sm:$0x3f]
  %v6570 = vld [vmem:[%s6562 + $0x38] sm:$0x3f]
  %v6571 = vld [vmem:[%s6562 + $0x40] sm:$0xff]
  %v6572 = vld [vmem:[%s6562 + $0x48] sm:$0xff]
  %v6573 = vld [vmem:[%s6562 + $0x50] sm:$0x3f]
  %v6574 = vld [vmem:[%s6562 + $0x58] sm:$0x3f]
  %v6575 = vld [vmem:[%s6562 + $0x60] sm:$0xff]
  %v6576 = vld [vmem:[%s6562 + $0x68] sm:$0xff]
  %v6577 = vld [vmem:[%s6562 + $0x70] sm:$0x3f]
  %v6578 = vld [vmem:[%s6562 + $0x78] sm:$0x3f]
  %v6579 = vld [vmem:[%s6562 + $0x80] sm:$0xff]
  %v6580 = vld [vmem:[%s6562 + $0x88] sm:$0xff]
  %v6581 = vld [vmem:[%s6562 + $0x90] sm:$0x3f]
  %v6582 = vld [vmem:[%s6562 + $0x98] sm:$0x3f]
  %v6583 = vld [vmem:[%s6562 + $0xa0] sm:$0xff]
  %v6584 = vld [vmem:[%s6562 + $0xa8] sm:$0xff]
  %v6585 = vld [vmem:[%s6562 + $0xb0] sm:$0x3f]
  %v6586 = vld [vmem:[%s6562 + $0xb8] sm:$0x3f]
  %v6587 = vld [vmem:[%s2788] sm:$0xff]
  %v6588 = vld [vmem:[%s2788 + $0x8] sm:$0xff]
  %v6589 = vld [vmem:[%s2788 + $0x10] sm:$0x3f]
  %v6590 = vld [vmem:[%s2788 + $0x18] sm:$0x3f]
  %v6591 = vld [vmem:[%s2788 + $0x20] sm:$0xff]
  %v6592 = vld [vmem:[%s2788 + $0x28] sm:$0xff]
  %v6593 = vld [vmem:[%s2788 + $0x30] sm:$0x3f]
  %v6594 = vld [vmem:[%s2788 + $0x38] sm:$0x3f]
  %v6595 = vld [vmem:[%s2788 + $0x40] sm:$0xff]
  %v6596 = vld [vmem:[%s2788 + $0x48] sm:$0xff]
  %v6597 = vld [vmem:[%s2788 + $0x50] sm:$0x3f]
  %v6598 = vld [vmem:[%s2788 + $0x58] sm:$0x3f]
  %v6599 = vld [vmem:[%s2788 + $0x60] sm:$0xff]
  %v6600 = vld [vmem:[%s2788 + $0x68] sm:$0xff]
  %v6601 = vld [vmem:[%s2788 + $0x70] sm:$0x3f]
  %v6602 = vld [vmem:[%s2788 + $0x78] sm:$0x3f]
  %v6603 = vld [vmem:[%s2788 + $0x80] sm:$0xff]
  %v6604 = vld [vmem:[%s2788 + $0x88] sm:$0xff]
  %v6605 = vld [vmem:[%s2788 + $0x90] sm:$0x3f]
  %v6606 = vld [vmem:[%s2788 + $0x98] sm:$0x3f]
  %v6607 = vmul.f32 %v6563, %v6587
  %v6608 = vmul.f32 %v6564, %v6588
  %v6609 = vmul.f32 %v6565, %v6589
  %v6610 = vmul.f32 %v6566, %v6590
  %v6611 = vmul.f32 %v6567, %v6587
  %v6612 = vmul.f32 %v6568, %v6588
  %v6613 = vmul.f32 %v6569, %v6589
  %v6614 = vmul.f32 %v6570, %v6590
  %v6615 = vadd.f32 %v6554, %v6607
  %v6616 = vadd.f32 %v6555, %v6608
  %v6617 = vadd.f32 %v6556, %v6609
  %v6618 = vadd.f32 %v6557, %v6610
  %v6619 = vadd.f32 %v6558, %v6611
  %v6620 = vadd.f32 %v6559, %v6612
  %v6621 = vadd.f32 %v6560, %v6613
  %v6622 = vadd.f32 %v6561, %v6614
  %v6623 = vmul.f32 %v6567, %v6591
  %v6624 = vmul.f32 %v6568, %v6592
  %v6625 = vmul.f32 %v6569, %v6593
  %v6626 = vmul.f32 %v6570, %v6594
  %v6627 = vmul.f32 %v6571, %v6591
  %v6628 = vmul.f32 %v6572, %v6592
  %v6629 = vmul.f32 %v6573, %v6593
  %v6630 = vmul.f32 %v6574, %v6594
  %v6631 = vadd.f32 %v6615, %v6623
  %v6632 = vadd.f32 %v6616, %v6624
  %v6633 = vadd.f32 %v6617, %v6625
  %v6634 = vadd.f32 %v6618, %v6626
  %v6635 = vadd.f32 %v6619, %v6627
  %v6636 = vadd.f32 %v6620, %v6628
  %v6637 = vadd.f32 %v6621, %v6629
  %v6638 = vadd.f32 %v6622, %v6630
  %v6639 = vmul.f32 %v6571, %v6595
  %v6640 = vmul.f32 %v6572, %v6596
  %v6641 = vmul.f32 %v6573, %v6597
  %v6642 = vmul.f32 %v6574, %v6598
  %v6643 = vmul.f32 %v6575, %v6595
  %v6644 = vmul.f32 %v6576, %v6596
  %v6645 = vmul.f32 %v6577, %v6597
  %v6646 = vmul.f32 %v6578, %v6598
  %v6647 = vadd.f32 %v6631, %v6639
  %v6648 = vadd.f32 %v6632, %v6640
  %v6649 = vadd.f32 %v6633, %v6641
  %v6650 = vadd.f32 %v6634, %v6642
  %v6651 = vadd.f32 %v6635, %v6643
  %v6652 = vadd.f32 %v6636, %v6644
  %v6653 = vadd.f32 %v6637, %v6645
  %v6654 = vadd.f32 %v6638, %v6646
  %v6655 = vmul.f32 %v6575, %v6599
  %v6656 = vmul.f32 %v6576, %v6600
  %v6657 = vmul.f32 %v6577, %v6601
  %v6658 = vmul.f32 %v6578, %v6602
  %v6659 = vmul.f32 %v6579, %v6599
  %v6660 = vmul.f32 %v6580, %v6600
  %v6661 = vmul.f32 %v6581, %v6601
  %v6662 = vmul.f32 %v6582, %v6602
  %v6663 = vadd.f32 %v6647, %v6655
  %v6664 = vadd.f32 %v6648, %v6656
  %v6665 = vadd.f32 %v6649, %v6657
  %v6666 = vadd.f32 %v6650, %v6658
  %v6667 = vadd.f32 %v6651, %v6659
  %v6668 = vadd.f32 %v6652, %v6660
  %v6669 = vadd.f32 %v6653, %v6661
  %v6670 = vadd.f32 %v6654, %v6662
  %v6671 = vmul.f32 %v6579, %v6603
  %v6672 = vmul.f32 %v6580, %v6604
  %v6673 = vmul.f32 %v6581, %v6605
  %v6674 = vmul.f32 %v6582, %v6606
  %v6675 = vmul.f32 %v6583, %v6603
  %v6676 = vmul.f32 %v6584, %v6604
  %v6677 = vmul.f32 %v6585, %v6605
  %v6678 = vmul.f32 %v6586, %v6606
  %v6679 = vadd.f32 %v6663, %v6671
  %v6680 = vadd.f32 %v6664, %v6672
  %v6681 = vadd.f32 %v6665, %v6673
  %v6682 = vadd.f32 %v6666, %v6674
  %v6683 = vadd.f32 %v6667, %v6675
  %v6684 = vadd.f32 %v6668, %v6676
  %v6685 = vadd.f32 %v6669, %v6677
  %v6686 = vadd.f32 %v6670, %v6678
  %s6687 = scalar_lea.vmem %s2, 384
  %6688 = vst [vmem:[%s6687] sm:$0xff] %v6679
  %6689 = vst.msk [vmem:[%s6687 + $0x8] sm:$0xff] %vm443, %v6680
  %6690 = vst [vmem:[%s6687 + $0x10] sm:$0x3f] %v6681
  %6691 = vst.msk [vmem:[%s6687 + $0x18] sm:$0x3f] %vm446, %v6682
  %6692 = vst [vmem:[%s6687 + $0x20] sm:$0xff] %v6683
  %6693 = vst.msk [vmem:[%s6687 + $0x28] sm:$0xff] %vm443, %v6684
  %6694 = vst [vmem:[%s6687 + $0x30] sm:$0x3f] %v6685
  %6695 = vst.msk [vmem:[%s6687 + $0x38] sm:$0x3f] %vm446, %v6686
  // Predicated region
  $region10: #{depthwise_conv2d_pallas.1} parent=0 // pred_check
    _
  $region11: #{depthwise_conv2d_pallas.1} parent=0 // pred_check_branch
    %6697 = sbr.rel (0) target = $region13
  $region12: #{depthwise_conv2d_pallas.1} parent=0 // pred_region
    _
  $region13: #{depthwise_conv2d_pallas.1} parent=0 // pred_fallthru
    _
  // Predicated region
  $region14: #{depthwise_conv2d_pallas.1} parent=0 // pred_check
    _
  $region15: #{depthwise_conv2d_pallas.1} parent=0 // pred_check_branch
    %6699 = sbr.rel (0) target = $region17
  $region16: #{depthwise_conv2d_pallas.1} parent=0 // pred_region
    _
  $region17: #{depthwise_conv2d_pallas.1} parent=0 // pred_fallthru
    _

</llo_original>
